<compile_context>
chip_gen: v5e
topology: v5e:2x2
jax: 0.10.0
libtpu: 0.0.40
codegen_flags: <defaults>
</compile_context>

<pallas_src>
import functools
import math

import jax
import jax.numpy as jnp
from jax.experimental import pallas as pl
from jax.experimental.pallas import tpu as pltpu


def _round_up(n, m):
    return (n + m - 1) // m * m


def _gelu(x):
    # exact (erf-based) GELU, matching torch.nn.GELU default
    return 0.5 * x * (1.0 + jax.lax.erf(x * (1.0 / math.sqrt(2.0))))


def _layernorm(x, gamma, beta, eps=1e-6):
    # standard two-pass LayerNorm (same form in kernel and reference)
    mu = jnp.mean(x, axis=-1, keepdims=True)
    var = jnp.mean(jnp.square(x - mu), axis=-1, keepdims=True)
    return (x - mu) * jax.lax.rsqrt(var + eps) * gamma + beta


def _pos_freq(dim, temperature=10000.0):
    i = jnp.arange(dim, dtype=jnp.float32)
    return temperature ** (2.0 * jnp.floor(i / 2.0) / (dim // 2))


# --------------------------------------------------------------------------
# Pallas kernel: connector (Linear + LayerNorm) -> +pos(in-kernel) -> proj_mlp
# --------------------------------------------------------------------------
def units_head_kernel(x_ref, yx_ref, wc_ref, w1_ref, w2_ref, pv_ref, o_ref,
                      *, dim_dec, dim_hidden):
    Dd = dim_dec
    Dh = dim_hidden
    half = Dd // 2

    # packed per-channel parameters + inv_freq: one (8,128) f32 tile
    bc = pv_ref[0:1, 0:Dd]
    gc = pv_ref[1:2, 0:Dd]
    betac = pv_ref[2:3, 0:Dd]
    gm = pv_ref[3:4, 0:Dd]
    bm = pv_ref[4:5, 0:Dd]
    b2 = pv_ref[5:6, 0:Dd]
    b1 = pv_ref[6:7, 0:Dh]
    invf = pv_ref[7:8, 0:Dd]

    # connector: Linear(dim_enc -> dim_dec) + LayerNorm(eps=1e-6), all f32
    h = jnp.dot(x_ref[...], wc_ref[...], preferred_element_type=jnp.float32) + bc
    h = _layernorm(h, gc, betac)

    # 2D sine positional encoding generated in-kernel (EUP slot) from per-token
    # normalized (y, x) coordinates.  Channel k < half -> y axis, else x axis;
    # even channel -> sin, odd channel -> cos (matches torch stack/flatten order).
    lane = jax.lax.broadcasted_iota(jnp.int32, (1, Dd), 1)
    coord = jnp.where(lane < half, yx_ref[:, 0:1], yx_ref[:, 1:2])
    ang = coord * invf
    pos = jnp.where((lane & 1) == 0, jnp.sin(ang), jnp.cos(ang))
    h = h + pos

    # proj_mlp: one pre-LN residual MLP block, mlp_ratio=4, exact GELU.
    # drop_path / dropout are identity in eval mode.
    ln = _layernorm(h, gm, bm)
    u = jnp.dot(ln, w1_ref[...], preferred_element_type=jnp.float32) + b1
    u = _gelu(u)
    v = jnp.dot(u, w2_ref[...], preferred_element_type=jnp.float32) + b2

    o_ref[...] = (h + v).astype(o_ref.dtype)


def units_head(x_flat, coords_flat, p, tm=128):
    """x_flat: (M, dim_enc) f32, coords_flat: (M, 2) f32 -> (M, dim_dec) f32."""
    M, De = x_flat.shape
    Dd = p["wc"].shape[1]
    Dh = p["w1"].shape[1]
    assert Dd <= 128 and Dh <= 128, "param packing assumes dims fit one 128-lane row"

    # Pack the small per-channel vectors + inv_freq into one (8,128) f32 tile:
    # rows: bc, gc, betac, gm, bm, b2, b1, inv_freq (lanes beyond the real dim are 0).
    half = Dd // 2
    inv_freq = 1.0 / _pos_freq(half)
    inv_freq_full = jnp.concatenate([inv_freq, inv_freq])      # (Dd,)
    pvec = jnp.zeros((8, 128), jnp.float32)
    for r, v in enumerate([p["bc"], p["gc"], p["betac"], p["gm"], p["bm"],
                           p["b2"], p["b1"], inv_freq_full]):
        v = jnp.asarray(v, jnp.float32).reshape(-1)
        pvec = pvec.at[r, : v.shape[0]].set(v)

    # Row padding only if M is not a multiple of tm (no-op at the toy shapes).
    M_p = _round_up(M, tm)
    if M_p != M:
        x_flat = jnp.pad(x_flat, ((0, M_p - M), (0, 0)))
        coords_flat = jnp.pad(coords_flat, ((0, M_p - M), (0, 0)))

    out = pl.pallas_call(
        functools.partial(units_head_kernel, dim_dec=Dd, dim_hidden=Dh),
        out_shape=jax.ShapeDtypeStruct((M_p, Dd), jnp.float32),
        grid_spec=pltpu.PrefetchScalarGridSpec(
            num_scalar_prefetch=0,
            grid=(M_p // tm,),
            in_specs=[
                pl.BlockSpec((tm, De), lambda i: (i, 0)),   # x tile, f32, unpadded lanes
                pl.BlockSpec((tm, 2), lambda i: (i, 0)),    # per-token (y,x) coords
                # grid-invariant weights / packed params (constant block index).
                # TODO(synk): single-buffer these (pipeline_mode=pl.Buffered(1)) once
                # dims grow enough for the double-buffered copies to matter for VMEM.
                pl.BlockSpec((De, Dd), lambda i: (0, 0)),   # connector linear weight
                pl.BlockSpec((Dd, Dh), lambda i: (0, 0)),   # mlp fc1 weight
                pl.BlockSpec((Dh, Dd), lambda i: (0, 0)),   # mlp fc2 weight
                pl.BlockSpec((8, 128), lambda i: (0, 0)),   # packed biases/ln params/inv_freq
            ],
            out_specs=pl.BlockSpec((tm, Dd), lambda i: (i, 0)),
        ),
        compiler_params=pltpu.CompilerParams(
            dimension_semantics=("parallel",),
        ),
    )(x_flat, coords_flat, p["wc"], p["w1"], p["w2"], pvec)

    return out[:M] if M_p != M else out


# --------------------------------------------------------------------------
# mask resize + normalized coordinates (tiny per-level glue, plain JAX)
# --------------------------------------------------------------------------
def _resize_mask_nearest(mask, h, w):
    """F.interpolate(mode='nearest') on a float mask, then != 0."""
    B, H0, W0 = mask.shape
    ih = jnp.floor(jnp.arange(h) * (H0 / h)).astype(jnp.int32)
    iw = jnp.floor(jnp.arange(w) * (W0 / w)).astype(jnp.int32)
    return (mask.astype(jnp.float32)[:, ih][:, :, iw]) != 0.0


def _normalized_grid(mask_resize):
    """(B,h,w) bool padding mask -> normalized (y, x) grids, normalize=True."""
    B, H, W = mask_resize.shape
    not_mask = (~mask_resize).astype(jnp.float32)
    y = jnp.arange(1, H + 1, dtype=jnp.float32).reshape(1, H, 1) * not_mask
    x = jnp.arange(1, W + 1, dtype=jnp.float32).reshape(1, 1, W) * not_mask
    eps = 1e-6
    scale = 2.0 * math.pi
    y = (y - 0.5) / (jnp.max(y, axis=1, keepdims=True) + eps) * scale
    x = (x - 0.5) / (jnp.max(x, axis=2, keepdims=True) + eps) * scale
    return y, x


def compute_pos_coords(shapes, mask):
    """Per-token normalized (y, x) coords -> (B, sum(h*w), 2) f32.
    The dense sin/cos encoding itself is generated inside the Pallas kernel."""
    B = mask.shape[0]
    outs = []
    for (h, w) in shapes:
        mr = _resize_mask_nearest(mask, h, w)
        y, x = _normalized_grid(mr)
        outs.append(jnp.stack([y, x], axis=-1).reshape(B, h * w, 2))
    return jnp.concatenate(outs, axis=1)


# --------------------------------------------------------------------------
# dense positional encoding + pure-JAX reference (correctness check only)
# --------------------------------------------------------------------------
def positional_encoding(mask_resize, dim, temperature=10000.0):
    B, H, W = mask_resize.shape
    y, x = _normalized_grid(mask_resize)
    freq = _pos_freq(dim, temperature)
    pos_x = x[..., None] / freq
    pos_y = y[..., None] / freq
    pos_x = jnp.stack([jnp.sin(pos_x[..., 0::2]), jnp.cos(pos_x[..., 1::2])],
                      axis=4).reshape(B, H, W, dim)
    pos_y = jnp.stack([jnp.sin(pos_y[..., 0::2]), jnp.cos(pos_y[..., 1::2])],
                      axis=4).reshape(B, H, W, dim)
    # torch returns (B, 2*dim, H, W); we keep channels-last token layout.
    return jnp.concatenate([pos_y, pos_x], axis=3)


def compute_pos_embed(shapes, mask, dim_dec):
    B = mask.shape[0]
    feats = []
    for (h, w) in shapes:
        mr = _resize_mask_nearest(mask, h, w)
        pos = positional_encoding(mr, dim_dec // 2)      # (B, h, w, dim_dec)
        feats.append(pos.reshape(B, h * w, dim_dec))
    return jnp.concatenate(feats, axis=1)


def reference(x, pos, p):
    h = x @ p["wc"] + p["bc"]
    h = _layernorm(h, p["gc"], p["betac"])
    h = h + pos
    ln = _layernorm(h, p["gm"], p["bm"])
    u = _gelu(ln @ p["w1"] + p["b1"])
    return h + u @ p["w2"] + p["b2"]


# --------------------------------------------------------------------------
if __name__ == "__main__":
    key = jax.random.PRNGKey(0)
    ks = jax.random.split(key, 8)

    B, H0, W0 = 2, 16, 16
    dim_enc, dim_dec = 48, 32
    shapes = [(8, 8)]                       # single feature level
    N = sum(h * w for (h, w) in shapes)     # 64 tokens

    # TODO(synk): encoder(batch) and decoder(...) are external nn.Modules passed
    # into Units; the encoder output is replaced by a synthetic feature tensor
    # and the decoder is not applied.
    encoded_feats = jax.random.normal(ks[0], (B, N, dim_enc), jnp.float32)

    # padding mask (True = padded), per-sample different padding
    mask = jnp.zeros((B, H0, W0), dtype=bool)
    mask = mask.at[0, :, 12:].set(True)
    mask = mask.at[1, 10:, :].set(True)

    # deterministic parameter init (shapes from Units.__init__)
    def lin(k, fan_in, fan_out):
        s = 1.0 / math.sqrt(fan_in)
        return jax.random.uniform(k, (fan_in, fan_out), jnp.float32, -s, s)

    params = dict(
        wc=lin(ks[1], dim_enc, dim_dec),                        # connector Linear
        bc=0.02 * jax.random.normal(ks[2], (dim_dec,), jnp.float32),
        gc=jnp.ones((dim_dec,), jnp.float32),                   # connector LayerNorm
        betac=jnp.zeros((dim_dec,), jnp.float32),
        gm=jnp.ones((dim_dec,), jnp.float32),                   # proj_mlp LayerNorm
        bm=jnp.zeros((dim_dec,), jnp.float32),
        w1=lin(ks[3], dim_dec, 4 * dim_dec),                    # proj_mlp fc1 (ratio 4)
        b1=0.02 * jax.random.normal(ks[4], (4 * dim_dec,), jnp.float32),
        w2=lin(ks[5], 4 * dim_dec, dim_dec),                    # proj_mlp fc2
        b2=0.02 * jax.random.normal(ks[6], (dim_dec,), jnp.float32),
    )

    # tiny per-token coordinate stream for the kernel (the sin/cos encoding itself
    # is generated in-kernel); dense pos only for the pure-JAX reference.
    coords = compute_pos_coords(shapes, mask)                   # (B, N, 2)
    pos_dense = compute_pos_embed(shapes, mask, dim_dec)        # (B, N, dim_dec)

    x_flat = encoded_feats.reshape(B * N, dim_enc)
    coords_flat = coords.reshape(B * N, 2)

    # tm=128 at toy M=128 -> grid=(1,): no per-step tax on single-TC v5e/v6e.
    # At production M use tm=256-512 and keep the grid an even multiple of 2 for v7x.
    out = units_head(x_flat, coords_flat, params, tm=128)
    out = out.reshape(B, N, dim_dec)
    jax.block_until_ready(out)

    ref = reference(encoded_feats, pos_dense, params)
    # Tolerance covers MXU f32-emulation precision modes and in-kernel sin/cos ulps;
    # any real layout/ordering bug would produce O(1) errors.
    assert jnp.allclose(out, ref, atol=1e-2, rtol=1e-2), "mismatch vs JAX reference"

    print("KERNEL_OK")
</pallas_src>

<mosaic_0001>
module attributes {stable_mosaic.version = 11 : i64} {
  func.func @units_head_kernel(%arg0: i32, %arg1: memref<128x48xf32, #tpu.memory_space<vmem>>, %arg2: memref<128x2xf32, #tpu.memory_space<vmem>>, %arg3: memref<48x32xf32, #tpu.memory_space<vmem>>, %arg4: memref<32x128xf32, #tpu.memory_space<vmem>>, %arg5: memref<128x32xf32, #tpu.memory_space<vmem>>, %arg6: memref<8x128xf32, #tpu.memory_space<vmem>>, %arg7: memref<128x32xf32, #tpu.memory_space<vmem>>) attributes {dimension_semantics = [#tpu.dimension_semantics<parallel>], iteration_bounds = array<i64: 1>, scalar_prefetch = 0 : i64, scratch_operands = 0 : i64, tpu.core_type = #tpu.core_type<tc>, window_params = [{transform_indices = @transform_0, window_bounds = array<i64: 128, 48>}, {transform_indices = @transform_1, window_bounds = array<i64: 128, 2>}, {pipeline_mode = #tpu.pipeline_mode<synchronous>, transform_indices = @transform_2, window_bounds = array<i64: 48, 32>}, {pipeline_mode = #tpu.pipeline_mode<synchronous>, transform_indices = @transform_3, window_bounds = array<i64: 32, 128>}, {pipeline_mode = #tpu.pipeline_mode<synchronous>, transform_indices = @transform_4, window_bounds = array<i64: 128, 32>}, {pipeline_mode = #tpu.pipeline_mode<synchronous>, transform_indices = @transform_5, window_bounds = array<i64: 8, 128>}, {transform_indices = @transform_6, window_bounds = array<i64: 128, 32>}]} {
    %c0 = arith.constant 0 : index
    %c0_0 = arith.constant 0 : index
    %0 = vector.load %arg6[%c0, %c0_0] : memref<8x128xf32, #tpu.memory_space<vmem>>, vector<1x32xf32>
    %c1 = arith.constant 1 : index
    %c0_1 = arith.constant 0 : index
    %1 = vector.load %arg6[%c1, %c0_1] : memref<8x128xf32, #tpu.memory_space<vmem>>, vector<1x32xf32>
    %c2 = arith.constant 2 : index
    %c0_2 = arith.constant 0 : index
    %2 = vector.load %arg6[%c2, %c0_2] : memref<8x128xf32, #tpu.memory_space<vmem>>, vector<1x32xf32>
    %c3 = arith.constant 3 : index
    %c0_3 = arith.constant 0 : index
    %3 = vector.load %arg6[%c3, %c0_3] : memref<8x128xf32, #tpu.memory_space<vmem>>, vector<1x32xf32>
    %c4 = arith.constant 4 : index
    %c0_4 = arith.constant 0 : index
    %4 = vector.load %arg6[%c4, %c0_4] : memref<8x128xf32, #tpu.memory_space<vmem>>, vector<1x32xf32>
    %c5 = arith.constant 5 : index
    %c0_5 = arith.constant 0 : index
    %5 = vector.load %arg6[%c5, %c0_5] : memref<8x128xf32, #tpu.memory_space<vmem>>, vector<1x32xf32>
    %c6 = arith.constant 6 : index
    %c0_6 = arith.constant 0 : index
    %6 = vector.load %arg6[%c6, %c0_6] : memref<8x128xf32, #tpu.memory_space<vmem>>, vector<1x128xf32>
    %c7 = arith.constant 7 : index
    %c0_7 = arith.constant 0 : index
    %7 = vector.load %arg6[%c7, %c0_7] : memref<8x128xf32, #tpu.memory_space<vmem>>, vector<1x32xf32>
    %c0_8 = arith.constant 0 : index
    %c0_9 = arith.constant 0 : index
    %8 = vector.load %arg1[%c0_8, %c0_9] : memref<128x48xf32, #tpu.memory_space<vmem>>, vector<128x48xf32>
    %c0_10 = arith.constant 0 : index
    %c0_11 = arith.constant 0 : index
    %9 = vector.load %arg3[%c0_10, %c0_11] : memref<48x32xf32, #tpu.memory_space<vmem>>, vector<48x32xf32>
    %cst = arith.constant dense<0.000000e+00> : vector<128x32xf32>
    %10 = tpu.matmul %8, %9, %cst {dimension_numbers = #tpu.dot_dimension_numbers<[1], [0], [0], [1], [0, 0, 1, 1], [], []>} : vector<128x48xf32>, vector<48x32xf32>, vector<128x32xf32> -> vector<128x32xf32>
    %11 = vector.broadcast %0 : vector<1x32xf32> to vector<128x32xf32>
    %12 = arith.addf %10, %11 : vector<128x32xf32>
    %cst_12 = arith.constant dense<0.000000e+00> : vector<128xf32>
    %13 = vector.multi_reduction <add>, %12, %cst_12 [1] : vector<128x32xf32> to vector<128xf32>
    %14 = vector.shape_cast %13 : vector<128xf32> to vector<128x1xf32>
    %cst_13 = arith.constant 3.200000e+01 : f32
    %15 = vector.broadcast %cst_13 : f32 to vector<128x1xf32>
    %16 = arith.divf %14, %15 : vector<128x1xf32>
    %17 = vector.broadcast %16 : vector<128x1xf32> to vector<128x32xf32>
    %18 = arith.subf %12, %17 : vector<128x32xf32>
    %19 = arith.mulf %18, %18 : vector<128x32xf32>
    %cst_14 = arith.constant dense<0.000000e+00> : vector<128xf32>
    %20 = vector.multi_reduction <add>, %19, %cst_14 [1] : vector<128x32xf32> to vector<128xf32>
    %21 = vector.shape_cast %20 : vector<128xf32> to vector<128x1xf32>
    %cst_15 = arith.constant 3.200000e+01 : f32
    %22 = vector.broadcast %cst_15 : f32 to vector<128x1xf32>
    %23 = arith.divf %21, %22 : vector<128x1xf32>
    %24 = vector.broadcast %16 : vector<128x1xf32> to vector<128x32xf32>
    %25 = arith.subf %12, %24 : vector<128x32xf32>
    %cst_16 = arith.constant 9.99999997E-7 : f32
    %26 = vector.broadcast %cst_16 : f32 to vector<128x1xf32>
    %27 = arith.addf %23, %26 : vector<128x1xf32>
    %28 = math.rsqrt %27 : vector<128x1xf32>
    %29 = vector.broadcast %28 : vector<128x1xf32> to vector<128x32xf32>
    %30 = arith.mulf %25, %29 : vector<128x32xf32>
    %31 = vector.broadcast %1 : vector<1x32xf32> to vector<128x32xf32>
    %32 = arith.mulf %30, %31 : vector<128x32xf32>
    %33 = vector.broadcast %2 : vector<1x32xf32> to vector<128x32xf32>
    %34 = arith.addf %32, %33 : vector<128x32xf32>
    %35 = tpu.iota {dimensions = array<i32: 1>} : vector<1x32xi32>
    %c16_i32 = arith.constant 16 : i32
    %36 = vector.broadcast %c16_i32 : i32 to vector<1x32xi32>
    %37 = arith.cmpi slt, %35, %36 : vector<1x32xi32>
    %c0_17 = arith.constant 0 : index
    %c0_18 = arith.constant 0 : index
    %38 = vector.load %arg2[%c0_17, %c0_18] : memref<128x2xf32, #tpu.memory_space<vmem>>, vector<128x1xf32>
    %c0_19 = arith.constant 0 : index
    %c1_20 = arith.constant 1 : index
    %39 = vector.load %arg2[%c0_19, %c1_20] : memref<128x2xf32, #tpu.memory_space<vmem>>, vector<128x1xf32>
    %40 = vector.shape_cast %37 : vector<1x32xi1> to vector<1x32xi1>
    %41 = vector.broadcast %40 : vector<1x32xi1> to vector<128x32xi1>
    %42 = vector.shape_cast %38 : vector<128x1xf32> to vector<128x1xf32>
    %43 = vector.broadcast %42 : vector<128x1xf32> to vector<128x32xf32>
    %44 = vector.shape_cast %39 : vector<128x1xf32> to vector<128x1xf32>
    %45 = vector.broadcast %44 : vector<128x1xf32> to vector<128x32xf32>
    %46 = arith.select %41, %43, %45 : vector<128x32xi1>, vector<128x32xf32>
    %47 = vector.broadcast %7 : vector<1x32xf32> to vector<128x32xf32>
    %48 = arith.mulf %46, %47 : vector<128x32xf32>
    %c1_i32 = arith.constant 1 : i32
    %49 = vector.broadcast %c1_i32 : i32 to vector<1x32xi32>
    %50 = arith.andi %35, %49 : vector<1x32xi32>
    %c0_i32 = arith.constant 0 : i32
    %51 = vector.broadcast %c0_i32 : i32 to vector<1x32xi32>
    %52 = arith.cmpi eq, %50, %51 : vector<1x32xi32>
    %53 = math.sin %48 : vector<128x32xf32>
    %54 = math.cos %48 : vector<128x32xf32>
    %55 = vector.shape_cast %52 : vector<1x32xi1> to vector<1x32xi1>
    %56 = vector.broadcast %55 : vector<1x32xi1> to vector<128x32xi1>
    %57 = arith.select %56, %53, %54 : vector<128x32xi1>, vector<128x32xf32>
    %58 = arith.addf %34, %57 : vector<128x32xf32>
    %cst_21 = arith.constant dense<0.000000e+00> : vector<128xf32>
    %59 = vector.multi_reduction <add>, %58, %cst_21 [1] : vector<128x32xf32> to vector<128xf32>
    %60 = vector.shape_cast %59 : vector<128xf32> to vector<128x1xf32>
    %cst_22 = arith.constant 3.200000e+01 : f32
    %61 = vector.broadcast %cst_22 : f32 to vector<128x1xf32>
    %62 = arith.divf %60, %61 : vector<128x1xf32>
    %63 = vector.broadcast %62 : vector<128x1xf32> to vector<128x32xf32>
    %64 = arith.subf %58, %63 : vector<128x32xf32>
    %65 = arith.mulf %64, %64 : vector<128x32xf32>
    %cst_23 = arith.constant dense<0.000000e+00> : vector<128xf32>
    %66 = vector.multi_reduction <add>, %65, %cst_23 [1] : vector<128x32xf32> to vector<128xf32>
    %67 = vector.shape_cast %66 : vector<128xf32> to vector<128x1xf32>
    %cst_24 = arith.constant 3.200000e+01 : f32
    %68 = vector.broadcast %cst_24 : f32 to vector<128x1xf32>
    %69 = arith.divf %67, %68 : vector<128x1xf32>
    %70 = vector.broadcast %62 : vector<128x1xf32> to vector<128x32xf32>
    %71 = arith.subf %58, %70 : vector<128x32xf32>
    %cst_25 = arith.constant 9.99999997E-7 : f32
    %72 = vector.broadcast %cst_25 : f32 to vector<128x1xf32>
    %73 = arith.addf %69, %72 : vector<128x1xf32>
    %74 = math.rsqrt %73 : vector<128x1xf32>
    %75 = vector.broadcast %74 : vector<128x1xf32> to vector<128x32xf32>
    %76 = arith.mulf %71, %75 : vector<128x32xf32>
    %77 = vector.broadcast %3 : vector<1x32xf32> to vector<128x32xf32>
    %78 = arith.mulf %76, %77 : vector<128x32xf32>
    %79 = vector.broadcast %4 : vector<1x32xf32> to vector<128x32xf32>
    %80 = arith.addf %78, %79 : vector<128x32xf32>
    %c0_26 = arith.constant 0 : index
    %c0_27 = arith.constant 0 : index
    %81 = vector.load %arg4[%c0_26, %c0_27] : memref<32x128xf32, #tpu.memory_space<vmem>>, vector<32x128xf32>
    %cst_28 = arith.constant dense<0.000000e+00> : vector<128x128xf32>
    %82 = tpu.matmul %80, %81, %cst_28 {dimension_numbers = #tpu.dot_dimension_numbers<[1], [0], [0], [1], [0, 0, 1, 1], [], []>} : vector<128x32xf32>, vector<32x128xf32>, vector<128x128xf32> -> vector<128x128xf32>
    %83 = vector.broadcast %6 : vector<1x128xf32> to vector<128x128xf32>
    %84 = arith.addf %82, %83 : vector<128x128xf32>
    %cst_29 = arith.constant 5.000000e-01 : f32
    %85 = vector.broadcast %cst_29 : f32 to vector<128x128xf32>
    %86 = arith.mulf %85, %84 : vector<128x128xf32>
    %cst_30 = arith.constant 0.707106769 : f32
    %87 = vector.broadcast %cst_30 : f32 to vector<128x128xf32>
    %88 = arith.mulf %84, %87 : vector<128x128xf32>
    %89 = math.erf %88 : vector<128x128xf32>
    %cst_31 = arith.constant 1.000000e+00 : f32
    %90 = vector.broadcast %cst_31 : f32 to vector<128x128xf32>
    %91 = arith.addf %90, %89 : vector<128x128xf32>
    %92 = arith.mulf %86, %91 : vector<128x128xf32>
    %c0_32 = arith.constant 0 : index
    %c0_33 = arith.constant 0 : index
    %93 = vector.load %arg5[%c0_32, %c0_33] : memref<128x32xf32, #tpu.memory_space<vmem>>, vector<128x32xf32>
    %cst_34 = arith.constant dense<0.000000e+00> : vector<128x32xf32>
    %94 = tpu.matmul %92, %93, %cst_34 {dimension_numbers = #tpu.dot_dimension_numbers<[1], [0], [0], [1], [0, 0, 1, 1], [], []>} : vector<128x128xf32>, vector<128x32xf32>, vector<128x32xf32> -> vector<128x32xf32>
    %95 = vector.broadcast %5 : vector<1x32xf32> to vector<128x32xf32>
    %96 = arith.addf %94, %95 : vector<128x32xf32>
    %97 = arith.addf %58, %96 : vector<128x32xf32>
    %c0_35 = arith.constant 0 : index
    %c0_36 = arith.constant 0 : index
    %98 = vector.load %arg7[%c0_35, %c0_36] : memref<128x32xf32, #tpu.memory_space<vmem>>, vector<128x32xf32>
    tpu.vector_store %arg7[%c0_35, %c0_36], %97 {strides = array<i32>} : memref<128x32xf32, #tpu.memory_space<vmem>>, vector<128x32xf32>,
    return
  }
  func.func @transform_0(%arg0: i32) -> (i32, i32) {
    %c0_i32 = arith.constant 0 : i32
    %c0_i32_0 = arith.constant 0 : i32
    return %arg0, %c0_i32 : i32, i32
  }
  func.func @transform_1(%arg0: i32) -> (i32, i32) {
    %c0_i32 = arith.constant 0 : i32
    %c0_i32_0 = arith.constant 0 : i32
    return %arg0, %c0_i32 : i32, i32
  }
  func.func @transform_2(%arg0: i32) -> (i32, i32) {
    %c0_i32 = arith.constant 0 : i32
    %c0_i32_0 = arith.constant 0 : i32
    %c0_i32_1 = arith.constant 0 : i32
    return %c0_i32, %c0_i32_0 : i32, i32
  }
  func.func @transform_3(%arg0: i32) -> (i32, i32) {
    %c0_i32 = arith.constant 0 : i32
    %c0_i32_0 = arith.constant 0 : i32
    %c0_i32_1 = arith.constant 0 : i32
    return %c0_i32, %c0_i32_0 : i32, i32
  }
  func.func @transform_4(%arg0: i32) -> (i32, i32) {
    %c0_i32 = arith.constant 0 : i32
    %c0_i32_0 = arith.constant 0 : i32
    %c0_i32_1 = arith.constant 0 : i32
    return %c0_i32, %c0_i32_0 : i32, i32
  }
  func.func @transform_5(%arg0: i32) -> (i32, i32) {
    %c0_i32 = arith.constant 0 : i32
    %c0_i32_0 = arith.constant 0 : i32
    %c0_i32_1 = arith.constant 0 : i32
    return %c0_i32, %c0_i32_0 : i32, i32
  }
  func.func @transform_6(%arg0: i32) -> (i32, i32) {
    %c0_i32 = arith.constant 0 : i32
    %c0_i32_0 = arith.constant 0 : i32
    return %arg0, %c0_i32 : i32, i32
  }
}

</mosaic_0001>

<llo_original>
// kernel: tpu_custom_call.1
$region0: #{tpu_custom_call.1}
  #allocation0 [shape = 'u32[]', space=smem, size = 0x4, offset = 0x4, fixed_abs, tag = 'smem constant byte address 0x4 - core index']
  #allocation1 [shape = 'u32[72,128]{1,0:T(1,128)}', space=vmem, size = 0x9000, scoped, tag = 'internal scratch']
  %s0 = inlined_call_operand.vmem [shape: f32[128,48], index: 0, kind: input, shape index: {}]
  %s1 = inlined_call_operand.vmem [shape: f32[128,2], index: 1, kind: input, shape index: {}]
  %s2 = inlined_call_operand.vmem [shape: f32[48,32], index: 2, kind: input, shape index: {}]
  %s3 = inlined_call_operand.vmem [shape: f32[32,128], index: 3, kind: input, shape index: {}]
  %s4 = inlined_call_operand.vmem [shape: f32[128,32], index: 4, kind: input, shape index: {}]
  %s5 = inlined_call_operand.vmem [shape: f32[8,128], index: 5, kind: input, shape index: {}]
  %s6 = inlined_call_operand.vmem [shape: f32[128,32], index: 6, kind: output, shape index: {}]
  %s7 = sld [smem:[#allocation0]]
  $region34: #{tpu_custom_call.1} parent=0
    _
  %s9 = ssub.s32 1, %s7
  %s10 = scalar_select 0, %s9, %s7
  // Predicated region
  $region2: #{tpu_custom_call.1} parent=0 // pred_check
    _
  $region3: #{tpu_custom_call.1} parent=0 // pred_check_branch
    %12 = sbr.rel (0) target = $region5
  $region4: #{tpu_custom_call.1} parent=0 // pred_region
    _
  $region5: #{tpu_custom_call.1} parent=0 // pred_fallthru
    _
  // Predicated region
  $region6: #{tpu_custom_call.1} parent=0 // pred_check
    _
  $region7: #{tpu_custom_call.1} parent=0 // pred_check_branch
    %14 = sbr.rel (0) target = $region9
  $region8: #{tpu_custom_call.1} parent=0 // pred_region
    _
  $region9: #{tpu_custom_call.1} parent=0 // pred_fallthru
    _
  // Predicated region
  $region10: #{tpu_custom_call.1} parent=0 // pred_check
    _
  $region11: #{tpu_custom_call.1} parent=0 // pred_check_branch
    %16 = sbr.rel (0) target = $region13
  $region12: #{tpu_custom_call.1} parent=0 // pred_region
    _
  $region13: #{tpu_custom_call.1} parent=0 // pred_fallthru
    _
  // Predicated region
  $region14: #{tpu_custom_call.1} parent=0 // pred_check
    _
  $region15: #{tpu_custom_call.1} parent=0 // pred_check_branch
    %18 = sbr.rel (0) target = $region17
  $region16: #{tpu_custom_call.1} parent=0 // pred_region
    _
  $region17: #{tpu_custom_call.1} parent=0 // pred_fallthru
    _
  // Predicated region
  $region18: #{tpu_custom_call.1} parent=0 // pred_check
    _
  $region19: #{tpu_custom_call.1} parent=0 // pred_check_branch
    %20 = sbr.rel (0) target = $region21
  $region20: #{tpu_custom_call.1} parent=0 // pred_region
    _
  $region21: #{tpu_custom_call.1} parent=0 // pred_fallthru
    _
  // Predicated region
  $region22: #{tpu_custom_call.1} parent=0 // pred_check
    _
  $region23: #{tpu_custom_call.1} parent=0 // pred_check_branch
    %22 = sbr.rel (0) target = $region25
  $region24: #{tpu_custom_call.1} parent=0 // pred_region
    _
  $region25: #{tpu_custom_call.1} parent=0 // pred_fallthru
    _
  %v23 = vld [vmem:[%s5] sm:$0x1]
  %v24 = vld [vmem:[%s5 + $0x1] sm:$0x1]
  %v25 = vld [vmem:[%s5 + $0x2] sm:$0x1]
  %v26 = vld [vmem:[%s5 + $0x3] sm:$0x1]
  %v27 = vld [vmem:[%s5 + $0x4] sm:$0x1]
  %v28 = vld [vmem:[%s5 + $0x5] sm:$0x1]
  %v29 = vld [vmem:[%s5 + $0x6] sm:$0x1]
  %v30 = vld [vmem:[%s5 + $0x7] sm:$0x1]
  %v31 = vld [vmem:[%s0] sm:$0xff]
  %v32 = vld [vmem:[%s0 + $0x8] sm:$0xff]
  %v33 = vld [vmem:[%s0 + $0x10] sm:$0xff]
  %v34 = vld [vmem:[%s0 + $0x18] sm:$0xff]
  %v35 = vld [vmem:[%s0 + $0x20] sm:$0xff]
  %v36 = vld [vmem:[%s0 + $0x28] sm:$0xff]
  %v37 = vld [vmem:[%s0 + $0x30] sm:$0xff]
  %v38 = vld [vmem:[%s0 + $0x38] sm:$0xff]
  %v39 = vld [vmem:[%s0 + $0x40] sm:$0xff]
  %v40 = vld [vmem:[%s0 + $0x48] sm:$0xff]
  %v41 = vld [vmem:[%s0 + $0x50] sm:$0xff]
  %v42 = vld [vmem:[%s0 + $0x58] sm:$0xff]
  %v43 = vld [vmem:[%s0 + $0x60] sm:$0xff]
  %v44 = vld [vmem:[%s0 + $0x68] sm:$0xff]
  %v45 = vld [vmem:[%s0 + $0x70] sm:$0xff]
  %v46 = vld [vmem:[%s0 + $0x78] sm:$0xff]
  %v47 = vld [vmem:[%s2] sm:$0xff]
  %v48 = vld [vmem:[%s2 + $0x8] sm:$0xff]
  %v49 = vld [vmem:[%s2 + $0x10] sm:$0xff]
  %v50 = vld [vmem:[%s2 + $0x18] sm:$0xff]
  %v51 = vld [vmem:[%s2 + $0x20] sm:$0xff]
  %v52 = vld [vmem:[%s2 + $0x28] sm:$0xff]
  %v53 = vperm.slane %v23, 0
  %vm54 = vcmask 392192
  %v56 = vsel %vm54, %v31, 0
  %v59 = vsel %vm54, %v32, 0
  %v62 = vsel %vm54, %v33, 0
  %v65 = vsel %vm54, %v34, 0
  %v68 = vsel %vm54, %v35, 0
  %v71 = vsel %vm54, %v36, 0
  %v74 = vsel %vm54, %v37, 0
  %v77 = vsel %vm54, %v38, 0
  %v80 = vsel %vm54, %v39, 0
  %v83 = vsel %vm54, %v40, 0
  %v86 = vsel %vm54, %v41, 0
  %v89 = vsel %vm54, %v42, 0
  %v92 = vsel %vm54, %v43, 0
  %v95 = vsel %vm54, %v44, 0
  %v98 = vsel %vm54, %v45, 0
  %v101 = vsel %vm54, %v46, 0
  %103 = vmatpush.msra.mxu0 0.0
  %104 = vmatpush.msra.mxu0 0.0
  %105 = vmatpush.msra.mxu0 0.0
  %106 = vmatpush.msra.mxu0 0.0
  %107 = vmatpush.msra.mxu0 0.0
  %108 = vmatpush.msra.mxu0 0.0
  %109 = vmatpush.msra.mxu0 0.0
  %110 = vmatpush.msra.mxu0 0.0
  %111 = vmatpush.msra.mxu0 0.0
  %112 = vmatpush.msra.mxu0 0.0
  %113 = vmatpush.msra.mxu0 %v52
  %114 = vmatpush.msra.mxu0 %v51
  %115 = vmatpush.msra.mxu0 %v50
  %116 = vmatpush.msra.mxu0 %v49
  %117 = vmatpush.msra.mxu0 %v48
  %118 = vmatpush.msra.mxu0 %v47
  %119 = vmatmul.f32.gmra.mxu0 %v56
  %v120 = vpop.f32.mrf.mxu0
  %v121 = vadd.f32 %v53, %v120
  %122 = vmatmul.f32.gmra.mxu0 %v59
  %v123 = vpop.f32.mrf.mxu0
  %v124 = vadd.f32 %v53, %v123
  %125 = vmatmul.f32.gmra.mxu0 %v62
  %v126 = vpop.f32.mrf.mxu0
  %v127 = vadd.f32 %v53, %v126
  %128 = vmatmul.f32.gmra.mxu0 %v65
  %v129 = vpop.f32.mrf.mxu0
  %v130 = vadd.f32 %v53, %v129
  %131 = vmatmul.f32.gmra.mxu0 %v68
  %v132 = vpop.f32.mrf.mxu0
  %v133 = vadd.f32 %v53, %v132
  %134 = vmatmul.f32.gmra.mxu0 %v71
  %v135 = vpop.f32.mrf.mxu0
  %v136 = vadd.f32 %v53, %v135
  %137 = vmatmul.f32.gmra.mxu0 %v74
  %v138 = vpop.f32.mrf.mxu0
  %v139 = vadd.f32 %v53, %v138
  %140 = vmatmul.f32.gmra.mxu0 %v77
  %v141 = vpop.f32.mrf.mxu0
  %v142 = vadd.f32 %v53, %v141
  %143 = vmatmul.f32.gmra.mxu0 %v80
  %v144 = vpop.f32.mrf.mxu0
  %v145 = vadd.f32 %v53, %v144
  %146 = vmatmul.f32.gmra.mxu0 %v83
  %v147 = vpop.f32.mrf.mxu0
  %v148 = vadd.f32 %v53, %v147
  %149 = vmatmul.f32.gmra.mxu0 %v86
  %v150 = vpop.f32.mrf.mxu0
  %v151 = vadd.f32 %v53, %v150
  %152 = vmatmul.f32.gmra.mxu0 %v89
  %v153 = vpop.f32.mrf.mxu0
  %v154 = vadd.f32 %v53, %v153
  %155 = vmatmul.f32.gmra.mxu0 %v92
  %v156 = vpop.f32.mrf.mxu0
  %v157 = vadd.f32 %v53, %v156
  %158 = vmatmul.f32.gmra.mxu0 %v95
  %v159 = vpop.f32.mrf.mxu0
  %v160 = vadd.f32 %v53, %v159
  %161 = vmatmul.f32.gmra.mxu0 %v98
  %v162 = vpop.f32.mrf.mxu0
  %v163 = vadd.f32 %v53, %v162
  %164 = vmatmul.f32.gmra.mxu0 %v101
  %v165 = vpop.f32.mrf.mxu0
  %v166 = vadd.f32 %v53, %v165
  %167 = vdwg.mxu0
  %vm168 = vcmask 261120
  %v169 = vsel %vm168, %v121, 0.0
  %170 = vadd.xlane.f32.xlu0 %v169
  %v171 = vpop.xlane.xlu0 %170
  %v172 = vsel %vm168, %v124, 0.0
  %173 = vadd.xlane.f32.xlu0 %v172
  %v174 = vpop.xlane.xlu0 %173
  %v175 = vsel %vm168, %v127, 0.0
  %176 = vadd.xlane.f32.xlu0 %v175
  %v177 = vpop.xlane.xlu0 %176
  %v178 = vsel %vm168, %v130, 0.0
  %179 = vadd.xlane.f32.xlu0 %v178
  %v180 = vpop.xlane.xlu0 %179
  %v181 = vsel %vm168, %v133, 0.0
  %182 = vadd.xlane.f32.xlu0 %v181
  %v183 = vpop.xlane.xlu0 %182
  %v184 = vsel %vm168, %v136, 0.0
  %185 = vadd.xlane.f32.xlu0 %v184
  %v186 = vpop.xlane.xlu0 %185
  %v187 = vsel %vm168, %v139, 0.0
  %188 = vadd.xlane.f32.xlu0 %v187
  %v189 = vpop.xlane.xlu0 %188
  %v190 = vsel %vm168, %v142, 0.0
  %191 = vadd.xlane.f32.xlu0 %v190
  %v192 = vpop.xlane.xlu0 %191
  %v193 = vsel %vm168, %v145, 0.0
  %194 = vadd.xlane.f32.xlu0 %v193
  %v195 = vpop.xlane.xlu0 %194
  %v196 = vsel %vm168, %v148, 0.0
  %197 = vadd.xlane.f32.xlu0 %v196
  %v198 = vpop.xlane.xlu0 %197
  %v199 = vsel %vm168, %v151, 0.0
  %200 = vadd.xlane.f32.xlu0 %v199
  %v201 = vpop.xlane.xlu0 %200
  %v202 = vsel %vm168, %v154, 0.0
  %203 = vadd.xlane.f32.xlu0 %v202
  %v204 = vpop.xlane.xlu0 %203
  %v205 = vsel %vm168, %v157, 0.0
  %206 = vadd.xlane.f32.xlu0 %v205
  %v207 = vpop.xlane.xlu0 %206
  %v208 = vsel %vm168, %v160, 0.0
  %209 = vadd.xlane.f32.xlu0 %v208
  %v210 = vpop.xlane.xlu0 %209
  %v211 = vsel %vm168, %v163, 0.0
  %212 = vadd.xlane.f32.xlu0 %v211
  %v213 = vpop.xlane.xlu0 %212
  %v214 = vsel %vm168, %v166, 0.0
  %215 = vadd.xlane.f32.xlu0 %v214
  %v216 = vpop.xlane.xlu0 %215
  %v217 = vrcp.pop 32.0
  %v218 = vmul.f32 32.0, %v217
  %v219 = vsub.f32 1.0, %v218
  %v220 = vmul.f32 %v217, %v219
  %v221 = vadd.f32 %v217, %v220
  %vm222 = vweird.f32 %v217
  %v223 = vsel %vm222, %v217, %v221
  %v224 = vmul.f32 %v171, %v223
  %v225 = vmul.f32 %v174, %v223
  %v226 = vmul.f32 %v177, %v223
  %v227 = vmul.f32 %v180, %v223
  %v228 = vmul.f32 %v183, %v223
  %v229 = vmul.f32 %v186, %v223
  %v230 = vmul.f32 %v189, %v223
  %v231 = vmul.f32 %v192, %v223
  %v232 = vmul.f32 %v195, %v223
  %v233 = vmul.f32 %v198, %v223
  %v234 = vmul.f32 %v201, %v223
  %v235 = vmul.f32 %v204, %v223
  %v236 = vmul.f32 %v207, %v223
  %v237 = vmul.f32 %v210, %v223
  %v238 = vmul.f32 %v213, %v223
  %v239 = vmul.f32 %v216, %v223
  %v240 = vsub.f32 %v121, %v224
  %v241 = vsub.f32 %v124, %v225
  %v242 = vsub.f32 %v127, %v226
  %v243 = vsub.f32 %v130, %v227
  %v244 = vsub.f32 %v133, %v228
  %v245 = vsub.f32 %v136, %v229
  %v246 = vsub.f32 %v139, %v230
  %v247 = vsub.f32 %v142, %v231
  %v248 = vsub.f32 %v145, %v232
  %v249 = vsub.f32 %v148, %v233
  %v250 = vsub.f32 %v151, %v234
  %v251 = vsub.f32 %v154, %v235
  %v252 = vsub.f32 %v157, %v236
  %v253 = vsub.f32 %v160, %v237
  %v254 = vsub.f32 %v163, %v238
  %v255 = vsub.f32 %v166, %v239
  %v256 = vmul.f32 %v240, %v240
  %v257 = vmul.f32 %v241, %v241
  %v258 = vmul.f32 %v242, %v242
  %v259 = vmul.f32 %v243, %v243
  %v260 = vmul.f32 %v244, %v244
  %v261 = vmul.f32 %v245, %v245
  %v262 = vmul.f32 %v246, %v246
  %v263 = vmul.f32 %v247, %v247
  %v264 = vmul.f32 %v248, %v248
  %v265 = vmul.f32 %v249, %v249
  %v266 = vmul.f32 %v250, %v250
  %v267 = vmul.f32 %v251, %v251
  %v268 = vmul.f32 %v252, %v252
  %v269 = vmul.f32 %v253, %v253
  %v270 = vmul.f32 %v254, %v254
  %v271 = vmul.f32 %v255, %v255
  %v272 = vsel %vm168, %v256, 0.0
  %273 = vadd.xlane.f32.xlu0 %v272
  %v274 = vpop.xlane.xlu0 %273
  %v275 = vsel %vm168, %v257, 0.0
  %276 = vadd.xlane.f32.xlu0 %v275
  %v277 = vpop.xlane.xlu0 %276
  %v278 = vsel %vm168, %v258, 0.0
  %279 = vadd.xlane.f32.xlu0 %v278
  %v280 = vpop.xlane.xlu0 %279
  %v281 = vsel %vm168, %v259, 0.0
  %282 = vadd.xlane.f32.xlu0 %v281
  %v283 = vpop.xlane.xlu0 %282
  %v284 = vsel %vm168, %v260, 0.0
  %285 = vadd.xlane.f32.xlu0 %v284
  %v286 = vpop.xlane.xlu0 %285
  %v287 = vsel %vm168, %v261, 0.0
  %288 = vadd.xlane.f32.xlu0 %v287
  %v289 = vpop.xlane.xlu0 %288
  %v290 = vsel %vm168, %v262, 0.0
  %291 = vadd.xlane.f32.xlu0 %v290
  %v292 = vpop.xlane.xlu0 %291
  %v293 = vsel %vm168, %v263, 0.0
  %294 = vadd.xlane.f32.xlu0 %v293
  %v295 = vpop.xlane.xlu0 %294
  %v296 = vsel %vm168, %v264, 0.0
  %297 = vadd.xlane.f32.xlu0 %v296
  %v298 = vpop.xlane.xlu0 %297
  %v299 = vsel %vm168, %v265, 0.0
  %300 = vadd.xlane.f32.xlu0 %v299
  %v301 = vpop.xlane.xlu0 %300
  %v302 = vsel %vm168, %v266, 0.0
  %303 = vadd.xlane.f32.xlu0 %v302
  %v304 = vpop.xlane.xlu0 %303
  %v305 = vsel %vm168, %v267, 0.0
  %306 = vadd.xlane.f32.xlu0 %v305
  %v307 = vpop.xlane.xlu0 %306
  %v308 = vsel %vm168, %v268, 0.0
  %309 = vadd.xlane.f32.xlu0 %v308
  %v310 = vpop.xlane.xlu0 %309
  %v311 = vsel %vm168, %v269, 0.0
  %312 = vadd.xlane.f32.xlu0 %v311
  %v313 = vpop.xlane.xlu0 %312
  %v314 = vsel %vm168, %v270, 0.0
  %315 = vadd.xlane.f32.xlu0 %v314
  %v316 = vpop.xlane.xlu0 %315
  %v317 = vsel %vm168, %v271, 0.0
  %318 = vadd.xlane.f32.xlu0 %v317
  %v319 = vpop.xlane.xlu0 %318
  %v320 = vmul.f32 %v274, %v223
  %v321 = vmul.f32 %v277, %v223
  %v322 = vmul.f32 %v280, %v223
  %v323 = vmul.f32 %v283, %v223
  %v324 = vmul.f32 %v286, %v223
  %v325 = vmul.f32 %v289, %v223
  %v326 = vmul.f32 %v292, %v223
  %v327 = vmul.f32 %v295, %v223
  %v328 = vmul.f32 %v298, %v223
  %v329 = vmul.f32 %v301, %v223
  %v330 = vmul.f32 %v304, %v223
  %v331 = vmul.f32 %v307, %v223
  %v332 = vmul.f32 %v310, %v223
  %v333 = vmul.f32 %v313, %v223
  %v334 = vmul.f32 %v316, %v223
  %v335 = vmul.f32 %v319, %v223
  %v336 = vadd.f32 %v320, 1e-06
  %v337 = vadd.f32 %v321, 1e-06
  %v338 = vadd.f32 %v322, 1e-06
  %v339 = vadd.f32 %v323, 1e-06
  %v340 = vadd.f32 %v324, 1e-06
  %v341 = vadd.f32 %v325, 1e-06
  %v342 = vadd.f32 %v326, 1e-06
  %v343 = vadd.f32 %v327, 1e-06
  %v344 = vadd.f32 %v328, 1e-06
  %v345 = vadd.f32 %v329, 1e-06
  %v346 = vadd.f32 %v330, 1e-06
  %v347 = vadd.f32 %v331, 1e-06
  %v348 = vadd.f32 %v332, 1e-06
  %v349 = vadd.f32 %v333, 1e-06
  %v350 = vadd.f32 %v334, 1e-06
  %v351 = vadd.f32 %v335, 1e-06
  %v352 = vrsqrt.pop %v336
  %v353 = vmul.f32 %v352, %v336
  %v354 = vmul.f32 %v353, %v352
  %v355 = vmul.f32 0.5, %v354
  %v356 = vsub.f32 1.5, %v355
  %v357 = vmul.f32 %v352, %v356
  %vm358 = vweird.f32 %v336
  %vm359 = vweird.f32 %v352
  %vm360 = vmor %vm358, %vm359
  %v361 = vsel %vm360, %v352, %v357
  %v362 = vrsqrt.pop %v337
  %v363 = vmul.f32 %v362, %v337
  %v364 = vmul.f32 %v363, %v362
  %v365 = vmul.f32 0.5, %v364
  %v366 = vsub.f32 1.5, %v365
  %v367 = vmul.f32 %v362, %v366
  %vm368 = vweird.f32 %v337
  %vm369 = vweird.f32 %v362
  %vm370 = vmor %vm368, %vm369
  %v371 = vsel %vm370, %v362, %v367
  %v372 = vrsqrt.pop %v338
  %v373 = vmul.f32 %v372, %v338
  %v374 = vmul.f32 %v373, %v372
  %v375 = vmul.f32 0.5, %v374
  %v376 = vsub.f32 1.5, %v375
  %v377 = vmul.f32 %v372, %v376
  %vm378 = vweird.f32 %v338
  %vm379 = vweird.f32 %v372
  %vm380 = vmor %vm378, %vm379
  %v381 = vsel %vm380, %v372, %v377
  %v382 = vrsqrt.pop %v339
  %v383 = vmul.f32 %v382, %v339
  %v384 = vmul.f32 %v383, %v382
  %v385 = vmul.f32 0.5, %v384
  %v386 = vsub.f32 1.5, %v385
  %v387 = vmul.f32 %v382, %v386
  %vm388 = vweird.f32 %v339
  %vm389 = vweird.f32 %v382
  %vm390 = vmor %vm388, %vm389
  %v391 = vsel %vm390, %v382, %v387
  %v392 = vrsqrt.pop %v340
  %v393 = vmul.f32 %v392, %v340
  %v394 = vmul.f32 %v393, %v392
  %v395 = vmul.f32 0.5, %v394
  %v396 = vsub.f32 1.5, %v395
  %v397 = vmul.f32 %v392, %v396
  %vm398 = vweird.f32 %v340
  %vm399 = vweird.f32 %v392
  %vm400 = vmor %vm398, %vm399
  %v401 = vsel %vm400, %v392, %v397
  %v402 = vrsqrt.pop %v341
  %v403 = vmul.f32 %v402, %v341
  %v404 = vmul.f32 %v403, %v402
  %v405 = vmul.f32 0.5, %v404
  %v406 = vsub.f32 1.5, %v405
  %v407 = vmul.f32 %v402, %v406
  %vm408 = vweird.f32 %v341
  %vm409 = vweird.f32 %v402
  %vm410 = vmor %vm408, %vm409
  %v411 = vsel %vm410, %v402, %v407
  %v412 = vrsqrt.pop %v342
  %v413 = vmul.f32 %v412, %v342
  %v414 = vmul.f32 %v413, %v412
  %v415 = vmul.f32 0.5, %v414
  %v416 = vsub.f32 1.5, %v415
  %v417 = vmul.f32 %v412, %v416
  %vm418 = vweird.f32 %v342
  %vm419 = vweird.f32 %v412
  %vm420 = vmor %vm418, %vm419
  %v421 = vsel %vm420, %v412, %v417
  %v422 = vrsqrt.pop %v343
  %v423 = vmul.f32 %v422, %v343
  %v424 = vmul.f32 %v423, %v422
  %v425 = vmul.f32 0.5, %v424
  %v426 = vsub.f32 1.5, %v425
  %v427 = vmul.f32 %v422, %v426
  %vm428 = vweird.f32 %v343
  %vm429 = vweird.f32 %v422
  %vm430 = vmor %vm428, %vm429
  %v431 = vsel %vm430, %v422, %v427
  %v432 = vrsqrt.pop %v344
  %v433 = vmul.f32 %v432, %v344
  %v434 = vmul.f32 %v433, %v432
  %v435 = vmul.f32 0.5, %v434
  %v436 = vsub.f32 1.5, %v435
  %v437 = vmul.f32 %v432, %v436
  %vm438 = vweird.f32 %v344
  %vm439 = vweird.f32 %v432
  %vm440 = vmor %vm438, %vm439
  %v441 = vsel %vm440, %v432, %v437
  %v442 = vrsqrt.pop %v345
  %v443 = vmul.f32 %v442, %v345
  %v444 = vmul.f32 %v443, %v442
  %v445 = vmul.f32 0.5, %v444
  %v446 = vsub.f32 1.5, %v445
  %v447 = vmul.f32 %v442, %v446
  %vm448 = vweird.f32 %v345
  %vm449 = vweird.f32 %v442
  %vm450 = vmor %vm448, %vm449
  %v451 = vsel %vm450, %v442, %v447
  %v452 = vrsqrt.pop %v346
  %v453 = vmul.f32 %v452, %v346
  %v454 = vmul.f32 %v453, %v452
  %v455 = vmul.f32 0.5, %v454
  %v456 = vsub.f32 1.5, %v455
  %v457 = vmul.f32 %v452, %v456
  %vm458 = vweird.f32 %v346
  %vm459 = vweird.f32 %v452
  %vm460 = vmor %vm458, %vm459
  %v461 = vsel %vm460, %v452, %v457
  %v462 = vrsqrt.pop %v347
  %v463 = vmul.f32 %v462, %v347
  %v464 = vmul.f32 %v463, %v462
  %v465 = vmul.f32 0.5, %v464
  %v466 = vsub.f32 1.5, %v465
  %v467 = vmul.f32 %v462, %v466
  %vm468 = vweird.f32 %v347
  %vm469 = vweird.f32 %v462
  %vm470 = vmor %vm468, %vm469
  %v471 = vsel %vm470, %v462, %v467
  %v472 = vrsqrt.pop %v348
  %v473 = vmul.f32 %v472, %v348
  %v474 = vmul.f32 %v473, %v472
  %v475 = vmul.f32 0.5, %v474
  %v476 = vsub.f32 1.5, %v475
  %v477 = vmul.f32 %v472, %v476
  %vm478 = vweird.f32 %v348
  %vm479 = vweird.f32 %v472
  %vm480 = vmor %vm478, %vm479
  %v481 = vsel %vm480, %v472, %v477
  %v482 = vrsqrt.pop %v349
  %v483 = vmul.f32 %v482, %v349
  %v484 = vmul.f32 %v483, %v482
  %v485 = vmul.f32 0.5, %v484
  %v486 = vsub.f32 1.5, %v485
  %v487 = vmul.f32 %v482, %v486
  %vm488 = vweird.f32 %v349
  %vm489 = vweird.f32 %v482
  %vm490 = vmor %vm488, %vm489
  %v491 = vsel %vm490, %v482, %v487
  %v492 = vrsqrt.pop %v350
  %v493 = vmul.f32 %v492, %v350
  %v494 = vmul.f32 %v493, %v492
  %v495 = vmul.f32 0.5, %v494
  %v496 = vsub.f32 1.5, %v495
  %v497 = vmul.f32 %v492, %v496
  %vm498 = vweird.f32 %v350
  %vm499 = vweird.f32 %v492
  %vm500 = vmor %vm498, %vm499
  %v501 = vsel %vm500, %v492, %v497
  %v502 = vrsqrt.pop %v351
  %v503 = vmul.f32 %v502, %v351
  %v504 = vmul.f32 %v503, %v502
  %v505 = vmul.f32 0.5, %v504
  %v506 = vsub.f32 1.5, %v505
  %v507 = vmul.f32 %v502, %v506
  %vm508 = vweird.f32 %v351
  %vm509 = vweird.f32 %v502
  %vm510 = vmor %vm508, %vm509
  %v511 = vsel %vm510, %v502, %v507
  %v512 = vmul.f32 %v240, %v361
  %v513 = vmul.f32 %v241, %v371
  %v514 = vmul.f32 %v242, %v381
  %v515 = vmul.f32 %v243, %v391
  %v516 = vmul.f32 %v244, %v401
  %v517 = vmul.f32 %v245, %v411
  %v518 = vmul.f32 %v246, %v421
  %v519 = vmul.f32 %v247, %v431
  %v520 = vmul.f32 %v248, %v441
  %v521 = vmul.f32 %v249, %v451
  %v522 = vmul.f32 %v250, %v461
  %v523 = vmul.f32 %v251, %v471
  %v524 = vmul.f32 %v252, %v481
  %v525 = vmul.f32 %v253, %v491
  %v526 = vmul.f32 %v254, %v501
  %v527 = vmul.f32 %v255, %v511
  %v528 = vperm.slane %v24, 0
  %v529 = vmul.f32 %v512, %v528
  %v530 = vmul.f32 %v513, %v528
  %v531 = vmul.f32 %v514, %v528
  %v532 = vmul.f32 %v515, %v528
  %v533 = vmul.f32 %v516, %v528
  %v534 = vmul.f32 %v517, %v528
  %v535 = vmul.f32 %v518, %v528
  %v536 = vmul.f32 %v519, %v528
  %v537 = vmul.f32 %v520, %v528
  %v538 = vmul.f32 %v521, %v528
  %v539 = vmul.f32 %v522, %v528
  %v540 = vmul.f32 %v523, %v528
  %v541 = vmul.f32 %v524, %v528
  %v542 = vmul.f32 %v525, %v528
  %v543 = vmul.f32 %v526, %v528
  %v544 = vmul.f32 %v527, %v528
  %v545 = vperm.slane %v25, 0
  %v546 = vadd.f32 %v529, %v545
  %v547 = vadd.f32 %v530, %v545
  %v548 = vadd.f32 %v531, %v545
  %v549 = vadd.f32 %v532, %v545
  %v550 = vadd.f32 %v533, %v545
  %v551 = vadd.f32 %v534, %v545
  %v552 = vadd.f32 %v535, %v545
  %v553 = vadd.f32 %v536, %v545
  %v554 = vadd.f32 %v537, %v545
  %v555 = vadd.f32 %v538, %v545
  %v556 = vadd.f32 %v539, %v545
  %v557 = vadd.f32 %v540, %v545
  %v558 = vadd.f32 %v541, %v545
  %v559 = vadd.f32 %v542, %v545
  %v560 = vadd.f32 %v543, %v545
  %v561 = vadd.f32 %v544, %v545
  %v562 = vlaneseq
  %v563 = vand.u32 %v562, 127
  %vm564 = vcmp.lt.s32.totalorder %v563, 16
  %v565 = vld [vmem:[%s1] sm:$0xff]
  %v566 = vld [vmem:[%s1 + $0x8] sm:$0xff]
  %v567 = vld [vmem:[%s1 + $0x10] sm:$0xff]
  %v568 = vld [vmem:[%s1 + $0x18] sm:$0xff]
  %v569 = vld [vmem:[%s1 + $0x20] sm:$0xff]
  %v570 = vld [vmem:[%s1 + $0x28] sm:$0xff]
  %v571 = vld [vmem:[%s1 + $0x30] sm:$0xff]
  %v572 = vld [vmem:[%s1 + $0x38] sm:$0xff]
  %v573 = vld [vmem:[%s1 + $0x40] sm:$0xff]
  %v574 = vld [vmem:[%s1 + $0x48] sm:$0xff]
  %v575 = vld [vmem:[%s1 + $0x50] sm:$0xff]
  %v576 = vld [vmem:[%s1 + $0x58] sm:$0xff]
  %v577 = vld [vmem:[%s1 + $0x60] sm:$0xff]
  %v578 = vld [vmem:[%s1 + $0x68] sm:$0xff]
  %v579 = vld [vmem:[%s1 + $0x70] sm:$0xff]
  %v580 = vld [vmem:[%s1 + $0x78] sm:$0xff]
  %v581 = vsel %vm564, 1, 0
  %vm582 = vcmp.eq.s32.totalorder %v581, 1
  %584 = vset.pattern.permute.xlu0 0
  %585 = vperm.xlu0 %584, %v565
  %v586 = vpop.permute.xlu0 %585
  %589 = vset.pattern.permute.xlu0 0
  %590 = vperm.xlu0 %589, %v566
  %v591 = vpop.permute.xlu0 %590
  %594 = vset.pattern.permute.xlu0 0
  %595 = vperm.xlu0 %594, %v567
  %v596 = vpop.permute.xlu0 %595
  %599 = vset.pattern.permute.xlu0 0
  %600 = vperm.xlu0 %599, %v568
  %v601 = vpop.permute.xlu0 %600
  %604 = vset.pattern.permute.xlu0 0
  %605 = vperm.xlu0 %604, %v569
  %v606 = vpop.permute.xlu0 %605
  %609 = vset.pattern.permute.xlu0 0
  %610 = vperm.xlu0 %609, %v570
  %v611 = vpop.permute.xlu0 %610
  %614 = vset.pattern.permute.xlu0 0
  %615 = vperm.xlu0 %614, %v571
  %v616 = vpop.permute.xlu0 %615
  %619 = vset.pattern.permute.xlu0 0
  %620 = vperm.xlu0 %619, %v572
  %v621 = vpop.permute.xlu0 %620
  %624 = vset.pattern.permute.xlu0 0
  %625 = vperm.xlu0 %624, %v573
  %v626 = vpop.permute.xlu0 %625
  %629 = vset.pattern.permute.xlu0 0
  %630 = vperm.xlu0 %629, %v574
  %v631 = vpop.permute.xlu0 %630
  %634 = vset.pattern.permute.xlu0 0
  %635 = vperm.xlu0 %634, %v575
  %v636 = vpop.permute.xlu0 %635
  %639 = vset.pattern.permute.xlu0 0
  %640 = vperm.xlu0 %639, %v576
  %v641 = vpop.permute.xlu0 %640
  %644 = vset.pattern.permute.xlu0 0
  %645 = vperm.xlu0 %644, %v577
  %v646 = vpop.permute.xlu0 %645
  %649 = vset.pattern.permute.xlu0 0
  %650 = vperm.xlu0 %649, %v578
  %v651 = vpop.permute.xlu0 %650
  %654 = vset.pattern.permute.xlu0 0
  %655 = vperm.xlu0 %654, %v579
  %v656 = vpop.permute.xlu0 %655
  %659 = vset.pattern.permute.xlu0 0
  %660 = vperm.xlu0 %659, %v580
  %v661 = vpop.permute.xlu0 %660
  %663 = vset.pattern.permute.xlu0 1
  %664 = vperm.xlu0 %663, %v565
  %v665 = vpop.permute.xlu0 %664
  %667 = vset.pattern.permute.xlu0 1
  %668 = vperm.xlu0 %667, %v566
  %v669 = vpop.permute.xlu0 %668
  %671 = vset.pattern.permute.xlu0 1
  %672 = vperm.xlu0 %671, %v567
  %v673 = vpop.permute.xlu0 %672
  %675 = vset.pattern.permute.xlu0 1
  %676 = vperm.xlu0 %675, %v568
  %v677 = vpop.permute.xlu0 %676
  %679 = vset.pattern.permute.xlu0 1
  %680 = vperm.xlu0 %679, %v569
  %v681 = vpop.permute.xlu0 %680
  %683 = vset.pattern.permute.xlu0 1
  %684 = vperm.xlu0 %683, %v570
  %v685 = vpop.permute.xlu0 %684
  %687 = vset.pattern.permute.xlu0 1
  %688 = vperm.xlu0 %687, %v571
  %v689 = vpop.permute.xlu0 %688
  %691 = vset.pattern.permute.xlu0 1
  %692 = vperm.xlu0 %691, %v572
  %v693 = vpop.permute.xlu0 %692
  %695 = vset.pattern.permute.xlu0 1
  %696 = vperm.xlu0 %695, %v573
  %v697 = vpop.permute.xlu0 %696
  %699 = vset.pattern.permute.xlu0 1
  %700 = vperm.xlu0 %699, %v574
  %v701 = vpop.permute.xlu0 %700
  %703 = vset.pattern.permute.xlu0 1
  %704 = vperm.xlu0 %703, %v575
  %v705 = vpop.permute.xlu0 %704
  %707 = vset.pattern.permute.xlu0 1
  %708 = vperm.xlu0 %707, %v576
  %v709 = vpop.permute.xlu0 %708
  %711 = vset.pattern.permute.xlu0 1
  %712 = vperm.xlu0 %711, %v577
  %v713 = vpop.permute.xlu0 %712
  %715 = vset.pattern.permute.xlu0 1
  %716 = vperm.xlu0 %715, %v578
  %v717 = vpop.permute.xlu0 %716
  %719 = vset.pattern.permute.xlu0 1
  %720 = vperm.xlu0 %719, %v579
  %v721 = vpop.permute.xlu0 %720
  %723 = vset.pattern.permute.xlu0 1
  %724 = vperm.xlu0 %723, %v580
  %v725 = vpop.permute.xlu0 %724
  %v727 = vsel %vm582, %v586, %v665
  %v728 = vsel %vm582, %v591, %v669
  %v729 = vsel %vm582, %v596, %v673
  %v730 = vsel %vm582, %v601, %v677
  %v731 = vsel %vm582, %v606, %v681
  %v732 = vsel %vm582, %v611, %v685
  %v733 = vsel %vm582, %v616, %v689
  %v734 = vsel %vm582, %v621, %v693
  %v735 = vsel %vm582, %v626, %v697
  %v736 = vsel %vm582, %v631, %v701
  %v737 = vsel %vm582, %v636, %v705
  %v738 = vsel %vm582, %v641, %v709
  %v739 = vsel %vm582, %v646, %v713
  %v740 = vsel %vm582, %v651, %v717
  %v741 = vsel %vm582, %v656, %v721
  %v742 = vsel %vm582, %v661, %v725
  %v743 = vperm.slane %v30, 0
  %v744 = vmul.f32 %v727, %v743
  %v745 = vmul.f32 %v728, %v743
  %v746 = vmul.f32 %v729, %v743
  %v747 = vmul.f32 %v730, %v743
  %v748 = vmul.f32 %v731, %v743
  %v749 = vmul.f32 %v732, %v743
  %v750 = vmul.f32 %v733, %v743
  %v751 = vmul.f32 %v734, %v743
  %v752 = vmul.f32 %v735, %v743
  %v753 = vmul.f32 %v736, %v743
  %v754 = vmul.f32 %v737, %v743
  %v755 = vmul.f32 %v738, %v743
  %v756 = vmul.f32 %v739, %v743
  %v757 = vmul.f32 %v740, %v743
  %v758 = vmul.f32 %v741, %v743
  %v759 = vmul.f32 %v742, %v743
  %v760 = vand.u32 %v563, 1
  %vm761 = vcmp.eq.s32.totalorder %v760, 0
  %v762 = vand.u32 2147483647, %v744
  %vm763 = vcmp.le.f32.partialorder %v762, 0.7853982
  %vm764 = vcmp.lt.s32.totalorder %v744, 0
  %v765 = vand.u32 %v744, 2139095040
  %v766 = vshrl.u32 %v765, 23
  %v767 = vsub.s32 %v766, 127
  %v768 = vand.u32 2147483647, %v744
  %v769 = vand.u32 %v768, 8388607
  %v770 = vor.u32 %v769, 8388608
  %v771 = vsub.s32 0, %v770
  %v772 = vadd.s32 %v767, 1
  %vm773 = vcmp.gt.s32.totalorder %v772, 0
  %v774 = vsel %vm773, %v772, 0
  %v775 = vshrl.u32 %v774, 5
  %v776 = vand.u32 %v774, 31
  %v777 = vsub.s32 32, %v776
  %v778 = vshrl.u32 683565275, %v777
  %v779 = vshll.u32 683565275, %v776
  %v780 = vshrl.u32 2475754826, %v777
  %v781 = vor.u32 %v779, %v780
  %v782 = vshll.u32 2475754826, %v776
  %v783 = vshrl.u32 2131351028, %v777
  %v784 = vor.u32 %v782, %v783
  %v785 = vshll.u32 2131351028, %v776
  %v786 = vshrl.u32 2102212464, %v777
  %v787 = vor.u32 %v785, %v786
  %v788 = vshll.u32 2102212464, %v776
  %v789 = vshrl.u32 920167782, %v777
  %v790 = vor.u32 %v788, %v789
  %v791 = vshll.u32 920167782, %v776
  %v792 = vshrl.u32 1326507024, %v777
  %v793 = vor.u32 %v791, %v792
  %vm794 = vcmp.lt.s32.totalorder %v775, 1
  %vm795 = vcmp.lt.s32.totalorder %v775, 2
  %vm796 = vcmp.lt.s32.totalorder %v775, 3
  %vm797 = vcmp.lt.s32.totalorder %v775, 4
  %v798 = vsel %vm794, %v778, %v781
  %v799 = vsel %vm797, %v787, 2102212464
  %v800 = vsel %vm796, %v784, %v799
  %v801 = vsel %vm795, %v798, %v800
  %v802 = vsel %vm794, %v781, %v784
  %v803 = vsel %vm797, %v790, 920167782
  %v804 = vsel %vm796, %v787, %v803
  %v805 = vsel %vm795, %v802, %v804
  %v806 = vsel %vm794, %v784, %v787
  %v807 = vsel %vm797, %v793, 1326507024
  %v808 = vsel %vm796, %v790, %v807
  %v809 = vsel %vm795, %v806, %v808
  %v810 = vshll.u32 %v770, 8
  %v811 = vand.u32 %v810, 65535
  %v812 = vshrl.u32 %v810, 16
  %v813 = vand.u32 %v809, 65535
  %v814 = vshrl.u32 %v809, 16
  %v815 = vmul.u32 %v811, %v813
  %v816 = vmul.u32 %v811, %v814
  %v817 = vmul.u32 %v812, %v813
  %v818 = vmul.u32 %v812, %v814
  %v819 = vshll.u32 %v816, 16
  %v820 = vshrl.u32 %v816, 16
  %v821 = vshll.u32 %v817, 16
  %v822 = vshrl.u32 %v817, 16
  %vm823 = vc.u32 %v815, %v819
  %v824 = vsel %vm823, 1, 0
  %v825 = vadd.s32 %v815, %v819
  %v826 = vadd.s32 %v818, %v824
  %vm827 = vc.u32 %v825, %v821
  %v828 = vsel %vm827, 1, 0
  %v829 = vadd.s32 %v825, %v821
  %v830 = vadd.s32 %v826, %v828
  %v831 = vadd.s32 %v830, %v820
  %v832 = vadd.s32 %v831, %v822
  %v833 = vand.u32 %v810, 65535
  %v834 = vshrl.u32 %v810, 16
  %v835 = vand.u32 %v805, 65535
  %v836 = vshrl.u32 %v805, 16
  %v837 = vmul.u32 %v833, %v835
  %v838 = vmul.u32 %v833, %v836
  %v839 = vmul.u32 %v834, %v835
  %v840 = vmul.u32 %v834, %v836
  %v841 = vshll.u32 %v838, 16
  %v842 = vshrl.u32 %v838, 16
  %v843 = vshll.u32 %v839, 16
  %v844 = vshrl.u32 %v839, 16
  %vm845 = vc.u32 %v837, %v841
  %v846 = vsel %vm845, 1, 0
  %v847 = vadd.s32 %v837, %v841
  %v848 = vadd.s32 %v840, %v846
  %vm849 = vc.u32 %v847, %v843
  %v850 = vsel %vm849, 1, 0
  %v851 = vadd.s32 %v847, %v843
  %v852 = vadd.s32 %v848, %v850
  %v853 = vadd.s32 %v852, %v842
  %v854 = vadd.s32 %v853, %v844
  %v855 = vmul.u32 %v810, %v801
  %v856 = vadd.s32 %v832, %v851
  %vm857 = vc.u32 %v832, %v851
  %v858 = vadd.s32 %v854, 1
  %v859 = vsel %vm857, %v858, %v854
  %v860 = vadd.s32 %v855, %v859
  %v861 = vadd.s32 %v860, 536870912
  %v862 = vshrl.u32 %v861, 30
  %v863 = vshll.u32 %v862, 30
  %v864 = vsub.s32 %v860, %v863
  %vm865 = vcmp.lt.s32.totalorder %v864, 0
  %v866 = vsub.s32 0, %v864
  %v867 = vsel %vm865, %v866, %v864
  %v868 = vclz %v867
  %v869 = vsub.s32 %v868, 2
  %vm870 = vcmp.gt.s32.totalorder 0, %v869
  %v871 = vsel %vm870, 0, %v869
  %v872 = vsub.s32 32, %v871
  %v873 = vshll.u32 %v864, %v871
  %v874 = vshrl.u32 %v856, %v872
  %v875 = vor.u32 %v873, %v874
  %v876 = vsub.s32 4294967266, %v871
  %v877 = vadd.s32 %v876, 127
  %v878 = vshll.u32 %v877, 23
  %v879 = vor.u32 4788187, %v878
  %v880 = vand.u32 2147483647, %v879
  %v882 = vcvt.s32.f32 %v875
  %v883 = vmul.f32 %v882, %v880
  %v884 = vxor.u32 %v883, 2147483648
  %v885 = vsel %vm764, %v884, %v883
  %v886 = vsub.s32 4, %v862
  %v887 = vsel %vm764, %v886, %v862
  %v888 = vsel %vm763, %v744, %v885
  %v889 = vsel %vm763, 0, %v887
  %v890 = vmul.f32 %v888, %v888
  %v891 = vmul.f32 %v890, -0.001358992
  %v892 = vadd.f32 %v891, 0.041655596
  %v893 = vmul.f32 %v890, %v892
  %v894 = vadd.f32 %v893, -0.4999988
  %v895 = vmul.f32 %v890, %v894
  %v896 = vadd.f32 1.0, %v895
  %v897 = vmul.f32 %v888, %v888
  %v898 = vmul.f32 %v897, -0.00019511016
  %v899 = vadd.f32 %v898, 0.008332121
  %v900 = vmul.f32 %v897, %v899
  %v901 = vadd.f32 %v900, -0.16666654
  %v902 = vmul.f32 %v897, %v901
  %v903 = vadd.f32 %v902, 1.0
  %v904 = vmul.f32 %v903, %v888
  %vm905 = vweird.f32 %v744
  %v906 = vadd.s32 %v889, 3
  %v907 = vand.u32 %v906, 3
  %vm908 = vcmp.lt.s32.totalorder %v907, 2
  %vm909 = vcmp.eq.s32.totalorder %v907, 0
  %v910 = vxor.u32 %v904, 2147483648
  %v911 = vsel %vm909, %v896, %v910
  %vm912 = vcmp.eq.s32.totalorder %v907, 2
  %v913 = vxor.u32 %v896, 2147483648
  %v914 = vsel %vm912, %v913, %v904
  %v915 = vsel %vm908, %v911, %v914
  %v916 = vsel %vm905, nan, %v915
  %v917 = vand.u32 2147483647, %v745
  %vm918 = vcmp.le.f32.partialorder %v917, 0.7853982
  %vm919 = vcmp.lt.s32.totalorder %v745, 0
  %v920 = vand.u32 %v745, 2139095040
  %v921 = vshrl.u32 %v920, 23
  %v922 = vsub.s32 %v921, 127
  %v923 = vand.u32 2147483647, %v745
  %v924 = vand.u32 %v923, 8388607
  %v925 = vor.u32 %v924, 8388608
  %v926 = vsub.s32 0, %v925
  %v927 = vadd.s32 %v922, 1
  %vm928 = vcmp.gt.s32.totalorder %v927, 0
  %v929 = vsel %vm928, %v927, 0
  %v930 = vshrl.u32 %v929, 5
  %v931 = vand.u32 %v929, 31
  %v932 = vsub.s32 32, %v931
  %v933 = vshrl.u32 683565275, %v932
  %v934 = vshll.u32 683565275, %v931
  %v935 = vshrl.u32 2475754826, %v932
  %v936 = vor.u32 %v934, %v935
  %v937 = vshll.u32 2475754826, %v931
  %v938 = vshrl.u32 2131351028, %v932
  %v939 = vor.u32 %v937, %v938
  %v940 = vshll.u32 2131351028, %v931
  %v941 = vshrl.u32 2102212464, %v932
  %v942 = vor.u32 %v940, %v941
  %v943 = vshll.u32 2102212464, %v931
  %v944 = vshrl.u32 920167782, %v932
  %v945 = vor.u32 %v943, %v944
  %v946 = vshll.u32 920167782, %v931
  %v947 = vshrl.u32 1326507024, %v932
  %v948 = vor.u32 %v946, %v947
  %vm949 = vcmp.lt.s32.totalorder %v930, 1
  %vm950 = vcmp.lt.s32.totalorder %v930, 2
  %vm951 = vcmp.lt.s32.totalorder %v930, 3
  %vm952 = vcmp.lt.s32.totalorder %v930, 4
  %v953 = vsel %vm949, %v933, %v936
  %v954 = vsel %vm952, %v942, 2102212464
  %v955 = vsel %vm951, %v939, %v954
  %v956 = vsel %vm950, %v953, %v955
  %v957 = vsel %vm949, %v936, %v939
  %v958 = vsel %vm952, %v945, 920167782
  %v959 = vsel %vm951, %v942, %v958
  %v960 = vsel %vm950, %v957, %v959
  %v961 = vsel %vm949, %v939, %v942
  %v962 = vsel %vm952, %v948, 1326507024
  %v963 = vsel %vm951, %v945, %v962
  %v964 = vsel %vm950, %v961, %v963
  %v965 = vshll.u32 %v925, 8
  %v966 = vand.u32 %v965, 65535
  %v967 = vshrl.u32 %v965, 16
  %v968 = vand.u32 %v964, 65535
  %v969 = vshrl.u32 %v964, 16
  %v970 = vmul.u32 %v966, %v968
  %v971 = vmul.u32 %v966, %v969
  %v972 = vmul.u32 %v967, %v968
  %v973 = vmul.u32 %v967, %v969
  %v974 = vshll.u32 %v971, 16
  %v975 = vshrl.u32 %v971, 16
  %v976 = vshll.u32 %v972, 16
  %v977 = vshrl.u32 %v972, 16
  %vm978 = vc.u32 %v970, %v974
  %v979 = vsel %vm978, 1, 0
  %v980 = vadd.s32 %v970, %v974
  %v981 = vadd.s32 %v973, %v979
  %vm982 = vc.u32 %v980, %v976
  %v983 = vsel %vm982, 1, 0
  %v984 = vadd.s32 %v980, %v976
  %v985 = vadd.s32 %v981, %v983
  %v986 = vadd.s32 %v985, %v975
  %v987 = vadd.s32 %v986, %v977
  %v988 = vand.u32 %v965, 65535
  %v989 = vshrl.u32 %v965, 16
  %v990 = vand.u32 %v960, 65535
  %v991 = vshrl.u32 %v960, 16
  %v992 = vmul.u32 %v988, %v990
  %v993 = vmul.u32 %v988, %v991
  %v994 = vmul.u32 %v989, %v990
  %v995 = vmul.u32 %v989, %v991
  %v996 = vshll.u32 %v993, 16
  %v997 = vshrl.u32 %v993, 16
  %v998 = vshll.u32 %v994, 16
  %v999 = vshrl.u32 %v994, 16
  %vm1000 = vc.u32 %v992, %v996
  %v1001 = vsel %vm1000, 1, 0
  %v1002 = vadd.s32 %v992, %v996
  %v1003 = vadd.s32 %v995, %v1001
  %vm1004 = vc.u32 %v1002, %v998
  %v1005 = vsel %vm1004, 1, 0
  %v1006 = vadd.s32 %v1002, %v998
  %v1007 = vadd.s32 %v1003, %v1005
  %v1008 = vadd.s32 %v1007, %v997
  %v1009 = vadd.s32 %v1008, %v999
  %v1010 = vmul.u32 %v965, %v956
  %v1011 = vadd.s32 %v987, %v1006
  %vm1012 = vc.u32 %v987, %v1006
  %v1013 = vadd.s32 %v1009, 1
  %v1014 = vsel %vm1012, %v1013, %v1009
  %v1015 = vadd.s32 %v1010, %v1014
  %v1016 = vadd.s32 %v1015, 536870912
  %v1017 = vshrl.u32 %v1016, 30
  %v1018 = vshll.u32 %v1017, 30
  %v1019 = vsub.s32 %v1015, %v1018
  %vm1020 = vcmp.lt.s32.totalorder %v1019, 0
  %v1021 = vsub.s32 0, %v1019
  %v1022 = vsel %vm1020, %v1021, %v1019
  %v1023 = vclz %v1022
  %v1024 = vsub.s32 %v1023, 2
  %vm1025 = vcmp.gt.s32.totalorder 0, %v1024
  %v1026 = vsel %vm1025, 0, %v1024
  %v1027 = vsub.s32 32, %v1026
  %v1028 = vshll.u32 %v1019, %v1026
  %v1029 = vshrl.u32 %v1011, %v1027
  %v1030 = vor.u32 %v1028, %v1029
  %v1031 = vsub.s32 4294967266, %v1026
  %v1032 = vadd.s32 %v1031, 127
  %v1033 = vshll.u32 %v1032, 23
  %v1034 = vor.u32 4788187, %v1033
  %v1035 = vand.u32 2147483647, %v1034
  %v1037 = vcvt.s32.f32 %v1030
  %v1038 = vmul.f32 %v1037, %v1035
  %v1039 = vxor.u32 %v1038, 2147483648
  %v1040 = vsel %vm919, %v1039, %v1038
  %v1041 = vsub.s32 4, %v1017
  %v1042 = vsel %vm919, %v1041, %v1017
  %v1043 = vsel %vm918, %v745, %v1040
  %v1044 = vsel %vm918, 0, %v1042
  %v1045 = vmul.f32 %v1043, %v1043
  %v1046 = vmul.f32 %v1045, -0.001358992
  %v1047 = vadd.f32 %v1046, 0.041655596
  %v1048 = vmul.f32 %v1045, %v1047
  %v1049 = vadd.f32 %v1048, -0.4999988
  %v1050 = vmul.f32 %v1045, %v1049
  %v1051 = vadd.f32 1.0, %v1050
  %v1052 = vmul.f32 %v1043, %v1043
  %v1053 = vmul.f32 %v1052, -0.00019511016
  %v1054 = vadd.f32 %v1053, 0.008332121
  %v1055 = vmul.f32 %v1052, %v1054
  %v1056 = vadd.f32 %v1055, -0.16666654
  %v1057 = vmul.f32 %v1052, %v1056
  %v1058 = vadd.f32 %v1057, 1.0
  %v1059 = vmul.f32 %v1058, %v1043
  %vm1060 = vweird.f32 %v745
  %v1061 = vadd.s32 %v1044, 3
  %v1062 = vand.u32 %v1061, 3
  %vm1063 = vcmp.lt.s32.totalorder %v1062, 2
  %vm1064 = vcmp.eq.s32.totalorder %v1062, 0
  %v1065 = vxor.u32 %v1059, 2147483648
  %v1066 = vsel %vm1064, %v1051, %v1065
  %vm1067 = vcmp.eq.s32.totalorder %v1062, 2
  %v1068 = vxor.u32 %v1051, 2147483648
  %v1069 = vsel %vm1067, %v1068, %v1059
  %v1070 = vsel %vm1063, %v1066, %v1069
  %v1071 = vsel %vm1060, nan, %v1070
  %v1072 = vand.u32 2147483647, %v746
  %vm1073 = vcmp.le.f32.partialorder %v1072, 0.7853982
  %vm1074 = vcmp.lt.s32.totalorder %v746, 0
  %v1075 = vand.u32 %v746, 2139095040
  %v1076 = vshrl.u32 %v1075, 23
  %v1077 = vsub.s32 %v1076, 127
  %v1078 = vand.u32 2147483647, %v746
  %v1079 = vand.u32 %v1078, 8388607
  %v1080 = vor.u32 %v1079, 8388608
  %v1081 = vsub.s32 0, %v1080
  %v1082 = vadd.s32 %v1077, 1
  %vm1083 = vcmp.gt.s32.totalorder %v1082, 0
  %v1084 = vsel %vm1083, %v1082, 0
  %v1085 = vshrl.u32 %v1084, 5
  %v1086 = vand.u32 %v1084, 31
  %v1087 = vsub.s32 32, %v1086
  %v1088 = vshrl.u32 683565275, %v1087
  %v1089 = vshll.u32 683565275, %v1086
  %v1090 = vshrl.u32 2475754826, %v1087
  %v1091 = vor.u32 %v1089, %v1090
  %v1092 = vshll.u32 2475754826, %v1086
  %v1093 = vshrl.u32 2131351028, %v1087
  %v1094 = vor.u32 %v1092, %v1093
  %v1095 = vshll.u32 2131351028, %v1086
  %v1096 = vshrl.u32 2102212464, %v1087
  %v1097 = vor.u32 %v1095, %v1096
  %v1098 = vshll.u32 2102212464, %v1086
  %v1099 = vshrl.u32 920167782, %v1087
  %v1100 = vor.u32 %v1098, %v1099
  %v1101 = vshll.u32 920167782, %v1086
  %v1102 = vshrl.u32 1326507024, %v1087
  %v1103 = vor.u32 %v1101, %v1102
  %vm1104 = vcmp.lt.s32.totalorder %v1085, 1
  %vm1105 = vcmp.lt.s32.totalorder %v1085, 2
  %vm1106 = vcmp.lt.s32.totalorder %v1085, 3
  %vm1107 = vcmp.lt.s32.totalorder %v1085, 4
  %v1108 = vsel %vm1104, %v1088, %v1091
  %v1109 = vsel %vm1107, %v1097, 2102212464
  %v1110 = vsel %vm1106, %v1094, %v1109
  %v1111 = vsel %vm1105, %v1108, %v1110
  %v1112 = vsel %vm1104, %v1091, %v1094
  %v1113 = vsel %vm1107, %v1100, 920167782
  %v1114 = vsel %vm1106, %v1097, %v1113
  %v1115 = vsel %vm1105, %v1112, %v1114
  %v1116 = vsel %vm1104, %v1094, %v1097
  %v1117 = vsel %vm1107, %v1103, 1326507024
  %v1118 = vsel %vm1106, %v1100, %v1117
  %v1119 = vsel %vm1105, %v1116, %v1118
  %v1120 = vshll.u32 %v1080, 8
  %v1121 = vand.u32 %v1120, 65535
  %v1122 = vshrl.u32 %v1120, 16
  %v1123 = vand.u32 %v1119, 65535
  %v1124 = vshrl.u32 %v1119, 16
  %v1125 = vmul.u32 %v1121, %v1123
  %v1126 = vmul.u32 %v1121, %v1124
  %v1127 = vmul.u32 %v1122, %v1123
  %v1128 = vmul.u32 %v1122, %v1124
  %v1129 = vshll.u32 %v1126, 16
  %v1130 = vshrl.u32 %v1126, 16
  %v1131 = vshll.u32 %v1127, 16
  %v1132 = vshrl.u32 %v1127, 16
  %vm1133 = vc.u32 %v1125, %v1129
  %v1134 = vsel %vm1133, 1, 0
  %v1135 = vadd.s32 %v1125, %v1129
  %v1136 = vadd.s32 %v1128, %v1134
  %vm1137 = vc.u32 %v1135, %v1131
  %v1138 = vsel %vm1137, 1, 0
  %v1139 = vadd.s32 %v1135, %v1131
  %v1140 = vadd.s32 %v1136, %v1138
  %v1141 = vadd.s32 %v1140, %v1130
  %v1142 = vadd.s32 %v1141, %v1132
  %v1143 = vand.u32 %v1120, 65535
  %v1144 = vshrl.u32 %v1120, 16
  %v1145 = vand.u32 %v1115, 65535
  %v1146 = vshrl.u32 %v1115, 16
  %v1147 = vmul.u32 %v1143, %v1145
  %v1148 = vmul.u32 %v1143, %v1146
  %v1149 = vmul.u32 %v1144, %v1145
  %v1150 = vmul.u32 %v1144, %v1146
  %v1151 = vshll.u32 %v1148, 16
  %v1152 = vshrl.u32 %v1148, 16
  %v1153 = vshll.u32 %v1149, 16
  %v1154 = vshrl.u32 %v1149, 16
  %vm1155 = vc.u32 %v1147, %v1151
  %v1156 = vsel %vm1155, 1, 0
  %v1157 = vadd.s32 %v1147, %v1151
  %v1158 = vadd.s32 %v1150, %v1156
  %vm1159 = vc.u32 %v1157, %v1153
  %v1160 = vsel %vm1159, 1, 0
  %v1161 = vadd.s32 %v1157, %v1153
  %v1162 = vadd.s32 %v1158, %v1160
  %v1163 = vadd.s32 %v1162, %v1152
  %v1164 = vadd.s32 %v1163, %v1154
  %v1165 = vmul.u32 %v1120, %v1111
  %v1166 = vadd.s32 %v1142, %v1161
  %vm1167 = vc.u32 %v1142, %v1161
  %v1168 = vadd.s32 %v1164, 1
  %v1169 = vsel %vm1167, %v1168, %v1164
  %v1170 = vadd.s32 %v1165, %v1169
  %v1171 = vadd.s32 %v1170, 536870912
  %v1172 = vshrl.u32 %v1171, 30
  %v1173 = vshll.u32 %v1172, 30
  %v1174 = vsub.s32 %v1170, %v1173
  %vm1175 = vcmp.lt.s32.totalorder %v1174, 0
  %v1176 = vsub.s32 0, %v1174
  %v1177 = vsel %vm1175, %v1176, %v1174
  %v1178 = vclz %v1177
  %v1179 = vsub.s32 %v1178, 2
  %vm1180 = vcmp.gt.s32.totalorder 0, %v1179
  %v1181 = vsel %vm1180, 0, %v1179
  %v1182 = vsub.s32 32, %v1181
  %v1183 = vshll.u32 %v1174, %v1181
  %v1184 = vshrl.u32 %v1166, %v1182
  %v1185 = vor.u32 %v1183, %v1184
  %v1186 = vsub.s32 4294967266, %v1181
  %v1187 = vadd.s32 %v1186, 127
  %v1188 = vshll.u32 %v1187, 23
  %v1189 = vor.u32 4788187, %v1188
  %v1190 = vand.u32 2147483647, %v1189
  %v1192 = vcvt.s32.f32 %v1185
  %v1193 = vmul.f32 %v1192, %v1190
  %v1194 = vxor.u32 %v1193, 2147483648
  %v1195 = vsel %vm1074, %v1194, %v1193
  %v1196 = vsub.s32 4, %v1172
  %v1197 = vsel %vm1074, %v1196, %v1172
  %v1198 = vsel %vm1073, %v746, %v1195
  %v1199 = vsel %vm1073, 0, %v1197
  %v1200 = vmul.f32 %v1198, %v1198
  %v1201 = vmul.f32 %v1200, -0.001358992
  %v1202 = vadd.f32 %v1201, 0.041655596
  %v1203 = vmul.f32 %v1200, %v1202
  %v1204 = vadd.f32 %v1203, -0.4999988
  %v1205 = vmul.f32 %v1200, %v1204
  %v1206 = vadd.f32 1.0, %v1205
  %v1207 = vmul.f32 %v1198, %v1198
  %v1208 = vmul.f32 %v1207, -0.00019511016
  %v1209 = vadd.f32 %v1208, 0.008332121
  %v1210 = vmul.f32 %v1207, %v1209
  %v1211 = vadd.f32 %v1210, -0.16666654
  %v1212 = vmul.f32 %v1207, %v1211
  %v1213 = vadd.f32 %v1212, 1.0
  %v1214 = vmul.f32 %v1213, %v1198
  %vm1215 = vweird.f32 %v746
  %v1216 = vadd.s32 %v1199, 3
  %v1217 = vand.u32 %v1216, 3
  %vm1218 = vcmp.lt.s32.totalorder %v1217, 2
  %vm1219 = vcmp.eq.s32.totalorder %v1217, 0
  %v1220 = vxor.u32 %v1214, 2147483648
  %v1221 = vsel %vm1219, %v1206, %v1220
  %vm1222 = vcmp.eq.s32.totalorder %v1217, 2
  %v1223 = vxor.u32 %v1206, 2147483648
  %v1224 = vsel %vm1222, %v1223, %v1214
  %v1225 = vsel %vm1218, %v1221, %v1224
  %v1226 = vsel %vm1215, nan, %v1225
  %v1227 = vand.u32 2147483647, %v747
  %vm1228 = vcmp.le.f32.partialorder %v1227, 0.7853982
  %vm1229 = vcmp.lt.s32.totalorder %v747, 0
  %v1230 = vand.u32 %v747, 2139095040
  %v1231 = vshrl.u32 %v1230, 23
  %v1232 = vsub.s32 %v1231, 127
  %v1233 = vand.u32 2147483647, %v747
  %v1234 = vand.u32 %v1233, 8388607
  %v1235 = vor.u32 %v1234, 8388608
  %v1236 = vsub.s32 0, %v1235
  %v1237 = vadd.s32 %v1232, 1
  %vm1238 = vcmp.gt.s32.totalorder %v1237, 0
  %v1239 = vsel %vm1238, %v1237, 0
  %v1240 = vshrl.u32 %v1239, 5
  %v1241 = vand.u32 %v1239, 31
  %v1242 = vsub.s32 32, %v1241
  %v1243 = vshrl.u32 683565275, %v1242
  %v1244 = vshll.u32 683565275, %v1241
  %v1245 = vshrl.u32 2475754826, %v1242
  %v1246 = vor.u32 %v1244, %v1245
  %v1247 = vshll.u32 2475754826, %v1241
  %v1248 = vshrl.u32 2131351028, %v1242
  %v1249 = vor.u32 %v1247, %v1248
  %v1250 = vshll.u32 2131351028, %v1241
  %v1251 = vshrl.u32 2102212464, %v1242
  %v1252 = vor.u32 %v1250, %v1251
  %v1253 = vshll.u32 2102212464, %v1241
  %v1254 = vshrl.u32 920167782, %v1242
  %v1255 = vor.u32 %v1253, %v1254
  %v1256 = vshll.u32 920167782, %v1241
  %v1257 = vshrl.u32 1326507024, %v1242
  %v1258 = vor.u32 %v1256, %v1257
  %vm1259 = vcmp.lt.s32.totalorder %v1240, 1
  %vm1260 = vcmp.lt.s32.totalorder %v1240, 2
  %vm1261 = vcmp.lt.s32.totalorder %v1240, 3
  %vm1262 = vcmp.lt.s32.totalorder %v1240, 4
  %v1263 = vsel %vm1259, %v1243, %v1246
  %v1264 = vsel %vm1262, %v1252, 2102212464
  %v1265 = vsel %vm1261, %v1249, %v1264
  %v1266 = vsel %vm1260, %v1263, %v1265
  %v1267 = vsel %vm1259, %v1246, %v1249
  %v1268 = vsel %vm1262, %v1255, 920167782
  %v1269 = vsel %vm1261, %v1252, %v1268
  %v1270 = vsel %vm1260, %v1267, %v1269
  %v1271 = vsel %vm1259, %v1249, %v1252
  %v1272 = vsel %vm1262, %v1258, 1326507024
  %v1273 = vsel %vm1261, %v1255, %v1272
  %v1274 = vsel %vm1260, %v1271, %v1273
  %v1275 = vshll.u32 %v1235, 8
  %v1276 = vand.u32 %v1275, 65535
  %v1277 = vshrl.u32 %v1275, 16
  %v1278 = vand.u32 %v1274, 65535
  %v1279 = vshrl.u32 %v1274, 16
  %v1280 = vmul.u32 %v1276, %v1278
  %v1281 = vmul.u32 %v1276, %v1279
  %v1282 = vmul.u32 %v1277, %v1278
  %v1283 = vmul.u32 %v1277, %v1279
  %v1284 = vshll.u32 %v1281, 16
  %v1285 = vshrl.u32 %v1281, 16
  %v1286 = vshll.u32 %v1282, 16
  %v1287 = vshrl.u32 %v1282, 16
  %vm1288 = vc.u32 %v1280, %v1284
  %v1289 = vsel %vm1288, 1, 0
  %v1290 = vadd.s32 %v1280, %v1284
  %v1291 = vadd.s32 %v1283, %v1289
  %vm1292 = vc.u32 %v1290, %v1286
  %v1293 = vsel %vm1292, 1, 0
  %v1294 = vadd.s32 %v1290, %v1286
  %v1295 = vadd.s32 %v1291, %v1293
  %v1296 = vadd.s32 %v1295, %v1285
  %v1297 = vadd.s32 %v1296, %v1287
  %v1298 = vand.u32 %v1275, 65535
  %v1299 = vshrl.u32 %v1275, 16
  %v1300 = vand.u32 %v1270, 65535
  %v1301 = vshrl.u32 %v1270, 16
  %v1302 = vmul.u32 %v1298, %v1300
  %v1303 = vmul.u32 %v1298, %v1301
  %v1304 = vmul.u32 %v1299, %v1300
  %v1305 = vmul.u32 %v1299, %v1301
  %v1306 = vshll.u32 %v1303, 16
  %v1307 = vshrl.u32 %v1303, 16
  %v1308 = vshll.u32 %v1304, 16
  %v1309 = vshrl.u32 %v1304, 16
  %vm1310 = vc.u32 %v1302, %v1306
  %v1311 = vsel %vm1310, 1, 0
  %v1312 = vadd.s32 %v1302, %v1306
  %v1313 = vadd.s32 %v1305, %v1311
  %vm1314 = vc.u32 %v1312, %v1308
  %v1315 = vsel %vm1314, 1, 0
  %v1316 = vadd.s32 %v1312, %v1308
  %v1317 = vadd.s32 %v1313, %v1315
  %v1318 = vadd.s32 %v1317, %v1307
  %v1319 = vadd.s32 %v1318, %v1309
  %v1320 = vmul.u32 %v1275, %v1266
  %v1321 = vadd.s32 %v1297, %v1316
  %vm1322 = vc.u32 %v1297, %v1316
  %v1323 = vadd.s32 %v1319, 1
  %v1324 = vsel %vm1322, %v1323, %v1319
  %v1325 = vadd.s32 %v1320, %v1324
  %v1326 = vadd.s32 %v1325, 536870912
  %v1327 = vshrl.u32 %v1326, 30
  %v1328 = vshll.u32 %v1327, 30
  %v1329 = vsub.s32 %v1325, %v1328
  %vm1330 = vcmp.lt.s32.totalorder %v1329, 0
  %v1331 = vsub.s32 0, %v1329
  %v1332 = vsel %vm1330, %v1331, %v1329
  %v1333 = vclz %v1332
  %v1334 = vsub.s32 %v1333, 2
  %vm1335 = vcmp.gt.s32.totalorder 0, %v1334
  %v1336 = vsel %vm1335, 0, %v1334
  %v1337 = vsub.s32 32, %v1336
  %v1338 = vshll.u32 %v1329, %v1336
  %v1339 = vshrl.u32 %v1321, %v1337
  %v1340 = vor.u32 %v1338, %v1339
  %v1341 = vsub.s32 4294967266, %v1336
  %v1342 = vadd.s32 %v1341, 127
  %v1343 = vshll.u32 %v1342, 23
  %v1344 = vor.u32 4788187, %v1343
  %v1345 = vand.u32 2147483647, %v1344
  %v1347 = vcvt.s32.f32 %v1340
  %v1348 = vmul.f32 %v1347, %v1345
  %v1349 = vxor.u32 %v1348, 2147483648
  %v1350 = vsel %vm1229, %v1349, %v1348
  %v1351 = vsub.s32 4, %v1327
  %v1352 = vsel %vm1229, %v1351, %v1327
  %v1353 = vsel %vm1228, %v747, %v1350
  %v1354 = vsel %vm1228, 0, %v1352
  %v1355 = vmul.f32 %v1353, %v1353
  %v1356 = vmul.f32 %v1355, -0.001358992
  %v1357 = vadd.f32 %v1356, 0.041655596
  %v1358 = vmul.f32 %v1355, %v1357
  %v1359 = vadd.f32 %v1358, -0.4999988
  %v1360 = vmul.f32 %v1355, %v1359
  %v1361 = vadd.f32 1.0, %v1360
  %v1362 = vmul.f32 %v1353, %v1353
  %v1363 = vmul.f32 %v1362, -0.00019511016
  %v1364 = vadd.f32 %v1363, 0.008332121
  %v1365 = vmul.f32 %v1362, %v1364
  %v1366 = vadd.f32 %v1365, -0.16666654
  %v1367 = vmul.f32 %v1362, %v1366
  %v1368 = vadd.f32 %v1367, 1.0
  %v1369 = vmul.f32 %v1368, %v1353
  %vm1370 = vweird.f32 %v747
  %v1371 = vadd.s32 %v1354, 3
  %v1372 = vand.u32 %v1371, 3
  %vm1373 = vcmp.lt.s32.totalorder %v1372, 2
  %vm1374 = vcmp.eq.s32.totalorder %v1372, 0
  %v1375 = vxor.u32 %v1369, 2147483648
  %v1376 = vsel %vm1374, %v1361, %v1375
  %vm1377 = vcmp.eq.s32.totalorder %v1372, 2
  %v1378 = vxor.u32 %v1361, 2147483648
  %v1379 = vsel %vm1377, %v1378, %v1369
  %v1380 = vsel %vm1373, %v1376, %v1379
  %v1381 = vsel %vm1370, nan, %v1380
  %v1382 = vand.u32 2147483647, %v748
  %vm1383 = vcmp.le.f32.partialorder %v1382, 0.7853982
  %vm1384 = vcmp.lt.s32.totalorder %v748, 0
  %v1385 = vand.u32 %v748, 2139095040
  %v1386 = vshrl.u32 %v1385, 23
  %v1387 = vsub.s32 %v1386, 127
  %v1388 = vand.u32 2147483647, %v748
  %v1389 = vand.u32 %v1388, 8388607
  %v1390 = vor.u32 %v1389, 8388608
  %v1391 = vsub.s32 0, %v1390
  %v1392 = vadd.s32 %v1387, 1
  %vm1393 = vcmp.gt.s32.totalorder %v1392, 0
  %v1394 = vsel %vm1393, %v1392, 0
  %v1395 = vshrl.u32 %v1394, 5
  %v1396 = vand.u32 %v1394, 31
  %v1397 = vsub.s32 32, %v1396
  %v1398 = vshrl.u32 683565275, %v1397
  %v1399 = vshll.u32 683565275, %v1396
  %v1400 = vshrl.u32 2475754826, %v1397
  %v1401 = vor.u32 %v1399, %v1400
  %v1402 = vshll.u32 2475754826, %v1396
  %v1403 = vshrl.u32 2131351028, %v1397
  %v1404 = vor.u32 %v1402, %v1403
  %v1405 = vshll.u32 2131351028, %v1396
  %v1406 = vshrl.u32 2102212464, %v1397
  %v1407 = vor.u32 %v1405, %v1406
  %v1408 = vshll.u32 2102212464, %v1396
  %v1409 = vshrl.u32 920167782, %v1397
  %v1410 = vor.u32 %v1408, %v1409
  %v1411 = vshll.u32 920167782, %v1396
  %v1412 = vshrl.u32 1326507024, %v1397
  %v1413 = vor.u32 %v1411, %v1412
  %vm1414 = vcmp.lt.s32.totalorder %v1395, 1
  %vm1415 = vcmp.lt.s32.totalorder %v1395, 2
  %vm1416 = vcmp.lt.s32.totalorder %v1395, 3
  %vm1417 = vcmp.lt.s32.totalorder %v1395, 4
  %v1418 = vsel %vm1414, %v1398, %v1401
  %v1419 = vsel %vm1417, %v1407, 2102212464
  %v1420 = vsel %vm1416, %v1404, %v1419
  %v1421 = vsel %vm1415, %v1418, %v1420
  %v1422 = vsel %vm1414, %v1401, %v1404
  %v1423 = vsel %vm1417, %v1410, 920167782
  %v1424 = vsel %vm1416, %v1407, %v1423
  %v1425 = vsel %vm1415, %v1422, %v1424
  %v1426 = vsel %vm1414, %v1404, %v1407
  %v1427 = vsel %vm1417, %v1413, 1326507024
  %v1428 = vsel %vm1416, %v1410, %v1427
  %v1429 = vsel %vm1415, %v1426, %v1428
  %v1430 = vshll.u32 %v1390, 8
  %v1431 = vand.u32 %v1430, 65535
  %v1432 = vshrl.u32 %v1430, 16
  %v1433 = vand.u32 %v1429, 65535
  %v1434 = vshrl.u32 %v1429, 16
  %v1435 = vmul.u32 %v1431, %v1433
  %v1436 = vmul.u32 %v1431, %v1434
  %v1437 = vmul.u32 %v1432, %v1433
  %v1438 = vmul.u32 %v1432, %v1434
  %v1439 = vshll.u32 %v1436, 16
  %v1440 = vshrl.u32 %v1436, 16
  %v1441 = vshll.u32 %v1437, 16
  %v1442 = vshrl.u32 %v1437, 16
  %vm1443 = vc.u32 %v1435, %v1439
  %v1444 = vsel %vm1443, 1, 0
  %v1445 = vadd.s32 %v1435, %v1439
  %v1446 = vadd.s32 %v1438, %v1444
  %vm1447 = vc.u32 %v1445, %v1441
  %v1448 = vsel %vm1447, 1, 0
  %v1449 = vadd.s32 %v1445, %v1441
  %v1450 = vadd.s32 %v1446, %v1448
  %v1451 = vadd.s32 %v1450, %v1440
  %v1452 = vadd.s32 %v1451, %v1442
  %v1453 = vand.u32 %v1430, 65535
  %v1454 = vshrl.u32 %v1430, 16
  %v1455 = vand.u32 %v1425, 65535
  %v1456 = vshrl.u32 %v1425, 16
  %v1457 = vmul.u32 %v1453, %v1455
  %v1458 = vmul.u32 %v1453, %v1456
  %v1459 = vmul.u32 %v1454, %v1455
  %v1460 = vmul.u32 %v1454, %v1456
  %v1461 = vshll.u32 %v1458, 16
  %v1462 = vshrl.u32 %v1458, 16
  %v1463 = vshll.u32 %v1459, 16
  %v1464 = vshrl.u32 %v1459, 16
  %vm1465 = vc.u32 %v1457, %v1461
  %v1466 = vsel %vm1465, 1, 0
  %v1467 = vadd.s32 %v1457, %v1461
  %v1468 = vadd.s32 %v1460, %v1466
  %vm1469 = vc.u32 %v1467, %v1463
  %v1470 = vsel %vm1469, 1, 0
  %v1471 = vadd.s32 %v1467, %v1463
  %v1472 = vadd.s32 %v1468, %v1470
  %v1473 = vadd.s32 %v1472, %v1462
  %v1474 = vadd.s32 %v1473, %v1464
  %v1475 = vmul.u32 %v1430, %v1421
  %v1476 = vadd.s32 %v1452, %v1471
  %vm1477 = vc.u32 %v1452, %v1471
  %v1478 = vadd.s32 %v1474, 1
  %v1479 = vsel %vm1477, %v1478, %v1474
  %v1480 = vadd.s32 %v1475, %v1479
  %v1481 = vadd.s32 %v1480, 536870912
  %v1482 = vshrl.u32 %v1481, 30
  %v1483 = vshll.u32 %v1482, 30
  %v1484 = vsub.s32 %v1480, %v1483
  %vm1485 = vcmp.lt.s32.totalorder %v1484, 0
  %v1486 = vsub.s32 0, %v1484
  %v1487 = vsel %vm1485, %v1486, %v1484
  %v1488 = vclz %v1487
  %v1489 = vsub.s32 %v1488, 2
  %vm1490 = vcmp.gt.s32.totalorder 0, %v1489
  %v1491 = vsel %vm1490, 0, %v1489
  %v1492 = vsub.s32 32, %v1491
  %v1493 = vshll.u32 %v1484, %v1491
  %v1494 = vshrl.u32 %v1476, %v1492
  %v1495 = vor.u32 %v1493, %v1494
  %v1496 = vsub.s32 4294967266, %v1491
  %v1497 = vadd.s32 %v1496, 127
  %v1498 = vshll.u32 %v1497, 23
  %v1499 = vor.u32 4788187, %v1498
  %v1500 = vand.u32 2147483647, %v1499
  %v1502 = vcvt.s32.f32 %v1495
  %v1503 = vmul.f32 %v1502, %v1500
  %v1504 = vxor.u32 %v1503, 2147483648
  %v1505 = vsel %vm1384, %v1504, %v1503
  %v1506 = vsub.s32 4, %v1482
  %v1507 = vsel %vm1384, %v1506, %v1482
  %v1508 = vsel %vm1383, %v748, %v1505
  %v1509 = vsel %vm1383, 0, %v1507
  %v1510 = vmul.f32 %v1508, %v1508
  %v1511 = vmul.f32 %v1510, -0.001358992
  %v1512 = vadd.f32 %v1511, 0.041655596
  %v1513 = vmul.f32 %v1510, %v1512
  %v1514 = vadd.f32 %v1513, -0.4999988
  %v1515 = vmul.f32 %v1510, %v1514
  %v1516 = vadd.f32 1.0, %v1515
  %v1517 = vmul.f32 %v1508, %v1508
  %v1518 = vmul.f32 %v1517, -0.00019511016
  %v1519 = vadd.f32 %v1518, 0.008332121
  %v1520 = vmul.f32 %v1517, %v1519
  %v1521 = vadd.f32 %v1520, -0.16666654
  %v1522 = vmul.f32 %v1517, %v1521
  %v1523 = vadd.f32 %v1522, 1.0
  %v1524 = vmul.f32 %v1523, %v1508
  %vm1525 = vweird.f32 %v748
  %v1526 = vadd.s32 %v1509, 3
  %v1527 = vand.u32 %v1526, 3
  %vm1528 = vcmp.lt.s32.totalorder %v1527, 2
  %vm1529 = vcmp.eq.s32.totalorder %v1527, 0
  %v1530 = vxor.u32 %v1524, 2147483648
  %v1531 = vsel %vm1529, %v1516, %v1530
  %vm1532 = vcmp.eq.s32.totalorder %v1527, 2
  %v1533 = vxor.u32 %v1516, 2147483648
  %v1534 = vsel %vm1532, %v1533, %v1524
  %v1535 = vsel %vm1528, %v1531, %v1534
  %v1536 = vsel %vm1525, nan, %v1535
  %v1537 = vand.u32 2147483647, %v749
  %vm1538 = vcmp.le.f32.partialorder %v1537, 0.7853982
  %vm1539 = vcmp.lt.s32.totalorder %v749, 0
  %v1540 = vand.u32 %v749, 2139095040
  %v1541 = vshrl.u32 %v1540, 23
  %v1542 = vsub.s32 %v1541, 127
  %v1543 = vand.u32 2147483647, %v749
  %v1544 = vand.u32 %v1543, 8388607
  %v1545 = vor.u32 %v1544, 8388608
  %v1546 = vsub.s32 0, %v1545
  %v1547 = vadd.s32 %v1542, 1
  %vm1548 = vcmp.gt.s32.totalorder %v1547, 0
  %v1549 = vsel %vm1548, %v1547, 0
  %v1550 = vshrl.u32 %v1549, 5
  %v1551 = vand.u32 %v1549, 31
  %v1552 = vsub.s32 32, %v1551
  %v1553 = vshrl.u32 683565275, %v1552
  %v1554 = vshll.u32 683565275, %v1551
  %v1555 = vshrl.u32 2475754826, %v1552
  %v1556 = vor.u32 %v1554, %v1555
  %v1557 = vshll.u32 2475754826, %v1551
  %v1558 = vshrl.u32 2131351028, %v1552
  %v1559 = vor.u32 %v1557, %v1558
  %v1560 = vshll.u32 2131351028, %v1551
  %v1561 = vshrl.u32 2102212464, %v1552
  %v1562 = vor.u32 %v1560, %v1561
  %v1563 = vshll.u32 2102212464, %v1551
  %v1564 = vshrl.u32 920167782, %v1552
  %v1565 = vor.u32 %v1563, %v1564
  %v1566 = vshll.u32 920167782, %v1551
  %v1567 = vshrl.u32 1326507024, %v1552
  %v1568 = vor.u32 %v1566, %v1567
  %vm1569 = vcmp.lt.s32.totalorder %v1550, 1
  %vm1570 = vcmp.lt.s32.totalorder %v1550, 2
  %vm1571 = vcmp.lt.s32.totalorder %v1550, 3
  %vm1572 = vcmp.lt.s32.totalorder %v1550, 4
  %v1573 = vsel %vm1569, %v1553, %v1556
  %v1574 = vsel %vm1572, %v1562, 2102212464
  %v1575 = vsel %vm1571, %v1559, %v1574
  %v1576 = vsel %vm1570, %v1573, %v1575
  %v1577 = vsel %vm1569, %v1556, %v1559
  %v1578 = vsel %vm1572, %v1565, 920167782
  %v1579 = vsel %vm1571, %v1562, %v1578
  %v1580 = vsel %vm1570, %v1577, %v1579
  %v1581 = vsel %vm1569, %v1559, %v1562
  %v1582 = vsel %vm1572, %v1568, 1326507024
  %v1583 = vsel %vm1571, %v1565, %v1582
  %v1584 = vsel %vm1570, %v1581, %v1583
  %v1585 = vshll.u32 %v1545, 8
  %v1586 = vand.u32 %v1585, 65535
  %v1587 = vshrl.u32 %v1585, 16
  %v1588 = vand.u32 %v1584, 65535
  %v1589 = vshrl.u32 %v1584, 16
  %v1590 = vmul.u32 %v1586, %v1588
  %v1591 = vmul.u32 %v1586, %v1589
  %v1592 = vmul.u32 %v1587, %v1588
  %v1593 = vmul.u32 %v1587, %v1589
  %v1594 = vshll.u32 %v1591, 16
  %v1595 = vshrl.u32 %v1591, 16
  %v1596 = vshll.u32 %v1592, 16
  %v1597 = vshrl.u32 %v1592, 16
  %vm1598 = vc.u32 %v1590, %v1594
  %v1599 = vsel %vm1598, 1, 0
  %v1600 = vadd.s32 %v1590, %v1594
  %v1601 = vadd.s32 %v1593, %v1599
  %vm1602 = vc.u32 %v1600, %v1596
  %v1603 = vsel %vm1602, 1, 0
  %v1604 = vadd.s32 %v1600, %v1596
  %v1605 = vadd.s32 %v1601, %v1603
  %v1606 = vadd.s32 %v1605, %v1595
  %v1607 = vadd.s32 %v1606, %v1597
  %v1608 = vand.u32 %v1585, 65535
  %v1609 = vshrl.u32 %v1585, 16
  %v1610 = vand.u32 %v1580, 65535
  %v1611 = vshrl.u32 %v1580, 16
  %v1612 = vmul.u32 %v1608, %v1610
  %v1613 = vmul.u32 %v1608, %v1611
  %v1614 = vmul.u32 %v1609, %v1610
  %v1615 = vmul.u32 %v1609, %v1611
  %v1616 = vshll.u32 %v1613, 16
  %v1617 = vshrl.u32 %v1613, 16
  %v1618 = vshll.u32 %v1614, 16
  %v1619 = vshrl.u32 %v1614, 16
  %vm1620 = vc.u32 %v1612, %v1616
  %v1621 = vsel %vm1620, 1, 0
  %v1622 = vadd.s32 %v1612, %v1616
  %v1623 = vadd.s32 %v1615, %v1621
  %vm1624 = vc.u32 %v1622, %v1618
  %v1625 = vsel %vm1624, 1, 0
  %v1626 = vadd.s32 %v1622, %v1618
  %v1627 = vadd.s32 %v1623, %v1625
  %v1628 = vadd.s32 %v1627, %v1617
  %v1629 = vadd.s32 %v1628, %v1619
  %v1630 = vmul.u32 %v1585, %v1576
  %v1631 = vadd.s32 %v1607, %v1626
  %vm1632 = vc.u32 %v1607, %v1626
  %v1633 = vadd.s32 %v1629, 1
  %v1634 = vsel %vm1632, %v1633, %v1629
  %v1635 = vadd.s32 %v1630, %v1634
  %v1636 = vadd.s32 %v1635, 536870912
  %v1637 = vshrl.u32 %v1636, 30
  %v1638 = vshll.u32 %v1637, 30
  %v1639 = vsub.s32 %v1635, %v1638
  %vm1640 = vcmp.lt.s32.totalorder %v1639, 0
  %v1641 = vsub.s32 0, %v1639
  %v1642 = vsel %vm1640, %v1641, %v1639
  %v1643 = vclz %v1642
  %v1644 = vsub.s32 %v1643, 2
  %vm1645 = vcmp.gt.s32.totalorder 0, %v1644
  %v1646 = vsel %vm1645, 0, %v1644
  %v1647 = vsub.s32 32, %v1646
  %v1648 = vshll.u32 %v1639, %v1646
  %v1649 = vshrl.u32 %v1631, %v1647
  %v1650 = vor.u32 %v1648, %v1649
  %v1651 = vsub.s32 4294967266, %v1646
  %v1652 = vadd.s32 %v1651, 127
  %v1653 = vshll.u32 %v1652, 23
  %v1654 = vor.u32 4788187, %v1653
  %v1655 = vand.u32 2147483647, %v1654
  %v1657 = vcvt.s32.f32 %v1650
  %v1658 = vmul.f32 %v1657, %v1655
  %v1659 = vxor.u32 %v1658, 2147483648
  %v1660 = vsel %vm1539, %v1659, %v1658
  %v1661 = vsub.s32 4, %v1637
  %v1662 = vsel %vm1539, %v1661, %v1637
  %v1663 = vsel %vm1538, %v749, %v1660
  %v1664 = vsel %vm1538, 0, %v1662
  %v1665 = vmul.f32 %v1663, %v1663
  %v1666 = vmul.f32 %v1665, -0.001358992
  %v1667 = vadd.f32 %v1666, 0.041655596
  %v1668 = vmul.f32 %v1665, %v1667
  %v1669 = vadd.f32 %v1668, -0.4999988
  %v1670 = vmul.f32 %v1665, %v1669
  %v1671 = vadd.f32 1.0, %v1670
  %v1672 = vmul.f32 %v1663, %v1663
  %v1673 = vmul.f32 %v1672, -0.00019511016
  %v1674 = vadd.f32 %v1673, 0.008332121
  %v1675 = vmul.f32 %v1672, %v1674
  %v1676 = vadd.f32 %v1675, -0.16666654
  %v1677 = vmul.f32 %v1672, %v1676
  %v1678 = vadd.f32 %v1677, 1.0
  %v1679 = vmul.f32 %v1678, %v1663
  %vm1680 = vweird.f32 %v749
  %v1681 = vadd.s32 %v1664, 3
  %v1682 = vand.u32 %v1681, 3
  %vm1683 = vcmp.lt.s32.totalorder %v1682, 2
  %vm1684 = vcmp.eq.s32.totalorder %v1682, 0
  %v1685 = vxor.u32 %v1679, 2147483648
  %v1686 = vsel %vm1684, %v1671, %v1685
  %vm1687 = vcmp.eq.s32.totalorder %v1682, 2
  %v1688 = vxor.u32 %v1671, 2147483648
  %v1689 = vsel %vm1687, %v1688, %v1679
  %v1690 = vsel %vm1683, %v1686, %v1689
  %v1691 = vsel %vm1680, nan, %v1690
  %v1692 = vand.u32 2147483647, %v750
  %vm1693 = vcmp.le.f32.partialorder %v1692, 0.7853982
  %vm1694 = vcmp.lt.s32.totalorder %v750, 0
  %v1695 = vand.u32 %v750, 2139095040
  %v1696 = vshrl.u32 %v1695, 23
  %v1697 = vsub.s32 %v1696, 127
  %v1698 = vand.u32 2147483647, %v750
  %v1699 = vand.u32 %v1698, 8388607
  %v1700 = vor.u32 %v1699, 8388608
  %v1701 = vsub.s32 0, %v1700
  %v1702 = vadd.s32 %v1697, 1
  %vm1703 = vcmp.gt.s32.totalorder %v1702, 0
  %v1704 = vsel %vm1703, %v1702, 0
  %v1705 = vshrl.u32 %v1704, 5
  %v1706 = vand.u32 %v1704, 31
  %v1707 = vsub.s32 32, %v1706
  %v1708 = vshrl.u32 683565275, %v1707
  %v1709 = vshll.u32 683565275, %v1706
  %v1710 = vshrl.u32 2475754826, %v1707
  %v1711 = vor.u32 %v1709, %v1710
  %v1712 = vshll.u32 2475754826, %v1706
  %v1713 = vshrl.u32 2131351028, %v1707
  %v1714 = vor.u32 %v1712, %v1713
  %v1715 = vshll.u32 2131351028, %v1706
  %v1716 = vshrl.u32 2102212464, %v1707
  %v1717 = vor.u32 %v1715, %v1716
  %v1718 = vshll.u32 2102212464, %v1706
  %v1719 = vshrl.u32 920167782, %v1707
  %v1720 = vor.u32 %v1718, %v1719
  %v1721 = vshll.u32 920167782, %v1706
  %v1722 = vshrl.u32 1326507024, %v1707
  %v1723 = vor.u32 %v1721, %v1722
  %vm1724 = vcmp.lt.s32.totalorder %v1705, 1
  %vm1725 = vcmp.lt.s32.totalorder %v1705, 2
  %vm1726 = vcmp.lt.s32.totalorder %v1705, 3
  %vm1727 = vcmp.lt.s32.totalorder %v1705, 4
  %v1728 = vsel %vm1724, %v1708, %v1711
  %v1729 = vsel %vm1727, %v1717, 2102212464
  %v1730 = vsel %vm1726, %v1714, %v1729
  %v1731 = vsel %vm1725, %v1728, %v1730
  %v1732 = vsel %vm1724, %v1711, %v1714
  %v1733 = vsel %vm1727, %v1720, 920167782
  %v1734 = vsel %vm1726, %v1717, %v1733
  %v1735 = vsel %vm1725, %v1732, %v1734
  %v1736 = vsel %vm1724, %v1714, %v1717
  %v1737 = vsel %vm1727, %v1723, 1326507024
  %v1738 = vsel %vm1726, %v1720, %v1737
  %v1739 = vsel %vm1725, %v1736, %v1738
  %v1740 = vshll.u32 %v1700, 8
  %v1741 = vand.u32 %v1740, 65535
  %v1742 = vshrl.u32 %v1740, 16
  %v1743 = vand.u32 %v1739, 65535
  %v1744 = vshrl.u32 %v1739, 16
  %v1745 = vmul.u32 %v1741, %v1743
  %v1746 = vmul.u32 %v1741, %v1744
  %v1747 = vmul.u32 %v1742, %v1743
  %v1748 = vmul.u32 %v1742, %v1744
  %v1749 = vshll.u32 %v1746, 16
  %v1750 = vshrl.u32 %v1746, 16
  %v1751 = vshll.u32 %v1747, 16
  %v1752 = vshrl.u32 %v1747, 16
  %vm1753 = vc.u32 %v1745, %v1749
  %v1754 = vsel %vm1753, 1, 0
  %v1755 = vadd.s32 %v1745, %v1749
  %v1756 = vadd.s32 %v1748, %v1754
  %vm1757 = vc.u32 %v1755, %v1751
  %v1758 = vsel %vm1757, 1, 0
  %v1759 = vadd.s32 %v1755, %v1751
  %v1760 = vadd.s32 %v1756, %v1758
  %v1761 = vadd.s32 %v1760, %v1750
  %v1762 = vadd.s32 %v1761, %v1752
  %v1763 = vand.u32 %v1740, 65535
  %v1764 = vshrl.u32 %v1740, 16
  %v1765 = vand.u32 %v1735, 65535
  %v1766 = vshrl.u32 %v1735, 16
  %v1767 = vmul.u32 %v1763, %v1765
  %v1768 = vmul.u32 %v1763, %v1766
  %v1769 = vmul.u32 %v1764, %v1765
  %v1770 = vmul.u32 %v1764, %v1766
  %v1771 = vshll.u32 %v1768, 16
  %v1772 = vshrl.u32 %v1768, 16
  %v1773 = vshll.u32 %v1769, 16
  %v1774 = vshrl.u32 %v1769, 16
  %vm1775 = vc.u32 %v1767, %v1771
  %v1776 = vsel %vm1775, 1, 0
  %v1777 = vadd.s32 %v1767, %v1771
  %v1778 = vadd.s32 %v1770, %v1776
  %vm1779 = vc.u32 %v1777, %v1773
  %v1780 = vsel %vm1779, 1, 0
  %v1781 = vadd.s32 %v1777, %v1773
  %v1782 = vadd.s32 %v1778, %v1780
  %v1783 = vadd.s32 %v1782, %v1772
  %v1784 = vadd.s32 %v1783, %v1774
  %v1785 = vmul.u32 %v1740, %v1731
  %v1786 = vadd.s32 %v1762, %v1781
  %vm1787 = vc.u32 %v1762, %v1781
  %v1788 = vadd.s32 %v1784, 1
  %v1789 = vsel %vm1787, %v1788, %v1784
  %v1790 = vadd.s32 %v1785, %v1789
  %v1791 = vadd.s32 %v1790, 536870912
  %v1792 = vshrl.u32 %v1791, 30
  %v1793 = vshll.u32 %v1792, 30
  %v1794 = vsub.s32 %v1790, %v1793
  %vm1795 = vcmp.lt.s32.totalorder %v1794, 0
  %v1796 = vsub.s32 0, %v1794
  %v1797 = vsel %vm1795, %v1796, %v1794
  %v1798 = vclz %v1797
  %v1799 = vsub.s32 %v1798, 2
  %vm1800 = vcmp.gt.s32.totalorder 0, %v1799
  %v1801 = vsel %vm1800, 0, %v1799
  %v1802 = vsub.s32 32, %v1801
  %v1803 = vshll.u32 %v1794, %v1801
  %v1804 = vshrl.u32 %v1786, %v1802
  %v1805 = vor.u32 %v1803, %v1804
  %v1806 = vsub.s32 4294967266, %v1801
  %v1807 = vadd.s32 %v1806, 127
  %v1808 = vshll.u32 %v1807, 23
  %v1809 = vor.u32 4788187, %v1808
  %v1810 = vand.u32 2147483647, %v1809
  %v1812 = vcvt.s32.f32 %v1805
  %v1813 = vmul.f32 %v1812, %v1810
  %v1814 = vxor.u32 %v1813, 2147483648
  %v1815 = vsel %vm1694, %v1814, %v1813
  %v1816 = vsub.s32 4, %v1792
  %v1817 = vsel %vm1694, %v1816, %v1792
  %v1818 = vsel %vm1693, %v750, %v1815
  %v1819 = vsel %vm1693, 0, %v1817
  %v1820 = vmul.f32 %v1818, %v1818
  %v1821 = vmul.f32 %v1820, -0.001358992
  %v1822 = vadd.f32 %v1821, 0.041655596
  %v1823 = vmul.f32 %v1820, %v1822
  %v1824 = vadd.f32 %v1823, -0.4999988
  %v1825 = vmul.f32 %v1820, %v1824
  %v1826 = vadd.f32 1.0, %v1825
  %v1827 = vmul.f32 %v1818, %v1818
  %v1828 = vmul.f32 %v1827, -0.00019511016
  %v1829 = vadd.f32 %v1828, 0.008332121
  %v1830 = vmul.f32 %v1827, %v1829
  %v1831 = vadd.f32 %v1830, -0.16666654
  %v1832 = vmul.f32 %v1827, %v1831
  %v1833 = vadd.f32 %v1832, 1.0
  %v1834 = vmul.f32 %v1833, %v1818
  %vm1835 = vweird.f32 %v750
  %v1836 = vadd.s32 %v1819, 3
  %v1837 = vand.u32 %v1836, 3
  %vm1838 = vcmp.lt.s32.totalorder %v1837, 2
  %vm1839 = vcmp.eq.s32.totalorder %v1837, 0
  %v1840 = vxor.u32 %v1834, 2147483648
  %v1841 = vsel %vm1839, %v1826, %v1840
  %vm1842 = vcmp.eq.s32.totalorder %v1837, 2
  %v1843 = vxor.u32 %v1826, 2147483648
  %v1844 = vsel %vm1842, %v1843, %v1834
  %v1845 = vsel %vm1838, %v1841, %v1844
  %v1846 = vsel %vm1835, nan, %v1845
  %v1847 = vand.u32 2147483647, %v751
  %vm1848 = vcmp.le.f32.partialorder %v1847, 0.7853982
  %vm1849 = vcmp.lt.s32.totalorder %v751, 0
  %v1850 = vand.u32 %v751, 2139095040
  %v1851 = vshrl.u32 %v1850, 23
  %v1852 = vsub.s32 %v1851, 127
  %v1853 = vand.u32 2147483647, %v751
  %v1854 = vand.u32 %v1853, 8388607
  %v1855 = vor.u32 %v1854, 8388608
  %v1856 = vsub.s32 0, %v1855
  %v1857 = vadd.s32 %v1852, 1
  %vm1858 = vcmp.gt.s32.totalorder %v1857, 0
  %v1859 = vsel %vm1858, %v1857, 0
  %v1860 = vshrl.u32 %v1859, 5
  %v1861 = vand.u32 %v1859, 31
  %v1862 = vsub.s32 32, %v1861
  %v1863 = vshrl.u32 683565275, %v1862
  %v1864 = vshll.u32 683565275, %v1861
  %v1865 = vshrl.u32 2475754826, %v1862
  %v1866 = vor.u32 %v1864, %v1865
  %v1867 = vshll.u32 2475754826, %v1861
  %v1868 = vshrl.u32 2131351028, %v1862
  %v1869 = vor.u32 %v1867, %v1868
  %v1870 = vshll.u32 2131351028, %v1861
  %v1871 = vshrl.u32 2102212464, %v1862
  %v1872 = vor.u32 %v1870, %v1871
  %v1873 = vshll.u32 2102212464, %v1861
  %v1874 = vshrl.u32 920167782, %v1862
  %v1875 = vor.u32 %v1873, %v1874
  %v1876 = vshll.u32 920167782, %v1861
  %v1877 = vshrl.u32 1326507024, %v1862
  %v1878 = vor.u32 %v1876, %v1877
  %vm1879 = vcmp.lt.s32.totalorder %v1860, 1
  %vm1880 = vcmp.lt.s32.totalorder %v1860, 2
  %vm1881 = vcmp.lt.s32.totalorder %v1860, 3
  %vm1882 = vcmp.lt.s32.totalorder %v1860, 4
  %v1883 = vsel %vm1879, %v1863, %v1866
  %v1884 = vsel %vm1882, %v1872, 2102212464
  %v1885 = vsel %vm1881, %v1869, %v1884
  %v1886 = vsel %vm1880, %v1883, %v1885
  %v1887 = vsel %vm1879, %v1866, %v1869
  %v1888 = vsel %vm1882, %v1875, 920167782
  %v1889 = vsel %vm1881, %v1872, %v1888
  %v1890 = vsel %vm1880, %v1887, %v1889
  %v1891 = vsel %vm1879, %v1869, %v1872
  %v1892 = vsel %vm1882, %v1878, 1326507024
  %v1893 = vsel %vm1881, %v1875, %v1892
  %v1894 = vsel %vm1880, %v1891, %v1893
  %v1895 = vshll.u32 %v1855, 8
  %v1896 = vand.u32 %v1895, 65535
  %v1897 = vshrl.u32 %v1895, 16
  %v1898 = vand.u32 %v1894, 65535
  %v1899 = vshrl.u32 %v1894, 16
  %v1900 = vmul.u32 %v1896, %v1898
  %v1901 = vmul.u32 %v1896, %v1899
  %v1902 = vmul.u32 %v1897, %v1898
  %v1903 = vmul.u32 %v1897, %v1899
  %v1904 = vshll.u32 %v1901, 16
  %v1905 = vshrl.u32 %v1901, 16
  %v1906 = vshll.u32 %v1902, 16
  %v1907 = vshrl.u32 %v1902, 16
  %vm1908 = vc.u32 %v1900, %v1904
  %v1909 = vsel %vm1908, 1, 0
  %v1910 = vadd.s32 %v1900, %v1904
  %v1911 = vadd.s32 %v1903, %v1909
  %vm1912 = vc.u32 %v1910, %v1906
  %v1913 = vsel %vm1912, 1, 0
  %v1914 = vadd.s32 %v1910, %v1906
  %v1915 = vadd.s32 %v1911, %v1913
  %v1916 = vadd.s32 %v1915, %v1905
  %v1917 = vadd.s32 %v1916, %v1907
  %v1918 = vand.u32 %v1895, 65535
  %v1919 = vshrl.u32 %v1895, 16
  %v1920 = vand.u32 %v1890, 65535
  %v1921 = vshrl.u32 %v1890, 16
  %v1922 = vmul.u32 %v1918, %v1920
  %v1923 = vmul.u32 %v1918, %v1921
  %v1924 = vmul.u32 %v1919, %v1920
  %v1925 = vmul.u32 %v1919, %v1921
  %v1926 = vshll.u32 %v1923, 16
  %v1927 = vshrl.u32 %v1923, 16
  %v1928 = vshll.u32 %v1924, 16
  %v1929 = vshrl.u32 %v1924, 16
  %vm1930 = vc.u32 %v1922, %v1926
  %v1931 = vsel %vm1930, 1, 0
  %v1932 = vadd.s32 %v1922, %v1926
  %v1933 = vadd.s32 %v1925, %v1931
  %vm1934 = vc.u32 %v1932, %v1928
  %v1935 = vsel %vm1934, 1, 0
  %v1936 = vadd.s32 %v1932, %v1928
  %v1937 = vadd.s32 %v1933, %v1935
  %v1938 = vadd.s32 %v1937, %v1927
  %v1939 = vadd.s32 %v1938, %v1929
  %v1940 = vmul.u32 %v1895, %v1886
  %v1941 = vadd.s32 %v1917, %v1936
  %vm1942 = vc.u32 %v1917, %v1936
  %v1943 = vadd.s32 %v1939, 1
  %v1944 = vsel %vm1942, %v1943, %v1939
  %v1945 = vadd.s32 %v1940, %v1944
  %v1946 = vadd.s32 %v1945, 536870912
  %v1947 = vshrl.u32 %v1946, 30
  %v1948 = vshll.u32 %v1947, 30
  %v1949 = vsub.s32 %v1945, %v1948
  %vm1950 = vcmp.lt.s32.totalorder %v1949, 0
  %v1951 = vsub.s32 0, %v1949
  %v1952 = vsel %vm1950, %v1951, %v1949
  %v1953 = vclz %v1952
  %v1954 = vsub.s32 %v1953, 2
  %vm1955 = vcmp.gt.s32.totalorder 0, %v1954
  %v1956 = vsel %vm1955, 0, %v1954
  %v1957 = vsub.s32 32, %v1956
  %v1958 = vshll.u32 %v1949, %v1956
  %v1959 = vshrl.u32 %v1941, %v1957
  %v1960 = vor.u32 %v1958, %v1959
  %v1961 = vsub.s32 4294967266, %v1956
  %v1962 = vadd.s32 %v1961, 127
  %v1963 = vshll.u32 %v1962, 23
  %v1964 = vor.u32 4788187, %v1963
  %v1965 = vand.u32 2147483647, %v1964
  %v1967 = vcvt.s32.f32 %v1960
  %v1968 = vmul.f32 %v1967, %v1965
  %v1969 = vxor.u32 %v1968, 2147483648
  %v1970 = vsel %vm1849, %v1969, %v1968
  %v1971 = vsub.s32 4, %v1947
  %v1972 = vsel %vm1849, %v1971, %v1947
  %v1973 = vsel %vm1848, %v751, %v1970
  %v1974 = vsel %vm1848, 0, %v1972
  %v1975 = vmul.f32 %v1973, %v1973
  %v1976 = vmul.f32 %v1975, -0.001358992
  %v1977 = vadd.f32 %v1976, 0.041655596
  %v1978 = vmul.f32 %v1975, %v1977
  %v1979 = vadd.f32 %v1978, -0.4999988
  %v1980 = vmul.f32 %v1975, %v1979
  %v1981 = vadd.f32 1.0, %v1980
  %v1982 = vmul.f32 %v1973, %v1973
  %v1983 = vmul.f32 %v1982, -0.00019511016
  %v1984 = vadd.f32 %v1983, 0.008332121
  %v1985 = vmul.f32 %v1982, %v1984
  %v1986 = vadd.f32 %v1985, -0.16666654
  %v1987 = vmul.f32 %v1982, %v1986
  %v1988 = vadd.f32 %v1987, 1.0
  %v1989 = vmul.f32 %v1988, %v1973
  %vm1990 = vweird.f32 %v751
  %v1991 = vadd.s32 %v1974, 3
  %v1992 = vand.u32 %v1991, 3
  %vm1993 = vcmp.lt.s32.totalorder %v1992, 2
  %vm1994 = vcmp.eq.s32.totalorder %v1992, 0
  %v1995 = vxor.u32 %v1989, 2147483648
  %v1996 = vsel %vm1994, %v1981, %v1995
  %vm1997 = vcmp.eq.s32.totalorder %v1992, 2
  %v1998 = vxor.u32 %v1981, 2147483648
  %v1999 = vsel %vm1997, %v1998, %v1989
  %v2000 = vsel %vm1993, %v1996, %v1999
  %v2001 = vsel %vm1990, nan, %v2000
  %v2002 = vand.u32 2147483647, %v752
  %vm2003 = vcmp.le.f32.partialorder %v2002, 0.7853982
  %vm2004 = vcmp.lt.s32.totalorder %v752, 0
  %v2005 = vand.u32 %v752, 2139095040
  %v2006 = vshrl.u32 %v2005, 23
  %v2007 = vsub.s32 %v2006, 127
  %v2008 = vand.u32 2147483647, %v752
  %v2009 = vand.u32 %v2008, 8388607
  %v2010 = vor.u32 %v2009, 8388608
  %v2011 = vsub.s32 0, %v2010
  %v2012 = vadd.s32 %v2007, 1
  %vm2013 = vcmp.gt.s32.totalorder %v2012, 0
  %v2014 = vsel %vm2013, %v2012, 0
  %v2015 = vshrl.u32 %v2014, 5
  %v2016 = vand.u32 %v2014, 31
  %v2017 = vsub.s32 32, %v2016
  %v2018 = vshrl.u32 683565275, %v2017
  %v2019 = vshll.u32 683565275, %v2016
  %v2020 = vshrl.u32 2475754826, %v2017
  %v2021 = vor.u32 %v2019, %v2020
  %v2022 = vshll.u32 2475754826, %v2016
  %v2023 = vshrl.u32 2131351028, %v2017
  %v2024 = vor.u32 %v2022, %v2023
  %v2025 = vshll.u32 2131351028, %v2016
  %v2026 = vshrl.u32 2102212464, %v2017
  %v2027 = vor.u32 %v2025, %v2026
  %v2028 = vshll.u32 2102212464, %v2016
  %v2029 = vshrl.u32 920167782, %v2017
  %v2030 = vor.u32 %v2028, %v2029
  %v2031 = vshll.u32 920167782, %v2016
  %v2032 = vshrl.u32 1326507024, %v2017
  %v2033 = vor.u32 %v2031, %v2032
  %vm2034 = vcmp.lt.s32.totalorder %v2015, 1
  %vm2035 = vcmp.lt.s32.totalorder %v2015, 2
  %vm2036 = vcmp.lt.s32.totalorder %v2015, 3
  %vm2037 = vcmp.lt.s32.totalorder %v2015, 4
  %v2038 = vsel %vm2034, %v2018, %v2021
  %v2039 = vsel %vm2037, %v2027, 2102212464
  %v2040 = vsel %vm2036, %v2024, %v2039
  %v2041 = vsel %vm2035, %v2038, %v2040
  %v2042 = vsel %vm2034, %v2021, %v2024
  %v2043 = vsel %vm2037, %v2030, 920167782
  %v2044 = vsel %vm2036, %v2027, %v2043
  %v2045 = vsel %vm2035, %v2042, %v2044
  %v2046 = vsel %vm2034, %v2024, %v2027
  %v2047 = vsel %vm2037, %v2033, 1326507024
  %v2048 = vsel %vm2036, %v2030, %v2047
  %v2049 = vsel %vm2035, %v2046, %v2048
  %v2050 = vshll.u32 %v2010, 8
  %v2051 = vand.u32 %v2050, 65535
  %v2052 = vshrl.u32 %v2050, 16
  %v2053 = vand.u32 %v2049, 65535
  %v2054 = vshrl.u32 %v2049, 16
  %v2055 = vmul.u32 %v2051, %v2053
  %v2056 = vmul.u32 %v2051, %v2054
  %v2057 = vmul.u32 %v2052, %v2053
  %v2058 = vmul.u32 %v2052, %v2054
  %v2059 = vshll.u32 %v2056, 16
  %v2060 = vshrl.u32 %v2056, 16
  %v2061 = vshll.u32 %v2057, 16
  %v2062 = vshrl.u32 %v2057, 16
  %vm2063 = vc.u32 %v2055, %v2059
  %v2064 = vsel %vm2063, 1, 0
  %v2065 = vadd.s32 %v2055, %v2059
  %v2066 = vadd.s32 %v2058, %v2064
  %vm2067 = vc.u32 %v2065, %v2061
  %v2068 = vsel %vm2067, 1, 0
  %v2069 = vadd.s32 %v2065, %v2061
  %v2070 = vadd.s32 %v2066, %v2068
  %v2071 = vadd.s32 %v2070, %v2060
  %v2072 = vadd.s32 %v2071, %v2062
  %v2073 = vand.u32 %v2050, 65535
  %v2074 = vshrl.u32 %v2050, 16
  %v2075 = vand.u32 %v2045, 65535
  %v2076 = vshrl.u32 %v2045, 16
  %v2077 = vmul.u32 %v2073, %v2075
  %v2078 = vmul.u32 %v2073, %v2076
  %v2079 = vmul.u32 %v2074, %v2075
  %v2080 = vmul.u32 %v2074, %v2076
  %v2081 = vshll.u32 %v2078, 16
  %v2082 = vshrl.u32 %v2078, 16
  %v2083 = vshll.u32 %v2079, 16
  %v2084 = vshrl.u32 %v2079, 16
  %vm2085 = vc.u32 %v2077, %v2081
  %v2086 = vsel %vm2085, 1, 0
  %v2087 = vadd.s32 %v2077, %v2081
  %v2088 = vadd.s32 %v2080, %v2086
  %vm2089 = vc.u32 %v2087, %v2083
  %v2090 = vsel %vm2089, 1, 0
  %v2091 = vadd.s32 %v2087, %v2083
  %v2092 = vadd.s32 %v2088, %v2090
  %v2093 = vadd.s32 %v2092, %v2082
  %v2094 = vadd.s32 %v2093, %v2084
  %v2095 = vmul.u32 %v2050, %v2041
  %v2096 = vadd.s32 %v2072, %v2091
  %vm2097 = vc.u32 %v2072, %v2091
  %v2098 = vadd.s32 %v2094, 1
  %v2099 = vsel %vm2097, %v2098, %v2094
  %v2100 = vadd.s32 %v2095, %v2099
  %v2101 = vadd.s32 %v2100, 536870912
  %v2102 = vshrl.u32 %v2101, 30
  %v2103 = vshll.u32 %v2102, 30
  %v2104 = vsub.s32 %v2100, %v2103
  %vm2105 = vcmp.lt.s32.totalorder %v2104, 0
  %v2106 = vsub.s32 0, %v2104
  %v2107 = vsel %vm2105, %v2106, %v2104
  %v2108 = vclz %v2107
  %v2109 = vsub.s32 %v2108, 2
  %vm2110 = vcmp.gt.s32.totalorder 0, %v2109
  %v2111 = vsel %vm2110, 0, %v2109
  %v2112 = vsub.s32 32, %v2111
  %v2113 = vshll.u32 %v2104, %v2111
  %v2114 = vshrl.u32 %v2096, %v2112
  %v2115 = vor.u32 %v2113, %v2114
  %v2116 = vsub.s32 4294967266, %v2111
  %v2117 = vadd.s32 %v2116, 127
  %v2118 = vshll.u32 %v2117, 23
  %v2119 = vor.u32 4788187, %v2118
  %v2120 = vand.u32 2147483647, %v2119
  %v2122 = vcvt.s32.f32 %v2115
  %v2123 = vmul.f32 %v2122, %v2120
  %v2124 = vxor.u32 %v2123, 2147483648
  %v2125 = vsel %vm2004, %v2124, %v2123
  %v2126 = vsub.s32 4, %v2102
  %v2127 = vsel %vm2004, %v2126, %v2102
  %v2128 = vsel %vm2003, %v752, %v2125
  %v2129 = vsel %vm2003, 0, %v2127
  %v2130 = vmul.f32 %v2128, %v2128
  %v2131 = vmul.f32 %v2130, -0.001358992
  %v2132 = vadd.f32 %v2131, 0.041655596
  %v2133 = vmul.f32 %v2130, %v2132
  %v2134 = vadd.f32 %v2133, -0.4999988
  %v2135 = vmul.f32 %v2130, %v2134
  %v2136 = vadd.f32 1.0, %v2135
  %v2137 = vmul.f32 %v2128, %v2128
  %v2138 = vmul.f32 %v2137, -0.00019511016
  %v2139 = vadd.f32 %v2138, 0.008332121
  %v2140 = vmul.f32 %v2137, %v2139
  %v2141 = vadd.f32 %v2140, -0.16666654
  %v2142 = vmul.f32 %v2137, %v2141
  %v2143 = vadd.f32 %v2142, 1.0
  %v2144 = vmul.f32 %v2143, %v2128
  %vm2145 = vweird.f32 %v752
  %v2146 = vadd.s32 %v2129, 3
  %v2147 = vand.u32 %v2146, 3
  %vm2148 = vcmp.lt.s32.totalorder %v2147, 2
  %vm2149 = vcmp.eq.s32.totalorder %v2147, 0
  %v2150 = vxor.u32 %v2144, 2147483648
  %v2151 = vsel %vm2149, %v2136, %v2150
  %vm2152 = vcmp.eq.s32.totalorder %v2147, 2
  %v2153 = vxor.u32 %v2136, 2147483648
  %v2154 = vsel %vm2152, %v2153, %v2144
  %v2155 = vsel %vm2148, %v2151, %v2154
  %v2156 = vsel %vm2145, nan, %v2155
  %v2157 = vand.u32 2147483647, %v753
  %vm2158 = vcmp.le.f32.partialorder %v2157, 0.7853982
  %vm2159 = vcmp.lt.s32.totalorder %v753, 0
  %v2160 = vand.u32 %v753, 2139095040
  %v2161 = vshrl.u32 %v2160, 23
  %v2162 = vsub.s32 %v2161, 127
  %v2163 = vand.u32 2147483647, %v753
  %v2164 = vand.u32 %v2163, 8388607
  %v2165 = vor.u32 %v2164, 8388608
  %v2166 = vsub.s32 0, %v2165
  %v2167 = vadd.s32 %v2162, 1
  %vm2168 = vcmp.gt.s32.totalorder %v2167, 0
  %v2169 = vsel %vm2168, %v2167, 0
  %v2170 = vshrl.u32 %v2169, 5
  %v2171 = vand.u32 %v2169, 31
  %v2172 = vsub.s32 32, %v2171
  %v2173 = vshrl.u32 683565275, %v2172
  %v2174 = vshll.u32 683565275, %v2171
  %v2175 = vshrl.u32 2475754826, %v2172
  %v2176 = vor.u32 %v2174, %v2175
  %v2177 = vshll.u32 2475754826, %v2171
  %v2178 = vshrl.u32 2131351028, %v2172
  %v2179 = vor.u32 %v2177, %v2178
  %v2180 = vshll.u32 2131351028, %v2171
  %v2181 = vshrl.u32 2102212464, %v2172
  %v2182 = vor.u32 %v2180, %v2181
  %v2183 = vshll.u32 2102212464, %v2171
  %v2184 = vshrl.u32 920167782, %v2172
  %v2185 = vor.u32 %v2183, %v2184
  %v2186 = vshll.u32 920167782, %v2171
  %v2187 = vshrl.u32 1326507024, %v2172
  %v2188 = vor.u32 %v2186, %v2187
  %vm2189 = vcmp.lt.s32.totalorder %v2170, 1
  %vm2190 = vcmp.lt.s32.totalorder %v2170, 2
  %vm2191 = vcmp.lt.s32.totalorder %v2170, 3
  %vm2192 = vcmp.lt.s32.totalorder %v2170, 4
  %v2193 = vsel %vm2189, %v2173, %v2176
  %v2194 = vsel %vm2192, %v2182, 2102212464
  %v2195 = vsel %vm2191, %v2179, %v2194
  %v2196 = vsel %vm2190, %v2193, %v2195
  %v2197 = vsel %vm2189, %v2176, %v2179
  %v2198 = vsel %vm2192, %v2185, 920167782
  %v2199 = vsel %vm2191, %v2182, %v2198
  %v2200 = vsel %vm2190, %v2197, %v2199
  %v2201 = vsel %vm2189, %v2179, %v2182
  %v2202 = vsel %vm2192, %v2188, 1326507024
  %v2203 = vsel %vm2191, %v2185, %v2202
  %v2204 = vsel %vm2190, %v2201, %v2203
  %v2205 = vshll.u32 %v2165, 8
  %v2206 = vand.u32 %v2205, 65535
  %v2207 = vshrl.u32 %v2205, 16
  %v2208 = vand.u32 %v2204, 65535
  %v2209 = vshrl.u32 %v2204, 16
  %v2210 = vmul.u32 %v2206, %v2208
  %v2211 = vmul.u32 %v2206, %v2209
  %v2212 = vmul.u32 %v2207, %v2208
  %v2213 = vmul.u32 %v2207, %v2209
  %v2214 = vshll.u32 %v2211, 16
  %v2215 = vshrl.u32 %v2211, 16
  %v2216 = vshll.u32 %v2212, 16
  %v2217 = vshrl.u32 %v2212, 16
  %vm2218 = vc.u32 %v2210, %v2214
  %v2219 = vsel %vm2218, 1, 0
  %v2220 = vadd.s32 %v2210, %v2214
  %v2221 = vadd.s32 %v2213, %v2219
  %vm2222 = vc.u32 %v2220, %v2216
  %v2223 = vsel %vm2222, 1, 0
  %v2224 = vadd.s32 %v2220, %v2216
  %v2225 = vadd.s32 %v2221, %v2223
  %v2226 = vadd.s32 %v2225, %v2215
  %v2227 = vadd.s32 %v2226, %v2217
  %v2228 = vand.u32 %v2205, 65535
  %v2229 = vshrl.u32 %v2205, 16
  %v2230 = vand.u32 %v2200, 65535
  %v2231 = vshrl.u32 %v2200, 16
  %v2232 = vmul.u32 %v2228, %v2230
  %v2233 = vmul.u32 %v2228, %v2231
  %v2234 = vmul.u32 %v2229, %v2230
  %v2235 = vmul.u32 %v2229, %v2231
  %v2236 = vshll.u32 %v2233, 16
  %v2237 = vshrl.u32 %v2233, 16
  %v2238 = vshll.u32 %v2234, 16
  %v2239 = vshrl.u32 %v2234, 16
  %vm2240 = vc.u32 %v2232, %v2236
  %v2241 = vsel %vm2240, 1, 0
  %v2242 = vadd.s32 %v2232, %v2236
  %v2243 = vadd.s32 %v2235, %v2241
  %vm2244 = vc.u32 %v2242, %v2238
  %v2245 = vsel %vm2244, 1, 0
  %v2246 = vadd.s32 %v2242, %v2238
  %v2247 = vadd.s32 %v2243, %v2245
  %v2248 = vadd.s32 %v2247, %v2237
  %v2249 = vadd.s32 %v2248, %v2239
  %v2250 = vmul.u32 %v2205, %v2196
  %v2251 = vadd.s32 %v2227, %v2246
  %vm2252 = vc.u32 %v2227, %v2246
  %v2253 = vadd.s32 %v2249, 1
  %v2254 = vsel %vm2252, %v2253, %v2249
  %v2255 = vadd.s32 %v2250, %v2254
  %v2256 = vadd.s32 %v2255, 536870912
  %v2257 = vshrl.u32 %v2256, 30
  %v2258 = vshll.u32 %v2257, 30
  %v2259 = vsub.s32 %v2255, %v2258
  %vm2260 = vcmp.lt.s32.totalorder %v2259, 0
  %v2261 = vsub.s32 0, %v2259
  %v2262 = vsel %vm2260, %v2261, %v2259
  %v2263 = vclz %v2262
  %v2264 = vsub.s32 %v2263, 2
  %vm2265 = vcmp.gt.s32.totalorder 0, %v2264
  %v2266 = vsel %vm2265, 0, %v2264
  %v2267 = vsub.s32 32, %v2266
  %v2268 = vshll.u32 %v2259, %v2266
  %v2269 = vshrl.u32 %v2251, %v2267
  %v2270 = vor.u32 %v2268, %v2269
  %v2271 = vsub.s32 4294967266, %v2266
  %v2272 = vadd.s32 %v2271, 127
  %v2273 = vshll.u32 %v2272, 23
  %v2274 = vor.u32 4788187, %v2273
  %v2275 = vand.u32 2147483647, %v2274
  %v2277 = vcvt.s32.f32 %v2270
  %v2278 = vmul.f32 %v2277, %v2275
  %v2279 = vxor.u32 %v2278, 2147483648
  %v2280 = vsel %vm2159, %v2279, %v2278
  %v2281 = vsub.s32 4, %v2257
  %v2282 = vsel %vm2159, %v2281, %v2257
  %v2283 = vsel %vm2158, %v753, %v2280
  %v2284 = vsel %vm2158, 0, %v2282
  %v2285 = vmul.f32 %v2283, %v2283
  %v2286 = vmul.f32 %v2285, -0.001358992
  %v2287 = vadd.f32 %v2286, 0.041655596
  %v2288 = vmul.f32 %v2285, %v2287
  %v2289 = vadd.f32 %v2288, -0.4999988
  %v2290 = vmul.f32 %v2285, %v2289
  %v2291 = vadd.f32 1.0, %v2290
  %v2292 = vmul.f32 %v2283, %v2283
  %v2293 = vmul.f32 %v2292, -0.00019511016
  %v2294 = vadd.f32 %v2293, 0.008332121
  %v2295 = vmul.f32 %v2292, %v2294
  %v2296 = vadd.f32 %v2295, -0.16666654
  %v2297 = vmul.f32 %v2292, %v2296
  %v2298 = vadd.f32 %v2297, 1.0
  %v2299 = vmul.f32 %v2298, %v2283
  %vm2300 = vweird.f32 %v753
  %v2301 = vadd.s32 %v2284, 3
  %v2302 = vand.u32 %v2301, 3
  %vm2303 = vcmp.lt.s32.totalorder %v2302, 2
  %vm2304 = vcmp.eq.s32.totalorder %v2302, 0
  %v2305 = vxor.u32 %v2299, 2147483648
  %v2306 = vsel %vm2304, %v2291, %v2305
  %vm2307 = vcmp.eq.s32.totalorder %v2302, 2
  %v2308 = vxor.u32 %v2291, 2147483648
  %v2309 = vsel %vm2307, %v2308, %v2299
  %v2310 = vsel %vm2303, %v2306, %v2309
  %v2311 = vsel %vm2300, nan, %v2310
  %v2312 = vand.u32 2147483647, %v754
  %vm2313 = vcmp.le.f32.partialorder %v2312, 0.7853982
  %vm2314 = vcmp.lt.s32.totalorder %v754, 0
  %v2315 = vand.u32 %v754, 2139095040
  %v2316 = vshrl.u32 %v2315, 23
  %v2317 = vsub.s32 %v2316, 127
  %v2318 = vand.u32 2147483647, %v754
  %v2319 = vand.u32 %v2318, 8388607
  %v2320 = vor.u32 %v2319, 8388608
  %v2321 = vsub.s32 0, %v2320
  %v2322 = vadd.s32 %v2317, 1
  %vm2323 = vcmp.gt.s32.totalorder %v2322, 0
  %v2324 = vsel %vm2323, %v2322, 0
  %v2325 = vshrl.u32 %v2324, 5
  %v2326 = vand.u32 %v2324, 31
  %v2327 = vsub.s32 32, %v2326
  %v2328 = vshrl.u32 683565275, %v2327
  %v2329 = vshll.u32 683565275, %v2326
  %v2330 = vshrl.u32 2475754826, %v2327
  %v2331 = vor.u32 %v2329, %v2330
  %v2332 = vshll.u32 2475754826, %v2326
  %v2333 = vshrl.u32 2131351028, %v2327
  %v2334 = vor.u32 %v2332, %v2333
  %v2335 = vshll.u32 2131351028, %v2326
  %v2336 = vshrl.u32 2102212464, %v2327
  %v2337 = vor.u32 %v2335, %v2336
  %v2338 = vshll.u32 2102212464, %v2326
  %v2339 = vshrl.u32 920167782, %v2327
  %v2340 = vor.u32 %v2338, %v2339
  %v2341 = vshll.u32 920167782, %v2326
  %v2342 = vshrl.u32 1326507024, %v2327
  %v2343 = vor.u32 %v2341, %v2342
  %vm2344 = vcmp.lt.s32.totalorder %v2325, 1
  %vm2345 = vcmp.lt.s32.totalorder %v2325, 2
  %vm2346 = vcmp.lt.s32.totalorder %v2325, 3
  %vm2347 = vcmp.lt.s32.totalorder %v2325, 4
  %v2348 = vsel %vm2344, %v2328, %v2331
  %v2349 = vsel %vm2347, %v2337, 2102212464
  %v2350 = vsel %vm2346, %v2334, %v2349
  %v2351 = vsel %vm2345, %v2348, %v2350
  %v2352 = vsel %vm2344, %v2331, %v2334
  %v2353 = vsel %vm2347, %v2340, 920167782
  %v2354 = vsel %vm2346, %v2337, %v2353
  %v2355 = vsel %vm2345, %v2352, %v2354
  %v2356 = vsel %vm2344, %v2334, %v2337
  %v2357 = vsel %vm2347, %v2343, 1326507024
  %v2358 = vsel %vm2346, %v2340, %v2357
  %v2359 = vsel %vm2345, %v2356, %v2358
  %v2360 = vshll.u32 %v2320, 8
  %v2361 = vand.u32 %v2360, 65535
  %v2362 = vshrl.u32 %v2360, 16
  %v2363 = vand.u32 %v2359, 65535
  %v2364 = vshrl.u32 %v2359, 16
  %v2365 = vmul.u32 %v2361, %v2363
  %v2366 = vmul.u32 %v2361, %v2364
  %v2367 = vmul.u32 %v2362, %v2363
  %v2368 = vmul.u32 %v2362, %v2364
  %v2369 = vshll.u32 %v2366, 16
  %v2370 = vshrl.u32 %v2366, 16
  %v2371 = vshll.u32 %v2367, 16
  %v2372 = vshrl.u32 %v2367, 16
  %vm2373 = vc.u32 %v2365, %v2369
  %v2374 = vsel %vm2373, 1, 0
  %v2375 = vadd.s32 %v2365, %v2369
  %v2376 = vadd.s32 %v2368, %v2374
  %vm2377 = vc.u32 %v2375, %v2371
  %v2378 = vsel %vm2377, 1, 0
  %v2379 = vadd.s32 %v2375, %v2371
  %v2380 = vadd.s32 %v2376, %v2378
  %v2381 = vadd.s32 %v2380, %v2370
  %v2382 = vadd.s32 %v2381, %v2372
  %v2383 = vand.u32 %v2360, 65535
  %v2384 = vshrl.u32 %v2360, 16
  %v2385 = vand.u32 %v2355, 65535
  %v2386 = vshrl.u32 %v2355, 16
  %v2387 = vmul.u32 %v2383, %v2385
  %v2388 = vmul.u32 %v2383, %v2386
  %v2389 = vmul.u32 %v2384, %v2385
  %v2390 = vmul.u32 %v2384, %v2386
  %v2391 = vshll.u32 %v2388, 16
  %v2392 = vshrl.u32 %v2388, 16
  %v2393 = vshll.u32 %v2389, 16
  %v2394 = vshrl.u32 %v2389, 16
  %vm2395 = vc.u32 %v2387, %v2391
  %v2396 = vsel %vm2395, 1, 0
  %v2397 = vadd.s32 %v2387, %v2391
  %v2398 = vadd.s32 %v2390, %v2396
  %vm2399 = vc.u32 %v2397, %v2393
  %v2400 = vsel %vm2399, 1, 0
  %v2401 = vadd.s32 %v2397, %v2393
  %v2402 = vadd.s32 %v2398, %v2400
  %v2403 = vadd.s32 %v2402, %v2392
  %v2404 = vadd.s32 %v2403, %v2394
  %v2405 = vmul.u32 %v2360, %v2351
  %v2406 = vadd.s32 %v2382, %v2401
  %vm2407 = vc.u32 %v2382, %v2401
  %v2408 = vadd.s32 %v2404, 1
  %v2409 = vsel %vm2407, %v2408, %v2404
  %v2410 = vadd.s32 %v2405, %v2409
  %v2411 = vadd.s32 %v2410, 536870912
  %v2412 = vshrl.u32 %v2411, 30
  %v2413 = vshll.u32 %v2412, 30
  %v2414 = vsub.s32 %v2410, %v2413
  %vm2415 = vcmp.lt.s32.totalorder %v2414, 0
  %v2416 = vsub.s32 0, %v2414
  %v2417 = vsel %vm2415, %v2416, %v2414
  %v2418 = vclz %v2417
  %v2419 = vsub.s32 %v2418, 2
  %vm2420 = vcmp.gt.s32.totalorder 0, %v2419
  %v2421 = vsel %vm2420, 0, %v2419
  %v2422 = vsub.s32 32, %v2421
  %v2423 = vshll.u32 %v2414, %v2421
  %v2424 = vshrl.u32 %v2406, %v2422
  %v2425 = vor.u32 %v2423, %v2424
  %v2426 = vsub.s32 4294967266, %v2421
  %v2427 = vadd.s32 %v2426, 127
  %v2428 = vshll.u32 %v2427, 23
  %v2429 = vor.u32 4788187, %v2428
  %v2430 = vand.u32 2147483647, %v2429
  %v2432 = vcvt.s32.f32 %v2425
  %v2433 = vmul.f32 %v2432, %v2430
  %v2434 = vxor.u32 %v2433, 2147483648
  %v2435 = vsel %vm2314, %v2434, %v2433
  %v2436 = vsub.s32 4, %v2412
  %v2437 = vsel %vm2314, %v2436, %v2412
  %v2438 = vsel %vm2313, %v754, %v2435
  %v2439 = vsel %vm2313, 0, %v2437
  %v2440 = vmul.f32 %v2438, %v2438
  %v2441 = vmul.f32 %v2440, -0.001358992
  %v2442 = vadd.f32 %v2441, 0.041655596
  %v2443 = vmul.f32 %v2440, %v2442
  %v2444 = vadd.f32 %v2443, -0.4999988
  %v2445 = vmul.f32 %v2440, %v2444
  %v2446 = vadd.f32 1.0, %v2445
  %v2447 = vmul.f32 %v2438, %v2438
  %v2448 = vmul.f32 %v2447, -0.00019511016
  %v2449 = vadd.f32 %v2448, 0.008332121
  %v2450 = vmul.f32 %v2447, %v2449
  %v2451 = vadd.f32 %v2450, -0.16666654
  %v2452 = vmul.f32 %v2447, %v2451
  %v2453 = vadd.f32 %v2452, 1.0
  %v2454 = vmul.f32 %v2453, %v2438
  %vm2455 = vweird.f32 %v754
  %v2456 = vadd.s32 %v2439, 3
  %v2457 = vand.u32 %v2456, 3
  %vm2458 = vcmp.lt.s32.totalorder %v2457, 2
  %vm2459 = vcmp.eq.s32.totalorder %v2457, 0
  %v2460 = vxor.u32 %v2454, 2147483648
  %v2461 = vsel %vm2459, %v2446, %v2460
  %vm2462 = vcmp.eq.s32.totalorder %v2457, 2
  %v2463 = vxor.u32 %v2446, 2147483648
  %v2464 = vsel %vm2462, %v2463, %v2454
  %v2465 = vsel %vm2458, %v2461, %v2464
  %v2466 = vsel %vm2455, nan, %v2465
  %v2467 = vand.u32 2147483647, %v755
  %vm2468 = vcmp.le.f32.partialorder %v2467, 0.7853982
  %vm2469 = vcmp.lt.s32.totalorder %v755, 0
  %v2470 = vand.u32 %v755, 2139095040
  %v2471 = vshrl.u32 %v2470, 23
  %v2472 = vsub.s32 %v2471, 127
  %v2473 = vand.u32 2147483647, %v755
  %v2474 = vand.u32 %v2473, 8388607
  %v2475 = vor.u32 %v2474, 8388608
  %v2476 = vsub.s32 0, %v2475
  %v2477 = vadd.s32 %v2472, 1
  %vm2478 = vcmp.gt.s32.totalorder %v2477, 0
  %v2479 = vsel %vm2478, %v2477, 0
  %v2480 = vshrl.u32 %v2479, 5
  %v2481 = vand.u32 %v2479, 31
  %v2482 = vsub.s32 32, %v2481
  %v2483 = vshrl.u32 683565275, %v2482
  %v2484 = vshll.u32 683565275, %v2481
  %v2485 = vshrl.u32 2475754826, %v2482
  %v2486 = vor.u32 %v2484, %v2485
  %v2487 = vshll.u32 2475754826, %v2481
  %v2488 = vshrl.u32 2131351028, %v2482
  %v2489 = vor.u32 %v2487, %v2488
  %v2490 = vshll.u32 2131351028, %v2481
  %v2491 = vshrl.u32 2102212464, %v2482
  %v2492 = vor.u32 %v2490, %v2491
  %v2493 = vshll.u32 2102212464, %v2481
  %v2494 = vshrl.u32 920167782, %v2482
  %v2495 = vor.u32 %v2493, %v2494
  %v2496 = vshll.u32 920167782, %v2481
  %v2497 = vshrl.u32 1326507024, %v2482
  %v2498 = vor.u32 %v2496, %v2497
  %vm2499 = vcmp.lt.s32.totalorder %v2480, 1
  %vm2500 = vcmp.lt.s32.totalorder %v2480, 2
  %vm2501 = vcmp.lt.s32.totalorder %v2480, 3
  %vm2502 = vcmp.lt.s32.totalorder %v2480, 4
  %v2503 = vsel %vm2499, %v2483, %v2486
  %v2504 = vsel %vm2502, %v2492, 2102212464
  %v2505 = vsel %vm2501, %v2489, %v2504
  %v2506 = vsel %vm2500, %v2503, %v2505
  %v2507 = vsel %vm2499, %v2486, %v2489
  %v2508 = vsel %vm2502, %v2495, 920167782
  %v2509 = vsel %vm2501, %v2492, %v2508
  %v2510 = vsel %vm2500, %v2507, %v2509
  %v2511 = vsel %vm2499, %v2489, %v2492
  %v2512 = vsel %vm2502, %v2498, 1326507024
  %v2513 = vsel %vm2501, %v2495, %v2512
  %v2514 = vsel %vm2500, %v2511, %v2513
  %v2515 = vshll.u32 %v2475, 8
  %v2516 = vand.u32 %v2515, 65535
  %v2517 = vshrl.u32 %v2515, 16
  %v2518 = vand.u32 %v2514, 65535
  %v2519 = vshrl.u32 %v2514, 16
  %v2520 = vmul.u32 %v2516, %v2518
  %v2521 = vmul.u32 %v2516, %v2519
  %v2522 = vmul.u32 %v2517, %v2518
  %v2523 = vmul.u32 %v2517, %v2519
  %v2524 = vshll.u32 %v2521, 16
  %v2525 = vshrl.u32 %v2521, 16
  %v2526 = vshll.u32 %v2522, 16
  %v2527 = vshrl.u32 %v2522, 16
  %vm2528 = vc.u32 %v2520, %v2524
  %v2529 = vsel %vm2528, 1, 0
  %v2530 = vadd.s32 %v2520, %v2524
  %v2531 = vadd.s32 %v2523, %v2529
  %vm2532 = vc.u32 %v2530, %v2526
  %v2533 = vsel %vm2532, 1, 0
  %v2534 = vadd.s32 %v2530, %v2526
  %v2535 = vadd.s32 %v2531, %v2533
  %v2536 = vadd.s32 %v2535, %v2525
  %v2537 = vadd.s32 %v2536, %v2527
  %v2538 = vand.u32 %v2515, 65535
  %v2539 = vshrl.u32 %v2515, 16
  %v2540 = vand.u32 %v2510, 65535
  %v2541 = vshrl.u32 %v2510, 16
  %v2542 = vmul.u32 %v2538, %v2540
  %v2543 = vmul.u32 %v2538, %v2541
  %v2544 = vmul.u32 %v2539, %v2540
  %v2545 = vmul.u32 %v2539, %v2541
  %v2546 = vshll.u32 %v2543, 16
  %v2547 = vshrl.u32 %v2543, 16
  %v2548 = vshll.u32 %v2544, 16
  %v2549 = vshrl.u32 %v2544, 16
  %vm2550 = vc.u32 %v2542, %v2546
  %v2551 = vsel %vm2550, 1, 0
  %v2552 = vadd.s32 %v2542, %v2546
  %v2553 = vadd.s32 %v2545, %v2551
  %vm2554 = vc.u32 %v2552, %v2548
  %v2555 = vsel %vm2554, 1, 0
  %v2556 = vadd.s32 %v2552, %v2548
  %v2557 = vadd.s32 %v2553, %v2555
  %v2558 = vadd.s32 %v2557, %v2547
  %v2559 = vadd.s32 %v2558, %v2549
  %v2560 = vmul.u32 %v2515, %v2506
  %v2561 = vadd.s32 %v2537, %v2556
  %vm2562 = vc.u32 %v2537, %v2556
  %v2563 = vadd.s32 %v2559, 1
  %v2564 = vsel %vm2562, %v2563, %v2559
  %v2565 = vadd.s32 %v2560, %v2564
  %v2566 = vadd.s32 %v2565, 536870912
  %v2567 = vshrl.u32 %v2566, 30
  %v2568 = vshll.u32 %v2567, 30
  %v2569 = vsub.s32 %v2565, %v2568
  %vm2570 = vcmp.lt.s32.totalorder %v2569, 0
  %v2571 = vsub.s32 0, %v2569
  %v2572 = vsel %vm2570, %v2571, %v2569
  %v2573 = vclz %v2572
  %v2574 = vsub.s32 %v2573, 2
  %vm2575 = vcmp.gt.s32.totalorder 0, %v2574
  %v2576 = vsel %vm2575, 0, %v2574
  %v2577 = vsub.s32 32, %v2576
  %v2578 = vshll.u32 %v2569, %v2576
  %v2579 = vshrl.u32 %v2561, %v2577
  %v2580 = vor.u32 %v2578, %v2579
  %v2581 = vsub.s32 4294967266, %v2576
  %v2582 = vadd.s32 %v2581, 127
  %v2583 = vshll.u32 %v2582, 23
  %v2584 = vor.u32 4788187, %v2583
  %v2585 = vand.u32 2147483647, %v2584
  %v2587 = vcvt.s32.f32 %v2580
  %v2588 = vmul.f32 %v2587, %v2585
  %v2589 = vxor.u32 %v2588, 2147483648
  %v2590 = vsel %vm2469, %v2589, %v2588
  %v2591 = vsub.s32 4, %v2567
  %v2592 = vsel %vm2469, %v2591, %v2567
  %v2593 = vsel %vm2468, %v755, %v2590
  %v2594 = vsel %vm2468, 0, %v2592
  %v2595 = vmul.f32 %v2593, %v2593
  %v2596 = vmul.f32 %v2595, -0.001358992
  %v2597 = vadd.f32 %v2596, 0.041655596
  %v2598 = vmul.f32 %v2595, %v2597
  %v2599 = vadd.f32 %v2598, -0.4999988
  %v2600 = vmul.f32 %v2595, %v2599
  %v2601 = vadd.f32 1.0, %v2600
  %v2602 = vmul.f32 %v2593, %v2593
  %v2603 = vmul.f32 %v2602, -0.00019511016
  %v2604 = vadd.f32 %v2603, 0.008332121
  %v2605 = vmul.f32 %v2602, %v2604
  %v2606 = vadd.f32 %v2605, -0.16666654
  %v2607 = vmul.f32 %v2602, %v2606
  %v2608 = vadd.f32 %v2607, 1.0
  %v2609 = vmul.f32 %v2608, %v2593
  %vm2610 = vweird.f32 %v755
  %v2611 = vadd.s32 %v2594, 3
  %v2612 = vand.u32 %v2611, 3
  %vm2613 = vcmp.lt.s32.totalorder %v2612, 2
  %vm2614 = vcmp.eq.s32.totalorder %v2612, 0
  %v2615 = vxor.u32 %v2609, 2147483648
  %v2616 = vsel %vm2614, %v2601, %v2615
  %vm2617 = vcmp.eq.s32.totalorder %v2612, 2
  %v2618 = vxor.u32 %v2601, 2147483648
  %v2619 = vsel %vm2617, %v2618, %v2609
  %v2620 = vsel %vm2613, %v2616, %v2619
  %v2621 = vsel %vm2610, nan, %v2620
  %v2622 = vand.u32 2147483647, %v756
  %vm2623 = vcmp.le.f32.partialorder %v2622, 0.7853982
  %vm2624 = vcmp.lt.s32.totalorder %v756, 0
  %v2625 = vand.u32 %v756, 2139095040
  %v2626 = vshrl.u32 %v2625, 23
  %v2627 = vsub.s32 %v2626, 127
  %v2628 = vand.u32 2147483647, %v756
  %v2629 = vand.u32 %v2628, 8388607
  %v2630 = vor.u32 %v2629, 8388608
  %v2631 = vsub.s32 0, %v2630
  %v2632 = vadd.s32 %v2627, 1
  %vm2633 = vcmp.gt.s32.totalorder %v2632, 0
  %v2634 = vsel %vm2633, %v2632, 0
  %v2635 = vshrl.u32 %v2634, 5
  %v2636 = vand.u32 %v2634, 31
  %v2637 = vsub.s32 32, %v2636
  %v2638 = vshrl.u32 683565275, %v2637
  %v2639 = vshll.u32 683565275, %v2636
  %v2640 = vshrl.u32 2475754826, %v2637
  %v2641 = vor.u32 %v2639, %v2640
  %v2642 = vshll.u32 2475754826, %v2636
  %v2643 = vshrl.u32 2131351028, %v2637
  %v2644 = vor.u32 %v2642, %v2643
  %v2645 = vshll.u32 2131351028, %v2636
  %v2646 = vshrl.u32 2102212464, %v2637
  %v2647 = vor.u32 %v2645, %v2646
  %v2648 = vshll.u32 2102212464, %v2636
  %v2649 = vshrl.u32 920167782, %v2637
  %v2650 = vor.u32 %v2648, %v2649
  %v2651 = vshll.u32 920167782, %v2636
  %v2652 = vshrl.u32 1326507024, %v2637
  %v2653 = vor.u32 %v2651, %v2652
  %vm2654 = vcmp.lt.s32.totalorder %v2635, 1
  %vm2655 = vcmp.lt.s32.totalorder %v2635, 2
  %vm2656 = vcmp.lt.s32.totalorder %v2635, 3
  %vm2657 = vcmp.lt.s32.totalorder %v2635, 4
  %v2658 = vsel %vm2654, %v2638, %v2641
  %v2659 = vsel %vm2657, %v2647, 2102212464
  %v2660 = vsel %vm2656, %v2644, %v2659
  %v2661 = vsel %vm2655, %v2658, %v2660
  %v2662 = vsel %vm2654, %v2641, %v2644
  %v2663 = vsel %vm2657, %v2650, 920167782
  %v2664 = vsel %vm2656, %v2647, %v2663
  %v2665 = vsel %vm2655, %v2662, %v2664
  %v2666 = vsel %vm2654, %v2644, %v2647
  %v2667 = vsel %vm2657, %v2653, 1326507024
  %v2668 = vsel %vm2656, %v2650, %v2667
  %v2669 = vsel %vm2655, %v2666, %v2668
  %v2670 = vshll.u32 %v2630, 8
  %v2671 = vand.u32 %v2670, 65535
  %v2672 = vshrl.u32 %v2670, 16
  %v2673 = vand.u32 %v2669, 65535
  %v2674 = vshrl.u32 %v2669, 16
  %v2675 = vmul.u32 %v2671, %v2673
  %v2676 = vmul.u32 %v2671, %v2674
  %v2677 = vmul.u32 %v2672, %v2673
  %v2678 = vmul.u32 %v2672, %v2674
  %v2679 = vshll.u32 %v2676, 16
  %v2680 = vshrl.u32 %v2676, 16
  %v2681 = vshll.u32 %v2677, 16
  %v2682 = vshrl.u32 %v2677, 16
  %vm2683 = vc.u32 %v2675, %v2679
  %v2684 = vsel %vm2683, 1, 0
  %v2685 = vadd.s32 %v2675, %v2679
  %v2686 = vadd.s32 %v2678, %v2684
  %vm2687 = vc.u32 %v2685, %v2681
  %v2688 = vsel %vm2687, 1, 0
  %v2689 = vadd.s32 %v2685, %v2681
  %v2690 = vadd.s32 %v2686, %v2688
  %v2691 = vadd.s32 %v2690, %v2680
  %v2692 = vadd.s32 %v2691, %v2682
  %v2693 = vand.u32 %v2670, 65535
  %v2694 = vshrl.u32 %v2670, 16
  %v2695 = vand.u32 %v2665, 65535
  %v2696 = vshrl.u32 %v2665, 16
  %v2697 = vmul.u32 %v2693, %v2695
  %v2698 = vmul.u32 %v2693, %v2696
  %v2699 = vmul.u32 %v2694, %v2695
  %v2700 = vmul.u32 %v2694, %v2696
  %v2701 = vshll.u32 %v2698, 16
  %v2702 = vshrl.u32 %v2698, 16
  %v2703 = vshll.u32 %v2699, 16
  %v2704 = vshrl.u32 %v2699, 16
  %vm2705 = vc.u32 %v2697, %v2701
  %v2706 = vsel %vm2705, 1, 0
  %v2707 = vadd.s32 %v2697, %v2701
  %v2708 = vadd.s32 %v2700, %v2706
  %vm2709 = vc.u32 %v2707, %v2703
  %v2710 = vsel %vm2709, 1, 0
  %v2711 = vadd.s32 %v2707, %v2703
  %v2712 = vadd.s32 %v2708, %v2710
  %v2713 = vadd.s32 %v2712, %v2702
  %v2714 = vadd.s32 %v2713, %v2704
  %v2715 = vmul.u32 %v2670, %v2661
  %v2716 = vadd.s32 %v2692, %v2711
  %vm2717 = vc.u32 %v2692, %v2711
  %v2718 = vadd.s32 %v2714, 1
  %v2719 = vsel %vm2717, %v2718, %v2714
  %v2720 = vadd.s32 %v2715, %v2719
  %v2721 = vadd.s32 %v2720, 536870912
  %v2722 = vshrl.u32 %v2721, 30
  %v2723 = vshll.u32 %v2722, 30
  %v2724 = vsub.s32 %v2720, %v2723
  %vm2725 = vcmp.lt.s32.totalorder %v2724, 0
  %v2726 = vsub.s32 0, %v2724
  %v2727 = vsel %vm2725, %v2726, %v2724
  %v2728 = vclz %v2727
  %v2729 = vsub.s32 %v2728, 2
  %vm2730 = vcmp.gt.s32.totalorder 0, %v2729
  %v2731 = vsel %vm2730, 0, %v2729
  %v2732 = vsub.s32 32, %v2731
  %v2733 = vshll.u32 %v2724, %v2731
  %v2734 = vshrl.u32 %v2716, %v2732
  %v2735 = vor.u32 %v2733, %v2734
  %v2736 = vsub.s32 4294967266, %v2731
  %v2737 = vadd.s32 %v2736, 127
  %v2738 = vshll.u32 %v2737, 23
  %v2739 = vor.u32 4788187, %v2738
  %v2740 = vand.u32 2147483647, %v2739
  %v2742 = vcvt.s32.f32 %v2735
  %v2743 = vmul.f32 %v2742, %v2740
  %v2744 = vxor.u32 %v2743, 2147483648
  %v2745 = vsel %vm2624, %v2744, %v2743
  %v2746 = vsub.s32 4, %v2722
  %v2747 = vsel %vm2624, %v2746, %v2722
  %v2748 = vsel %vm2623, %v756, %v2745
  %v2749 = vsel %vm2623, 0, %v2747
  %v2750 = vmul.f32 %v2748, %v2748
  %v2751 = vmul.f32 %v2750, -0.001358992
  %v2752 = vadd.f32 %v2751, 0.041655596
  %v2753 = vmul.f32 %v2750, %v2752
  %v2754 = vadd.f32 %v2753, -0.4999988
  %v2755 = vmul.f32 %v2750, %v2754
  %v2756 = vadd.f32 1.0, %v2755
  %v2757 = vmul.f32 %v2748, %v2748
  %v2758 = vmul.f32 %v2757, -0.00019511016
  %v2759 = vadd.f32 %v2758, 0.008332121
  %v2760 = vmul.f32 %v2757, %v2759
  %v2761 = vadd.f32 %v2760, -0.16666654
  %v2762 = vmul.f32 %v2757, %v2761
  %v2763 = vadd.f32 %v2762, 1.0
  %v2764 = vmul.f32 %v2763, %v2748
  %vm2765 = vweird.f32 %v756
  %v2766 = vadd.s32 %v2749, 3
  %v2767 = vand.u32 %v2766, 3
  %vm2768 = vcmp.lt.s32.totalorder %v2767, 2
  %vm2769 = vcmp.eq.s32.totalorder %v2767, 0
  %v2770 = vxor.u32 %v2764, 2147483648
  %v2771 = vsel %vm2769, %v2756, %v2770
  %vm2772 = vcmp.eq.s32.totalorder %v2767, 2
  %v2773 = vxor.u32 %v2756, 2147483648
  %v2774 = vsel %vm2772, %v2773, %v2764
  %v2775 = vsel %vm2768, %v2771, %v2774
  %v2776 = vsel %vm2765, nan, %v2775
  %v2777 = vand.u32 2147483647, %v757
  %vm2778 = vcmp.le.f32.partialorder %v2777, 0.7853982
  %vm2779 = vcmp.lt.s32.totalorder %v757, 0
  %v2780 = vand.u32 %v757, 2139095040
  %v2781 = vshrl.u32 %v2780, 23
  %v2782 = vsub.s32 %v2781, 127
  %v2783 = vand.u32 2147483647, %v757
  %v2784 = vand.u32 %v2783, 8388607
  %v2785 = vor.u32 %v2784, 8388608
  %v2786 = vsub.s32 0, %v2785
  %v2787 = vadd.s32 %v2782, 1
  %vm2788 = vcmp.gt.s32.totalorder %v2787, 0
  %v2789 = vsel %vm2788, %v2787, 0
  %v2790 = vshrl.u32 %v2789, 5
  %v2791 = vand.u32 %v2789, 31
  %v2792 = vsub.s32 32, %v2791
  %v2793 = vshrl.u32 683565275, %v2792
  %v2794 = vshll.u32 683565275, %v2791
  %v2795 = vshrl.u32 2475754826, %v2792
  %v2796 = vor.u32 %v2794, %v2795
  %v2797 = vshll.u32 2475754826, %v2791
  %v2798 = vshrl.u32 2131351028, %v2792
  %v2799 = vor.u32 %v2797, %v2798
  %v2800 = vshll.u32 2131351028, %v2791
  %v2801 = vshrl.u32 2102212464, %v2792
  %v2802 = vor.u32 %v2800, %v2801
  %v2803 = vshll.u32 2102212464, %v2791
  %v2804 = vshrl.u32 920167782, %v2792
  %v2805 = vor.u32 %v2803, %v2804
  %v2806 = vshll.u32 920167782, %v2791
  %v2807 = vshrl.u32 1326507024, %v2792
  %v2808 = vor.u32 %v2806, %v2807
  %vm2809 = vcmp.lt.s32.totalorder %v2790, 1
  %vm2810 = vcmp.lt.s32.totalorder %v2790, 2
  %vm2811 = vcmp.lt.s32.totalorder %v2790, 3
  %vm2812 = vcmp.lt.s32.totalorder %v2790, 4
  %v2813 = vsel %vm2809, %v2793, %v2796
  %v2814 = vsel %vm2812, %v2802, 2102212464
  %v2815 = vsel %vm2811, %v2799, %v2814
  %v2816 = vsel %vm2810, %v2813, %v2815
  %v2817 = vsel %vm2809, %v2796, %v2799
  %v2818 = vsel %vm2812, %v2805, 920167782
  %v2819 = vsel %vm2811, %v2802, %v2818
  %v2820 = vsel %vm2810, %v2817, %v2819
  %v2821 = vsel %vm2809, %v2799, %v2802
  %v2822 = vsel %vm2812, %v2808, 1326507024
  %v2823 = vsel %vm2811, %v2805, %v2822
  %v2824 = vsel %vm2810, %v2821, %v2823
  %v2825 = vshll.u32 %v2785, 8
  %v2826 = vand.u32 %v2825, 65535
  %v2827 = vshrl.u32 %v2825, 16
  %v2828 = vand.u32 %v2824, 65535
  %v2829 = vshrl.u32 %v2824, 16
  %v2830 = vmul.u32 %v2826, %v2828
  %v2831 = vmul.u32 %v2826, %v2829
  %v2832 = vmul.u32 %v2827, %v2828
  %v2833 = vmul.u32 %v2827, %v2829
  %v2834 = vshll.u32 %v2831, 16
  %v2835 = vshrl.u32 %v2831, 16
  %v2836 = vshll.u32 %v2832, 16
  %v2837 = vshrl.u32 %v2832, 16
  %vm2838 = vc.u32 %v2830, %v2834
  %v2839 = vsel %vm2838, 1, 0
  %v2840 = vadd.s32 %v2830, %v2834
  %v2841 = vadd.s32 %v2833, %v2839
  %vm2842 = vc.u32 %v2840, %v2836
  %v2843 = vsel %vm2842, 1, 0
  %v2844 = vadd.s32 %v2840, %v2836
  %v2845 = vadd.s32 %v2841, %v2843
  %v2846 = vadd.s32 %v2845, %v2835
  %v2847 = vadd.s32 %v2846, %v2837
  %v2848 = vand.u32 %v2825, 65535
  %v2849 = vshrl.u32 %v2825, 16
  %v2850 = vand.u32 %v2820, 65535
  %v2851 = vshrl.u32 %v2820, 16
  %v2852 = vmul.u32 %v2848, %v2850
  %v2853 = vmul.u32 %v2848, %v2851
  %v2854 = vmul.u32 %v2849, %v2850
  %v2855 = vmul.u32 %v2849, %v2851
  %v2856 = vshll.u32 %v2853, 16
  %v2857 = vshrl.u32 %v2853, 16
  %v2858 = vshll.u32 %v2854, 16
  %v2859 = vshrl.u32 %v2854, 16
  %vm2860 = vc.u32 %v2852, %v2856
  %v2861 = vsel %vm2860, 1, 0
  %v2862 = vadd.s32 %v2852, %v2856
  %v2863 = vadd.s32 %v2855, %v2861
  %vm2864 = vc.u32 %v2862, %v2858
  %v2865 = vsel %vm2864, 1, 0
  %v2866 = vadd.s32 %v2862, %v2858
  %v2867 = vadd.s32 %v2863, %v2865
  %v2868 = vadd.s32 %v2867, %v2857
  %v2869 = vadd.s32 %v2868, %v2859
  %v2870 = vmul.u32 %v2825, %v2816
  %v2871 = vadd.s32 %v2847, %v2866
  %vm2872 = vc.u32 %v2847, %v2866
  %v2873 = vadd.s32 %v2869, 1
  %v2874 = vsel %vm2872, %v2873, %v2869
  %v2875 = vadd.s32 %v2870, %v2874
  %v2876 = vadd.s32 %v2875, 536870912
  %v2877 = vshrl.u32 %v2876, 30
  %v2878 = vshll.u32 %v2877, 30
  %v2879 = vsub.s32 %v2875, %v2878
  %vm2880 = vcmp.lt.s32.totalorder %v2879, 0
  %v2881 = vsub.s32 0, %v2879
  %v2882 = vsel %vm2880, %v2881, %v2879
  %v2883 = vclz %v2882
  %v2884 = vsub.s32 %v2883, 2
  %vm2885 = vcmp.gt.s32.totalorder 0, %v2884
  %v2886 = vsel %vm2885, 0, %v2884
  %v2887 = vsub.s32 32, %v2886
  %v2888 = vshll.u32 %v2879, %v2886
  %v2889 = vshrl.u32 %v2871, %v2887
  %v2890 = vor.u32 %v2888, %v2889
  %v2891 = vsub.s32 4294967266, %v2886
  %v2892 = vadd.s32 %v2891, 127
  %v2893 = vshll.u32 %v2892, 23
  %v2894 = vor.u32 4788187, %v2893
  %v2895 = vand.u32 2147483647, %v2894
  %v2897 = vcvt.s32.f32 %v2890
  %v2898 = vmul.f32 %v2897, %v2895
  %v2899 = vxor.u32 %v2898, 2147483648
  %v2900 = vsel %vm2779, %v2899, %v2898
  %v2901 = vsub.s32 4, %v2877
  %v2902 = vsel %vm2779, %v2901, %v2877
  %v2903 = vsel %vm2778, %v757, %v2900
  %v2904 = vsel %vm2778, 0, %v2902
  %v2905 = vmul.f32 %v2903, %v2903
  %v2906 = vmul.f32 %v2905, -0.001358992
  %v2907 = vadd.f32 %v2906, 0.041655596
  %v2908 = vmul.f32 %v2905, %v2907
  %v2909 = vadd.f32 %v2908, -0.4999988
  %v2910 = vmul.f32 %v2905, %v2909
  %v2911 = vadd.f32 1.0, %v2910
  %v2912 = vmul.f32 %v2903, %v2903
  %v2913 = vmul.f32 %v2912, -0.00019511016
  %v2914 = vadd.f32 %v2913, 0.008332121
  %v2915 = vmul.f32 %v2912, %v2914
  %v2916 = vadd.f32 %v2915, -0.16666654
  %v2917 = vmul.f32 %v2912, %v2916
  %v2918 = vadd.f32 %v2917, 1.0
  %v2919 = vmul.f32 %v2918, %v2903
  %vm2920 = vweird.f32 %v757
  %v2921 = vadd.s32 %v2904, 3
  %v2922 = vand.u32 %v2921, 3
  %vm2923 = vcmp.lt.s32.totalorder %v2922, 2
  %vm2924 = vcmp.eq.s32.totalorder %v2922, 0
  %v2925 = vxor.u32 %v2919, 2147483648
  %v2926 = vsel %vm2924, %v2911, %v2925
  %vm2927 = vcmp.eq.s32.totalorder %v2922, 2
  %v2928 = vxor.u32 %v2911, 2147483648
  %v2929 = vsel %vm2927, %v2928, %v2919
  %v2930 = vsel %vm2923, %v2926, %v2929
  %v2931 = vsel %vm2920, nan, %v2930
  %v2932 = vand.u32 2147483647, %v758
  %vm2933 = vcmp.le.f32.partialorder %v2932, 0.7853982
  %vm2934 = vcmp.lt.s32.totalorder %v758, 0
  %v2935 = vand.u32 %v758, 2139095040
  %v2936 = vshrl.u32 %v2935, 23
  %v2937 = vsub.s32 %v2936, 127
  %v2938 = vand.u32 2147483647, %v758
  %v2939 = vand.u32 %v2938, 8388607
  %v2940 = vor.u32 %v2939, 8388608
  %v2941 = vsub.s32 0, %v2940
  %v2942 = vadd.s32 %v2937, 1
  %vm2943 = vcmp.gt.s32.totalorder %v2942, 0
  %v2944 = vsel %vm2943, %v2942, 0
  %v2945 = vshrl.u32 %v2944, 5
  %v2946 = vand.u32 %v2944, 31
  %v2947 = vsub.s32 32, %v2946
  %v2948 = vshrl.u32 683565275, %v2947
  %v2949 = vshll.u32 683565275, %v2946
  %v2950 = vshrl.u32 2475754826, %v2947
  %v2951 = vor.u32 %v2949, %v2950
  %v2952 = vshll.u32 2475754826, %v2946
  %v2953 = vshrl.u32 2131351028, %v2947
  %v2954 = vor.u32 %v2952, %v2953
  %v2955 = vshll.u32 2131351028, %v2946
  %v2956 = vshrl.u32 2102212464, %v2947
  %v2957 = vor.u32 %v2955, %v2956
  %v2958 = vshll.u32 2102212464, %v2946
  %v2959 = vshrl.u32 920167782, %v2947
  %v2960 = vor.u32 %v2958, %v2959
  %v2961 = vshll.u32 920167782, %v2946
  %v2962 = vshrl.u32 1326507024, %v2947
  %v2963 = vor.u32 %v2961, %v2962
  %vm2964 = vcmp.lt.s32.totalorder %v2945, 1
  %vm2965 = vcmp.lt.s32.totalorder %v2945, 2
  %vm2966 = vcmp.lt.s32.totalorder %v2945, 3
  %vm2967 = vcmp.lt.s32.totalorder %v2945, 4
  %v2968 = vsel %vm2964, %v2948, %v2951
  %v2969 = vsel %vm2967, %v2957, 2102212464
  %v2970 = vsel %vm2966, %v2954, %v2969
  %v2971 = vsel %vm2965, %v2968, %v2970
  %v2972 = vsel %vm2964, %v2951, %v2954
  %v2973 = vsel %vm2967, %v2960, 920167782
  %v2974 = vsel %vm2966, %v2957, %v2973
  %v2975 = vsel %vm2965, %v2972, %v2974
  %v2976 = vsel %vm2964, %v2954, %v2957
  %v2977 = vsel %vm2967, %v2963, 1326507024
  %v2978 = vsel %vm2966, %v2960, %v2977
  %v2979 = vsel %vm2965, %v2976, %v2978
  %v2980 = vshll.u32 %v2940, 8
  %v2981 = vand.u32 %v2980, 65535
  %v2982 = vshrl.u32 %v2980, 16
  %v2983 = vand.u32 %v2979, 65535
  %v2984 = vshrl.u32 %v2979, 16
  %v2985 = vmul.u32 %v2981, %v2983
  %v2986 = vmul.u32 %v2981, %v2984
  %v2987 = vmul.u32 %v2982, %v2983
  %v2988 = vmul.u32 %v2982, %v2984
  %v2989 = vshll.u32 %v2986, 16
  %v2990 = vshrl.u32 %v2986, 16
  %v2991 = vshll.u32 %v2987, 16
  %v2992 = vshrl.u32 %v2987, 16
  %vm2993 = vc.u32 %v2985, %v2989
  %v2994 = vsel %vm2993, 1, 0
  %v2995 = vadd.s32 %v2985, %v2989
  %v2996 = vadd.s32 %v2988, %v2994
  %vm2997 = vc.u32 %v2995, %v2991
  %v2998 = vsel %vm2997, 1, 0
  %v2999 = vadd.s32 %v2995, %v2991
  %v3000 = vadd.s32 %v2996, %v2998
  %v3001 = vadd.s32 %v3000, %v2990
  %v3002 = vadd.s32 %v3001, %v2992
  %v3003 = vand.u32 %v2980, 65535
  %v3004 = vshrl.u32 %v2980, 16
  %v3005 = vand.u32 %v2975, 65535
  %v3006 = vshrl.u32 %v2975, 16
  %v3007 = vmul.u32 %v3003, %v3005
  %v3008 = vmul.u32 %v3003, %v3006
  %v3009 = vmul.u32 %v3004, %v3005
  %v3010 = vmul.u32 %v3004, %v3006
  %v3011 = vshll.u32 %v3008, 16
  %v3012 = vshrl.u32 %v3008, 16
  %v3013 = vshll.u32 %v3009, 16
  %v3014 = vshrl.u32 %v3009, 16
  %vm3015 = vc.u32 %v3007, %v3011
  %v3016 = vsel %vm3015, 1, 0
  %v3017 = vadd.s32 %v3007, %v3011
  %v3018 = vadd.s32 %v3010, %v3016
  %vm3019 = vc.u32 %v3017, %v3013
  %v3020 = vsel %vm3019, 1, 0
  %v3021 = vadd.s32 %v3017, %v3013
  %v3022 = vadd.s32 %v3018, %v3020
  %v3023 = vadd.s32 %v3022, %v3012
  %v3024 = vadd.s32 %v3023, %v3014
  %v3025 = vmul.u32 %v2980, %v2971
  %v3026 = vadd.s32 %v3002, %v3021
  %vm3027 = vc.u32 %v3002, %v3021
  %v3028 = vadd.s32 %v3024, 1
  %v3029 = vsel %vm3027, %v3028, %v3024
  %v3030 = vadd.s32 %v3025, %v3029
  %v3031 = vadd.s32 %v3030, 536870912
  %v3032 = vshrl.u32 %v3031, 30
  %v3033 = vshll.u32 %v3032, 30
  %v3034 = vsub.s32 %v3030, %v3033
  %vm3035 = vcmp.lt.s32.totalorder %v3034, 0
  %v3036 = vsub.s32 0, %v3034
  %v3037 = vsel %vm3035, %v3036, %v3034
  %v3038 = vclz %v3037
  %v3039 = vsub.s32 %v3038, 2
  %vm3040 = vcmp.gt.s32.totalorder 0, %v3039
  %v3041 = vsel %vm3040, 0, %v3039
  %v3042 = vsub.s32 32, %v3041
  %v3043 = vshll.u32 %v3034, %v3041
  %v3044 = vshrl.u32 %v3026, %v3042
  %v3045 = vor.u32 %v3043, %v3044
  %v3046 = vsub.s32 4294967266, %v3041
  %v3047 = vadd.s32 %v3046, 127
  %v3048 = vshll.u32 %v3047, 23
  %v3049 = vor.u32 4788187, %v3048
  %v3050 = vand.u32 2147483647, %v3049
  %v3052 = vcvt.s32.f32 %v3045
  %v3053 = vmul.f32 %v3052, %v3050
  %v3054 = vxor.u32 %v3053, 2147483648
  %v3055 = vsel %vm2934, %v3054, %v3053
  %v3056 = vsub.s32 4, %v3032
  %v3057 = vsel %vm2934, %v3056, %v3032
  %v3058 = vsel %vm2933, %v758, %v3055
  %v3059 = vsel %vm2933, 0, %v3057
  %v3060 = vmul.f32 %v3058, %v3058
  %v3061 = vmul.f32 %v3060, -0.001358992
  %v3062 = vadd.f32 %v3061, 0.041655596
  %v3063 = vmul.f32 %v3060, %v3062
  %v3064 = vadd.f32 %v3063, -0.4999988
  %v3065 = vmul.f32 %v3060, %v3064
  %v3066 = vadd.f32 1.0, %v3065
  %v3067 = vmul.f32 %v3058, %v3058
  %v3068 = vmul.f32 %v3067, -0.00019511016
  %v3069 = vadd.f32 %v3068, 0.008332121
  %v3070 = vmul.f32 %v3067, %v3069
  %v3071 = vadd.f32 %v3070, -0.16666654
  %v3072 = vmul.f32 %v3067, %v3071
  %v3073 = vadd.f32 %v3072, 1.0
  %v3074 = vmul.f32 %v3073, %v3058
  %vm3075 = vweird.f32 %v758
  %v3076 = vadd.s32 %v3059, 3
  %v3077 = vand.u32 %v3076, 3
  %vm3078 = vcmp.lt.s32.totalorder %v3077, 2
  %vm3079 = vcmp.eq.s32.totalorder %v3077, 0
  %v3080 = vxor.u32 %v3074, 2147483648
  %v3081 = vsel %vm3079, %v3066, %v3080
  %vm3082 = vcmp.eq.s32.totalorder %v3077, 2
  %v3083 = vxor.u32 %v3066, 2147483648
  %v3084 = vsel %vm3082, %v3083, %v3074
  %v3085 = vsel %vm3078, %v3081, %v3084
  %v3086 = vsel %vm3075, nan, %v3085
  %v3087 = vand.u32 2147483647, %v759
  %vm3088 = vcmp.le.f32.partialorder %v3087, 0.7853982
  %vm3089 = vcmp.lt.s32.totalorder %v759, 0
  %v3090 = vand.u32 %v759, 2139095040
  %v3091 = vshrl.u32 %v3090, 23
  %v3092 = vsub.s32 %v3091, 127
  %v3093 = vand.u32 2147483647, %v759
  %v3094 = vand.u32 %v3093, 8388607
  %v3095 = vor.u32 %v3094, 8388608
  %v3096 = vsub.s32 0, %v3095
  %v3097 = vadd.s32 %v3092, 1
  %vm3098 = vcmp.gt.s32.totalorder %v3097, 0
  %v3099 = vsel %vm3098, %v3097, 0
  %v3100 = vshrl.u32 %v3099, 5
  %v3101 = vand.u32 %v3099, 31
  %v3102 = vsub.s32 32, %v3101
  %v3103 = vshrl.u32 683565275, %v3102
  %v3104 = vshll.u32 683565275, %v3101
  %v3105 = vshrl.u32 2475754826, %v3102
  %v3106 = vor.u32 %v3104, %v3105
  %v3107 = vshll.u32 2475754826, %v3101
  %v3108 = vshrl.u32 2131351028, %v3102
  %v3109 = vor.u32 %v3107, %v3108
  %v3110 = vshll.u32 2131351028, %v3101
  %v3111 = vshrl.u32 2102212464, %v3102
  %v3112 = vor.u32 %v3110, %v3111
  %v3113 = vshll.u32 2102212464, %v3101
  %v3114 = vshrl.u32 920167782, %v3102
  %v3115 = vor.u32 %v3113, %v3114
  %v3116 = vshll.u32 920167782, %v3101
  %v3117 = vshrl.u32 1326507024, %v3102
  %v3118 = vor.u32 %v3116, %v3117
  %vm3119 = vcmp.lt.s32.totalorder %v3100, 1
  %vm3120 = vcmp.lt.s32.totalorder %v3100, 2
  %vm3121 = vcmp.lt.s32.totalorder %v3100, 3
  %vm3122 = vcmp.lt.s32.totalorder %v3100, 4
  %v3123 = vsel %vm3119, %v3103, %v3106
  %v3124 = vsel %vm3122, %v3112, 2102212464
  %v3125 = vsel %vm3121, %v3109, %v3124
  %v3126 = vsel %vm3120, %v3123, %v3125
  %v3127 = vsel %vm3119, %v3106, %v3109
  %v3128 = vsel %vm3122, %v3115, 920167782
  %v3129 = vsel %vm3121, %v3112, %v3128
  %v3130 = vsel %vm3120, %v3127, %v3129
  %v3131 = vsel %vm3119, %v3109, %v3112
  %v3132 = vsel %vm3122, %v3118, 1326507024
  %v3133 = vsel %vm3121, %v3115, %v3132
  %v3134 = vsel %vm3120, %v3131, %v3133
  %v3135 = vshll.u32 %v3095, 8
  %v3136 = vand.u32 %v3135, 65535
  %v3137 = vshrl.u32 %v3135, 16
  %v3138 = vand.u32 %v3134, 65535
  %v3139 = vshrl.u32 %v3134, 16
  %v3140 = vmul.u32 %v3136, %v3138
  %v3141 = vmul.u32 %v3136, %v3139
  %v3142 = vmul.u32 %v3137, %v3138
  %v3143 = vmul.u32 %v3137, %v3139
  %v3144 = vshll.u32 %v3141, 16
  %v3145 = vshrl.u32 %v3141, 16
  %v3146 = vshll.u32 %v3142, 16
  %v3147 = vshrl.u32 %v3142, 16
  %vm3148 = vc.u32 %v3140, %v3144
  %v3149 = vsel %vm3148, 1, 0
  %v3150 = vadd.s32 %v3140, %v3144
  %v3151 = vadd.s32 %v3143, %v3149
  %vm3152 = vc.u32 %v3150, %v3146
  %v3153 = vsel %vm3152, 1, 0
  %v3154 = vadd.s32 %v3150, %v3146
  %v3155 = vadd.s32 %v3151, %v3153
  %v3156 = vadd.s32 %v3155, %v3145
  %v3157 = vadd.s32 %v3156, %v3147
  %v3158 = vand.u32 %v3135, 65535
  %v3159 = vshrl.u32 %v3135, 16
  %v3160 = vand.u32 %v3130, 65535
  %v3161 = vshrl.u32 %v3130, 16
  %v3162 = vmul.u32 %v3158, %v3160
  %v3163 = vmul.u32 %v3158, %v3161
  %v3164 = vmul.u32 %v3159, %v3160
  %v3165 = vmul.u32 %v3159, %v3161
  %v3166 = vshll.u32 %v3163, 16
  %v3167 = vshrl.u32 %v3163, 16
  %v3168 = vshll.u32 %v3164, 16
  %v3169 = vshrl.u32 %v3164, 16
  %vm3170 = vc.u32 %v3162, %v3166
  %v3171 = vsel %vm3170, 1, 0
  %v3172 = vadd.s32 %v3162, %v3166
  %v3173 = vadd.s32 %v3165, %v3171
  %vm3174 = vc.u32 %v3172, %v3168
  %v3175 = vsel %vm3174, 1, 0
  %v3176 = vadd.s32 %v3172, %v3168
  %v3177 = vadd.s32 %v3173, %v3175
  %v3178 = vadd.s32 %v3177, %v3167
  %v3179 = vadd.s32 %v3178, %v3169
  %v3180 = vmul.u32 %v3135, %v3126
  %v3181 = vadd.s32 %v3157, %v3176
  %vm3182 = vc.u32 %v3157, %v3176
  %v3183 = vadd.s32 %v3179, 1
  %v3184 = vsel %vm3182, %v3183, %v3179
  %v3185 = vadd.s32 %v3180, %v3184
  %v3186 = vadd.s32 %v3185, 536870912
  %v3187 = vshrl.u32 %v3186, 30
  %v3188 = vshll.u32 %v3187, 30
  %v3189 = vsub.s32 %v3185, %v3188
  %vm3190 = vcmp.lt.s32.totalorder %v3189, 0
  %v3191 = vsub.s32 0, %v3189
  %v3192 = vsel %vm3190, %v3191, %v3189
  %v3193 = vclz %v3192
  %v3194 = vsub.s32 %v3193, 2
  %vm3195 = vcmp.gt.s32.totalorder 0, %v3194
  %v3196 = vsel %vm3195, 0, %v3194
  %v3197 = vsub.s32 32, %v3196
  %v3198 = vshll.u32 %v3189, %v3196
  %v3199 = vshrl.u32 %v3181, %v3197
  %v3200 = vor.u32 %v3198, %v3199
  %v3201 = vsub.s32 4294967266, %v3196
  %v3202 = vadd.s32 %v3201, 127
  %v3203 = vshll.u32 %v3202, 23
  %v3204 = vor.u32 4788187, %v3203
  %v3205 = vand.u32 2147483647, %v3204
  %v3207 = vcvt.s32.f32 %v3200
  %v3208 = vmul.f32 %v3207, %v3205
  %v3209 = vxor.u32 %v3208, 2147483648
  %v3210 = vsel %vm3089, %v3209, %v3208
  %v3211 = vsub.s32 4, %v3187
  %v3212 = vsel %vm3089, %v3211, %v3187
  %v3213 = vsel %vm3088, %v759, %v3210
  %v3214 = vsel %vm3088, 0, %v3212
  %v3215 = vmul.f32 %v3213, %v3213
  %v3216 = vmul.f32 %v3215, -0.001358992
  %v3217 = vadd.f32 %v3216, 0.041655596
  %v3218 = vmul.f32 %v3215, %v3217
  %v3219 = vadd.f32 %v3218, -0.4999988
  %v3220 = vmul.f32 %v3215, %v3219
  %v3221 = vadd.f32 1.0, %v3220
  %v3222 = vmul.f32 %v3213, %v3213
  %v3223 = vmul.f32 %v3222, -0.00019511016
  %v3224 = vadd.f32 %v3223, 0.008332121
  %v3225 = vmul.f32 %v3222, %v3224
  %v3226 = vadd.f32 %v3225, -0.16666654
  %v3227 = vmul.f32 %v3222, %v3226
  %v3228 = vadd.f32 %v3227, 1.0
  %v3229 = vmul.f32 %v3228, %v3213
  %vm3230 = vweird.f32 %v759
  %v3231 = vadd.s32 %v3214, 3
  %v3232 = vand.u32 %v3231, 3
  %vm3233 = vcmp.lt.s32.totalorder %v3232, 2
  %vm3234 = vcmp.eq.s32.totalorder %v3232, 0
  %v3235 = vxor.u32 %v3229, 2147483648
  %v3236 = vsel %vm3234, %v3221, %v3235
  %vm3237 = vcmp.eq.s32.totalorder %v3232, 2
  %v3238 = vxor.u32 %v3221, 2147483648
  %v3239 = vsel %vm3237, %v3238, %v3229
  %v3240 = vsel %vm3233, %v3236, %v3239
  %v3241 = vsel %vm3230, nan, %v3240
  %v3242 = vand.u32 2147483647, %v744
  %vm3243 = vcmp.le.f32.partialorder %v3242, 0.7853982
  %vm3244 = vcmp.lt.s32.totalorder %v744, 0
  %v3245 = vand.u32 %v744, 2139095040
  %v3246 = vshrl.u32 %v3245, 23
  %v3247 = vsub.s32 %v3246, 127
  %v3248 = vand.u32 2147483647, %v744
  %v3249 = vand.u32 %v3248, 8388607
  %v3250 = vor.u32 %v3249, 8388608
  %v3251 = vsub.s32 0, %v3250
  %v3252 = vadd.s32 %v3247, 1
  %vm3253 = vcmp.gt.s32.totalorder %v3252, 0
  %v3254 = vsel %vm3253, %v3252, 0
  %v3255 = vshrl.u32 %v3254, 5
  %v3256 = vand.u32 %v3254, 31
  %v3257 = vsub.s32 32, %v3256
  %v3258 = vshrl.u32 683565275, %v3257
  %v3259 = vshll.u32 683565275, %v3256
  %v3260 = vshrl.u32 2475754826, %v3257
  %v3261 = vor.u32 %v3259, %v3260
  %v3262 = vshll.u32 2475754826, %v3256
  %v3263 = vshrl.u32 2131351028, %v3257
  %v3264 = vor.u32 %v3262, %v3263
  %v3265 = vshll.u32 2131351028, %v3256
  %v3266 = vshrl.u32 2102212464, %v3257
  %v3267 = vor.u32 %v3265, %v3266
  %v3268 = vshll.u32 2102212464, %v3256
  %v3269 = vshrl.u32 920167782, %v3257
  %v3270 = vor.u32 %v3268, %v3269
  %v3271 = vshll.u32 920167782, %v3256
  %v3272 = vshrl.u32 1326507024, %v3257
  %v3273 = vor.u32 %v3271, %v3272
  %vm3274 = vcmp.lt.s32.totalorder %v3255, 1
  %vm3275 = vcmp.lt.s32.totalorder %v3255, 2
  %vm3276 = vcmp.lt.s32.totalorder %v3255, 3
  %vm3277 = vcmp.lt.s32.totalorder %v3255, 4
  %v3278 = vsel %vm3274, %v3258, %v3261
  %v3279 = vsel %vm3277, %v3267, 2102212464
  %v3280 = vsel %vm3276, %v3264, %v3279
  %v3281 = vsel %vm3275, %v3278, %v3280
  %v3282 = vsel %vm3274, %v3261, %v3264
  %v3283 = vsel %vm3277, %v3270, 920167782
  %v3284 = vsel %vm3276, %v3267, %v3283
  %v3285 = vsel %vm3275, %v3282, %v3284
  %v3286 = vsel %vm3274, %v3264, %v3267
  %v3287 = vsel %vm3277, %v3273, 1326507024
  %v3288 = vsel %vm3276, %v3270, %v3287
  %v3289 = vsel %vm3275, %v3286, %v3288
  %v3290 = vshll.u32 %v3250, 8
  %v3291 = vand.u32 %v3290, 65535
  %v3292 = vshrl.u32 %v3290, 16
  %v3293 = vand.u32 %v3289, 65535
  %v3294 = vshrl.u32 %v3289, 16
  %v3295 = vmul.u32 %v3291, %v3293
  %v3296 = vmul.u32 %v3291, %v3294
  %v3297 = vmul.u32 %v3292, %v3293
  %v3298 = vmul.u32 %v3292, %v3294
  %v3299 = vshll.u32 %v3296, 16
  %v3300 = vshrl.u32 %v3296, 16
  %v3301 = vshll.u32 %v3297, 16
  %v3302 = vshrl.u32 %v3297, 16
  %vm3303 = vc.u32 %v3295, %v3299
  %v3304 = vsel %vm3303, 1, 0
  %v3305 = vadd.s32 %v3295, %v3299
  %v3306 = vadd.s32 %v3298, %v3304
  %vm3307 = vc.u32 %v3305, %v3301
  %v3308 = vsel %vm3307, 1, 0
  %v3309 = vadd.s32 %v3305, %v3301
  %v3310 = vadd.s32 %v3306, %v3308
  %v3311 = vadd.s32 %v3310, %v3300
  %v3312 = vadd.s32 %v3311, %v3302
  %v3313 = vand.u32 %v3290, 65535
  %v3314 = vshrl.u32 %v3290, 16
  %v3315 = vand.u32 %v3285, 65535
  %v3316 = vshrl.u32 %v3285, 16
  %v3317 = vmul.u32 %v3313, %v3315
  %v3318 = vmul.u32 %v3313, %v3316
  %v3319 = vmul.u32 %v3314, %v3315
  %v3320 = vmul.u32 %v3314, %v3316
  %v3321 = vshll.u32 %v3318, 16
  %v3322 = vshrl.u32 %v3318, 16
  %v3323 = vshll.u32 %v3319, 16
  %v3324 = vshrl.u32 %v3319, 16
  %vm3325 = vc.u32 %v3317, %v3321
  %v3326 = vsel %vm3325, 1, 0
  %v3327 = vadd.s32 %v3317, %v3321
  %v3328 = vadd.s32 %v3320, %v3326
  %vm3329 = vc.u32 %v3327, %v3323
  %v3330 = vsel %vm3329, 1, 0
  %v3331 = vadd.s32 %v3327, %v3323
  %v3332 = vadd.s32 %v3328, %v3330
  %v3333 = vadd.s32 %v3332, %v3322
  %v3334 = vadd.s32 %v3333, %v3324
  %v3335 = vmul.u32 %v3290, %v3281
  %v3336 = vadd.s32 %v3312, %v3331
  %vm3337 = vc.u32 %v3312, %v3331
  %v3338 = vadd.s32 %v3334, 1
  %v3339 = vsel %vm3337, %v3338, %v3334
  %v3340 = vadd.s32 %v3335, %v3339
  %v3341 = vadd.s32 %v3340, 536870912
  %v3342 = vshrl.u32 %v3341, 30
  %v3343 = vshll.u32 %v3342, 30
  %v3344 = vsub.s32 %v3340, %v3343
  %vm3345 = vcmp.lt.s32.totalorder %v3344, 0
  %v3346 = vsub.s32 0, %v3344
  %v3347 = vsel %vm3345, %v3346, %v3344
  %v3348 = vclz %v3347
  %v3349 = vsub.s32 %v3348, 2
  %vm3350 = vcmp.gt.s32.totalorder 0, %v3349
  %v3351 = vsel %vm3350, 0, %v3349
  %v3352 = vsub.s32 32, %v3351
  %v3353 = vshll.u32 %v3344, %v3351
  %v3354 = vshrl.u32 %v3336, %v3352
  %v3355 = vor.u32 %v3353, %v3354
  %v3356 = vsub.s32 4294967266, %v3351
  %v3357 = vadd.s32 %v3356, 127
  %v3358 = vshll.u32 %v3357, 23
  %v3359 = vor.u32 4788187, %v3358
  %v3360 = vand.u32 2147483647, %v3359
  %v3362 = vcvt.s32.f32 %v3355
  %v3363 = vmul.f32 %v3362, %v3360
  %v3364 = vxor.u32 %v3363, 2147483648
  %v3365 = vsel %vm3244, %v3364, %v3363
  %v3366 = vsub.s32 4, %v3342
  %v3367 = vsel %vm3244, %v3366, %v3342
  %v3368 = vsel %vm3243, %v744, %v3365
  %v3369 = vsel %vm3243, 0, %v3367
  %v3370 = vmul.f32 %v3368, %v3368
  %v3371 = vmul.f32 %v3370, -0.001358992
  %v3372 = vadd.f32 %v3371, 0.041655596
  %v3373 = vmul.f32 %v3370, %v3372
  %v3374 = vadd.f32 %v3373, -0.4999988
  %v3375 = vmul.f32 %v3370, %v3374
  %v3376 = vadd.f32 1.0, %v3375
  %v3377 = vmul.f32 %v3368, %v3368
  %v3378 = vmul.f32 %v3377, -0.00019511016
  %v3379 = vadd.f32 %v3378, 0.008332121
  %v3380 = vmul.f32 %v3377, %v3379
  %v3381 = vadd.f32 %v3380, -0.16666654
  %v3382 = vmul.f32 %v3377, %v3381
  %v3383 = vadd.f32 %v3382, 1.0
  %v3384 = vmul.f32 %v3383, %v3368
  %vm3385 = vweird.f32 %v744
  %v3386 = vand.u32 %v3369, 3
  %vm3387 = vcmp.lt.s32.totalorder %v3386, 2
  %vm3388 = vcmp.eq.s32.totalorder %v3386, 0
  %v3389 = vxor.u32 %v3384, 2147483648
  %v3390 = vsel %vm3388, %v3376, %v3389
  %vm3391 = vcmp.eq.s32.totalorder %v3386, 2
  %v3392 = vxor.u32 %v3376, 2147483648
  %v3393 = vsel %vm3391, %v3392, %v3384
  %v3394 = vsel %vm3387, %v3390, %v3393
  %v3395 = vsel %vm3385, nan, %v3394
  %v3396 = vand.u32 2147483647, %v745
  %vm3397 = vcmp.le.f32.partialorder %v3396, 0.7853982
  %vm3398 = vcmp.lt.s32.totalorder %v745, 0
  %v3399 = vand.u32 %v745, 2139095040
  %v3400 = vshrl.u32 %v3399, 23
  %v3401 = vsub.s32 %v3400, 127
  %v3402 = vand.u32 2147483647, %v745
  %v3403 = vand.u32 %v3402, 8388607
  %v3404 = vor.u32 %v3403, 8388608
  %v3405 = vsub.s32 0, %v3404
  %v3406 = vadd.s32 %v3401, 1
  %vm3407 = vcmp.gt.s32.totalorder %v3406, 0
  %v3408 = vsel %vm3407, %v3406, 0
  %v3409 = vshrl.u32 %v3408, 5
  %v3410 = vand.u32 %v3408, 31
  %v3411 = vsub.s32 32, %v3410
  %v3412 = vshrl.u32 683565275, %v3411
  %v3413 = vshll.u32 683565275, %v3410
  %v3414 = vshrl.u32 2475754826, %v3411
  %v3415 = vor.u32 %v3413, %v3414
  %v3416 = vshll.u32 2475754826, %v3410
  %v3417 = vshrl.u32 2131351028, %v3411
  %v3418 = vor.u32 %v3416, %v3417
  %v3419 = vshll.u32 2131351028, %v3410
  %v3420 = vshrl.u32 2102212464, %v3411
  %v3421 = vor.u32 %v3419, %v3420
  %v3422 = vshll.u32 2102212464, %v3410
  %v3423 = vshrl.u32 920167782, %v3411
  %v3424 = vor.u32 %v3422, %v3423
  %v3425 = vshll.u32 920167782, %v3410
  %v3426 = vshrl.u32 1326507024, %v3411
  %v3427 = vor.u32 %v3425, %v3426
  %vm3428 = vcmp.lt.s32.totalorder %v3409, 1
  %vm3429 = vcmp.lt.s32.totalorder %v3409, 2
  %vm3430 = vcmp.lt.s32.totalorder %v3409, 3
  %vm3431 = vcmp.lt.s32.totalorder %v3409, 4
  %v3432 = vsel %vm3428, %v3412, %v3415
  %v3433 = vsel %vm3431, %v3421, 2102212464
  %v3434 = vsel %vm3430, %v3418, %v3433
  %v3435 = vsel %vm3429, %v3432, %v3434
  %v3436 = vsel %vm3428, %v3415, %v3418
  %v3437 = vsel %vm3431, %v3424, 920167782
  %v3438 = vsel %vm3430, %v3421, %v3437
  %v3439 = vsel %vm3429, %v3436, %v3438
  %v3440 = vsel %vm3428, %v3418, %v3421
  %v3441 = vsel %vm3431, %v3427, 1326507024
  %v3442 = vsel %vm3430, %v3424, %v3441
  %v3443 = vsel %vm3429, %v3440, %v3442
  %v3444 = vshll.u32 %v3404, 8
  %v3445 = vand.u32 %v3444, 65535
  %v3446 = vshrl.u32 %v3444, 16
  %v3447 = vand.u32 %v3443, 65535
  %v3448 = vshrl.u32 %v3443, 16
  %v3449 = vmul.u32 %v3445, %v3447
  %v3450 = vmul.u32 %v3445, %v3448
  %v3451 = vmul.u32 %v3446, %v3447
  %v3452 = vmul.u32 %v3446, %v3448
  %v3453 = vshll.u32 %v3450, 16
  %v3454 = vshrl.u32 %v3450, 16
  %v3455 = vshll.u32 %v3451, 16
  %v3456 = vshrl.u32 %v3451, 16
  %vm3457 = vc.u32 %v3449, %v3453
  %v3458 = vsel %vm3457, 1, 0
  %v3459 = vadd.s32 %v3449, %v3453
  %v3460 = vadd.s32 %v3452, %v3458
  %vm3461 = vc.u32 %v3459, %v3455
  %v3462 = vsel %vm3461, 1, 0
  %v3463 = vadd.s32 %v3459, %v3455
  %v3464 = vadd.s32 %v3460, %v3462
  %v3465 = vadd.s32 %v3464, %v3454
  %v3466 = vadd.s32 %v3465, %v3456
  %v3467 = vand.u32 %v3444, 65535
  %v3468 = vshrl.u32 %v3444, 16
  %v3469 = vand.u32 %v3439, 65535
  %v3470 = vshrl.u32 %v3439, 16
  %v3471 = vmul.u32 %v3467, %v3469
  %v3472 = vmul.u32 %v3467, %v3470
  %v3473 = vmul.u32 %v3468, %v3469
  %v3474 = vmul.u32 %v3468, %v3470
  %v3475 = vshll.u32 %v3472, 16
  %v3476 = vshrl.u32 %v3472, 16
  %v3477 = vshll.u32 %v3473, 16
  %v3478 = vshrl.u32 %v3473, 16
  %vm3479 = vc.u32 %v3471, %v3475
  %v3480 = vsel %vm3479, 1, 0
  %v3481 = vadd.s32 %v3471, %v3475
  %v3482 = vadd.s32 %v3474, %v3480
  %vm3483 = vc.u32 %v3481, %v3477
  %v3484 = vsel %vm3483, 1, 0
  %v3485 = vadd.s32 %v3481, %v3477
  %v3486 = vadd.s32 %v3482, %v3484
  %v3487 = vadd.s32 %v3486, %v3476
  %v3488 = vadd.s32 %v3487, %v3478
  %v3489 = vmul.u32 %v3444, %v3435
  %v3490 = vadd.s32 %v3466, %v3485
  %vm3491 = vc.u32 %v3466, %v3485
  %v3492 = vadd.s32 %v3488, 1
  %v3493 = vsel %vm3491, %v3492, %v3488
  %v3494 = vadd.s32 %v3489, %v3493
  %v3495 = vadd.s32 %v3494, 536870912
  %v3496 = vshrl.u32 %v3495, 30
  %v3497 = vshll.u32 %v3496, 30
  %v3498 = vsub.s32 %v3494, %v3497
  %vm3499 = vcmp.lt.s32.totalorder %v3498, 0
  %v3500 = vsub.s32 0, %v3498
  %v3501 = vsel %vm3499, %v3500, %v3498
  %v3502 = vclz %v3501
  %v3503 = vsub.s32 %v3502, 2
  %vm3504 = vcmp.gt.s32.totalorder 0, %v3503
  %v3505 = vsel %vm3504, 0, %v3503
  %v3506 = vsub.s32 32, %v3505
  %v3507 = vshll.u32 %v3498, %v3505
  %v3508 = vshrl.u32 %v3490, %v3506
  %v3509 = vor.u32 %v3507, %v3508
  %v3510 = vsub.s32 4294967266, %v3505
  %v3511 = vadd.s32 %v3510, 127
  %v3512 = vshll.u32 %v3511, 23
  %v3513 = vor.u32 4788187, %v3512
  %v3514 = vand.u32 2147483647, %v3513
  %v3516 = vcvt.s32.f32 %v3509
  %v3517 = vmul.f32 %v3516, %v3514
  %v3518 = vxor.u32 %v3517, 2147483648
  %v3519 = vsel %vm3398, %v3518, %v3517
  %v3520 = vsub.s32 4, %v3496
  %v3521 = vsel %vm3398, %v3520, %v3496
  %v3522 = vsel %vm3397, %v745, %v3519
  %v3523 = vsel %vm3397, 0, %v3521
  %v3524 = vmul.f32 %v3522, %v3522
  %v3525 = vmul.f32 %v3524, -0.001358992
  %v3526 = vadd.f32 %v3525, 0.041655596
  %v3527 = vmul.f32 %v3524, %v3526
  %v3528 = vadd.f32 %v3527, -0.4999988
  %v3529 = vmul.f32 %v3524, %v3528
  %v3530 = vadd.f32 1.0, %v3529
  %v3531 = vmul.f32 %v3522, %v3522
  %v3532 = vmul.f32 %v3531, -0.00019511016
  %v3533 = vadd.f32 %v3532, 0.008332121
  %v3534 = vmul.f32 %v3531, %v3533
  %v3535 = vadd.f32 %v3534, -0.16666654
  %v3536 = vmul.f32 %v3531, %v3535
  %v3537 = vadd.f32 %v3536, 1.0
  %v3538 = vmul.f32 %v3537, %v3522
  %vm3539 = vweird.f32 %v745
  %v3540 = vand.u32 %v3523, 3
  %vm3541 = vcmp.lt.s32.totalorder %v3540, 2
  %vm3542 = vcmp.eq.s32.totalorder %v3540, 0
  %v3543 = vxor.u32 %v3538, 2147483648
  %v3544 = vsel %vm3542, %v3530, %v3543
  %vm3545 = vcmp.eq.s32.totalorder %v3540, 2
  %v3546 = vxor.u32 %v3530, 2147483648
  %v3547 = vsel %vm3545, %v3546, %v3538
  %v3548 = vsel %vm3541, %v3544, %v3547
  %v3549 = vsel %vm3539, nan, %v3548
  %v3550 = vand.u32 2147483647, %v746
  %vm3551 = vcmp.le.f32.partialorder %v3550, 0.7853982
  %vm3552 = vcmp.lt.s32.totalorder %v746, 0
  %v3553 = vand.u32 %v746, 2139095040
  %v3554 = vshrl.u32 %v3553, 23
  %v3555 = vsub.s32 %v3554, 127
  %v3556 = vand.u32 2147483647, %v746
  %v3557 = vand.u32 %v3556, 8388607
  %v3558 = vor.u32 %v3557, 8388608
  %v3559 = vsub.s32 0, %v3558
  %v3560 = vadd.s32 %v3555, 1
  %vm3561 = vcmp.gt.s32.totalorder %v3560, 0
  %v3562 = vsel %vm3561, %v3560, 0
  %v3563 = vshrl.u32 %v3562, 5
  %v3564 = vand.u32 %v3562, 31
  %v3565 = vsub.s32 32, %v3564
  %v3566 = vshrl.u32 683565275, %v3565
  %v3567 = vshll.u32 683565275, %v3564
  %v3568 = vshrl.u32 2475754826, %v3565
  %v3569 = vor.u32 %v3567, %v3568
  %v3570 = vshll.u32 2475754826, %v3564
  %v3571 = vshrl.u32 2131351028, %v3565
  %v3572 = vor.u32 %v3570, %v3571
  %v3573 = vshll.u32 2131351028, %v3564
  %v3574 = vshrl.u32 2102212464, %v3565
  %v3575 = vor.u32 %v3573, %v3574
  %v3576 = vshll.u32 2102212464, %v3564
  %v3577 = vshrl.u32 920167782, %v3565
  %v3578 = vor.u32 %v3576, %v3577
  %v3579 = vshll.u32 920167782, %v3564
  %v3580 = vshrl.u32 1326507024, %v3565
  %v3581 = vor.u32 %v3579, %v3580
  %vm3582 = vcmp.lt.s32.totalorder %v3563, 1
  %vm3583 = vcmp.lt.s32.totalorder %v3563, 2
  %vm3584 = vcmp.lt.s32.totalorder %v3563, 3
  %vm3585 = vcmp.lt.s32.totalorder %v3563, 4
  %v3586 = vsel %vm3582, %v3566, %v3569
  %v3587 = vsel %vm3585, %v3575, 2102212464
  %v3588 = vsel %vm3584, %v3572, %v3587
  %v3589 = vsel %vm3583, %v3586, %v3588
  %v3590 = vsel %vm3582, %v3569, %v3572
  %v3591 = vsel %vm3585, %v3578, 920167782
  %v3592 = vsel %vm3584, %v3575, %v3591
  %v3593 = vsel %vm3583, %v3590, %v3592
  %v3594 = vsel %vm3582, %v3572, %v3575
  %v3595 = vsel %vm3585, %v3581, 1326507024
  %v3596 = vsel %vm3584, %v3578, %v3595
  %v3597 = vsel %vm3583, %v3594, %v3596
  %v3598 = vshll.u32 %v3558, 8
  %v3599 = vand.u32 %v3598, 65535
  %v3600 = vshrl.u32 %v3598, 16
  %v3601 = vand.u32 %v3597, 65535
  %v3602 = vshrl.u32 %v3597, 16
  %v3603 = vmul.u32 %v3599, %v3601
  %v3604 = vmul.u32 %v3599, %v3602
  %v3605 = vmul.u32 %v3600, %v3601
  %v3606 = vmul.u32 %v3600, %v3602
  %v3607 = vshll.u32 %v3604, 16
  %v3608 = vshrl.u32 %v3604, 16
  %v3609 = vshll.u32 %v3605, 16
  %v3610 = vshrl.u32 %v3605, 16
  %vm3611 = vc.u32 %v3603, %v3607
  %v3612 = vsel %vm3611, 1, 0
  %v3613 = vadd.s32 %v3603, %v3607
  %v3614 = vadd.s32 %v3606, %v3612
  %vm3615 = vc.u32 %v3613, %v3609
  %v3616 = vsel %vm3615, 1, 0
  %v3617 = vadd.s32 %v3613, %v3609
  %v3618 = vadd.s32 %v3614, %v3616
  %v3619 = vadd.s32 %v3618, %v3608
  %v3620 = vadd.s32 %v3619, %v3610
  %v3621 = vand.u32 %v3598, 65535
  %v3622 = vshrl.u32 %v3598, 16
  %v3623 = vand.u32 %v3593, 65535
  %v3624 = vshrl.u32 %v3593, 16
  %v3625 = vmul.u32 %v3621, %v3623
  %v3626 = vmul.u32 %v3621, %v3624
  %v3627 = vmul.u32 %v3622, %v3623
  %v3628 = vmul.u32 %v3622, %v3624
  %v3629 = vshll.u32 %v3626, 16
  %v3630 = vshrl.u32 %v3626, 16
  %v3631 = vshll.u32 %v3627, 16
  %v3632 = vshrl.u32 %v3627, 16
  %vm3633 = vc.u32 %v3625, %v3629
  %v3634 = vsel %vm3633, 1, 0
  %v3635 = vadd.s32 %v3625, %v3629
  %v3636 = vadd.s32 %v3628, %v3634
  %vm3637 = vc.u32 %v3635, %v3631
  %v3638 = vsel %vm3637, 1, 0
  %v3639 = vadd.s32 %v3635, %v3631
  %v3640 = vadd.s32 %v3636, %v3638
  %v3641 = vadd.s32 %v3640, %v3630
  %v3642 = vadd.s32 %v3641, %v3632
  %v3643 = vmul.u32 %v3598, %v3589
  %v3644 = vadd.s32 %v3620, %v3639
  %vm3645 = vc.u32 %v3620, %v3639
  %v3646 = vadd.s32 %v3642, 1
  %v3647 = vsel %vm3645, %v3646, %v3642
  %v3648 = vadd.s32 %v3643, %v3647
  %v3649 = vadd.s32 %v3648, 536870912
  %v3650 = vshrl.u32 %v3649, 30
  %v3651 = vshll.u32 %v3650, 30
  %v3652 = vsub.s32 %v3648, %v3651
  %vm3653 = vcmp.lt.s32.totalorder %v3652, 0
  %v3654 = vsub.s32 0, %v3652
  %v3655 = vsel %vm3653, %v3654, %v3652
  %v3656 = vclz %v3655
  %v3657 = vsub.s32 %v3656, 2
  %vm3658 = vcmp.gt.s32.totalorder 0, %v3657
  %v3659 = vsel %vm3658, 0, %v3657
  %v3660 = vsub.s32 32, %v3659
  %v3661 = vshll.u32 %v3652, %v3659
  %v3662 = vshrl.u32 %v3644, %v3660
  %v3663 = vor.u32 %v3661, %v3662
  %v3664 = vsub.s32 4294967266, %v3659
  %v3665 = vadd.s32 %v3664, 127
  %v3666 = vshll.u32 %v3665, 23
  %v3667 = vor.u32 4788187, %v3666
  %v3668 = vand.u32 2147483647, %v3667
  %v3670 = vcvt.s32.f32 %v3663
  %v3671 = vmul.f32 %v3670, %v3668
  %v3672 = vxor.u32 %v3671, 2147483648
  %v3673 = vsel %vm3552, %v3672, %v3671
  %v3674 = vsub.s32 4, %v3650
  %v3675 = vsel %vm3552, %v3674, %v3650
  %v3676 = vsel %vm3551, %v746, %v3673
  %v3677 = vsel %vm3551, 0, %v3675
  %v3678 = vmul.f32 %v3676, %v3676
  %v3679 = vmul.f32 %v3678, -0.001358992
  %v3680 = vadd.f32 %v3679, 0.041655596
  %v3681 = vmul.f32 %v3678, %v3680
  %v3682 = vadd.f32 %v3681, -0.4999988
  %v3683 = vmul.f32 %v3678, %v3682
  %v3684 = vadd.f32 1.0, %v3683
  %v3685 = vmul.f32 %v3676, %v3676
  %v3686 = vmul.f32 %v3685, -0.00019511016
  %v3687 = vadd.f32 %v3686, 0.008332121
  %v3688 = vmul.f32 %v3685, %v3687
  %v3689 = vadd.f32 %v3688, -0.16666654
  %v3690 = vmul.f32 %v3685, %v3689
  %v3691 = vadd.f32 %v3690, 1.0
  %v3692 = vmul.f32 %v3691, %v3676
  %vm3693 = vweird.f32 %v746
  %v3694 = vand.u32 %v3677, 3
  %vm3695 = vcmp.lt.s32.totalorder %v3694, 2
  %vm3696 = vcmp.eq.s32.totalorder %v3694, 0
  %v3697 = vxor.u32 %v3692, 2147483648
  %v3698 = vsel %vm3696, %v3684, %v3697
  %vm3699 = vcmp.eq.s32.totalorder %v3694, 2
  %v3700 = vxor.u32 %v3684, 2147483648
  %v3701 = vsel %vm3699, %v3700, %v3692
  %v3702 = vsel %vm3695, %v3698, %v3701
  %v3703 = vsel %vm3693, nan, %v3702
  %v3704 = vand.u32 2147483647, %v747
  %vm3705 = vcmp.le.f32.partialorder %v3704, 0.7853982
  %vm3706 = vcmp.lt.s32.totalorder %v747, 0
  %v3707 = vand.u32 %v747, 2139095040
  %v3708 = vshrl.u32 %v3707, 23
  %v3709 = vsub.s32 %v3708, 127
  %v3710 = vand.u32 2147483647, %v747
  %v3711 = vand.u32 %v3710, 8388607
  %v3712 = vor.u32 %v3711, 8388608
  %v3713 = vsub.s32 0, %v3712
  %v3714 = vadd.s32 %v3709, 1
  %vm3715 = vcmp.gt.s32.totalorder %v3714, 0
  %v3716 = vsel %vm3715, %v3714, 0
  %v3717 = vshrl.u32 %v3716, 5
  %v3718 = vand.u32 %v3716, 31
  %v3719 = vsub.s32 32, %v3718
  %v3720 = vshrl.u32 683565275, %v3719
  %v3721 = vshll.u32 683565275, %v3718
  %v3722 = vshrl.u32 2475754826, %v3719
  %v3723 = vor.u32 %v3721, %v3722
  %v3724 = vshll.u32 2475754826, %v3718
  %v3725 = vshrl.u32 2131351028, %v3719
  %v3726 = vor.u32 %v3724, %v3725
  %v3727 = vshll.u32 2131351028, %v3718
  %v3728 = vshrl.u32 2102212464, %v3719
  %v3729 = vor.u32 %v3727, %v3728
  %v3730 = vshll.u32 2102212464, %v3718
  %v3731 = vshrl.u32 920167782, %v3719
  %v3732 = vor.u32 %v3730, %v3731
  %v3733 = vshll.u32 920167782, %v3718
  %v3734 = vshrl.u32 1326507024, %v3719
  %v3735 = vor.u32 %v3733, %v3734
  %vm3736 = vcmp.lt.s32.totalorder %v3717, 1
  %vm3737 = vcmp.lt.s32.totalorder %v3717, 2
  %vm3738 = vcmp.lt.s32.totalorder %v3717, 3
  %vm3739 = vcmp.lt.s32.totalorder %v3717, 4
  %v3740 = vsel %vm3736, %v3720, %v3723
  %v3741 = vsel %vm3739, %v3729, 2102212464
  %v3742 = vsel %vm3738, %v3726, %v3741
  %v3743 = vsel %vm3737, %v3740, %v3742
  %v3744 = vsel %vm3736, %v3723, %v3726
  %v3745 = vsel %vm3739, %v3732, 920167782
  %v3746 = vsel %vm3738, %v3729, %v3745
  %v3747 = vsel %vm3737, %v3744, %v3746
  %v3748 = vsel %vm3736, %v3726, %v3729
  %v3749 = vsel %vm3739, %v3735, 1326507024
  %v3750 = vsel %vm3738, %v3732, %v3749
  %v3751 = vsel %vm3737, %v3748, %v3750
  %v3752 = vshll.u32 %v3712, 8
  %v3753 = vand.u32 %v3752, 65535
  %v3754 = vshrl.u32 %v3752, 16
  %v3755 = vand.u32 %v3751, 65535
  %v3756 = vshrl.u32 %v3751, 16
  %v3757 = vmul.u32 %v3753, %v3755
  %v3758 = vmul.u32 %v3753, %v3756
  %v3759 = vmul.u32 %v3754, %v3755
  %v3760 = vmul.u32 %v3754, %v3756
  %v3761 = vshll.u32 %v3758, 16
  %v3762 = vshrl.u32 %v3758, 16
  %v3763 = vshll.u32 %v3759, 16
  %v3764 = vshrl.u32 %v3759, 16
  %vm3765 = vc.u32 %v3757, %v3761
  %v3766 = vsel %vm3765, 1, 0
  %v3767 = vadd.s32 %v3757, %v3761
  %v3768 = vadd.s32 %v3760, %v3766
  %vm3769 = vc.u32 %v3767, %v3763
  %v3770 = vsel %vm3769, 1, 0
  %v3771 = vadd.s32 %v3767, %v3763
  %v3772 = vadd.s32 %v3768, %v3770
  %v3773 = vadd.s32 %v3772, %v3762
  %v3774 = vadd.s32 %v3773, %v3764
  %v3775 = vand.u32 %v3752, 65535
  %v3776 = vshrl.u32 %v3752, 16
  %v3777 = vand.u32 %v3747, 65535
  %v3778 = vshrl.u32 %v3747, 16
  %v3779 = vmul.u32 %v3775, %v3777
  %v3780 = vmul.u32 %v3775, %v3778
  %v3781 = vmul.u32 %v3776, %v3777
  %v3782 = vmul.u32 %v3776, %v3778
  %v3783 = vshll.u32 %v3780, 16
  %v3784 = vshrl.u32 %v3780, 16
  %v3785 = vshll.u32 %v3781, 16
  %v3786 = vshrl.u32 %v3781, 16
  %vm3787 = vc.u32 %v3779, %v3783
  %v3788 = vsel %vm3787, 1, 0
  %v3789 = vadd.s32 %v3779, %v3783
  %v3790 = vadd.s32 %v3782, %v3788
  %vm3791 = vc.u32 %v3789, %v3785
  %v3792 = vsel %vm3791, 1, 0
  %v3793 = vadd.s32 %v3789, %v3785
  %v3794 = vadd.s32 %v3790, %v3792
  %v3795 = vadd.s32 %v3794, %v3784
  %v3796 = vadd.s32 %v3795, %v3786
  %v3797 = vmul.u32 %v3752, %v3743
  %v3798 = vadd.s32 %v3774, %v3793
  %vm3799 = vc.u32 %v3774, %v3793
  %v3800 = vadd.s32 %v3796, 1
  %v3801 = vsel %vm3799, %v3800, %v3796
  %v3802 = vadd.s32 %v3797, %v3801
  %v3803 = vadd.s32 %v3802, 536870912
  %v3804 = vshrl.u32 %v3803, 30
  %v3805 = vshll.u32 %v3804, 30
  %v3806 = vsub.s32 %v3802, %v3805
  %vm3807 = vcmp.lt.s32.totalorder %v3806, 0
  %v3808 = vsub.s32 0, %v3806
  %v3809 = vsel %vm3807, %v3808, %v3806
  %v3810 = vclz %v3809
  %v3811 = vsub.s32 %v3810, 2
  %vm3812 = vcmp.gt.s32.totalorder 0, %v3811
  %v3813 = vsel %vm3812, 0, %v3811
  %v3814 = vsub.s32 32, %v3813
  %v3815 = vshll.u32 %v3806, %v3813
  %v3816 = vshrl.u32 %v3798, %v3814
  %v3817 = vor.u32 %v3815, %v3816
  %v3818 = vsub.s32 4294967266, %v3813
  %v3819 = vadd.s32 %v3818, 127
  %v3820 = vshll.u32 %v3819, 23
  %v3821 = vor.u32 4788187, %v3820
  %v3822 = vand.u32 2147483647, %v3821
  %v3824 = vcvt.s32.f32 %v3817
  %v3825 = vmul.f32 %v3824, %v3822
  %v3826 = vxor.u32 %v3825, 2147483648
  %v3827 = vsel %vm3706, %v3826, %v3825
  %v3828 = vsub.s32 4, %v3804
  %v3829 = vsel %vm3706, %v3828, %v3804
  %v3830 = vsel %vm3705, %v747, %v3827
  %v3831 = vsel %vm3705, 0, %v3829
  %v3832 = vmul.f32 %v3830, %v3830
  %v3833 = vmul.f32 %v3832, -0.001358992
  %v3834 = vadd.f32 %v3833, 0.041655596
  %v3835 = vmul.f32 %v3832, %v3834
  %v3836 = vadd.f32 %v3835, -0.4999988
  %v3837 = vmul.f32 %v3832, %v3836
  %v3838 = vadd.f32 1.0, %v3837
  %v3839 = vmul.f32 %v3830, %v3830
  %v3840 = vmul.f32 %v3839, -0.00019511016
  %v3841 = vadd.f32 %v3840, 0.008332121
  %v3842 = vmul.f32 %v3839, %v3841
  %v3843 = vadd.f32 %v3842, -0.16666654
  %v3844 = vmul.f32 %v3839, %v3843
  %v3845 = vadd.f32 %v3844, 1.0
  %v3846 = vmul.f32 %v3845, %v3830
  %vm3847 = vweird.f32 %v747
  %v3848 = vand.u32 %v3831, 3
  %vm3849 = vcmp.lt.s32.totalorder %v3848, 2
  %vm3850 = vcmp.eq.s32.totalorder %v3848, 0
  %v3851 = vxor.u32 %v3846, 2147483648
  %v3852 = vsel %vm3850, %v3838, %v3851
  %vm3853 = vcmp.eq.s32.totalorder %v3848, 2
  %v3854 = vxor.u32 %v3838, 2147483648
  %v3855 = vsel %vm3853, %v3854, %v3846
  %v3856 = vsel %vm3849, %v3852, %v3855
  %v3857 = vsel %vm3847, nan, %v3856
  %v3858 = vand.u32 2147483647, %v748
  %vm3859 = vcmp.le.f32.partialorder %v3858, 0.7853982
  %vm3860 = vcmp.lt.s32.totalorder %v748, 0
  %v3861 = vand.u32 %v748, 2139095040
  %v3862 = vshrl.u32 %v3861, 23
  %v3863 = vsub.s32 %v3862, 127
  %v3864 = vand.u32 2147483647, %v748
  %v3865 = vand.u32 %v3864, 8388607
  %v3866 = vor.u32 %v3865, 8388608
  %v3867 = vsub.s32 0, %v3866
  %v3868 = vadd.s32 %v3863, 1
  %vm3869 = vcmp.gt.s32.totalorder %v3868, 0
  %v3870 = vsel %vm3869, %v3868, 0
  %v3871 = vshrl.u32 %v3870, 5
  %v3872 = vand.u32 %v3870, 31
  %v3873 = vsub.s32 32, %v3872
  %v3874 = vshrl.u32 683565275, %v3873
  %v3875 = vshll.u32 683565275, %v3872
  %v3876 = vshrl.u32 2475754826, %v3873
  %v3877 = vor.u32 %v3875, %v3876
  %v3878 = vshll.u32 2475754826, %v3872
  %v3879 = vshrl.u32 2131351028, %v3873
  %v3880 = vor.u32 %v3878, %v3879
  %v3881 = vshll.u32 2131351028, %v3872
  %v3882 = vshrl.u32 2102212464, %v3873
  %v3883 = vor.u32 %v3881, %v3882
  %v3884 = vshll.u32 2102212464, %v3872
  %v3885 = vshrl.u32 920167782, %v3873
  %v3886 = vor.u32 %v3884, %v3885
  %v3887 = vshll.u32 920167782, %v3872
  %v3888 = vshrl.u32 1326507024, %v3873
  %v3889 = vor.u32 %v3887, %v3888
  %vm3890 = vcmp.lt.s32.totalorder %v3871, 1
  %vm3891 = vcmp.lt.s32.totalorder %v3871, 2
  %vm3892 = vcmp.lt.s32.totalorder %v3871, 3
  %vm3893 = vcmp.lt.s32.totalorder %v3871, 4
  %v3894 = vsel %vm3890, %v3874, %v3877
  %v3895 = vsel %vm3893, %v3883, 2102212464
  %v3896 = vsel %vm3892, %v3880, %v3895
  %v3897 = vsel %vm3891, %v3894, %v3896
  %v3898 = vsel %vm3890, %v3877, %v3880
  %v3899 = vsel %vm3893, %v3886, 920167782
  %v3900 = vsel %vm3892, %v3883, %v3899
  %v3901 = vsel %vm3891, %v3898, %v3900
  %v3902 = vsel %vm3890, %v3880, %v3883
  %v3903 = vsel %vm3893, %v3889, 1326507024
  %v3904 = vsel %vm3892, %v3886, %v3903
  %v3905 = vsel %vm3891, %v3902, %v3904
  %v3906 = vshll.u32 %v3866, 8
  %v3907 = vand.u32 %v3906, 65535
  %v3908 = vshrl.u32 %v3906, 16
  %v3909 = vand.u32 %v3905, 65535
  %v3910 = vshrl.u32 %v3905, 16
  %v3911 = vmul.u32 %v3907, %v3909
  %v3912 = vmul.u32 %v3907, %v3910
  %v3913 = vmul.u32 %v3908, %v3909
  %v3914 = vmul.u32 %v3908, %v3910
  %v3915 = vshll.u32 %v3912, 16
  %v3916 = vshrl.u32 %v3912, 16
  %v3917 = vshll.u32 %v3913, 16
  %v3918 = vshrl.u32 %v3913, 16
  %vm3919 = vc.u32 %v3911, %v3915
  %v3920 = vsel %vm3919, 1, 0
  %v3921 = vadd.s32 %v3911, %v3915
  %v3922 = vadd.s32 %v3914, %v3920
  %vm3923 = vc.u32 %v3921, %v3917
  %v3924 = vsel %vm3923, 1, 0
  %v3925 = vadd.s32 %v3921, %v3917
  %v3926 = vadd.s32 %v3922, %v3924
  %v3927 = vadd.s32 %v3926, %v3916
  %v3928 = vadd.s32 %v3927, %v3918
  %v3929 = vand.u32 %v3906, 65535
  %v3930 = vshrl.u32 %v3906, 16
  %v3931 = vand.u32 %v3901, 65535
  %v3932 = vshrl.u32 %v3901, 16
  %v3933 = vmul.u32 %v3929, %v3931
  %v3934 = vmul.u32 %v3929, %v3932
  %v3935 = vmul.u32 %v3930, %v3931
  %v3936 = vmul.u32 %v3930, %v3932
  %v3937 = vshll.u32 %v3934, 16
  %v3938 = vshrl.u32 %v3934, 16
  %v3939 = vshll.u32 %v3935, 16
  %v3940 = vshrl.u32 %v3935, 16
  %vm3941 = vc.u32 %v3933, %v3937
  %v3942 = vsel %vm3941, 1, 0
  %v3943 = vadd.s32 %v3933, %v3937
  %v3944 = vadd.s32 %v3936, %v3942
  %vm3945 = vc.u32 %v3943, %v3939
  %v3946 = vsel %vm3945, 1, 0
  %v3947 = vadd.s32 %v3943, %v3939
  %v3948 = vadd.s32 %v3944, %v3946
  %v3949 = vadd.s32 %v3948, %v3938
  %v3950 = vadd.s32 %v3949, %v3940
  %v3951 = vmul.u32 %v3906, %v3897
  %v3952 = vadd.s32 %v3928, %v3947
  %vm3953 = vc.u32 %v3928, %v3947
  %v3954 = vadd.s32 %v3950, 1
  %v3955 = vsel %vm3953, %v3954, %v3950
  %v3956 = vadd.s32 %v3951, %v3955
  %v3957 = vadd.s32 %v3956, 536870912
  %v3958 = vshrl.u32 %v3957, 30
  %v3959 = vshll.u32 %v3958, 30
  %v3960 = vsub.s32 %v3956, %v3959
  %vm3961 = vcmp.lt.s32.totalorder %v3960, 0
  %v3962 = vsub.s32 0, %v3960
  %v3963 = vsel %vm3961, %v3962, %v3960
  %v3964 = vclz %v3963
  %v3965 = vsub.s32 %v3964, 2
  %vm3966 = vcmp.gt.s32.totalorder 0, %v3965
  %v3967 = vsel %vm3966, 0, %v3965
  %v3968 = vsub.s32 32, %v3967
  %v3969 = vshll.u32 %v3960, %v3967
  %v3970 = vshrl.u32 %v3952, %v3968
  %v3971 = vor.u32 %v3969, %v3970
  %v3972 = vsub.s32 4294967266, %v3967
  %v3973 = vadd.s32 %v3972, 127
  %v3974 = vshll.u32 %v3973, 23
  %v3975 = vor.u32 4788187, %v3974
  %v3976 = vand.u32 2147483647, %v3975
  %v3978 = vcvt.s32.f32 %v3971
  %v3979 = vmul.f32 %v3978, %v3976
  %v3980 = vxor.u32 %v3979, 2147483648
  %v3981 = vsel %vm3860, %v3980, %v3979
  %v3982 = vsub.s32 4, %v3958
  %v3983 = vsel %vm3860, %v3982, %v3958
  %v3984 = vsel %vm3859, %v748, %v3981
  %v3985 = vsel %vm3859, 0, %v3983
  %v3986 = vmul.f32 %v3984, %v3984
  %v3987 = vmul.f32 %v3986, -0.001358992
  %v3988 = vadd.f32 %v3987, 0.041655596
  %v3989 = vmul.f32 %v3986, %v3988
  %v3990 = vadd.f32 %v3989, -0.4999988
  %v3991 = vmul.f32 %v3986, %v3990
  %v3992 = vadd.f32 1.0, %v3991
  %v3993 = vmul.f32 %v3984, %v3984
  %v3994 = vmul.f32 %v3993, -0.00019511016
  %v3995 = vadd.f32 %v3994, 0.008332121
  %v3996 = vmul.f32 %v3993, %v3995
  %v3997 = vadd.f32 %v3996, -0.16666654
  %v3998 = vmul.f32 %v3993, %v3997
  %v3999 = vadd.f32 %v3998, 1.0
  %v4000 = vmul.f32 %v3999, %v3984
  %vm4001 = vweird.f32 %v748
  %v4002 = vand.u32 %v3985, 3
  %vm4003 = vcmp.lt.s32.totalorder %v4002, 2
  %vm4004 = vcmp.eq.s32.totalorder %v4002, 0
  %v4005 = vxor.u32 %v4000, 2147483648
  %v4006 = vsel %vm4004, %v3992, %v4005
  %vm4007 = vcmp.eq.s32.totalorder %v4002, 2
  %v4008 = vxor.u32 %v3992, 2147483648
  %v4009 = vsel %vm4007, %v4008, %v4000
  %v4010 = vsel %vm4003, %v4006, %v4009
  %v4011 = vsel %vm4001, nan, %v4010
  %v4012 = vand.u32 2147483647, %v749
  %vm4013 = vcmp.le.f32.partialorder %v4012, 0.7853982
  %vm4014 = vcmp.lt.s32.totalorder %v749, 0
  %v4015 = vand.u32 %v749, 2139095040
  %v4016 = vshrl.u32 %v4015, 23
  %v4017 = vsub.s32 %v4016, 127
  %v4018 = vand.u32 2147483647, %v749
  %v4019 = vand.u32 %v4018, 8388607
  %v4020 = vor.u32 %v4019, 8388608
  %v4021 = vsub.s32 0, %v4020
  %v4022 = vadd.s32 %v4017, 1
  %vm4023 = vcmp.gt.s32.totalorder %v4022, 0
  %v4024 = vsel %vm4023, %v4022, 0
  %v4025 = vshrl.u32 %v4024, 5
  %v4026 = vand.u32 %v4024, 31
  %v4027 = vsub.s32 32, %v4026
  %v4028 = vshrl.u32 683565275, %v4027
  %v4029 = vshll.u32 683565275, %v4026
  %v4030 = vshrl.u32 2475754826, %v4027
  %v4031 = vor.u32 %v4029, %v4030
  %v4032 = vshll.u32 2475754826, %v4026
  %v4033 = vshrl.u32 2131351028, %v4027
  %v4034 = vor.u32 %v4032, %v4033
  %v4035 = vshll.u32 2131351028, %v4026
  %v4036 = vshrl.u32 2102212464, %v4027
  %v4037 = vor.u32 %v4035, %v4036
  %v4038 = vshll.u32 2102212464, %v4026
  %v4039 = vshrl.u32 920167782, %v4027
  %v4040 = vor.u32 %v4038, %v4039
  %v4041 = vshll.u32 920167782, %v4026
  %v4042 = vshrl.u32 1326507024, %v4027
  %v4043 = vor.u32 %v4041, %v4042
  %vm4044 = vcmp.lt.s32.totalorder %v4025, 1
  %vm4045 = vcmp.lt.s32.totalorder %v4025, 2
  %vm4046 = vcmp.lt.s32.totalorder %v4025, 3
  %vm4047 = vcmp.lt.s32.totalorder %v4025, 4
  %v4048 = vsel %vm4044, %v4028, %v4031
  %v4049 = vsel %vm4047, %v4037, 2102212464
  %v4050 = vsel %vm4046, %v4034, %v4049
  %v4051 = vsel %vm4045, %v4048, %v4050
  %v4052 = vsel %vm4044, %v4031, %v4034
  %v4053 = vsel %vm4047, %v4040, 920167782
  %v4054 = vsel %vm4046, %v4037, %v4053
  %v4055 = vsel %vm4045, %v4052, %v4054
  %v4056 = vsel %vm4044, %v4034, %v4037
  %v4057 = vsel %vm4047, %v4043, 1326507024
  %v4058 = vsel %vm4046, %v4040, %v4057
  %v4059 = vsel %vm4045, %v4056, %v4058
  %v4060 = vshll.u32 %v4020, 8
  %v4061 = vand.u32 %v4060, 65535
  %v4062 = vshrl.u32 %v4060, 16
  %v4063 = vand.u32 %v4059, 65535
  %v4064 = vshrl.u32 %v4059, 16
  %v4065 = vmul.u32 %v4061, %v4063
  %v4066 = vmul.u32 %v4061, %v4064
  %v4067 = vmul.u32 %v4062, %v4063
  %v4068 = vmul.u32 %v4062, %v4064
  %v4069 = vshll.u32 %v4066, 16
  %v4070 = vshrl.u32 %v4066, 16
  %v4071 = vshll.u32 %v4067, 16
  %v4072 = vshrl.u32 %v4067, 16
  %vm4073 = vc.u32 %v4065, %v4069
  %v4074 = vsel %vm4073, 1, 0
  %v4075 = vadd.s32 %v4065, %v4069
  %v4076 = vadd.s32 %v4068, %v4074
  %vm4077 = vc.u32 %v4075, %v4071
  %v4078 = vsel %vm4077, 1, 0
  %v4079 = vadd.s32 %v4075, %v4071
  %v4080 = vadd.s32 %v4076, %v4078
  %v4081 = vadd.s32 %v4080, %v4070
  %v4082 = vadd.s32 %v4081, %v4072
  %v4083 = vand.u32 %v4060, 65535
  %v4084 = vshrl.u32 %v4060, 16
  %v4085 = vand.u32 %v4055, 65535
  %v4086 = vshrl.u32 %v4055, 16
  %v4087 = vmul.u32 %v4083, %v4085
  %v4088 = vmul.u32 %v4083, %v4086
  %v4089 = vmul.u32 %v4084, %v4085
  %v4090 = vmul.u32 %v4084, %v4086
  %v4091 = vshll.u32 %v4088, 16
  %v4092 = vshrl.u32 %v4088, 16
  %v4093 = vshll.u32 %v4089, 16
  %v4094 = vshrl.u32 %v4089, 16
  %vm4095 = vc.u32 %v4087, %v4091
  %v4096 = vsel %vm4095, 1, 0
  %v4097 = vadd.s32 %v4087, %v4091
  %v4098 = vadd.s32 %v4090, %v4096
  %vm4099 = vc.u32 %v4097, %v4093
  %v4100 = vsel %vm4099, 1, 0
  %v4101 = vadd.s32 %v4097, %v4093
  %v4102 = vadd.s32 %v4098, %v4100
  %v4103 = vadd.s32 %v4102, %v4092
  %v4104 = vadd.s32 %v4103, %v4094
  %v4105 = vmul.u32 %v4060, %v4051
  %v4106 = vadd.s32 %v4082, %v4101
  %vm4107 = vc.u32 %v4082, %v4101
  %v4108 = vadd.s32 %v4104, 1
  %v4109 = vsel %vm4107, %v4108, %v4104
  %v4110 = vadd.s32 %v4105, %v4109
  %v4111 = vadd.s32 %v4110, 536870912
  %v4112 = vshrl.u32 %v4111, 30
  %v4113 = vshll.u32 %v4112, 30
  %v4114 = vsub.s32 %v4110, %v4113
  %vm4115 = vcmp.lt.s32.totalorder %v4114, 0
  %v4116 = vsub.s32 0, %v4114
  %v4117 = vsel %vm4115, %v4116, %v4114
  %v4118 = vclz %v4117
  %v4119 = vsub.s32 %v4118, 2
  %vm4120 = vcmp.gt.s32.totalorder 0, %v4119
  %v4121 = vsel %vm4120, 0, %v4119
  %v4122 = vsub.s32 32, %v4121
  %v4123 = vshll.u32 %v4114, %v4121
  %v4124 = vshrl.u32 %v4106, %v4122
  %v4125 = vor.u32 %v4123, %v4124
  %v4126 = vsub.s32 4294967266, %v4121
  %v4127 = vadd.s32 %v4126, 127
  %v4128 = vshll.u32 %v4127, 23
  %v4129 = vor.u32 4788187, %v4128
  %v4130 = vand.u32 2147483647, %v4129
  %v4132 = vcvt.s32.f32 %v4125
  %v4133 = vmul.f32 %v4132, %v4130
  %v4134 = vxor.u32 %v4133, 2147483648
  %v4135 = vsel %vm4014, %v4134, %v4133
  %v4136 = vsub.s32 4, %v4112
  %v4137 = vsel %vm4014, %v4136, %v4112
  %v4138 = vsel %vm4013, %v749, %v4135
  %v4139 = vsel %vm4013, 0, %v4137
  %v4140 = vmul.f32 %v4138, %v4138
  %v4141 = vmul.f32 %v4140, -0.001358992
  %v4142 = vadd.f32 %v4141, 0.041655596
  %v4143 = vmul.f32 %v4140, %v4142
  %v4144 = vadd.f32 %v4143, -0.4999988
  %v4145 = vmul.f32 %v4140, %v4144
  %v4146 = vadd.f32 1.0, %v4145
  %v4147 = vmul.f32 %v4138, %v4138
  %v4148 = vmul.f32 %v4147, -0.00019511016
  %v4149 = vadd.f32 %v4148, 0.008332121
  %v4150 = vmul.f32 %v4147, %v4149
  %v4151 = vadd.f32 %v4150, -0.16666654
  %v4152 = vmul.f32 %v4147, %v4151
  %v4153 = vadd.f32 %v4152, 1.0
  %v4154 = vmul.f32 %v4153, %v4138
  %vm4155 = vweird.f32 %v749
  %v4156 = vand.u32 %v4139, 3
  %vm4157 = vcmp.lt.s32.totalorder %v4156, 2
  %vm4158 = vcmp.eq.s32.totalorder %v4156, 0
  %v4159 = vxor.u32 %v4154, 2147483648
  %v4160 = vsel %vm4158, %v4146, %v4159
  %vm4161 = vcmp.eq.s32.totalorder %v4156, 2
  %v4162 = vxor.u32 %v4146, 2147483648
  %v4163 = vsel %vm4161, %v4162, %v4154
  %v4164 = vsel %vm4157, %v4160, %v4163
  %v4165 = vsel %vm4155, nan, %v4164
  %v4166 = vand.u32 2147483647, %v750
  %vm4167 = vcmp.le.f32.partialorder %v4166, 0.7853982
  %vm4168 = vcmp.lt.s32.totalorder %v750, 0
  %v4169 = vand.u32 %v750, 2139095040
  %v4170 = vshrl.u32 %v4169, 23
  %v4171 = vsub.s32 %v4170, 127
  %v4172 = vand.u32 2147483647, %v750
  %v4173 = vand.u32 %v4172, 8388607
  %v4174 = vor.u32 %v4173, 8388608
  %v4175 = vsub.s32 0, %v4174
  %v4176 = vadd.s32 %v4171, 1
  %vm4177 = vcmp.gt.s32.totalorder %v4176, 0
  %v4178 = vsel %vm4177, %v4176, 0
  %v4179 = vshrl.u32 %v4178, 5
  %v4180 = vand.u32 %v4178, 31
  %v4181 = vsub.s32 32, %v4180
  %v4182 = vshrl.u32 683565275, %v4181
  %v4183 = vshll.u32 683565275, %v4180
  %v4184 = vshrl.u32 2475754826, %v4181
  %v4185 = vor.u32 %v4183, %v4184
  %v4186 = vshll.u32 2475754826, %v4180
  %v4187 = vshrl.u32 2131351028, %v4181
  %v4188 = vor.u32 %v4186, %v4187
  %v4189 = vshll.u32 2131351028, %v4180
  %v4190 = vshrl.u32 2102212464, %v4181
  %v4191 = vor.u32 %v4189, %v4190
  %v4192 = vshll.u32 2102212464, %v4180
  %v4193 = vshrl.u32 920167782, %v4181
  %v4194 = vor.u32 %v4192, %v4193
  %v4195 = vshll.u32 920167782, %v4180
  %v4196 = vshrl.u32 1326507024, %v4181
  %v4197 = vor.u32 %v4195, %v4196
  %vm4198 = vcmp.lt.s32.totalorder %v4179, 1
  %vm4199 = vcmp.lt.s32.totalorder %v4179, 2
  %vm4200 = vcmp.lt.s32.totalorder %v4179, 3
  %vm4201 = vcmp.lt.s32.totalorder %v4179, 4
  %v4202 = vsel %vm4198, %v4182, %v4185
  %v4203 = vsel %vm4201, %v4191, 2102212464
  %v4204 = vsel %vm4200, %v4188, %v4203
  %v4205 = vsel %vm4199, %v4202, %v4204
  %v4206 = vsel %vm4198, %v4185, %v4188
  %v4207 = vsel %vm4201, %v4194, 920167782
  %v4208 = vsel %vm4200, %v4191, %v4207
  %v4209 = vsel %vm4199, %v4206, %v4208
  %v4210 = vsel %vm4198, %v4188, %v4191
  %v4211 = vsel %vm4201, %v4197, 1326507024
  %v4212 = vsel %vm4200, %v4194, %v4211
  %v4213 = vsel %vm4199, %v4210, %v4212
  %v4214 = vshll.u32 %v4174, 8
  %v4215 = vand.u32 %v4214, 65535
  %v4216 = vshrl.u32 %v4214, 16
  %v4217 = vand.u32 %v4213, 65535
  %v4218 = vshrl.u32 %v4213, 16
  %v4219 = vmul.u32 %v4215, %v4217
  %v4220 = vmul.u32 %v4215, %v4218
  %v4221 = vmul.u32 %v4216, %v4217
  %v4222 = vmul.u32 %v4216, %v4218
  %v4223 = vshll.u32 %v4220, 16
  %v4224 = vshrl.u32 %v4220, 16
  %v4225 = vshll.u32 %v4221, 16
  %v4226 = vshrl.u32 %v4221, 16
  %vm4227 = vc.u32 %v4219, %v4223
  %v4228 = vsel %vm4227, 1, 0
  %v4229 = vadd.s32 %v4219, %v4223
  %v4230 = vadd.s32 %v4222, %v4228
  %vm4231 = vc.u32 %v4229, %v4225
  %v4232 = vsel %vm4231, 1, 0
  %v4233 = vadd.s32 %v4229, %v4225
  %v4234 = vadd.s32 %v4230, %v4232
  %v4235 = vadd.s32 %v4234, %v4224
  %v4236 = vadd.s32 %v4235, %v4226
  %v4237 = vand.u32 %v4214, 65535
  %v4238 = vshrl.u32 %v4214, 16
  %v4239 = vand.u32 %v4209, 65535
  %v4240 = vshrl.u32 %v4209, 16
  %v4241 = vmul.u32 %v4237, %v4239
  %v4242 = vmul.u32 %v4237, %v4240
  %v4243 = vmul.u32 %v4238, %v4239
  %v4244 = vmul.u32 %v4238, %v4240
  %v4245 = vshll.u32 %v4242, 16
  %v4246 = vshrl.u32 %v4242, 16
  %v4247 = vshll.u32 %v4243, 16
  %v4248 = vshrl.u32 %v4243, 16
  %vm4249 = vc.u32 %v4241, %v4245
  %v4250 = vsel %vm4249, 1, 0
  %v4251 = vadd.s32 %v4241, %v4245
  %v4252 = vadd.s32 %v4244, %v4250
  %vm4253 = vc.u32 %v4251, %v4247
  %v4254 = vsel %vm4253, 1, 0
  %v4255 = vadd.s32 %v4251, %v4247
  %v4256 = vadd.s32 %v4252, %v4254
  %v4257 = vadd.s32 %v4256, %v4246
  %v4258 = vadd.s32 %v4257, %v4248
  %v4259 = vmul.u32 %v4214, %v4205
  %v4260 = vadd.s32 %v4236, %v4255
  %vm4261 = vc.u32 %v4236, %v4255
  %v4262 = vadd.s32 %v4258, 1
  %v4263 = vsel %vm4261, %v4262, %v4258
  %v4264 = vadd.s32 %v4259, %v4263
  %v4265 = vadd.s32 %v4264, 536870912
  %v4266 = vshrl.u32 %v4265, 30
  %v4267 = vshll.u32 %v4266, 30
  %v4268 = vsub.s32 %v4264, %v4267
  %vm4269 = vcmp.lt.s32.totalorder %v4268, 0
  %v4270 = vsub.s32 0, %v4268
  %v4271 = vsel %vm4269, %v4270, %v4268
  %v4272 = vclz %v4271
  %v4273 = vsub.s32 %v4272, 2
  %vm4274 = vcmp.gt.s32.totalorder 0, %v4273
  %v4275 = vsel %vm4274, 0, %v4273
  %v4276 = vsub.s32 32, %v4275
  %v4277 = vshll.u32 %v4268, %v4275
  %v4278 = vshrl.u32 %v4260, %v4276
  %v4279 = vor.u32 %v4277, %v4278
  %v4280 = vsub.s32 4294967266, %v4275
  %v4281 = vadd.s32 %v4280, 127
  %v4282 = vshll.u32 %v4281, 23
  %v4283 = vor.u32 4788187, %v4282
  %v4284 = vand.u32 2147483647, %v4283
  %v4286 = vcvt.s32.f32 %v4279
  %v4287 = vmul.f32 %v4286, %v4284
  %v4288 = vxor.u32 %v4287, 2147483648
  %v4289 = vsel %vm4168, %v4288, %v4287
  %v4290 = vsub.s32 4, %v4266
  %v4291 = vsel %vm4168, %v4290, %v4266
  %v4292 = vsel %vm4167, %v750, %v4289
  %v4293 = vsel %vm4167, 0, %v4291
  %v4294 = vmul.f32 %v4292, %v4292
  %v4295 = vmul.f32 %v4294, -0.001358992
  %v4296 = vadd.f32 %v4295, 0.041655596
  %v4297 = vmul.f32 %v4294, %v4296
  %v4298 = vadd.f32 %v4297, -0.4999988
  %v4299 = vmul.f32 %v4294, %v4298
  %v4300 = vadd.f32 1.0, %v4299
  %v4301 = vmul.f32 %v4292, %v4292
  %v4302 = vmul.f32 %v4301, -0.00019511016
  %v4303 = vadd.f32 %v4302, 0.008332121
  %v4304 = vmul.f32 %v4301, %v4303
  %v4305 = vadd.f32 %v4304, -0.16666654
  %v4306 = vmul.f32 %v4301, %v4305
  %v4307 = vadd.f32 %v4306, 1.0
  %v4308 = vmul.f32 %v4307, %v4292
  %vm4309 = vweird.f32 %v750
  %v4310 = vand.u32 %v4293, 3
  %vm4311 = vcmp.lt.s32.totalorder %v4310, 2
  %vm4312 = vcmp.eq.s32.totalorder %v4310, 0
  %v4313 = vxor.u32 %v4308, 2147483648
  %v4314 = vsel %vm4312, %v4300, %v4313
  %vm4315 = vcmp.eq.s32.totalorder %v4310, 2
  %v4316 = vxor.u32 %v4300, 2147483648
  %v4317 = vsel %vm4315, %v4316, %v4308
  %v4318 = vsel %vm4311, %v4314, %v4317
  %v4319 = vsel %vm4309, nan, %v4318
  %v4320 = vand.u32 2147483647, %v751
  %vm4321 = vcmp.le.f32.partialorder %v4320, 0.7853982
  %vm4322 = vcmp.lt.s32.totalorder %v751, 0
  %v4323 = vand.u32 %v751, 2139095040
  %v4324 = vshrl.u32 %v4323, 23
  %v4325 = vsub.s32 %v4324, 127
  %v4326 = vand.u32 2147483647, %v751
  %v4327 = vand.u32 %v4326, 8388607
  %v4328 = vor.u32 %v4327, 8388608
  %v4329 = vsub.s32 0, %v4328
  %v4330 = vadd.s32 %v4325, 1
  %vm4331 = vcmp.gt.s32.totalorder %v4330, 0
  %v4332 = vsel %vm4331, %v4330, 0
  %v4333 = vshrl.u32 %v4332, 5
  %v4334 = vand.u32 %v4332, 31
  %v4335 = vsub.s32 32, %v4334
  %v4336 = vshrl.u32 683565275, %v4335
  %v4337 = vshll.u32 683565275, %v4334
  %v4338 = vshrl.u32 2475754826, %v4335
  %v4339 = vor.u32 %v4337, %v4338
  %v4340 = vshll.u32 2475754826, %v4334
  %v4341 = vshrl.u32 2131351028, %v4335
  %v4342 = vor.u32 %v4340, %v4341
  %v4343 = vshll.u32 2131351028, %v4334
  %v4344 = vshrl.u32 2102212464, %v4335
  %v4345 = vor.u32 %v4343, %v4344
  %v4346 = vshll.u32 2102212464, %v4334
  %v4347 = vshrl.u32 920167782, %v4335
  %v4348 = vor.u32 %v4346, %v4347
  %v4349 = vshll.u32 920167782, %v4334
  %v4350 = vshrl.u32 1326507024, %v4335
  %v4351 = vor.u32 %v4349, %v4350
  %vm4352 = vcmp.lt.s32.totalorder %v4333, 1
  %vm4353 = vcmp.lt.s32.totalorder %v4333, 2
  %vm4354 = vcmp.lt.s32.totalorder %v4333, 3
  %vm4355 = vcmp.lt.s32.totalorder %v4333, 4
  %v4356 = vsel %vm4352, %v4336, %v4339
  %v4357 = vsel %vm4355, %v4345, 2102212464
  %v4358 = vsel %vm4354, %v4342, %v4357
  %v4359 = vsel %vm4353, %v4356, %v4358
  %v4360 = vsel %vm4352, %v4339, %v4342
  %v4361 = vsel %vm4355, %v4348, 920167782
  %v4362 = vsel %vm4354, %v4345, %v4361
  %v4363 = vsel %vm4353, %v4360, %v4362
  %v4364 = vsel %vm4352, %v4342, %v4345
  %v4365 = vsel %vm4355, %v4351, 1326507024
  %v4366 = vsel %vm4354, %v4348, %v4365
  %v4367 = vsel %vm4353, %v4364, %v4366
  %v4368 = vshll.u32 %v4328, 8
  %v4369 = vand.u32 %v4368, 65535
  %v4370 = vshrl.u32 %v4368, 16
  %v4371 = vand.u32 %v4367, 65535
  %v4372 = vshrl.u32 %v4367, 16
  %v4373 = vmul.u32 %v4369, %v4371
  %v4374 = vmul.u32 %v4369, %v4372
  %v4375 = vmul.u32 %v4370, %v4371
  %v4376 = vmul.u32 %v4370, %v4372
  %v4377 = vshll.u32 %v4374, 16
  %v4378 = vshrl.u32 %v4374, 16
  %v4379 = vshll.u32 %v4375, 16
  %v4380 = vshrl.u32 %v4375, 16
  %vm4381 = vc.u32 %v4373, %v4377
  %v4382 = vsel %vm4381, 1, 0
  %v4383 = vadd.s32 %v4373, %v4377
  %v4384 = vadd.s32 %v4376, %v4382
  %vm4385 = vc.u32 %v4383, %v4379
  %v4386 = vsel %vm4385, 1, 0
  %v4387 = vadd.s32 %v4383, %v4379
  %v4388 = vadd.s32 %v4384, %v4386
  %v4389 = vadd.s32 %v4388, %v4378
  %v4390 = vadd.s32 %v4389, %v4380
  %v4391 = vand.u32 %v4368, 65535
  %v4392 = vshrl.u32 %v4368, 16
  %v4393 = vand.u32 %v4363, 65535
  %v4394 = vshrl.u32 %v4363, 16
  %v4395 = vmul.u32 %v4391, %v4393
  %v4396 = vmul.u32 %v4391, %v4394
  %v4397 = vmul.u32 %v4392, %v4393
  %v4398 = vmul.u32 %v4392, %v4394
  %v4399 = vshll.u32 %v4396, 16
  %v4400 = vshrl.u32 %v4396, 16
  %v4401 = vshll.u32 %v4397, 16
  %v4402 = vshrl.u32 %v4397, 16
  %vm4403 = vc.u32 %v4395, %v4399
  %v4404 = vsel %vm4403, 1, 0
  %v4405 = vadd.s32 %v4395, %v4399
  %v4406 = vadd.s32 %v4398, %v4404
  %vm4407 = vc.u32 %v4405, %v4401
  %v4408 = vsel %vm4407, 1, 0
  %v4409 = vadd.s32 %v4405, %v4401
  %v4410 = vadd.s32 %v4406, %v4408
  %v4411 = vadd.s32 %v4410, %v4400
  %v4412 = vadd.s32 %v4411, %v4402
  %v4413 = vmul.u32 %v4368, %v4359
  %v4414 = vadd.s32 %v4390, %v4409
  %vm4415 = vc.u32 %v4390, %v4409
  %v4416 = vadd.s32 %v4412, 1
  %v4417 = vsel %vm4415, %v4416, %v4412
  %v4418 = vadd.s32 %v4413, %v4417
  %v4419 = vadd.s32 %v4418, 536870912
  %v4420 = vshrl.u32 %v4419, 30
  %v4421 = vshll.u32 %v4420, 30
  %v4422 = vsub.s32 %v4418, %v4421
  %vm4423 = vcmp.lt.s32.totalorder %v4422, 0
  %v4424 = vsub.s32 0, %v4422
  %v4425 = vsel %vm4423, %v4424, %v4422
  %v4426 = vclz %v4425
  %v4427 = vsub.s32 %v4426, 2
  %vm4428 = vcmp.gt.s32.totalorder 0, %v4427
  %v4429 = vsel %vm4428, 0, %v4427
  %v4430 = vsub.s32 32, %v4429
  %v4431 = vshll.u32 %v4422, %v4429
  %v4432 = vshrl.u32 %v4414, %v4430
  %v4433 = vor.u32 %v4431, %v4432
  %v4434 = vsub.s32 4294967266, %v4429
  %v4435 = vadd.s32 %v4434, 127
  %v4436 = vshll.u32 %v4435, 23
  %v4437 = vor.u32 4788187, %v4436
  %v4438 = vand.u32 2147483647, %v4437
  %v4440 = vcvt.s32.f32 %v4433
  %v4441 = vmul.f32 %v4440, %v4438
  %v4442 = vxor.u32 %v4441, 2147483648
  %v4443 = vsel %vm4322, %v4442, %v4441
  %v4444 = vsub.s32 4, %v4420
  %v4445 = vsel %vm4322, %v4444, %v4420
  %v4446 = vsel %vm4321, %v751, %v4443
  %v4447 = vsel %vm4321, 0, %v4445
  %v4448 = vmul.f32 %v4446, %v4446
  %v4449 = vmul.f32 %v4448, -0.001358992
  %v4450 = vadd.f32 %v4449, 0.041655596
  %v4451 = vmul.f32 %v4448, %v4450
  %v4452 = vadd.f32 %v4451, -0.4999988
  %v4453 = vmul.f32 %v4448, %v4452
  %v4454 = vadd.f32 1.0, %v4453
  %v4455 = vmul.f32 %v4446, %v4446
  %v4456 = vmul.f32 %v4455, -0.00019511016
  %v4457 = vadd.f32 %v4456, 0.008332121
  %v4458 = vmul.f32 %v4455, %v4457
  %v4459 = vadd.f32 %v4458, -0.16666654
  %v4460 = vmul.f32 %v4455, %v4459
  %v4461 = vadd.f32 %v4460, 1.0
  %v4462 = vmul.f32 %v4461, %v4446
  %vm4463 = vweird.f32 %v751
  %v4464 = vand.u32 %v4447, 3
  %vm4465 = vcmp.lt.s32.totalorder %v4464, 2
  %vm4466 = vcmp.eq.s32.totalorder %v4464, 0
  %v4467 = vxor.u32 %v4462, 2147483648
  %v4468 = vsel %vm4466, %v4454, %v4467
  %vm4469 = vcmp.eq.s32.totalorder %v4464, 2
  %v4470 = vxor.u32 %v4454, 2147483648
  %v4471 = vsel %vm4469, %v4470, %v4462
  %v4472 = vsel %vm4465, %v4468, %v4471
  %v4473 = vsel %vm4463, nan, %v4472
  %v4474 = vand.u32 2147483647, %v752
  %vm4475 = vcmp.le.f32.partialorder %v4474, 0.7853982
  %vm4476 = vcmp.lt.s32.totalorder %v752, 0
  %v4477 = vand.u32 %v752, 2139095040
  %v4478 = vshrl.u32 %v4477, 23
  %v4479 = vsub.s32 %v4478, 127
  %v4480 = vand.u32 2147483647, %v752
  %v4481 = vand.u32 %v4480, 8388607
  %v4482 = vor.u32 %v4481, 8388608
  %v4483 = vsub.s32 0, %v4482
  %v4484 = vadd.s32 %v4479, 1
  %vm4485 = vcmp.gt.s32.totalorder %v4484, 0
  %v4486 = vsel %vm4485, %v4484, 0
  %v4487 = vshrl.u32 %v4486, 5
  %v4488 = vand.u32 %v4486, 31
  %v4489 = vsub.s32 32, %v4488
  %v4490 = vshrl.u32 683565275, %v4489
  %v4491 = vshll.u32 683565275, %v4488
  %v4492 = vshrl.u32 2475754826, %v4489
  %v4493 = vor.u32 %v4491, %v4492
  %v4494 = vshll.u32 2475754826, %v4488
  %v4495 = vshrl.u32 2131351028, %v4489
  %v4496 = vor.u32 %v4494, %v4495
  %v4497 = vshll.u32 2131351028, %v4488
  %v4498 = vshrl.u32 2102212464, %v4489
  %v4499 = vor.u32 %v4497, %v4498
  %v4500 = vshll.u32 2102212464, %v4488
  %v4501 = vshrl.u32 920167782, %v4489
  %v4502 = vor.u32 %v4500, %v4501
  %v4503 = vshll.u32 920167782, %v4488
  %v4504 = vshrl.u32 1326507024, %v4489
  %v4505 = vor.u32 %v4503, %v4504
  %vm4506 = vcmp.lt.s32.totalorder %v4487, 1
  %vm4507 = vcmp.lt.s32.totalorder %v4487, 2
  %vm4508 = vcmp.lt.s32.totalorder %v4487, 3
  %vm4509 = vcmp.lt.s32.totalorder %v4487, 4
  %v4510 = vsel %vm4506, %v4490, %v4493
  %v4511 = vsel %vm4509, %v4499, 2102212464
  %v4512 = vsel %vm4508, %v4496, %v4511
  %v4513 = vsel %vm4507, %v4510, %v4512
  %v4514 = vsel %vm4506, %v4493, %v4496
  %v4515 = vsel %vm4509, %v4502, 920167782
  %v4516 = vsel %vm4508, %v4499, %v4515
  %v4517 = vsel %vm4507, %v4514, %v4516
  %v4518 = vsel %vm4506, %v4496, %v4499
  %v4519 = vsel %vm4509, %v4505, 1326507024
  %v4520 = vsel %vm4508, %v4502, %v4519
  %v4521 = vsel %vm4507, %v4518, %v4520
  %v4522 = vshll.u32 %v4482, 8
  %v4523 = vand.u32 %v4522, 65535
  %v4524 = vshrl.u32 %v4522, 16
  %v4525 = vand.u32 %v4521, 65535
  %v4526 = vshrl.u32 %v4521, 16
  %v4527 = vmul.u32 %v4523, %v4525
  %v4528 = vmul.u32 %v4523, %v4526
  %v4529 = vmul.u32 %v4524, %v4525
  %v4530 = vmul.u32 %v4524, %v4526
  %v4531 = vshll.u32 %v4528, 16
  %v4532 = vshrl.u32 %v4528, 16
  %v4533 = vshll.u32 %v4529, 16
  %v4534 = vshrl.u32 %v4529, 16
  %vm4535 = vc.u32 %v4527, %v4531
  %v4536 = vsel %vm4535, 1, 0
  %v4537 = vadd.s32 %v4527, %v4531
  %v4538 = vadd.s32 %v4530, %v4536
  %vm4539 = vc.u32 %v4537, %v4533
  %v4540 = vsel %vm4539, 1, 0
  %v4541 = vadd.s32 %v4537, %v4533
  %v4542 = vadd.s32 %v4538, %v4540
  %v4543 = vadd.s32 %v4542, %v4532
  %v4544 = vadd.s32 %v4543, %v4534
  %v4545 = vand.u32 %v4522, 65535
  %v4546 = vshrl.u32 %v4522, 16
  %v4547 = vand.u32 %v4517, 65535
  %v4548 = vshrl.u32 %v4517, 16
  %v4549 = vmul.u32 %v4545, %v4547
  %v4550 = vmul.u32 %v4545, %v4548
  %v4551 = vmul.u32 %v4546, %v4547
  %v4552 = vmul.u32 %v4546, %v4548
  %v4553 = vshll.u32 %v4550, 16
  %v4554 = vshrl.u32 %v4550, 16
  %v4555 = vshll.u32 %v4551, 16
  %v4556 = vshrl.u32 %v4551, 16
  %vm4557 = vc.u32 %v4549, %v4553
  %v4558 = vsel %vm4557, 1, 0
  %v4559 = vadd.s32 %v4549, %v4553
  %v4560 = vadd.s32 %v4552, %v4558
  %vm4561 = vc.u32 %v4559, %v4555
  %v4562 = vsel %vm4561, 1, 0
  %v4563 = vadd.s32 %v4559, %v4555
  %v4564 = vadd.s32 %v4560, %v4562
  %v4565 = vadd.s32 %v4564, %v4554
  %v4566 = vadd.s32 %v4565, %v4556
  %v4567 = vmul.u32 %v4522, %v4513
  %v4568 = vadd.s32 %v4544, %v4563
  %vm4569 = vc.u32 %v4544, %v4563
  %v4570 = vadd.s32 %v4566, 1
  %v4571 = vsel %vm4569, %v4570, %v4566
  %v4572 = vadd.s32 %v4567, %v4571
  %v4573 = vadd.s32 %v4572, 536870912
  %v4574 = vshrl.u32 %v4573, 30
  %v4575 = vshll.u32 %v4574, 30
  %v4576 = vsub.s32 %v4572, %v4575
  %vm4577 = vcmp.lt.s32.totalorder %v4576, 0
  %v4578 = vsub.s32 0, %v4576
  %v4579 = vsel %vm4577, %v4578, %v4576
  %v4580 = vclz %v4579
  %v4581 = vsub.s32 %v4580, 2
  %vm4582 = vcmp.gt.s32.totalorder 0, %v4581
  %v4583 = vsel %vm4582, 0, %v4581
  %v4584 = vsub.s32 32, %v4583
  %v4585 = vshll.u32 %v4576, %v4583
  %v4586 = vshrl.u32 %v4568, %v4584
  %v4587 = vor.u32 %v4585, %v4586
  %v4588 = vsub.s32 4294967266, %v4583
  %v4589 = vadd.s32 %v4588, 127
  %v4590 = vshll.u32 %v4589, 23
  %v4591 = vor.u32 4788187, %v4590
  %v4592 = vand.u32 2147483647, %v4591
  %v4594 = vcvt.s32.f32 %v4587
  %v4595 = vmul.f32 %v4594, %v4592
  %v4596 = vxor.u32 %v4595, 2147483648
  %v4597 = vsel %vm4476, %v4596, %v4595
  %v4598 = vsub.s32 4, %v4574
  %v4599 = vsel %vm4476, %v4598, %v4574
  %v4600 = vsel %vm4475, %v752, %v4597
  %v4601 = vsel %vm4475, 0, %v4599
  %v4602 = vmul.f32 %v4600, %v4600
  %v4603 = vmul.f32 %v4602, -0.001358992
  %v4604 = vadd.f32 %v4603, 0.041655596
  %v4605 = vmul.f32 %v4602, %v4604
  %v4606 = vadd.f32 %v4605, -0.4999988
  %v4607 = vmul.f32 %v4602, %v4606
  %v4608 = vadd.f32 1.0, %v4607
  %v4609 = vmul.f32 %v4600, %v4600
  %v4610 = vmul.f32 %v4609, -0.00019511016
  %v4611 = vadd.f32 %v4610, 0.008332121
  %v4612 = vmul.f32 %v4609, %v4611
  %v4613 = vadd.f32 %v4612, -0.16666654
  %v4614 = vmul.f32 %v4609, %v4613
  %v4615 = vadd.f32 %v4614, 1.0
  %v4616 = vmul.f32 %v4615, %v4600
  %vm4617 = vweird.f32 %v752
  %v4618 = vand.u32 %v4601, 3
  %vm4619 = vcmp.lt.s32.totalorder %v4618, 2
  %vm4620 = vcmp.eq.s32.totalorder %v4618, 0
  %v4621 = vxor.u32 %v4616, 2147483648
  %v4622 = vsel %vm4620, %v4608, %v4621
  %vm4623 = vcmp.eq.s32.totalorder %v4618, 2
  %v4624 = vxor.u32 %v4608, 2147483648
  %v4625 = vsel %vm4623, %v4624, %v4616
  %v4626 = vsel %vm4619, %v4622, %v4625
  %v4627 = vsel %vm4617, nan, %v4626
  %v4628 = vand.u32 2147483647, %v753
  %vm4629 = vcmp.le.f32.partialorder %v4628, 0.7853982
  %vm4630 = vcmp.lt.s32.totalorder %v753, 0
  %v4631 = vand.u32 %v753, 2139095040
  %v4632 = vshrl.u32 %v4631, 23
  %v4633 = vsub.s32 %v4632, 127
  %v4634 = vand.u32 2147483647, %v753
  %v4635 = vand.u32 %v4634, 8388607
  %v4636 = vor.u32 %v4635, 8388608
  %v4637 = vsub.s32 0, %v4636
  %v4638 = vadd.s32 %v4633, 1
  %vm4639 = vcmp.gt.s32.totalorder %v4638, 0
  %v4640 = vsel %vm4639, %v4638, 0
  %v4641 = vshrl.u32 %v4640, 5
  %v4642 = vand.u32 %v4640, 31
  %v4643 = vsub.s32 32, %v4642
  %v4644 = vshrl.u32 683565275, %v4643
  %v4645 = vshll.u32 683565275, %v4642
  %v4646 = vshrl.u32 2475754826, %v4643
  %v4647 = vor.u32 %v4645, %v4646
  %v4648 = vshll.u32 2475754826, %v4642
  %v4649 = vshrl.u32 2131351028, %v4643
  %v4650 = vor.u32 %v4648, %v4649
  %v4651 = vshll.u32 2131351028, %v4642
  %v4652 = vshrl.u32 2102212464, %v4643
  %v4653 = vor.u32 %v4651, %v4652
  %v4654 = vshll.u32 2102212464, %v4642
  %v4655 = vshrl.u32 920167782, %v4643
  %v4656 = vor.u32 %v4654, %v4655
  %v4657 = vshll.u32 920167782, %v4642
  %v4658 = vshrl.u32 1326507024, %v4643
  %v4659 = vor.u32 %v4657, %v4658
  %vm4660 = vcmp.lt.s32.totalorder %v4641, 1
  %vm4661 = vcmp.lt.s32.totalorder %v4641, 2
  %vm4662 = vcmp.lt.s32.totalorder %v4641, 3
  %vm4663 = vcmp.lt.s32.totalorder %v4641, 4
  %v4664 = vsel %vm4660, %v4644, %v4647
  %v4665 = vsel %vm4663, %v4653, 2102212464
  %v4666 = vsel %vm4662, %v4650, %v4665
  %v4667 = vsel %vm4661, %v4664, %v4666
  %v4668 = vsel %vm4660, %v4647, %v4650
  %v4669 = vsel %vm4663, %v4656, 920167782
  %v4670 = vsel %vm4662, %v4653, %v4669
  %v4671 = vsel %vm4661, %v4668, %v4670
  %v4672 = vsel %vm4660, %v4650, %v4653
  %v4673 = vsel %vm4663, %v4659, 1326507024
  %v4674 = vsel %vm4662, %v4656, %v4673
  %v4675 = vsel %vm4661, %v4672, %v4674
  %v4676 = vshll.u32 %v4636, 8
  %v4677 = vand.u32 %v4676, 65535
  %v4678 = vshrl.u32 %v4676, 16
  %v4679 = vand.u32 %v4675, 65535
  %v4680 = vshrl.u32 %v4675, 16
  %v4681 = vmul.u32 %v4677, %v4679
  %v4682 = vmul.u32 %v4677, %v4680
  %v4683 = vmul.u32 %v4678, %v4679
  %v4684 = vmul.u32 %v4678, %v4680
  %v4685 = vshll.u32 %v4682, 16
  %v4686 = vshrl.u32 %v4682, 16
  %v4687 = vshll.u32 %v4683, 16
  %v4688 = vshrl.u32 %v4683, 16
  %vm4689 = vc.u32 %v4681, %v4685
  %v4690 = vsel %vm4689, 1, 0
  %v4691 = vadd.s32 %v4681, %v4685
  %v4692 = vadd.s32 %v4684, %v4690
  %vm4693 = vc.u32 %v4691, %v4687
  %v4694 = vsel %vm4693, 1, 0
  %v4695 = vadd.s32 %v4691, %v4687
  %v4696 = vadd.s32 %v4692, %v4694
  %v4697 = vadd.s32 %v4696, %v4686
  %v4698 = vadd.s32 %v4697, %v4688
  %v4699 = vand.u32 %v4676, 65535
  %v4700 = vshrl.u32 %v4676, 16
  %v4701 = vand.u32 %v4671, 65535
  %v4702 = vshrl.u32 %v4671, 16
  %v4703 = vmul.u32 %v4699, %v4701
  %v4704 = vmul.u32 %v4699, %v4702
  %v4705 = vmul.u32 %v4700, %v4701
  %v4706 = vmul.u32 %v4700, %v4702
  %v4707 = vshll.u32 %v4704, 16
  %v4708 = vshrl.u32 %v4704, 16
  %v4709 = vshll.u32 %v4705, 16
  %v4710 = vshrl.u32 %v4705, 16
  %vm4711 = vc.u32 %v4703, %v4707
  %v4712 = vsel %vm4711, 1, 0
  %v4713 = vadd.s32 %v4703, %v4707
  %v4714 = vadd.s32 %v4706, %v4712
  %vm4715 = vc.u32 %v4713, %v4709
  %v4716 = vsel %vm4715, 1, 0
  %v4717 = vadd.s32 %v4713, %v4709
  %v4718 = vadd.s32 %v4714, %v4716
  %v4719 = vadd.s32 %v4718, %v4708
  %v4720 = vadd.s32 %v4719, %v4710
  %v4721 = vmul.u32 %v4676, %v4667
  %v4722 = vadd.s32 %v4698, %v4717
  %vm4723 = vc.u32 %v4698, %v4717
  %v4724 = vadd.s32 %v4720, 1
  %v4725 = vsel %vm4723, %v4724, %v4720
  %v4726 = vadd.s32 %v4721, %v4725
  %v4727 = vadd.s32 %v4726, 536870912
  %v4728 = vshrl.u32 %v4727, 30
  %v4729 = vshll.u32 %v4728, 30
  %v4730 = vsub.s32 %v4726, %v4729
  %vm4731 = vcmp.lt.s32.totalorder %v4730, 0
  %v4732 = vsub.s32 0, %v4730
  %v4733 = vsel %vm4731, %v4732, %v4730
  %v4734 = vclz %v4733
  %v4735 = vsub.s32 %v4734, 2
  %vm4736 = vcmp.gt.s32.totalorder 0, %v4735
  %v4737 = vsel %vm4736, 0, %v4735
  %v4738 = vsub.s32 32, %v4737
  %v4739 = vshll.u32 %v4730, %v4737
  %v4740 = vshrl.u32 %v4722, %v4738
  %v4741 = vor.u32 %v4739, %v4740
  %v4742 = vsub.s32 4294967266, %v4737
  %v4743 = vadd.s32 %v4742, 127
  %v4744 = vshll.u32 %v4743, 23
  %v4745 = vor.u32 4788187, %v4744
  %v4746 = vand.u32 2147483647, %v4745
  %v4748 = vcvt.s32.f32 %v4741
  %v4749 = vmul.f32 %v4748, %v4746
  %v4750 = vxor.u32 %v4749, 2147483648
  %v4751 = vsel %vm4630, %v4750, %v4749
  %v4752 = vsub.s32 4, %v4728
  %v4753 = vsel %vm4630, %v4752, %v4728
  %v4754 = vsel %vm4629, %v753, %v4751
  %v4755 = vsel %vm4629, 0, %v4753
  %v4756 = vmul.f32 %v4754, %v4754
  %v4757 = vmul.f32 %v4756, -0.001358992
  %v4758 = vadd.f32 %v4757, 0.041655596
  %v4759 = vmul.f32 %v4756, %v4758
  %v4760 = vadd.f32 %v4759, -0.4999988
  %v4761 = vmul.f32 %v4756, %v4760
  %v4762 = vadd.f32 1.0, %v4761
  %v4763 = vmul.f32 %v4754, %v4754
  %v4764 = vmul.f32 %v4763, -0.00019511016
  %v4765 = vadd.f32 %v4764, 0.008332121
  %v4766 = vmul.f32 %v4763, %v4765
  %v4767 = vadd.f32 %v4766, -0.16666654
  %v4768 = vmul.f32 %v4763, %v4767
  %v4769 = vadd.f32 %v4768, 1.0
  %v4770 = vmul.f32 %v4769, %v4754
  %vm4771 = vweird.f32 %v753
  %v4772 = vand.u32 %v4755, 3
  %vm4773 = vcmp.lt.s32.totalorder %v4772, 2
  %vm4774 = vcmp.eq.s32.totalorder %v4772, 0
  %v4775 = vxor.u32 %v4770, 2147483648
  %v4776 = vsel %vm4774, %v4762, %v4775
  %vm4777 = vcmp.eq.s32.totalorder %v4772, 2
  %v4778 = vxor.u32 %v4762, 2147483648
  %v4779 = vsel %vm4777, %v4778, %v4770
  %v4780 = vsel %vm4773, %v4776, %v4779
  %v4781 = vsel %vm4771, nan, %v4780
  %v4782 = vand.u32 2147483647, %v754
  %vm4783 = vcmp.le.f32.partialorder %v4782, 0.7853982
  %vm4784 = vcmp.lt.s32.totalorder %v754, 0
  %v4785 = vand.u32 %v754, 2139095040
  %v4786 = vshrl.u32 %v4785, 23
  %v4787 = vsub.s32 %v4786, 127
  %v4788 = vand.u32 2147483647, %v754
  %v4789 = vand.u32 %v4788, 8388607
  %v4790 = vor.u32 %v4789, 8388608
  %v4791 = vsub.s32 0, %v4790
  %v4792 = vadd.s32 %v4787, 1
  %vm4793 = vcmp.gt.s32.totalorder %v4792, 0
  %v4794 = vsel %vm4793, %v4792, 0
  %v4795 = vshrl.u32 %v4794, 5
  %v4796 = vand.u32 %v4794, 31
  %v4797 = vsub.s32 32, %v4796
  %v4798 = vshrl.u32 683565275, %v4797
  %v4799 = vshll.u32 683565275, %v4796
  %v4800 = vshrl.u32 2475754826, %v4797
  %v4801 = vor.u32 %v4799, %v4800
  %v4802 = vshll.u32 2475754826, %v4796
  %v4803 = vshrl.u32 2131351028, %v4797
  %v4804 = vor.u32 %v4802, %v4803
  %v4805 = vshll.u32 2131351028, %v4796
  %v4806 = vshrl.u32 2102212464, %v4797
  %v4807 = vor.u32 %v4805, %v4806
  %v4808 = vshll.u32 2102212464, %v4796
  %v4809 = vshrl.u32 920167782, %v4797
  %v4810 = vor.u32 %v4808, %v4809
  %v4811 = vshll.u32 920167782, %v4796
  %v4812 = vshrl.u32 1326507024, %v4797
  %v4813 = vor.u32 %v4811, %v4812
  %vm4814 = vcmp.lt.s32.totalorder %v4795, 1
  %vm4815 = vcmp.lt.s32.totalorder %v4795, 2
  %vm4816 = vcmp.lt.s32.totalorder %v4795, 3
  %vm4817 = vcmp.lt.s32.totalorder %v4795, 4
  %v4818 = vsel %vm4814, %v4798, %v4801
  %v4819 = vsel %vm4817, %v4807, 2102212464
  %v4820 = vsel %vm4816, %v4804, %v4819
  %v4821 = vsel %vm4815, %v4818, %v4820
  %v4822 = vsel %vm4814, %v4801, %v4804
  %v4823 = vsel %vm4817, %v4810, 920167782
  %v4824 = vsel %vm4816, %v4807, %v4823
  %v4825 = vsel %vm4815, %v4822, %v4824
  %v4826 = vsel %vm4814, %v4804, %v4807
  %v4827 = vsel %vm4817, %v4813, 1326507024
  %v4828 = vsel %vm4816, %v4810, %v4827
  %v4829 = vsel %vm4815, %v4826, %v4828
  %v4830 = vshll.u32 %v4790, 8
  %v4831 = vand.u32 %v4830, 65535
  %v4832 = vshrl.u32 %v4830, 16
  %v4833 = vand.u32 %v4829, 65535
  %v4834 = vshrl.u32 %v4829, 16
  %v4835 = vmul.u32 %v4831, %v4833
  %v4836 = vmul.u32 %v4831, %v4834
  %v4837 = vmul.u32 %v4832, %v4833
  %v4838 = vmul.u32 %v4832, %v4834
  %v4839 = vshll.u32 %v4836, 16
  %v4840 = vshrl.u32 %v4836, 16
  %v4841 = vshll.u32 %v4837, 16
  %v4842 = vshrl.u32 %v4837, 16
  %vm4843 = vc.u32 %v4835, %v4839
  %v4844 = vsel %vm4843, 1, 0
  %v4845 = vadd.s32 %v4835, %v4839
  %v4846 = vadd.s32 %v4838, %v4844
  %vm4847 = vc.u32 %v4845, %v4841
  %v4848 = vsel %vm4847, 1, 0
  %v4849 = vadd.s32 %v4845, %v4841
  %v4850 = vadd.s32 %v4846, %v4848
  %v4851 = vadd.s32 %v4850, %v4840
  %v4852 = vadd.s32 %v4851, %v4842
  %v4853 = vand.u32 %v4830, 65535
  %v4854 = vshrl.u32 %v4830, 16
  %v4855 = vand.u32 %v4825, 65535
  %v4856 = vshrl.u32 %v4825, 16
  %v4857 = vmul.u32 %v4853, %v4855
  %v4858 = vmul.u32 %v4853, %v4856
  %v4859 = vmul.u32 %v4854, %v4855
  %v4860 = vmul.u32 %v4854, %v4856
  %v4861 = vshll.u32 %v4858, 16
  %v4862 = vshrl.u32 %v4858, 16
  %v4863 = vshll.u32 %v4859, 16
  %v4864 = vshrl.u32 %v4859, 16
  %vm4865 = vc.u32 %v4857, %v4861
  %v4866 = vsel %vm4865, 1, 0
  %v4867 = vadd.s32 %v4857, %v4861
  %v4868 = vadd.s32 %v4860, %v4866
  %vm4869 = vc.u32 %v4867, %v4863
  %v4870 = vsel %vm4869, 1, 0
  %v4871 = vadd.s32 %v4867, %v4863
  %v4872 = vadd.s32 %v4868, %v4870
  %v4873 = vadd.s32 %v4872, %v4862
  %v4874 = vadd.s32 %v4873, %v4864
  %v4875 = vmul.u32 %v4830, %v4821
  %v4876 = vadd.s32 %v4852, %v4871
  %vm4877 = vc.u32 %v4852, %v4871
  %v4878 = vadd.s32 %v4874, 1
  %v4879 = vsel %vm4877, %v4878, %v4874
  %v4880 = vadd.s32 %v4875, %v4879
  %v4881 = vadd.s32 %v4880, 536870912
  %v4882 = vshrl.u32 %v4881, 30
  %v4883 = vshll.u32 %v4882, 30
  %v4884 = vsub.s32 %v4880, %v4883
  %vm4885 = vcmp.lt.s32.totalorder %v4884, 0
  %v4886 = vsub.s32 0, %v4884
  %v4887 = vsel %vm4885, %v4886, %v4884
  %v4888 = vclz %v4887
  %v4889 = vsub.s32 %v4888, 2
  %vm4890 = vcmp.gt.s32.totalorder 0, %v4889
  %v4891 = vsel %vm4890, 0, %v4889
  %v4892 = vsub.s32 32, %v4891
  %v4893 = vshll.u32 %v4884, %v4891
  %v4894 = vshrl.u32 %v4876, %v4892
  %v4895 = vor.u32 %v4893, %v4894
  %v4896 = vsub.s32 4294967266, %v4891
  %v4897 = vadd.s32 %v4896, 127
  %v4898 = vshll.u32 %v4897, 23
  %v4899 = vor.u32 4788187, %v4898
  %v4900 = vand.u32 2147483647, %v4899
  %v4902 = vcvt.s32.f32 %v4895
  %v4903 = vmul.f32 %v4902, %v4900
  %v4904 = vxor.u32 %v4903, 2147483648
  %v4905 = vsel %vm4784, %v4904, %v4903
  %v4906 = vsub.s32 4, %v4882
  %v4907 = vsel %vm4784, %v4906, %v4882
  %v4908 = vsel %vm4783, %v754, %v4905
  %v4909 = vsel %vm4783, 0, %v4907
  %v4910 = vmul.f32 %v4908, %v4908
  %v4911 = vmul.f32 %v4910, -0.001358992
  %v4912 = vadd.f32 %v4911, 0.041655596
  %v4913 = vmul.f32 %v4910, %v4912
  %v4914 = vadd.f32 %v4913, -0.4999988
  %v4915 = vmul.f32 %v4910, %v4914
  %v4916 = vadd.f32 1.0, %v4915
  %v4917 = vmul.f32 %v4908, %v4908
  %v4918 = vmul.f32 %v4917, -0.00019511016
  %v4919 = vadd.f32 %v4918, 0.008332121
  %v4920 = vmul.f32 %v4917, %v4919
  %v4921 = vadd.f32 %v4920, -0.16666654
  %v4922 = vmul.f32 %v4917, %v4921
  %v4923 = vadd.f32 %v4922, 1.0
  %v4924 = vmul.f32 %v4923, %v4908
  %vm4925 = vweird.f32 %v754
  %v4926 = vand.u32 %v4909, 3
  %vm4927 = vcmp.lt.s32.totalorder %v4926, 2
  %vm4928 = vcmp.eq.s32.totalorder %v4926, 0
  %v4929 = vxor.u32 %v4924, 2147483648
  %v4930 = vsel %vm4928, %v4916, %v4929
  %vm4931 = vcmp.eq.s32.totalorder %v4926, 2
  %v4932 = vxor.u32 %v4916, 2147483648
  %v4933 = vsel %vm4931, %v4932, %v4924
  %v4934 = vsel %vm4927, %v4930, %v4933
  %v4935 = vsel %vm4925, nan, %v4934
  %v4936 = vand.u32 2147483647, %v755
  %vm4937 = vcmp.le.f32.partialorder %v4936, 0.7853982
  %vm4938 = vcmp.lt.s32.totalorder %v755, 0
  %v4939 = vand.u32 %v755, 2139095040
  %v4940 = vshrl.u32 %v4939, 23
  %v4941 = vsub.s32 %v4940, 127
  %v4942 = vand.u32 2147483647, %v755
  %v4943 = vand.u32 %v4942, 8388607
  %v4944 = vor.u32 %v4943, 8388608
  %v4945 = vsub.s32 0, %v4944
  %v4946 = vadd.s32 %v4941, 1
  %vm4947 = vcmp.gt.s32.totalorder %v4946, 0
  %v4948 = vsel %vm4947, %v4946, 0
  %v4949 = vshrl.u32 %v4948, 5
  %v4950 = vand.u32 %v4948, 31
  %v4951 = vsub.s32 32, %v4950
  %v4952 = vshrl.u32 683565275, %v4951
  %v4953 = vshll.u32 683565275, %v4950
  %v4954 = vshrl.u32 2475754826, %v4951
  %v4955 = vor.u32 %v4953, %v4954
  %v4956 = vshll.u32 2475754826, %v4950
  %v4957 = vshrl.u32 2131351028, %v4951
  %v4958 = vor.u32 %v4956, %v4957
  %v4959 = vshll.u32 2131351028, %v4950
  %v4960 = vshrl.u32 2102212464, %v4951
  %v4961 = vor.u32 %v4959, %v4960
  %v4962 = vshll.u32 2102212464, %v4950
  %v4963 = vshrl.u32 920167782, %v4951
  %v4964 = vor.u32 %v4962, %v4963
  %v4965 = vshll.u32 920167782, %v4950
  %v4966 = vshrl.u32 1326507024, %v4951
  %v4967 = vor.u32 %v4965, %v4966
  %vm4968 = vcmp.lt.s32.totalorder %v4949, 1
  %vm4969 = vcmp.lt.s32.totalorder %v4949, 2
  %vm4970 = vcmp.lt.s32.totalorder %v4949, 3
  %vm4971 = vcmp.lt.s32.totalorder %v4949, 4
  %v4972 = vsel %vm4968, %v4952, %v4955
  %v4973 = vsel %vm4971, %v4961, 2102212464
  %v4974 = vsel %vm4970, %v4958, %v4973
  %v4975 = vsel %vm4969, %v4972, %v4974
  %v4976 = vsel %vm4968, %v4955, %v4958
  %v4977 = vsel %vm4971, %v4964, 920167782
  %v4978 = vsel %vm4970, %v4961, %v4977
  %v4979 = vsel %vm4969, %v4976, %v4978
  %v4980 = vsel %vm4968, %v4958, %v4961
  %v4981 = vsel %vm4971, %v4967, 1326507024
  %v4982 = vsel %vm4970, %v4964, %v4981
  %v4983 = vsel %vm4969, %v4980, %v4982
  %v4984 = vshll.u32 %v4944, 8
  %v4985 = vand.u32 %v4984, 65535
  %v4986 = vshrl.u32 %v4984, 16
  %v4987 = vand.u32 %v4983, 65535
  %v4988 = vshrl.u32 %v4983, 16
  %v4989 = vmul.u32 %v4985, %v4987
  %v4990 = vmul.u32 %v4985, %v4988
  %v4991 = vmul.u32 %v4986, %v4987
  %v4992 = vmul.u32 %v4986, %v4988
  %v4993 = vshll.u32 %v4990, 16
  %v4994 = vshrl.u32 %v4990, 16
  %v4995 = vshll.u32 %v4991, 16
  %v4996 = vshrl.u32 %v4991, 16
  %vm4997 = vc.u32 %v4989, %v4993
  %v4998 = vsel %vm4997, 1, 0
  %v4999 = vadd.s32 %v4989, %v4993
  %v5000 = vadd.s32 %v4992, %v4998
  %vm5001 = vc.u32 %v4999, %v4995
  %v5002 = vsel %vm5001, 1, 0
  %v5003 = vadd.s32 %v4999, %v4995
  %v5004 = vadd.s32 %v5000, %v5002
  %v5005 = vadd.s32 %v5004, %v4994
  %v5006 = vadd.s32 %v5005, %v4996
  %v5007 = vand.u32 %v4984, 65535
  %v5008 = vshrl.u32 %v4984, 16
  %v5009 = vand.u32 %v4979, 65535
  %v5010 = vshrl.u32 %v4979, 16
  %v5011 = vmul.u32 %v5007, %v5009
  %v5012 = vmul.u32 %v5007, %v5010
  %v5013 = vmul.u32 %v5008, %v5009
  %v5014 = vmul.u32 %v5008, %v5010
  %v5015 = vshll.u32 %v5012, 16
  %v5016 = vshrl.u32 %v5012, 16
  %v5017 = vshll.u32 %v5013, 16
  %v5018 = vshrl.u32 %v5013, 16
  %vm5019 = vc.u32 %v5011, %v5015
  %v5020 = vsel %vm5019, 1, 0
  %v5021 = vadd.s32 %v5011, %v5015
  %v5022 = vadd.s32 %v5014, %v5020
  %vm5023 = vc.u32 %v5021, %v5017
  %v5024 = vsel %vm5023, 1, 0
  %v5025 = vadd.s32 %v5021, %v5017
  %v5026 = vadd.s32 %v5022, %v5024
  %v5027 = vadd.s32 %v5026, %v5016
  %v5028 = vadd.s32 %v5027, %v5018
  %v5029 = vmul.u32 %v4984, %v4975
  %v5030 = vadd.s32 %v5006, %v5025
  %vm5031 = vc.u32 %v5006, %v5025
  %v5032 = vadd.s32 %v5028, 1
  %v5033 = vsel %vm5031, %v5032, %v5028
  %v5034 = vadd.s32 %v5029, %v5033
  %v5035 = vadd.s32 %v5034, 536870912
  %v5036 = vshrl.u32 %v5035, 30
  %v5037 = vshll.u32 %v5036, 30
  %v5038 = vsub.s32 %v5034, %v5037
  %vm5039 = vcmp.lt.s32.totalorder %v5038, 0
  %v5040 = vsub.s32 0, %v5038
  %v5041 = vsel %vm5039, %v5040, %v5038
  %v5042 = vclz %v5041
  %v5043 = vsub.s32 %v5042, 2
  %vm5044 = vcmp.gt.s32.totalorder 0, %v5043
  %v5045 = vsel %vm5044, 0, %v5043
  %v5046 = vsub.s32 32, %v5045
  %v5047 = vshll.u32 %v5038, %v5045
  %v5048 = vshrl.u32 %v5030, %v5046
  %v5049 = vor.u32 %v5047, %v5048
  %v5050 = vsub.s32 4294967266, %v5045
  %v5051 = vadd.s32 %v5050, 127
  %v5052 = vshll.u32 %v5051, 23
  %v5053 = vor.u32 4788187, %v5052
  %v5054 = vand.u32 2147483647, %v5053
  %v5056 = vcvt.s32.f32 %v5049
  %v5057 = vmul.f32 %v5056, %v5054
  %v5058 = vxor.u32 %v5057, 2147483648
  %v5059 = vsel %vm4938, %v5058, %v5057
  %v5060 = vsub.s32 4, %v5036
  %v5061 = vsel %vm4938, %v5060, %v5036
  %v5062 = vsel %vm4937, %v755, %v5059
  %v5063 = vsel %vm4937, 0, %v5061
  %v5064 = vmul.f32 %v5062, %v5062
  %v5065 = vmul.f32 %v5064, -0.001358992
  %v5066 = vadd.f32 %v5065, 0.041655596
  %v5067 = vmul.f32 %v5064, %v5066
  %v5068 = vadd.f32 %v5067, -0.4999988
  %v5069 = vmul.f32 %v5064, %v5068
  %v5070 = vadd.f32 1.0, %v5069
  %v5071 = vmul.f32 %v5062, %v5062
  %v5072 = vmul.f32 %v5071, -0.00019511016
  %v5073 = vadd.f32 %v5072, 0.008332121
  %v5074 = vmul.f32 %v5071, %v5073
  %v5075 = vadd.f32 %v5074, -0.16666654
  %v5076 = vmul.f32 %v5071, %v5075
  %v5077 = vadd.f32 %v5076, 1.0
  %v5078 = vmul.f32 %v5077, %v5062
  %vm5079 = vweird.f32 %v755
  %v5080 = vand.u32 %v5063, 3
  %vm5081 = vcmp.lt.s32.totalorder %v5080, 2
  %vm5082 = vcmp.eq.s32.totalorder %v5080, 0
  %v5083 = vxor.u32 %v5078, 2147483648
  %v5084 = vsel %vm5082, %v5070, %v5083
  %vm5085 = vcmp.eq.s32.totalorder %v5080, 2
  %v5086 = vxor.u32 %v5070, 2147483648
  %v5087 = vsel %vm5085, %v5086, %v5078
  %v5088 = vsel %vm5081, %v5084, %v5087
  %v5089 = vsel %vm5079, nan, %v5088
  %v5090 = vand.u32 2147483647, %v756
  %vm5091 = vcmp.le.f32.partialorder %v5090, 0.7853982
  %vm5092 = vcmp.lt.s32.totalorder %v756, 0
  %v5093 = vand.u32 %v756, 2139095040
  %v5094 = vshrl.u32 %v5093, 23
  %v5095 = vsub.s32 %v5094, 127
  %v5096 = vand.u32 2147483647, %v756
  %v5097 = vand.u32 %v5096, 8388607
  %v5098 = vor.u32 %v5097, 8388608
  %v5099 = vsub.s32 0, %v5098
  %v5100 = vadd.s32 %v5095, 1
  %vm5101 = vcmp.gt.s32.totalorder %v5100, 0
  %v5102 = vsel %vm5101, %v5100, 0
  %v5103 = vshrl.u32 %v5102, 5
  %v5104 = vand.u32 %v5102, 31
  %v5105 = vsub.s32 32, %v5104
  %v5106 = vshrl.u32 683565275, %v5105
  %v5107 = vshll.u32 683565275, %v5104
  %v5108 = vshrl.u32 2475754826, %v5105
  %v5109 = vor.u32 %v5107, %v5108
  %v5110 = vshll.u32 2475754826, %v5104
  %v5111 = vshrl.u32 2131351028, %v5105
  %v5112 = vor.u32 %v5110, %v5111
  %v5113 = vshll.u32 2131351028, %v5104
  %v5114 = vshrl.u32 2102212464, %v5105
  %v5115 = vor.u32 %v5113, %v5114
  %v5116 = vshll.u32 2102212464, %v5104
  %v5117 = vshrl.u32 920167782, %v5105
  %v5118 = vor.u32 %v5116, %v5117
  %v5119 = vshll.u32 920167782, %v5104
  %v5120 = vshrl.u32 1326507024, %v5105
  %v5121 = vor.u32 %v5119, %v5120
  %vm5122 = vcmp.lt.s32.totalorder %v5103, 1
  %vm5123 = vcmp.lt.s32.totalorder %v5103, 2
  %vm5124 = vcmp.lt.s32.totalorder %v5103, 3
  %vm5125 = vcmp.lt.s32.totalorder %v5103, 4
  %v5126 = vsel %vm5122, %v5106, %v5109
  %v5127 = vsel %vm5125, %v5115, 2102212464
  %v5128 = vsel %vm5124, %v5112, %v5127
  %v5129 = vsel %vm5123, %v5126, %v5128
  %v5130 = vsel %vm5122, %v5109, %v5112
  %v5131 = vsel %vm5125, %v5118, 920167782
  %v5132 = vsel %vm5124, %v5115, %v5131
  %v5133 = vsel %vm5123, %v5130, %v5132
  %v5134 = vsel %vm5122, %v5112, %v5115
  %v5135 = vsel %vm5125, %v5121, 1326507024
  %v5136 = vsel %vm5124, %v5118, %v5135
  %v5137 = vsel %vm5123, %v5134, %v5136
  %v5138 = vshll.u32 %v5098, 8
  %v5139 = vand.u32 %v5138, 65535
  %v5140 = vshrl.u32 %v5138, 16
  %v5141 = vand.u32 %v5137, 65535
  %v5142 = vshrl.u32 %v5137, 16
  %v5143 = vmul.u32 %v5139, %v5141
  %v5144 = vmul.u32 %v5139, %v5142
  %v5145 = vmul.u32 %v5140, %v5141
  %v5146 = vmul.u32 %v5140, %v5142
  %v5147 = vshll.u32 %v5144, 16
  %v5148 = vshrl.u32 %v5144, 16
  %v5149 = vshll.u32 %v5145, 16
  %v5150 = vshrl.u32 %v5145, 16
  %vm5151 = vc.u32 %v5143, %v5147
  %v5152 = vsel %vm5151, 1, 0
  %v5153 = vadd.s32 %v5143, %v5147
  %v5154 = vadd.s32 %v5146, %v5152
  %vm5155 = vc.u32 %v5153, %v5149
  %v5156 = vsel %vm5155, 1, 0
  %v5157 = vadd.s32 %v5153, %v5149
  %v5158 = vadd.s32 %v5154, %v5156
  %v5159 = vadd.s32 %v5158, %v5148
  %v5160 = vadd.s32 %v5159, %v5150
  %v5161 = vand.u32 %v5138, 65535
  %v5162 = vshrl.u32 %v5138, 16
  %v5163 = vand.u32 %v5133, 65535
  %v5164 = vshrl.u32 %v5133, 16
  %v5165 = vmul.u32 %v5161, %v5163
  %v5166 = vmul.u32 %v5161, %v5164
  %v5167 = vmul.u32 %v5162, %v5163
  %v5168 = vmul.u32 %v5162, %v5164
  %v5169 = vshll.u32 %v5166, 16
  %v5170 = vshrl.u32 %v5166, 16
  %v5171 = vshll.u32 %v5167, 16
  %v5172 = vshrl.u32 %v5167, 16
  %vm5173 = vc.u32 %v5165, %v5169
  %v5174 = vsel %vm5173, 1, 0
  %v5175 = vadd.s32 %v5165, %v5169
  %v5176 = vadd.s32 %v5168, %v5174
  %vm5177 = vc.u32 %v5175, %v5171
  %v5178 = vsel %vm5177, 1, 0
  %v5179 = vadd.s32 %v5175, %v5171
  %v5180 = vadd.s32 %v5176, %v5178
  %v5181 = vadd.s32 %v5180, %v5170
  %v5182 = vadd.s32 %v5181, %v5172
  %v5183 = vmul.u32 %v5138, %v5129
  %v5184 = vadd.s32 %v5160, %v5179
  %vm5185 = vc.u32 %v5160, %v5179
  %v5186 = vadd.s32 %v5182, 1
  %v5187 = vsel %vm5185, %v5186, %v5182
  %v5188 = vadd.s32 %v5183, %v5187
  %v5189 = vadd.s32 %v5188, 536870912
  %v5190 = vshrl.u32 %v5189, 30
  %v5191 = vshll.u32 %v5190, 30
  %v5192 = vsub.s32 %v5188, %v5191
  %vm5193 = vcmp.lt.s32.totalorder %v5192, 0
  %v5194 = vsub.s32 0, %v5192
  %v5195 = vsel %vm5193, %v5194, %v5192
  %v5196 = vclz %v5195
  %v5197 = vsub.s32 %v5196, 2
  %vm5198 = vcmp.gt.s32.totalorder 0, %v5197
  %v5199 = vsel %vm5198, 0, %v5197
  %v5200 = vsub.s32 32, %v5199
  %v5201 = vshll.u32 %v5192, %v5199
  %v5202 = vshrl.u32 %v5184, %v5200
  %v5203 = vor.u32 %v5201, %v5202
  %v5204 = vsub.s32 4294967266, %v5199
  %v5205 = vadd.s32 %v5204, 127
  %v5206 = vshll.u32 %v5205, 23
  %v5207 = vor.u32 4788187, %v5206
  %v5208 = vand.u32 2147483647, %v5207
  %v5210 = vcvt.s32.f32 %v5203
  %v5211 = vmul.f32 %v5210, %v5208
  %v5212 = vxor.u32 %v5211, 2147483648
  %v5213 = vsel %vm5092, %v5212, %v5211
  %v5214 = vsub.s32 4, %v5190
  %v5215 = vsel %vm5092, %v5214, %v5190
  %v5216 = vsel %vm5091, %v756, %v5213
  %v5217 = vsel %vm5091, 0, %v5215
  %v5218 = vmul.f32 %v5216, %v5216
  %v5219 = vmul.f32 %v5218, -0.001358992
  %v5220 = vadd.f32 %v5219, 0.041655596
  %v5221 = vmul.f32 %v5218, %v5220
  %v5222 = vadd.f32 %v5221, -0.4999988
  %v5223 = vmul.f32 %v5218, %v5222
  %v5224 = vadd.f32 1.0, %v5223
  %v5225 = vmul.f32 %v5216, %v5216
  %v5226 = vmul.f32 %v5225, -0.00019511016
  %v5227 = vadd.f32 %v5226, 0.008332121
  %v5228 = vmul.f32 %v5225, %v5227
  %v5229 = vadd.f32 %v5228, -0.16666654
  %v5230 = vmul.f32 %v5225, %v5229
  %v5231 = vadd.f32 %v5230, 1.0
  %v5232 = vmul.f32 %v5231, %v5216
  %vm5233 = vweird.f32 %v756
  %v5234 = vand.u32 %v5217, 3
  %vm5235 = vcmp.lt.s32.totalorder %v5234, 2
  %vm5236 = vcmp.eq.s32.totalorder %v5234, 0
  %v5237 = vxor.u32 %v5232, 2147483648
  %v5238 = vsel %vm5236, %v5224, %v5237
  %vm5239 = vcmp.eq.s32.totalorder %v5234, 2
  %v5240 = vxor.u32 %v5224, 2147483648
  %v5241 = vsel %vm5239, %v5240, %v5232
  %v5242 = vsel %vm5235, %v5238, %v5241
  %v5243 = vsel %vm5233, nan, %v5242
  %v5244 = vand.u32 2147483647, %v757
  %vm5245 = vcmp.le.f32.partialorder %v5244, 0.7853982
  %vm5246 = vcmp.lt.s32.totalorder %v757, 0
  %v5247 = vand.u32 %v757, 2139095040
  %v5248 = vshrl.u32 %v5247, 23
  %v5249 = vsub.s32 %v5248, 127
  %v5250 = vand.u32 2147483647, %v757
  %v5251 = vand.u32 %v5250, 8388607
  %v5252 = vor.u32 %v5251, 8388608
  %v5253 = vsub.s32 0, %v5252
  %v5254 = vadd.s32 %v5249, 1
  %vm5255 = vcmp.gt.s32.totalorder %v5254, 0
  %v5256 = vsel %vm5255, %v5254, 0
  %v5257 = vshrl.u32 %v5256, 5
  %v5258 = vand.u32 %v5256, 31
  %v5259 = vsub.s32 32, %v5258
  %v5260 = vshrl.u32 683565275, %v5259
  %v5261 = vshll.u32 683565275, %v5258
  %v5262 = vshrl.u32 2475754826, %v5259
  %v5263 = vor.u32 %v5261, %v5262
  %v5264 = vshll.u32 2475754826, %v5258
  %v5265 = vshrl.u32 2131351028, %v5259
  %v5266 = vor.u32 %v5264, %v5265
  %v5267 = vshll.u32 2131351028, %v5258
  %v5268 = vshrl.u32 2102212464, %v5259
  %v5269 = vor.u32 %v5267, %v5268
  %v5270 = vshll.u32 2102212464, %v5258
  %v5271 = vshrl.u32 920167782, %v5259
  %v5272 = vor.u32 %v5270, %v5271
  %v5273 = vshll.u32 920167782, %v5258
  %v5274 = vshrl.u32 1326507024, %v5259
  %v5275 = vor.u32 %v5273, %v5274
  %vm5276 = vcmp.lt.s32.totalorder %v5257, 1
  %vm5277 = vcmp.lt.s32.totalorder %v5257, 2
  %vm5278 = vcmp.lt.s32.totalorder %v5257, 3
  %vm5279 = vcmp.lt.s32.totalorder %v5257, 4
  %v5280 = vsel %vm5276, %v5260, %v5263
  %v5281 = vsel %vm5279, %v5269, 2102212464
  %v5282 = vsel %vm5278, %v5266, %v5281
  %v5283 = vsel %vm5277, %v5280, %v5282
  %v5284 = vsel %vm5276, %v5263, %v5266
  %v5285 = vsel %vm5279, %v5272, 920167782
  %v5286 = vsel %vm5278, %v5269, %v5285
  %v5287 = vsel %vm5277, %v5284, %v5286
  %v5288 = vsel %vm5276, %v5266, %v5269
  %v5289 = vsel %vm5279, %v5275, 1326507024
  %v5290 = vsel %vm5278, %v5272, %v5289
  %v5291 = vsel %vm5277, %v5288, %v5290
  %v5292 = vshll.u32 %v5252, 8
  %v5293 = vand.u32 %v5292, 65535
  %v5294 = vshrl.u32 %v5292, 16
  %v5295 = vand.u32 %v5291, 65535
  %v5296 = vshrl.u32 %v5291, 16
  %v5297 = vmul.u32 %v5293, %v5295
  %v5298 = vmul.u32 %v5293, %v5296
  %v5299 = vmul.u32 %v5294, %v5295
  %v5300 = vmul.u32 %v5294, %v5296
  %v5301 = vshll.u32 %v5298, 16
  %v5302 = vshrl.u32 %v5298, 16
  %v5303 = vshll.u32 %v5299, 16
  %v5304 = vshrl.u32 %v5299, 16
  %vm5305 = vc.u32 %v5297, %v5301
  %v5306 = vsel %vm5305, 1, 0
  %v5307 = vadd.s32 %v5297, %v5301
  %v5308 = vadd.s32 %v5300, %v5306
  %vm5309 = vc.u32 %v5307, %v5303
  %v5310 = vsel %vm5309, 1, 0
  %v5311 = vadd.s32 %v5307, %v5303
  %v5312 = vadd.s32 %v5308, %v5310
  %v5313 = vadd.s32 %v5312, %v5302
  %v5314 = vadd.s32 %v5313, %v5304
  %v5315 = vand.u32 %v5292, 65535
  %v5316 = vshrl.u32 %v5292, 16
  %v5317 = vand.u32 %v5287, 65535
  %v5318 = vshrl.u32 %v5287, 16
  %v5319 = vmul.u32 %v5315, %v5317
  %v5320 = vmul.u32 %v5315, %v5318
  %v5321 = vmul.u32 %v5316, %v5317
  %v5322 = vmul.u32 %v5316, %v5318
  %v5323 = vshll.u32 %v5320, 16
  %v5324 = vshrl.u32 %v5320, 16
  %v5325 = vshll.u32 %v5321, 16
  %v5326 = vshrl.u32 %v5321, 16
  %vm5327 = vc.u32 %v5319, %v5323
  %v5328 = vsel %vm5327, 1, 0
  %v5329 = vadd.s32 %v5319, %v5323
  %v5330 = vadd.s32 %v5322, %v5328
  %vm5331 = vc.u32 %v5329, %v5325
  %v5332 = vsel %vm5331, 1, 0
  %v5333 = vadd.s32 %v5329, %v5325
  %v5334 = vadd.s32 %v5330, %v5332
  %v5335 = vadd.s32 %v5334, %v5324
  %v5336 = vadd.s32 %v5335, %v5326
  %v5337 = vmul.u32 %v5292, %v5283
  %v5338 = vadd.s32 %v5314, %v5333
  %vm5339 = vc.u32 %v5314, %v5333
  %v5340 = vadd.s32 %v5336, 1
  %v5341 = vsel %vm5339, %v5340, %v5336
  %v5342 = vadd.s32 %v5337, %v5341
  %v5343 = vadd.s32 %v5342, 536870912
  %v5344 = vshrl.u32 %v5343, 30
  %v5345 = vshll.u32 %v5344, 30
  %v5346 = vsub.s32 %v5342, %v5345
  %vm5347 = vcmp.lt.s32.totalorder %v5346, 0
  %v5348 = vsub.s32 0, %v5346
  %v5349 = vsel %vm5347, %v5348, %v5346
  %v5350 = vclz %v5349
  %v5351 = vsub.s32 %v5350, 2
  %vm5352 = vcmp.gt.s32.totalorder 0, %v5351
  %v5353 = vsel %vm5352, 0, %v5351
  %v5354 = vsub.s32 32, %v5353
  %v5355 = vshll.u32 %v5346, %v5353
  %v5356 = vshrl.u32 %v5338, %v5354
  %v5357 = vor.u32 %v5355, %v5356
  %v5358 = vsub.s32 4294967266, %v5353
  %v5359 = vadd.s32 %v5358, 127
  %v5360 = vshll.u32 %v5359, 23
  %v5361 = vor.u32 4788187, %v5360
  %v5362 = vand.u32 2147483647, %v5361
  %v5364 = vcvt.s32.f32 %v5357
  %v5365 = vmul.f32 %v5364, %v5362
  %v5366 = vxor.u32 %v5365, 2147483648
  %v5367 = vsel %vm5246, %v5366, %v5365
  %v5368 = vsub.s32 4, %v5344
  %v5369 = vsel %vm5246, %v5368, %v5344
  %v5370 = vsel %vm5245, %v757, %v5367
  %v5371 = vsel %vm5245, 0, %v5369
  %v5372 = vmul.f32 %v5370, %v5370
  %v5373 = vmul.f32 %v5372, -0.001358992
  %v5374 = vadd.f32 %v5373, 0.041655596
  %v5375 = vmul.f32 %v5372, %v5374
  %v5376 = vadd.f32 %v5375, -0.4999988
  %v5377 = vmul.f32 %v5372, %v5376
  %v5378 = vadd.f32 1.0, %v5377
  %v5379 = vmul.f32 %v5370, %v5370
  %v5380 = vmul.f32 %v5379, -0.00019511016
  %v5381 = vadd.f32 %v5380, 0.008332121
  %v5382 = vmul.f32 %v5379, %v5381
  %v5383 = vadd.f32 %v5382, -0.16666654
  %v5384 = vmul.f32 %v5379, %v5383
  %v5385 = vadd.f32 %v5384, 1.0
  %v5386 = vmul.f32 %v5385, %v5370
  %vm5387 = vweird.f32 %v757
  %v5388 = vand.u32 %v5371, 3
  %vm5389 = vcmp.lt.s32.totalorder %v5388, 2
  %vm5390 = vcmp.eq.s32.totalorder %v5388, 0
  %v5391 = vxor.u32 %v5386, 2147483648
  %v5392 = vsel %vm5390, %v5378, %v5391
  %vm5393 = vcmp.eq.s32.totalorder %v5388, 2
  %v5394 = vxor.u32 %v5378, 2147483648
  %v5395 = vsel %vm5393, %v5394, %v5386
  %v5396 = vsel %vm5389, %v5392, %v5395
  %v5397 = vsel %vm5387, nan, %v5396
  %v5398 = vand.u32 2147483647, %v758
  %vm5399 = vcmp.le.f32.partialorder %v5398, 0.7853982
  %vm5400 = vcmp.lt.s32.totalorder %v758, 0
  %v5401 = vand.u32 %v758, 2139095040
  %v5402 = vshrl.u32 %v5401, 23
  %v5403 = vsub.s32 %v5402, 127
  %v5404 = vand.u32 2147483647, %v758
  %v5405 = vand.u32 %v5404, 8388607
  %v5406 = vor.u32 %v5405, 8388608
  %v5407 = vsub.s32 0, %v5406
  %v5408 = vadd.s32 %v5403, 1
  %vm5409 = vcmp.gt.s32.totalorder %v5408, 0
  %v5410 = vsel %vm5409, %v5408, 0
  %v5411 = vshrl.u32 %v5410, 5
  %v5412 = vand.u32 %v5410, 31
  %v5413 = vsub.s32 32, %v5412
  %v5414 = vshrl.u32 683565275, %v5413
  %v5415 = vshll.u32 683565275, %v5412
  %v5416 = vshrl.u32 2475754826, %v5413
  %v5417 = vor.u32 %v5415, %v5416
  %v5418 = vshll.u32 2475754826, %v5412
  %v5419 = vshrl.u32 2131351028, %v5413
  %v5420 = vor.u32 %v5418, %v5419
  %v5421 = vshll.u32 2131351028, %v5412
  %v5422 = vshrl.u32 2102212464, %v5413
  %v5423 = vor.u32 %v5421, %v5422
  %v5424 = vshll.u32 2102212464, %v5412
  %v5425 = vshrl.u32 920167782, %v5413
  %v5426 = vor.u32 %v5424, %v5425
  %v5427 = vshll.u32 920167782, %v5412
  %v5428 = vshrl.u32 1326507024, %v5413
  %v5429 = vor.u32 %v5427, %v5428
  %vm5430 = vcmp.lt.s32.totalorder %v5411, 1
  %vm5431 = vcmp.lt.s32.totalorder %v5411, 2
  %vm5432 = vcmp.lt.s32.totalorder %v5411, 3
  %vm5433 = vcmp.lt.s32.totalorder %v5411, 4
  %v5434 = vsel %vm5430, %v5414, %v5417
  %v5435 = vsel %vm5433, %v5423, 2102212464
  %v5436 = vsel %vm5432, %v5420, %v5435
  %v5437 = vsel %vm5431, %v5434, %v5436
  %v5438 = vsel %vm5430, %v5417, %v5420
  %v5439 = vsel %vm5433, %v5426, 920167782
  %v5440 = vsel %vm5432, %v5423, %v5439
  %v5441 = vsel %vm5431, %v5438, %v5440
  %v5442 = vsel %vm5430, %v5420, %v5423
  %v5443 = vsel %vm5433, %v5429, 1326507024
  %v5444 = vsel %vm5432, %v5426, %v5443
  %v5445 = vsel %vm5431, %v5442, %v5444
  %v5446 = vshll.u32 %v5406, 8
  %v5447 = vand.u32 %v5446, 65535
  %v5448 = vshrl.u32 %v5446, 16
  %v5449 = vand.u32 %v5445, 65535
  %v5450 = vshrl.u32 %v5445, 16
  %v5451 = vmul.u32 %v5447, %v5449
  %v5452 = vmul.u32 %v5447, %v5450
  %v5453 = vmul.u32 %v5448, %v5449
  %v5454 = vmul.u32 %v5448, %v5450
  %v5455 = vshll.u32 %v5452, 16
  %v5456 = vshrl.u32 %v5452, 16
  %v5457 = vshll.u32 %v5453, 16
  %v5458 = vshrl.u32 %v5453, 16
  %vm5459 = vc.u32 %v5451, %v5455
  %v5460 = vsel %vm5459, 1, 0
  %v5461 = vadd.s32 %v5451, %v5455
  %v5462 = vadd.s32 %v5454, %v5460
  %vm5463 = vc.u32 %v5461, %v5457
  %v5464 = vsel %vm5463, 1, 0
  %v5465 = vadd.s32 %v5461, %v5457
  %v5466 = vadd.s32 %v5462, %v5464
  %v5467 = vadd.s32 %v5466, %v5456
  %v5468 = vadd.s32 %v5467, %v5458
  %v5469 = vand.u32 %v5446, 65535
  %v5470 = vshrl.u32 %v5446, 16
  %v5471 = vand.u32 %v5441, 65535
  %v5472 = vshrl.u32 %v5441, 16
  %v5473 = vmul.u32 %v5469, %v5471
  %v5474 = vmul.u32 %v5469, %v5472
  %v5475 = vmul.u32 %v5470, %v5471
  %v5476 = vmul.u32 %v5470, %v5472
  %v5477 = vshll.u32 %v5474, 16
  %v5478 = vshrl.u32 %v5474, 16
  %v5479 = vshll.u32 %v5475, 16
  %v5480 = vshrl.u32 %v5475, 16
  %vm5481 = vc.u32 %v5473, %v5477
  %v5482 = vsel %vm5481, 1, 0
  %v5483 = vadd.s32 %v5473, %v5477
  %v5484 = vadd.s32 %v5476, %v5482
  %vm5485 = vc.u32 %v5483, %v5479
  %v5486 = vsel %vm5485, 1, 0
  %v5487 = vadd.s32 %v5483, %v5479
  %v5488 = vadd.s32 %v5484, %v5486
  %v5489 = vadd.s32 %v5488, %v5478
  %v5490 = vadd.s32 %v5489, %v5480
  %v5491 = vmul.u32 %v5446, %v5437
  %v5492 = vadd.s32 %v5468, %v5487
  %vm5493 = vc.u32 %v5468, %v5487
  %v5494 = vadd.s32 %v5490, 1
  %v5495 = vsel %vm5493, %v5494, %v5490
  %v5496 = vadd.s32 %v5491, %v5495
  %v5497 = vadd.s32 %v5496, 536870912
  %v5498 = vshrl.u32 %v5497, 30
  %v5499 = vshll.u32 %v5498, 30
  %v5500 = vsub.s32 %v5496, %v5499
  %vm5501 = vcmp.lt.s32.totalorder %v5500, 0
  %v5502 = vsub.s32 0, %v5500
  %v5503 = vsel %vm5501, %v5502, %v5500
  %v5504 = vclz %v5503
  %v5505 = vsub.s32 %v5504, 2
  %vm5506 = vcmp.gt.s32.totalorder 0, %v5505
  %v5507 = vsel %vm5506, 0, %v5505
  %v5508 = vsub.s32 32, %v5507
  %v5509 = vshll.u32 %v5500, %v5507
  %v5510 = vshrl.u32 %v5492, %v5508
  %v5511 = vor.u32 %v5509, %v5510
  %v5512 = vsub.s32 4294967266, %v5507
  %v5513 = vadd.s32 %v5512, 127
  %v5514 = vshll.u32 %v5513, 23
  %v5515 = vor.u32 4788187, %v5514
  %v5516 = vand.u32 2147483647, %v5515
  %v5518 = vcvt.s32.f32 %v5511
  %v5519 = vmul.f32 %v5518, %v5516
  %v5520 = vxor.u32 %v5519, 2147483648
  %v5521 = vsel %vm5400, %v5520, %v5519
  %v5522 = vsub.s32 4, %v5498
  %v5523 = vsel %vm5400, %v5522, %v5498
  %v5524 = vsel %vm5399, %v758, %v5521
  %v5525 = vsel %vm5399, 0, %v5523
  %v5526 = vmul.f32 %v5524, %v5524
  %v5527 = vmul.f32 %v5526, -0.001358992
  %v5528 = vadd.f32 %v5527, 0.041655596
  %v5529 = vmul.f32 %v5526, %v5528
  %v5530 = vadd.f32 %v5529, -0.4999988
  %v5531 = vmul.f32 %v5526, %v5530
  %v5532 = vadd.f32 1.0, %v5531
  %v5533 = vmul.f32 %v5524, %v5524
  %v5534 = vmul.f32 %v5533, -0.00019511016
  %v5535 = vadd.f32 %v5534, 0.008332121
  %v5536 = vmul.f32 %v5533, %v5535
  %v5537 = vadd.f32 %v5536, -0.16666654
  %v5538 = vmul.f32 %v5533, %v5537
  %v5539 = vadd.f32 %v5538, 1.0
  %v5540 = vmul.f32 %v5539, %v5524
  %vm5541 = vweird.f32 %v758
  %v5542 = vand.u32 %v5525, 3
  %vm5543 = vcmp.lt.s32.totalorder %v5542, 2
  %vm5544 = vcmp.eq.s32.totalorder %v5542, 0
  %v5545 = vxor.u32 %v5540, 2147483648
  %v5546 = vsel %vm5544, %v5532, %v5545
  %vm5547 = vcmp.eq.s32.totalorder %v5542, 2
  %v5548 = vxor.u32 %v5532, 2147483648
  %v5549 = vsel %vm5547, %v5548, %v5540
  %v5550 = vsel %vm5543, %v5546, %v5549
  %v5551 = vsel %vm5541, nan, %v5550
  %v5552 = vand.u32 2147483647, %v759
  %vm5553 = vcmp.le.f32.partialorder %v5552, 0.7853982
  %vm5554 = vcmp.lt.s32.totalorder %v759, 0
  %v5555 = vand.u32 %v759, 2139095040
  %v5556 = vshrl.u32 %v5555, 23
  %v5557 = vsub.s32 %v5556, 127
  %v5558 = vand.u32 2147483647, %v759
  %v5559 = vand.u32 %v5558, 8388607
  %v5560 = vor.u32 %v5559, 8388608
  %v5561 = vsub.s32 0, %v5560
  %v5562 = vadd.s32 %v5557, 1
  %vm5563 = vcmp.gt.s32.totalorder %v5562, 0
  %v5564 = vsel %vm5563, %v5562, 0
  %v5565 = vshrl.u32 %v5564, 5
  %v5566 = vand.u32 %v5564, 31
  %v5567 = vsub.s32 32, %v5566
  %v5568 = vshrl.u32 683565275, %v5567
  %v5569 = vshll.u32 683565275, %v5566
  %v5570 = vshrl.u32 2475754826, %v5567
  %v5571 = vor.u32 %v5569, %v5570
  %v5572 = vshll.u32 2475754826, %v5566
  %v5573 = vshrl.u32 2131351028, %v5567
  %v5574 = vor.u32 %v5572, %v5573
  %v5575 = vshll.u32 2131351028, %v5566
  %v5576 = vshrl.u32 2102212464, %v5567
  %v5577 = vor.u32 %v5575, %v5576
  %v5578 = vshll.u32 2102212464, %v5566
  %v5579 = vshrl.u32 920167782, %v5567
  %v5580 = vor.u32 %v5578, %v5579
  %v5581 = vshll.u32 920167782, %v5566
  %v5582 = vshrl.u32 1326507024, %v5567
  %v5583 = vor.u32 %v5581, %v5582
  %vm5584 = vcmp.lt.s32.totalorder %v5565, 1
  %vm5585 = vcmp.lt.s32.totalorder %v5565, 2
  %vm5586 = vcmp.lt.s32.totalorder %v5565, 3
  %vm5587 = vcmp.lt.s32.totalorder %v5565, 4
  %v5588 = vsel %vm5584, %v5568, %v5571
  %v5589 = vsel %vm5587, %v5577, 2102212464
  %v5590 = vsel %vm5586, %v5574, %v5589
  %v5591 = vsel %vm5585, %v5588, %v5590
  %v5592 = vsel %vm5584, %v5571, %v5574
  %v5593 = vsel %vm5587, %v5580, 920167782
  %v5594 = vsel %vm5586, %v5577, %v5593
  %v5595 = vsel %vm5585, %v5592, %v5594
  %v5596 = vsel %vm5584, %v5574, %v5577
  %v5597 = vsel %vm5587, %v5583, 1326507024
  %v5598 = vsel %vm5586, %v5580, %v5597
  %v5599 = vsel %vm5585, %v5596, %v5598
  %v5600 = vshll.u32 %v5560, 8
  %v5601 = vand.u32 %v5600, 65535
  %v5602 = vshrl.u32 %v5600, 16
  %v5603 = vand.u32 %v5599, 65535
  %v5604 = vshrl.u32 %v5599, 16
  %v5605 = vmul.u32 %v5601, %v5603
  %v5606 = vmul.u32 %v5601, %v5604
  %v5607 = vmul.u32 %v5602, %v5603
  %v5608 = vmul.u32 %v5602, %v5604
  %v5609 = vshll.u32 %v5606, 16
  %v5610 = vshrl.u32 %v5606, 16
  %v5611 = vshll.u32 %v5607, 16
  %v5612 = vshrl.u32 %v5607, 16
  %vm5613 = vc.u32 %v5605, %v5609
  %v5614 = vsel %vm5613, 1, 0
  %v5615 = vadd.s32 %v5605, %v5609
  %v5616 = vadd.s32 %v5608, %v5614
  %vm5617 = vc.u32 %v5615, %v5611
  %v5618 = vsel %vm5617, 1, 0
  %v5619 = vadd.s32 %v5615, %v5611
  %v5620 = vadd.s32 %v5616, %v5618
  %v5621 = vadd.s32 %v5620, %v5610
  %v5622 = vadd.s32 %v5621, %v5612
  %v5623 = vand.u32 %v5600, 65535
  %v5624 = vshrl.u32 %v5600, 16
  %v5625 = vand.u32 %v5595, 65535
  %v5626 = vshrl.u32 %v5595, 16
  %v5627 = vmul.u32 %v5623, %v5625
  %v5628 = vmul.u32 %v5623, %v5626
  %v5629 = vmul.u32 %v5624, %v5625
  %v5630 = vmul.u32 %v5624, %v5626
  %v5631 = vshll.u32 %v5628, 16
  %v5632 = vshrl.u32 %v5628, 16
  %v5633 = vshll.u32 %v5629, 16
  %v5634 = vshrl.u32 %v5629, 16
  %vm5635 = vc.u32 %v5627, %v5631
  %v5636 = vsel %vm5635, 1, 0
  %v5637 = vadd.s32 %v5627, %v5631
  %v5638 = vadd.s32 %v5630, %v5636
  %vm5639 = vc.u32 %v5637, %v5633
  %v5640 = vsel %vm5639, 1, 0
  %v5641 = vadd.s32 %v5637, %v5633
  %v5642 = vadd.s32 %v5638, %v5640
  %v5643 = vadd.s32 %v5642, %v5632
  %v5644 = vadd.s32 %v5643, %v5634
  %v5645 = vmul.u32 %v5600, %v5591
  %v5646 = vadd.s32 %v5622, %v5641
  %vm5647 = vc.u32 %v5622, %v5641
  %v5648 = vadd.s32 %v5644, 1
  %v5649 = vsel %vm5647, %v5648, %v5644
  %v5650 = vadd.s32 %v5645, %v5649
  %v5651 = vadd.s32 %v5650, 536870912
  %v5652 = vshrl.u32 %v5651, 30
  %v5653 = vshll.u32 %v5652, 30
  %v5654 = vsub.s32 %v5650, %v5653
  %vm5655 = vcmp.lt.s32.totalorder %v5654, 0
  %v5656 = vsub.s32 0, %v5654
  %v5657 = vsel %vm5655, %v5656, %v5654
  %v5658 = vclz %v5657
  %v5659 = vsub.s32 %v5658, 2
  %vm5660 = vcmp.gt.s32.totalorder 0, %v5659
  %v5661 = vsel %vm5660, 0, %v5659
  %v5662 = vsub.s32 32, %v5661
  %v5663 = vshll.u32 %v5654, %v5661
  %v5664 = vshrl.u32 %v5646, %v5662
  %v5665 = vor.u32 %v5663, %v5664
  %v5666 = vsub.s32 4294967266, %v5661
  %v5667 = vadd.s32 %v5666, 127
  %v5668 = vshll.u32 %v5667, 23
  %v5669 = vor.u32 4788187, %v5668
  %v5670 = vand.u32 2147483647, %v5669
  %v5672 = vcvt.s32.f32 %v5665
  %v5673 = vmul.f32 %v5672, %v5670
  %v5674 = vxor.u32 %v5673, 2147483648
  %v5675 = vsel %vm5554, %v5674, %v5673
  %v5676 = vsub.s32 4, %v5652
  %v5677 = vsel %vm5554, %v5676, %v5652
  %v5678 = vsel %vm5553, %v759, %v5675
  %v5679 = vsel %vm5553, 0, %v5677
  %v5680 = vmul.f32 %v5678, %v5678
  %v5681 = vmul.f32 %v5680, -0.001358992
  %v5682 = vadd.f32 %v5681, 0.041655596
  %v5683 = vmul.f32 %v5680, %v5682
  %v5684 = vadd.f32 %v5683, -0.4999988
  %v5685 = vmul.f32 %v5680, %v5684
  %v5686 = vadd.f32 1.0, %v5685
  %v5687 = vmul.f32 %v5678, %v5678
  %v5688 = vmul.f32 %v5687, -0.00019511016
  %v5689 = vadd.f32 %v5688, 0.008332121
  %v5690 = vmul.f32 %v5687, %v5689
  %v5691 = vadd.f32 %v5690, -0.16666654
  %v5692 = vmul.f32 %v5687, %v5691
  %v5693 = vadd.f32 %v5692, 1.0
  %v5694 = vmul.f32 %v5693, %v5678
  %vm5695 = vweird.f32 %v759
  %v5696 = vand.u32 %v5679, 3
  %vm5697 = vcmp.lt.s32.totalorder %v5696, 2
  %vm5698 = vcmp.eq.s32.totalorder %v5696, 0
  %v5699 = vxor.u32 %v5694, 2147483648
  %v5700 = vsel %vm5698, %v5686, %v5699
  %vm5701 = vcmp.eq.s32.totalorder %v5696, 2
  %v5702 = vxor.u32 %v5686, 2147483648
  %v5703 = vsel %vm5701, %v5702, %v5694
  %v5704 = vsel %vm5697, %v5700, %v5703
  %v5705 = vsel %vm5695, nan, %v5704
  %v5706 = vsel %vm761, 1, 0
  %vm5707 = vcmp.eq.s32.totalorder %v5706, 1
  %v5708 = vsel %vm5707, %v916, %v3395
  %v5709 = vsel %vm5707, %v1071, %v3549
  %v5710 = vsel %vm5707, %v1226, %v3703
  %v5711 = vsel %vm5707, %v1381, %v3857
  %v5712 = vsel %vm5707, %v1536, %v4011
  %v5713 = vsel %vm5707, %v1691, %v4165
  %v5714 = vsel %vm5707, %v1846, %v4319
  %v5715 = vsel %vm5707, %v2001, %v4473
  %v5716 = vsel %vm5707, %v2156, %v4627
  %v5717 = vsel %vm5707, %v2311, %v4781
  %v5718 = vsel %vm5707, %v2466, %v4935
  %v5719 = vsel %vm5707, %v2621, %v5089
  %v5720 = vsel %vm5707, %v2776, %v5243
  %v5721 = vsel %vm5707, %v2931, %v5397
  %v5722 = vsel %vm5707, %v3086, %v5551
  %v5723 = vsel %vm5707, %v3241, %v5705
  %v5724 = vadd.f32 %v546, %v5708
  %v5725 = vadd.f32 %v547, %v5709
  %v5726 = vadd.f32 %v548, %v5710
  %v5727 = vadd.f32 %v549, %v5711
  %v5728 = vadd.f32 %v550, %v5712
  %v5729 = vadd.f32 %v551, %v5713
  %v5730 = vadd.f32 %v552, %v5714
  %v5731 = vadd.f32 %v553, %v5715
  %v5732 = vadd.f32 %v554, %v5716
  %v5733 = vadd.f32 %v555, %v5717
  %v5734 = vadd.f32 %v556, %v5718
  %v5735 = vadd.f32 %v557, %v5719
  %v5736 = vadd.f32 %v558, %v5720
  %v5737 = vadd.f32 %v559, %v5721
  %v5738 = vadd.f32 %v560, %v5722
  %v5739 = vadd.f32 %v561, %v5723
  %v5740 = vsel %vm168, %v5724, 0.0
  %5741 = vadd.xlane.f32.xlu0 %v5740
  %v5742 = vpop.xlane.xlu0 %5741
  %v5743 = vsel %vm168, %v5725, 0.0
  %5744 = vadd.xlane.f32.xlu0 %v5743
  %v5745 = vpop.xlane.xlu0 %5744
  %v5746 = vsel %vm168, %v5726, 0.0
  %5747 = vadd.xlane.f32.xlu0 %v5746
  %v5748 = vpop.xlane.xlu0 %5747
  %v5749 = vsel %vm168, %v5727, 0.0
  %5750 = vadd.xlane.f32.xlu0 %v5749
  %v5751 = vpop.xlane.xlu0 %5750
  %v5752 = vsel %vm168, %v5728, 0.0
  %5753 = vadd.xlane.f32.xlu0 %v5752
  %v5754 = vpop.xlane.xlu0 %5753
  %v5755 = vsel %vm168, %v5729, 0.0
  %5756 = vadd.xlane.f32.xlu0 %v5755
  %v5757 = vpop.xlane.xlu0 %5756
  %v5758 = vsel %vm168, %v5730, 0.0
  %5759 = vadd.xlane.f32.xlu0 %v5758
  %v5760 = vpop.xlane.xlu0 %5759
  %v5761 = vsel %vm168, %v5731, 0.0
  %5762 = vadd.xlane.f32.xlu0 %v5761
  %v5763 = vpop.xlane.xlu0 %5762
  %v5764 = vsel %vm168, %v5732, 0.0
  %5765 = vadd.xlane.f32.xlu0 %v5764
  %v5766 = vpop.xlane.xlu0 %5765
  %v5767 = vsel %vm168, %v5733, 0.0
  %5768 = vadd.xlane.f32.xlu0 %v5767
  %v5769 = vpop.xlane.xlu0 %5768
  %v5770 = vsel %vm168, %v5734, 0.0
  %5771 = vadd.xlane.f32.xlu0 %v5770
  %v5772 = vpop.xlane.xlu0 %5771
  %v5773 = vsel %vm168, %v5735, 0.0
  %5774 = vadd.xlane.f32.xlu0 %v5773
  %v5775 = vpop.xlane.xlu0 %5774
  %v5776 = vsel %vm168, %v5736, 0.0
  %5777 = vadd.xlane.f32.xlu0 %v5776
  %v5778 = vpop.xlane.xlu0 %5777
  %v5779 = vsel %vm168, %v5737, 0.0
  %5780 = vadd.xlane.f32.xlu0 %v5779
  %v5781 = vpop.xlane.xlu0 %5780
  %v5782 = vsel %vm168, %v5738, 0.0
  %5783 = vadd.xlane.f32.xlu0 %v5782
  %v5784 = vpop.xlane.xlu0 %5783
  %v5785 = vsel %vm168, %v5739, 0.0
  %5786 = vadd.xlane.f32.xlu0 %v5785
  %v5787 = vpop.xlane.xlu0 %5786
  %v5788 = vmul.f32 %v5742, %v223
  %v5789 = vmul.f32 %v5745, %v223
  %v5790 = vmul.f32 %v5748, %v223
  %v5791 = vmul.f32 %v5751, %v223
  %v5792 = vmul.f32 %v5754, %v223
  %v5793 = vmul.f32 %v5757, %v223
  %v5794 = vmul.f32 %v5760, %v223
  %v5795 = vmul.f32 %v5763, %v223
  %v5796 = vmul.f32 %v5766, %v223
  %v5797 = vmul.f32 %v5769, %v223
  %v5798 = vmul.f32 %v5772, %v223
  %v5799 = vmul.f32 %v5775, %v223
  %v5800 = vmul.f32 %v5778, %v223
  %v5801 = vmul.f32 %v5781, %v223
  %v5802 = vmul.f32 %v5784, %v223
  %v5803 = vmul.f32 %v5787, %v223
  %v5804 = vsub.f32 %v5724, %v5788
  %v5805 = vsub.f32 %v5725, %v5789
  %v5806 = vsub.f32 %v5726, %v5790
  %v5807 = vsub.f32 %v5727, %v5791
  %v5808 = vsub.f32 %v5728, %v5792
  %v5809 = vsub.f32 %v5729, %v5793
  %v5810 = vsub.f32 %v5730, %v5794
  %v5811 = vsub.f32 %v5731, %v5795
  %v5812 = vsub.f32 %v5732, %v5796
  %v5813 = vsub.f32 %v5733, %v5797
  %v5814 = vsub.f32 %v5734, %v5798
  %v5815 = vsub.f32 %v5735, %v5799
  %v5816 = vsub.f32 %v5736, %v5800
  %v5817 = vsub.f32 %v5737, %v5801
  %v5818 = vsub.f32 %v5738, %v5802
  %v5819 = vsub.f32 %v5739, %v5803
  %v5820 = vmul.f32 %v5804, %v5804
  %v5821 = vmul.f32 %v5805, %v5805
  %v5822 = vmul.f32 %v5806, %v5806
  %v5823 = vmul.f32 %v5807, %v5807
  %v5824 = vmul.f32 %v5808, %v5808
  %v5825 = vmul.f32 %v5809, %v5809
  %v5826 = vmul.f32 %v5810, %v5810
  %v5827 = vmul.f32 %v5811, %v5811
  %v5828 = vmul.f32 %v5812, %v5812
  %v5829 = vmul.f32 %v5813, %v5813
  %v5830 = vmul.f32 %v5814, %v5814
  %v5831 = vmul.f32 %v5815, %v5815
  %v5832 = vmul.f32 %v5816, %v5816
  %v5833 = vmul.f32 %v5817, %v5817
  %v5834 = vmul.f32 %v5818, %v5818
  %v5835 = vmul.f32 %v5819, %v5819
  %v5836 = vsel %vm168, %v5820, 0.0
  %5837 = vadd.xlane.f32.xlu0 %v5836
  %v5838 = vpop.xlane.xlu0 %5837
  %v5839 = vsel %vm168, %v5821, 0.0
  %5840 = vadd.xlane.f32.xlu0 %v5839
  %v5841 = vpop.xlane.xlu0 %5840
  %v5842 = vsel %vm168, %v5822, 0.0
  %5843 = vadd.xlane.f32.xlu0 %v5842
  %v5844 = vpop.xlane.xlu0 %5843
  %v5845 = vsel %vm168, %v5823, 0.0
  %5846 = vadd.xlane.f32.xlu0 %v5845
  %v5847 = vpop.xlane.xlu0 %5846
  %v5848 = vsel %vm168, %v5824, 0.0
  %5849 = vadd.xlane.f32.xlu0 %v5848
  %v5850 = vpop.xlane.xlu0 %5849
  %v5851 = vsel %vm168, %v5825, 0.0
  %5852 = vadd.xlane.f32.xlu0 %v5851
  %v5853 = vpop.xlane.xlu0 %5852
  %v5854 = vsel %vm168, %v5826, 0.0
  %5855 = vadd.xlane.f32.xlu0 %v5854
  %v5856 = vpop.xlane.xlu0 %5855
  %v5857 = vsel %vm168, %v5827, 0.0
  %5858 = vadd.xlane.f32.xlu0 %v5857
  %v5859 = vpop.xlane.xlu0 %5858
  %v5860 = vsel %vm168, %v5828, 0.0
  %5861 = vadd.xlane.f32.xlu0 %v5860
  %v5862 = vpop.xlane.xlu0 %5861
  %v5863 = vsel %vm168, %v5829, 0.0
  %5864 = vadd.xlane.f32.xlu0 %v5863
  %v5865 = vpop.xlane.xlu0 %5864
  %v5866 = vsel %vm168, %v5830, 0.0
  %5867 = vadd.xlane.f32.xlu0 %v5866
  %v5868 = vpop.xlane.xlu0 %5867
  %v5869 = vsel %vm168, %v5831, 0.0
  %5870 = vadd.xlane.f32.xlu0 %v5869
  %v5871 = vpop.xlane.xlu0 %5870
  %v5872 = vsel %vm168, %v5832, 0.0
  %5873 = vadd.xlane.f32.xlu0 %v5872
  %v5874 = vpop.xlane.xlu0 %5873
  %v5875 = vsel %vm168, %v5833, 0.0
  %5876 = vadd.xlane.f32.xlu0 %v5875
  %v5877 = vpop.xlane.xlu0 %5876
  %v5878 = vsel %vm168, %v5834, 0.0
  %5879 = vadd.xlane.f32.xlu0 %v5878
  %v5880 = vpop.xlane.xlu0 %5879
  %v5881 = vsel %vm168, %v5835, 0.0
  %5882 = vadd.xlane.f32.xlu0 %v5881
  %v5883 = vpop.xlane.xlu0 %5882
  %v5884 = vmul.f32 %v5838, %v223
  %v5885 = vmul.f32 %v5841, %v223
  %v5886 = vmul.f32 %v5844, %v223
  %v5887 = vmul.f32 %v5847, %v223
  %v5888 = vmul.f32 %v5850, %v223
  %v5889 = vmul.f32 %v5853, %v223
  %v5890 = vmul.f32 %v5856, %v223
  %v5891 = vmul.f32 %v5859, %v223
  %v5892 = vmul.f32 %v5862, %v223
  %v5893 = vmul.f32 %v5865, %v223
  %v5894 = vmul.f32 %v5868, %v223
  %v5895 = vmul.f32 %v5871, %v223
  %v5896 = vmul.f32 %v5874, %v223
  %v5897 = vmul.f32 %v5877, %v223
  %v5898 = vmul.f32 %v5880, %v223
  %v5899 = vmul.f32 %v5883, %v223
  %v5900 = vadd.f32 %v5884, 1e-06
  %v5901 = vadd.f32 %v5885, 1e-06
  %v5902 = vadd.f32 %v5886, 1e-06
  %v5903 = vadd.f32 %v5887, 1e-06
  %v5904 = vadd.f32 %v5888, 1e-06
  %v5905 = vadd.f32 %v5889, 1e-06
  %v5906 = vadd.f32 %v5890, 1e-06
  %v5907 = vadd.f32 %v5891, 1e-06
  %v5908 = vadd.f32 %v5892, 1e-06
  %v5909 = vadd.f32 %v5893, 1e-06
  %v5910 = vadd.f32 %v5894, 1e-06
  %v5911 = vadd.f32 %v5895, 1e-06
  %v5912 = vadd.f32 %v5896, 1e-06
  %v5913 = vadd.f32 %v5897, 1e-06
  %v5914 = vadd.f32 %v5898, 1e-06
  %v5915 = vadd.f32 %v5899, 1e-06
  %v5916 = vrsqrt.pop %v5900
  %v5917 = vmul.f32 %v5916, %v5900
  %v5918 = vmul.f32 %v5917, %v5916
  %v5919 = vmul.f32 0.5, %v5918
  %v5920 = vsub.f32 1.5, %v5919
  %v5921 = vmul.f32 %v5916, %v5920
  %vm5922 = vweird.f32 %v5900
  %vm5923 = vweird.f32 %v5916
  %vm5924 = vmor %vm5922, %vm5923
  %v5925 = vsel %vm5924, %v5916, %v5921
  %v5926 = vrsqrt.pop %v5901
  %v5927 = vmul.f32 %v5926, %v5901
  %v5928 = vmul.f32 %v5927, %v5926
  %v5929 = vmul.f32 0.5, %v5928
  %v5930 = vsub.f32 1.5, %v5929
  %v5931 = vmul.f32 %v5926, %v5930
  %vm5932 = vweird.f32 %v5901
  %vm5933 = vweird.f32 %v5926
  %vm5934 = vmor %vm5932, %vm5933
  %v5935 = vsel %vm5934, %v5926, %v5931
  %v5936 = vrsqrt.pop %v5902
  %v5937 = vmul.f32 %v5936, %v5902
  %v5938 = vmul.f32 %v5937, %v5936
  %v5939 = vmul.f32 0.5, %v5938
  %v5940 = vsub.f32 1.5, %v5939
  %v5941 = vmul.f32 %v5936, %v5940
  %vm5942 = vweird.f32 %v5902
  %vm5943 = vweird.f32 %v5936
  %vm5944 = vmor %vm5942, %vm5943
  %v5945 = vsel %vm5944, %v5936, %v5941
  %v5946 = vrsqrt.pop %v5903
  %v5947 = vmul.f32 %v5946, %v5903
  %v5948 = vmul.f32 %v5947, %v5946
  %v5949 = vmul.f32 0.5, %v5948
  %v5950 = vsub.f32 1.5, %v5949
  %v5951 = vmul.f32 %v5946, %v5950
  %vm5952 = vweird.f32 %v5903
  %vm5953 = vweird.f32 %v5946
  %vm5954 = vmor %vm5952, %vm5953
  %v5955 = vsel %vm5954, %v5946, %v5951
  %v5956 = vrsqrt.pop %v5904
  %v5957 = vmul.f32 %v5956, %v5904
  %v5958 = vmul.f32 %v5957, %v5956
  %v5959 = vmul.f32 0.5, %v5958
  %v5960 = vsub.f32 1.5, %v5959
  %v5961 = vmul.f32 %v5956, %v5960
  %vm5962 = vweird.f32 %v5904
  %vm5963 = vweird.f32 %v5956
  %vm5964 = vmor %vm5962, %vm5963
  %v5965 = vsel %vm5964, %v5956, %v5961
  %v5966 = vrsqrt.pop %v5905
  %v5967 = vmul.f32 %v5966, %v5905
  %v5968 = vmul.f32 %v5967, %v5966
  %v5969 = vmul.f32 0.5, %v5968
  %v5970 = vsub.f32 1.5, %v5969
  %v5971 = vmul.f32 %v5966, %v5970
  %vm5972 = vweird.f32 %v5905
  %vm5973 = vweird.f32 %v5966
  %vm5974 = vmor %vm5972, %vm5973
  %v5975 = vsel %vm5974, %v5966, %v5971
  %v5976 = vrsqrt.pop %v5906
  %v5977 = vmul.f32 %v5976, %v5906
  %v5978 = vmul.f32 %v5977, %v5976
  %v5979 = vmul.f32 0.5, %v5978
  %v5980 = vsub.f32 1.5, %v5979
  %v5981 = vmul.f32 %v5976, %v5980
  %vm5982 = vweird.f32 %v5906
  %vm5983 = vweird.f32 %v5976
  %vm5984 = vmor %vm5982, %vm5983
  %v5985 = vsel %vm5984, %v5976, %v5981
  %v5986 = vrsqrt.pop %v5907
  %v5987 = vmul.f32 %v5986, %v5907
  %v5988 = vmul.f32 %v5987, %v5986
  %v5989 = vmul.f32 0.5, %v5988
  %v5990 = vsub.f32 1.5, %v5989
  %v5991 = vmul.f32 %v5986, %v5990
  %vm5992 = vweird.f32 %v5907
  %vm5993 = vweird.f32 %v5986
  %vm5994 = vmor %vm5992, %vm5993
  %v5995 = vsel %vm5994, %v5986, %v5991
  %v5996 = vrsqrt.pop %v5908
  %v5997 = vmul.f32 %v5996, %v5908
  %v5998 = vmul.f32 %v5997, %v5996
  %v5999 = vmul.f32 0.5, %v5998
  %v6000 = vsub.f32 1.5, %v5999
  %v6001 = vmul.f32 %v5996, %v6000
  %vm6002 = vweird.f32 %v5908
  %vm6003 = vweird.f32 %v5996
  %vm6004 = vmor %vm6002, %vm6003
  %v6005 = vsel %vm6004, %v5996, %v6001
  %v6006 = vrsqrt.pop %v5909
  %v6007 = vmul.f32 %v6006, %v5909
  %v6008 = vmul.f32 %v6007, %v6006
  %v6009 = vmul.f32 0.5, %v6008
  %v6010 = vsub.f32 1.5, %v6009
  %v6011 = vmul.f32 %v6006, %v6010
  %vm6012 = vweird.f32 %v5909
  %vm6013 = vweird.f32 %v6006
  %vm6014 = vmor %vm6012, %vm6013
  %v6015 = vsel %vm6014, %v6006, %v6011
  %v6016 = vrsqrt.pop %v5910
  %v6017 = vmul.f32 %v6016, %v5910
  %v6018 = vmul.f32 %v6017, %v6016
  %v6019 = vmul.f32 0.5, %v6018
  %v6020 = vsub.f32 1.5, %v6019
  %v6021 = vmul.f32 %v6016, %v6020
  %vm6022 = vweird.f32 %v5910
  %vm6023 = vweird.f32 %v6016
  %vm6024 = vmor %vm6022, %vm6023
  %v6025 = vsel %vm6024, %v6016, %v6021
  %v6026 = vrsqrt.pop %v5911
  %v6027 = vmul.f32 %v6026, %v5911
  %v6028 = vmul.f32 %v6027, %v6026
  %v6029 = vmul.f32 0.5, %v6028
  %v6030 = vsub.f32 1.5, %v6029
  %v6031 = vmul.f32 %v6026, %v6030
  %vm6032 = vweird.f32 %v5911
  %vm6033 = vweird.f32 %v6026
  %vm6034 = vmor %vm6032, %vm6033
  %v6035 = vsel %vm6034, %v6026, %v6031
  %v6036 = vrsqrt.pop %v5912
  %v6037 = vmul.f32 %v6036, %v5912
  %v6038 = vmul.f32 %v6037, %v6036
  %v6039 = vmul.f32 0.5, %v6038
  %v6040 = vsub.f32 1.5, %v6039
  %v6041 = vmul.f32 %v6036, %v6040
  %vm6042 = vweird.f32 %v5912
  %vm6043 = vweird.f32 %v6036
  %vm6044 = vmor %vm6042, %vm6043
  %v6045 = vsel %vm6044, %v6036, %v6041
  %v6046 = vrsqrt.pop %v5913
  %v6047 = vmul.f32 %v6046, %v5913
  %v6048 = vmul.f32 %v6047, %v6046
  %v6049 = vmul.f32 0.5, %v6048
  %v6050 = vsub.f32 1.5, %v6049
  %v6051 = vmul.f32 %v6046, %v6050
  %vm6052 = vweird.f32 %v5913
  %vm6053 = vweird.f32 %v6046
  %vm6054 = vmor %vm6052, %vm6053
  %v6055 = vsel %vm6054, %v6046, %v6051
  %v6056 = vrsqrt.pop %v5914
  %v6057 = vmul.f32 %v6056, %v5914
  %v6058 = vmul.f32 %v6057, %v6056
  %v6059 = vmul.f32 0.5, %v6058
  %v6060 = vsub.f32 1.5, %v6059
  %v6061 = vmul.f32 %v6056, %v6060
  %vm6062 = vweird.f32 %v5914
  %vm6063 = vweird.f32 %v6056
  %vm6064 = vmor %vm6062, %vm6063
  %v6065 = vsel %vm6064, %v6056, %v6061
  %v6066 = vrsqrt.pop %v5915
  %v6067 = vmul.f32 %v6066, %v5915
  %v6068 = vmul.f32 %v6067, %v6066
  %v6069 = vmul.f32 0.5, %v6068
  %v6070 = vsub.f32 1.5, %v6069
  %v6071 = vmul.f32 %v6066, %v6070
  %vm6072 = vweird.f32 %v5915
  %vm6073 = vweird.f32 %v6066
  %vm6074 = vmor %vm6072, %vm6073
  %v6075 = vsel %vm6074, %v6066, %v6071
  %v6076 = vmul.f32 %v5804, %v5925
  %v6077 = vmul.f32 %v5805, %v5935
  %v6078 = vmul.f32 %v5806, %v5945
  %v6079 = vmul.f32 %v5807, %v5955
  %v6080 = vmul.f32 %v5808, %v5965
  %v6081 = vmul.f32 %v5809, %v5975
  %v6082 = vmul.f32 %v5810, %v5985
  %v6083 = vmul.f32 %v5811, %v5995
  %v6084 = vmul.f32 %v5812, %v6005
  %v6085 = vmul.f32 %v5813, %v6015
  %v6086 = vmul.f32 %v5814, %v6025
  %v6087 = vmul.f32 %v5815, %v6035
  %v6088 = vmul.f32 %v5816, %v6045
  %v6089 = vmul.f32 %v5817, %v6055
  %v6090 = vmul.f32 %v5818, %v6065
  %v6091 = vmul.f32 %v5819, %v6075
  %v6092 = vperm.slane %v26, 0
  %v6093 = vmul.f32 %v6076, %v6092
  %v6094 = vmul.f32 %v6077, %v6092
  %v6095 = vmul.f32 %v6078, %v6092
  %v6096 = vmul.f32 %v6079, %v6092
  %v6097 = vmul.f32 %v6080, %v6092
  %v6098 = vmul.f32 %v6081, %v6092
  %v6099 = vmul.f32 %v6082, %v6092
  %v6100 = vmul.f32 %v6083, %v6092
  %v6101 = vmul.f32 %v6084, %v6092
  %v6102 = vmul.f32 %v6085, %v6092
  %v6103 = vmul.f32 %v6086, %v6092
  %v6104 = vmul.f32 %v6087, %v6092
  %v6105 = vmul.f32 %v6088, %v6092
  %v6106 = vmul.f32 %v6089, %v6092
  %v6107 = vmul.f32 %v6090, %v6092
  %v6108 = vmul.f32 %v6091, %v6092
  %v6109 = vperm.slane %v27, 0
  %v6110 = vadd.f32 %v6093, %v6109
  %v6111 = vadd.f32 %v6094, %v6109
  %v6112 = vadd.f32 %v6095, %v6109
  %v6113 = vadd.f32 %v6096, %v6109
  %v6114 = vadd.f32 %v6097, %v6109
  %v6115 = vadd.f32 %v6098, %v6109
  %v6116 = vadd.f32 %v6099, %v6109
  %v6117 = vadd.f32 %v6100, %v6109
  %v6118 = vadd.f32 %v6101, %v6109
  %v6119 = vadd.f32 %v6102, %v6109
  %v6120 = vadd.f32 %v6103, %v6109
  %v6121 = vadd.f32 %v6104, %v6109
  %v6122 = vadd.f32 %v6105, %v6109
  %v6123 = vadd.f32 %v6106, %v6109
  %v6124 = vadd.f32 %v6107, %v6109
  %v6125 = vadd.f32 %v6108, %v6109
  %v6126 = vld [vmem:[%s3] sm:$0xff]
  %v6127 = vld [vmem:[%s3 + $0x8] sm:$0xff]
  %v6128 = vld [vmem:[%s3 + $0x10] sm:$0xff]
  %v6129 = vld [vmem:[%s3 + $0x18] sm:$0xff]
  %v6130 = vperm.slane %v29, 0
  %v6132 = vsel %vm168, %v6110, 0
  %v6135 = vsel %vm168, %v6111, 0
  %v6138 = vsel %vm168, %v6112, 0
  %v6141 = vsel %vm168, %v6113, 0
  %v6144 = vsel %vm168, %v6114, 0
  %v6147 = vsel %vm168, %v6115, 0
  %v6150 = vsel %vm168, %v6116, 0
  %v6153 = vsel %vm168, %v6117, 0
  %v6156 = vsel %vm168, %v6118, 0
  %v6159 = vsel %vm168, %v6119, 0
  %v6162 = vsel %vm168, %v6120, 0
  %v6165 = vsel %vm168, %v6121, 0
  %v6168 = vsel %vm168, %v6122, 0
  %v6171 = vsel %vm168, %v6123, 0
  %v6174 = vsel %vm168, %v6124, 0
  %v6177 = vsel %vm168, %v6125, 0
  %6179 = vmatpush.msra.mxu0 0.0
  %6180 = vmatpush.msra.mxu0 0.0
  %6181 = vmatpush.msra.mxu0 0.0
  %6182 = vmatpush.msra.mxu0 0.0
  %6183 = vmatpush.msra.mxu0 0.0
  %6184 = vmatpush.msra.mxu0 0.0
  %6185 = vmatpush.msra.mxu0 0.0
  %6186 = vmatpush.msra.mxu0 0.0
  %6187 = vmatpush.msra.mxu0 0.0
  %6188 = vmatpush.msra.mxu0 0.0
  %6189 = vmatpush.msra.mxu0 0.0
  %6190 = vmatpush.msra.mxu0 0.0
  %6191 = vmatpush.msra.mxu0 %v6129
  %6192 = vmatpush.msra.mxu0 %v6128
  %6193 = vmatpush.msra.mxu0 %v6127
  %6194 = vmatpush.msra.mxu0 %v6126
  %6195 = vmatmul.f32.gmra.mxu0 %v6132
  %v6196 = vpop.f32.mrf.mxu0
  %v6197 = vadd.f32 %v6130, %v6196
  %6198 = vmatmul.f32.gmra.mxu0 %v6135
  %v6199 = vpop.f32.mrf.mxu0
  %v6200 = vadd.f32 %v6130, %v6199
  %6201 = vmatmul.f32.gmra.mxu0 %v6138
  %v6202 = vpop.f32.mrf.mxu0
  %v6203 = vadd.f32 %v6130, %v6202
  %6204 = vmatmul.f32.gmra.mxu0 %v6141
  %v6205 = vpop.f32.mrf.mxu0
  %v6206 = vadd.f32 %v6130, %v6205
  %6207 = vmatmul.f32.gmra.mxu0 %v6144
  %v6208 = vpop.f32.mrf.mxu0
  %v6209 = vadd.f32 %v6130, %v6208
  %6210 = vmatmul.f32.gmra.mxu0 %v6147
  %v6211 = vpop.f32.mrf.mxu0
  %v6212 = vadd.f32 %v6130, %v6211
  %6213 = vmatmul.f32.gmra.mxu0 %v6150
  %v6214 = vpop.f32.mrf.mxu0
  %v6215 = vadd.f32 %v6130, %v6214
  %6216 = vmatmul.f32.gmra.mxu0 %v6153
  %v6217 = vpop.f32.mrf.mxu0
  %v6218 = vadd.f32 %v6130, %v6217
  %6219 = vmatmul.f32.gmra.mxu0 %v6156
  %v6220 = vpop.f32.mrf.mxu0
  %v6221 = vadd.f32 %v6130, %v6220
  %6222 = vmatmul.f32.gmra.mxu0 %v6159
  %v6223 = vpop.f32.mrf.mxu0
  %v6224 = vadd.f32 %v6130, %v6223
  %6225 = vmatmul.f32.gmra.mxu0 %v6162
  %v6226 = vpop.f32.mrf.mxu0
  %v6227 = vadd.f32 %v6130, %v6226
  %6228 = vmatmul.f32.gmra.mxu0 %v6165
  %v6229 = vpop.f32.mrf.mxu0
  %v6230 = vadd.f32 %v6130, %v6229
  %6231 = vmatmul.f32.gmra.mxu0 %v6168
  %v6232 = vpop.f32.mrf.mxu0
  %v6233 = vadd.f32 %v6130, %v6232
  %6234 = vmatmul.f32.gmra.mxu0 %v6171
  %v6235 = vpop.f32.mrf.mxu0
  %v6236 = vadd.f32 %v6130, %v6235
  %6237 = vmatmul.f32.gmra.mxu0 %v6174
  %v6238 = vpop.f32.mrf.mxu0
  %v6239 = vadd.f32 %v6130, %v6238
  %6240 = vmatmul.f32.gmra.mxu0 %v6177
  %v6241 = vpop.f32.mrf.mxu0
  %v6242 = vadd.f32 %v6130, %v6241
  %6243 = vdwg.mxu0
  %v6244 = vmul.f32 %v6197, 0.5
  %v6245 = vmul.f32 %v6200, 0.5
  %v6246 = vmul.f32 %v6203, 0.5
  %v6247 = vmul.f32 %v6206, 0.5
  %v6248 = vmul.f32 %v6209, 0.5
  %v6249 = vmul.f32 %v6212, 0.5
  %v6250 = vmul.f32 %v6215, 0.5
  %v6251 = vmul.f32 %v6218, 0.5
  %v6252 = vmul.f32 %v6221, 0.5
  %v6253 = vmul.f32 %v6224, 0.5
  %v6254 = vmul.f32 %v6227, 0.5
  %v6255 = vmul.f32 %v6230, 0.5
  %v6256 = vmul.f32 %v6233, 0.5
  %v6257 = vmul.f32 %v6236, 0.5
  %v6258 = vmul.f32 %v6239, 0.5
  %v6259 = vmul.f32 %v6242, 0.5
  %v6260 = vmul.f32 %v6197, 0.70710677
  %v6261 = vmul.f32 %v6200, 0.70710677
  %v6262 = vmul.f32 %v6203, 0.70710677
  %v6263 = vmul.f32 %v6206, 0.70710677
  %v6264 = vmul.f32 %v6209, 0.70710677
  %v6265 = vmul.f32 %v6212, 0.70710677
  %v6266 = vmul.f32 %v6215, 0.70710677
  %v6267 = vmul.f32 %v6218, 0.70710677
  %v6268 = vmul.f32 %v6221, 0.70710677
  %v6269 = vmul.f32 %v6224, 0.70710677
  %v6270 = vmul.f32 %v6227, 0.70710677
  %v6271 = vmul.f32 %v6230, 0.70710677
  %v6272 = vmul.f32 %v6233, 0.70710677
  %v6273 = vmul.f32 %v6236, 0.70710677
  %v6274 = vmul.f32 %v6239, 0.70710677
  %v6275 = vmul.f32 %v6242, 0.70710677
  %v6276 = vmul.f32 %v6260, %v6260
  %v6277 = vmin.f32 16.0, %v6276
  %v6278 = vmul.f32 %v6277, 2.1237322e-06
  %v6279 = vadd.f32 %v6278, 0.00028619796
  %v6280 = vmul.f32 %v6277, %v6279
  %v6281 = vadd.f32 %v6280, 0.0036580483
  %v6282 = vmul.f32 %v6277, %v6281
  %v6283 = vadd.f32 %v6282, 0.05243302
  %v6284 = vmul.f32 %v6277, %v6283
  %v6285 = vadd.f32 %v6284, 0.18741608
  %v6286 = vmul.f32 %v6277, %v6285
  %v6287 = vadd.f32 %v6286, 1.1283791
  %v6288 = vmul.f32 %v6260, %v6287
  %v6289 = vmul.f32 %v6277, 3.8918573e-05
  %v6290 = vadd.f32 %v6289, 0.001143296
  %v6291 = vmul.f32 %v6277, %v6290
  %v6292 = vadd.f32 %v6291, 0.014752088
  %v6293 = vmul.f32 %v6277, %v6292
  %v6294 = vadd.f32 %v6293, 0.112945676
  %v6295 = vmul.f32 %v6277, %v6294
  %v6296 = vadd.f32 %v6295, 0.4994258
  %v6297 = vmul.f32 %v6277, %v6296
  %v6298 = vadd.f32 %v6297, 1.0
  %v6299 = vrcp.pop %v6298
  %v6300 = vmul.f32 %v6298, %v6299
  %v6301 = vsub.f32 1.0, %v6300
  %v6302 = vmul.f32 %v6299, %v6301
  %v6303 = vadd.f32 %v6299, %v6302
  %vm6304 = vweird.f32 %v6298
  %vm6305 = vweird.f32 %v6299
  %vm6306 = vmor %vm6304, %vm6305
  %v6307 = vsel %vm6306, %v6299, %v6303
  %v6308 = vand.u32 2147483647, %v6298
  %vm6309 = vcmp.eq.f32.partialorder %v6308, 8.507059e+37
  %v6310 = vand.u32 %v6298, 2147483648
  %v6311 = vor.u32 1.1754944e-38, %v6310
  %v6312 = vsel %vm6309, %v6311, %v6307
  %v6313 = vmul.f32 %v6288, %v6312
  %v6314 = vmin.f32 %v6313, 1.0
  %v6315 = vmax.f32 %v6314, -1.0
  %v6316 = vmul.f32 %v6261, %v6261
  %v6317 = vmin.f32 16.0, %v6316
  %v6318 = vmul.f32 %v6317, 2.1237322e-06
  %v6319 = vadd.f32 %v6318, 0.00028619796
  %v6320 = vmul.f32 %v6317, %v6319
  %v6321 = vadd.f32 %v6320, 0.0036580483
  %v6322 = vmul.f32 %v6317, %v6321
  %v6323 = vadd.f32 %v6322, 0.05243302
  %v6324 = vmul.f32 %v6317, %v6323
  %v6325 = vadd.f32 %v6324, 0.18741608
  %v6326 = vmul.f32 %v6317, %v6325
  %v6327 = vadd.f32 %v6326, 1.1283791
  %v6328 = vmul.f32 %v6261, %v6327
  %v6329 = vmul.f32 %v6317, 3.8918573e-05
  %v6330 = vadd.f32 %v6329, 0.001143296
  %v6331 = vmul.f32 %v6317, %v6330
  %v6332 = vadd.f32 %v6331, 0.014752088
  %v6333 = vmul.f32 %v6317, %v6332
  %v6334 = vadd.f32 %v6333, 0.112945676
  %v6335 = vmul.f32 %v6317, %v6334
  %v6336 = vadd.f32 %v6335, 0.4994258
  %v6337 = vmul.f32 %v6317, %v6336
  %v6338 = vadd.f32 %v6337, 1.0
  %v6339 = vrcp.pop %v6338
  %v6340 = vmul.f32 %v6338, %v6339
  %v6341 = vsub.f32 1.0, %v6340
  %v6342 = vmul.f32 %v6339, %v6341
  %v6343 = vadd.f32 %v6339, %v6342
  %vm6344 = vweird.f32 %v6338
  %vm6345 = vweird.f32 %v6339
  %vm6346 = vmor %vm6344, %vm6345
  %v6347 = vsel %vm6346, %v6339, %v6343
  %v6348 = vand.u32 2147483647, %v6338
  %vm6349 = vcmp.eq.f32.partialorder %v6348, 8.507059e+37
  %v6350 = vand.u32 %v6338, 2147483648
  %v6351 = vor.u32 1.1754944e-38, %v6350
  %v6352 = vsel %vm6349, %v6351, %v6347
  %v6353 = vmul.f32 %v6328, %v6352
  %v6354 = vmin.f32 %v6353, 1.0
  %v6355 = vmax.f32 %v6354, -1.0
  %v6356 = vmul.f32 %v6262, %v6262
  %v6357 = vmin.f32 16.0, %v6356
  %v6358 = vmul.f32 %v6357, 2.1237322e-06
  %v6359 = vadd.f32 %v6358, 0.00028619796
  %v6360 = vmul.f32 %v6357, %v6359
  %v6361 = vadd.f32 %v6360, 0.0036580483
  %v6362 = vmul.f32 %v6357, %v6361
  %v6363 = vadd.f32 %v6362, 0.05243302
  %v6364 = vmul.f32 %v6357, %v6363
  %v6365 = vadd.f32 %v6364, 0.18741608
  %v6366 = vmul.f32 %v6357, %v6365
  %v6367 = vadd.f32 %v6366, 1.1283791
  %v6368 = vmul.f32 %v6262, %v6367
  %v6369 = vmul.f32 %v6357, 3.8918573e-05
  %v6370 = vadd.f32 %v6369, 0.001143296
  %v6371 = vmul.f32 %v6357, %v6370
  %v6372 = vadd.f32 %v6371, 0.014752088
  %v6373 = vmul.f32 %v6357, %v6372
  %v6374 = vadd.f32 %v6373, 0.112945676
  %v6375 = vmul.f32 %v6357, %v6374
  %v6376 = vadd.f32 %v6375, 0.4994258
  %v6377 = vmul.f32 %v6357, %v6376
  %v6378 = vadd.f32 %v6377, 1.0
  %v6379 = vrcp.pop %v6378
  %v6380 = vmul.f32 %v6378, %v6379
  %v6381 = vsub.f32 1.0, %v6380
  %v6382 = vmul.f32 %v6379, %v6381
  %v6383 = vadd.f32 %v6379, %v6382
  %vm6384 = vweird.f32 %v6378
  %vm6385 = vweird.f32 %v6379
  %vm6386 = vmor %vm6384, %vm6385
  %v6387 = vsel %vm6386, %v6379, %v6383
  %v6388 = vand.u32 2147483647, %v6378
  %vm6389 = vcmp.eq.f32.partialorder %v6388, 8.507059e+37
  %v6390 = vand.u32 %v6378, 2147483648
  %v6391 = vor.u32 1.1754944e-38, %v6390
  %v6392 = vsel %vm6389, %v6391, %v6387
  %v6393 = vmul.f32 %v6368, %v6392
  %v6394 = vmin.f32 %v6393, 1.0
  %v6395 = vmax.f32 %v6394, -1.0
  %v6396 = vmul.f32 %v6263, %v6263
  %v6397 = vmin.f32 16.0, %v6396
  %v6398 = vmul.f32 %v6397, 2.1237322e-06
  %v6399 = vadd.f32 %v6398, 0.00028619796
  %v6400 = vmul.f32 %v6397, %v6399
  %v6401 = vadd.f32 %v6400, 0.0036580483
  %v6402 = vmul.f32 %v6397, %v6401
  %v6403 = vadd.f32 %v6402, 0.05243302
  %v6404 = vmul.f32 %v6397, %v6403
  %v6405 = vadd.f32 %v6404, 0.18741608
  %v6406 = vmul.f32 %v6397, %v6405
  %v6407 = vadd.f32 %v6406, 1.1283791
  %v6408 = vmul.f32 %v6263, %v6407
  %v6409 = vmul.f32 %v6397, 3.8918573e-05
  %v6410 = vadd.f32 %v6409, 0.001143296
  %v6411 = vmul.f32 %v6397, %v6410
  %v6412 = vadd.f32 %v6411, 0.014752088
  %v6413 = vmul.f32 %v6397, %v6412
  %v6414 = vadd.f32 %v6413, 0.112945676
  %v6415 = vmul.f32 %v6397, %v6414
  %v6416 = vadd.f32 %v6415, 0.4994258
  %v6417 = vmul.f32 %v6397, %v6416
  %v6418 = vadd.f32 %v6417, 1.0
  %v6419 = vrcp.pop %v6418
  %v6420 = vmul.f32 %v6418, %v6419
  %v6421 = vsub.f32 1.0, %v6420
  %v6422 = vmul.f32 %v6419, %v6421
  %v6423 = vadd.f32 %v6419, %v6422
  %vm6424 = vweird.f32 %v6418
  %vm6425 = vweird.f32 %v6419
  %vm6426 = vmor %vm6424, %vm6425
  %v6427 = vsel %vm6426, %v6419, %v6423
  %v6428 = vand.u32 2147483647, %v6418
  %vm6429 = vcmp.eq.f32.partialorder %v6428, 8.507059e+37
  %v6430 = vand.u32 %v6418, 2147483648
  %v6431 = vor.u32 1.1754944e-38, %v6430
  %v6432 = vsel %vm6429, %v6431, %v6427
  %v6433 = vmul.f32 %v6408, %v6432
  %v6434 = vmin.f32 %v6433, 1.0
  %v6435 = vmax.f32 %v6434, -1.0
  %v6436 = vmul.f32 %v6264, %v6264
  %v6437 = vmin.f32 16.0, %v6436
  %v6438 = vmul.f32 %v6437, 2.1237322e-06
  %v6439 = vadd.f32 %v6438, 0.00028619796
  %v6440 = vmul.f32 %v6437, %v6439
  %v6441 = vadd.f32 %v6440, 0.0036580483
  %v6442 = vmul.f32 %v6437, %v6441
  %v6443 = vadd.f32 %v6442, 0.05243302
  %v6444 = vmul.f32 %v6437, %v6443
  %v6445 = vadd.f32 %v6444, 0.18741608
  %v6446 = vmul.f32 %v6437, %v6445
  %v6447 = vadd.f32 %v6446, 1.1283791
  %v6448 = vmul.f32 %v6264, %v6447
  %v6449 = vmul.f32 %v6437, 3.8918573e-05
  %v6450 = vadd.f32 %v6449, 0.001143296
  %v6451 = vmul.f32 %v6437, %v6450
  %v6452 = vadd.f32 %v6451, 0.014752088
  %v6453 = vmul.f32 %v6437, %v6452
  %v6454 = vadd.f32 %v6453, 0.112945676
  %v6455 = vmul.f32 %v6437, %v6454
  %v6456 = vadd.f32 %v6455, 0.4994258
  %v6457 = vmul.f32 %v6437, %v6456
  %v6458 = vadd.f32 %v6457, 1.0
  %v6459 = vrcp.pop %v6458
  %v6460 = vmul.f32 %v6458, %v6459
  %v6461 = vsub.f32 1.0, %v6460
  %v6462 = vmul.f32 %v6459, %v6461
  %v6463 = vadd.f32 %v6459, %v6462
  %vm6464 = vweird.f32 %v6458
  %vm6465 = vweird.f32 %v6459
  %vm6466 = vmor %vm6464, %vm6465
  %v6467 = vsel %vm6466, %v6459, %v6463
  %v6468 = vand.u32 2147483647, %v6458
  %vm6469 = vcmp.eq.f32.partialorder %v6468, 8.507059e+37
  %v6470 = vand.u32 %v6458, 2147483648
  %v6471 = vor.u32 1.1754944e-38, %v6470
  %v6472 = vsel %vm6469, %v6471, %v6467
  %v6473 = vmul.f32 %v6448, %v6472
  %v6474 = vmin.f32 %v6473, 1.0
  %v6475 = vmax.f32 %v6474, -1.0
  %v6476 = vmul.f32 %v6265, %v6265
  %v6477 = vmin.f32 16.0, %v6476
  %v6478 = vmul.f32 %v6477, 2.1237322e-06
  %v6479 = vadd.f32 %v6478, 0.00028619796
  %v6480 = vmul.f32 %v6477, %v6479
  %v6481 = vadd.f32 %v6480, 0.0036580483
  %v6482 = vmul.f32 %v6477, %v6481
  %v6483 = vadd.f32 %v6482, 0.05243302
  %v6484 = vmul.f32 %v6477, %v6483
  %v6485 = vadd.f32 %v6484, 0.18741608
  %v6486 = vmul.f32 %v6477, %v6485
  %v6487 = vadd.f32 %v6486, 1.1283791
  %v6488 = vmul.f32 %v6265, %v6487
  %v6489 = vmul.f32 %v6477, 3.8918573e-05
  %v6490 = vadd.f32 %v6489, 0.001143296
  %v6491 = vmul.f32 %v6477, %v6490
  %v6492 = vadd.f32 %v6491, 0.014752088
  %v6493 = vmul.f32 %v6477, %v6492
  %v6494 = vadd.f32 %v6493, 0.112945676
  %v6495 = vmul.f32 %v6477, %v6494
  %v6496 = vadd.f32 %v6495, 0.4994258
  %v6497 = vmul.f32 %v6477, %v6496
  %v6498 = vadd.f32 %v6497, 1.0
  %v6499 = vrcp.pop %v6498
  %v6500 = vmul.f32 %v6498, %v6499
  %v6501 = vsub.f32 1.0, %v6500
  %v6502 = vmul.f32 %v6499, %v6501
  %v6503 = vadd.f32 %v6499, %v6502
  %vm6504 = vweird.f32 %v6498
  %vm6505 = vweird.f32 %v6499
  %vm6506 = vmor %vm6504, %vm6505
  %v6507 = vsel %vm6506, %v6499, %v6503
  %v6508 = vand.u32 2147483647, %v6498
  %vm6509 = vcmp.eq.f32.partialorder %v6508, 8.507059e+37
  %v6510 = vand.u32 %v6498, 2147483648
  %v6511 = vor.u32 1.1754944e-38, %v6510
  %v6512 = vsel %vm6509, %v6511, %v6507
  %v6513 = vmul.f32 %v6488, %v6512
  %v6514 = vmin.f32 %v6513, 1.0
  %v6515 = vmax.f32 %v6514, -1.0
  %v6516 = vmul.f32 %v6266, %v6266
  %v6517 = vmin.f32 16.0, %v6516
  %v6518 = vmul.f32 %v6517, 2.1237322e-06
  %v6519 = vadd.f32 %v6518, 0.00028619796
  %v6520 = vmul.f32 %v6517, %v6519
  %v6521 = vadd.f32 %v6520, 0.0036580483
  %v6522 = vmul.f32 %v6517, %v6521
  %v6523 = vadd.f32 %v6522, 0.05243302
  %v6524 = vmul.f32 %v6517, %v6523
  %v6525 = vadd.f32 %v6524, 0.18741608
  %v6526 = vmul.f32 %v6517, %v6525
  %v6527 = vadd.f32 %v6526, 1.1283791
  %v6528 = vmul.f32 %v6266, %v6527
  %v6529 = vmul.f32 %v6517, 3.8918573e-05
  %v6530 = vadd.f32 %v6529, 0.001143296
  %v6531 = vmul.f32 %v6517, %v6530
  %v6532 = vadd.f32 %v6531, 0.014752088
  %v6533 = vmul.f32 %v6517, %v6532
  %v6534 = vadd.f32 %v6533, 0.112945676
  %v6535 = vmul.f32 %v6517, %v6534
  %v6536 = vadd.f32 %v6535, 0.4994258
  %v6537 = vmul.f32 %v6517, %v6536
  %v6538 = vadd.f32 %v6537, 1.0
  %v6539 = vrcp.pop %v6538
  %v6540 = vmul.f32 %v6538, %v6539
  %v6541 = vsub.f32 1.0, %v6540
  %v6542 = vmul.f32 %v6539, %v6541
  %v6543 = vadd.f32 %v6539, %v6542
  %vm6544 = vweird.f32 %v6538
  %vm6545 = vweird.f32 %v6539
  %vm6546 = vmor %vm6544, %vm6545
  %v6547 = vsel %vm6546, %v6539, %v6543
  %v6548 = vand.u32 2147483647, %v6538
  %vm6549 = vcmp.eq.f32.partialorder %v6548, 8.507059e+37
  %v6550 = vand.u32 %v6538, 2147483648
  %v6551 = vor.u32 1.1754944e-38, %v6550
  %v6552 = vsel %vm6549, %v6551, %v6547
  %v6553 = vmul.f32 %v6528, %v6552
  %v6554 = vmin.f32 %v6553, 1.0
  %v6555 = vmax.f32 %v6554, -1.0
  %v6556 = vmul.f32 %v6267, %v6267
  %v6557 = vmin.f32 16.0, %v6556
  %v6558 = vmul.f32 %v6557, 2.1237322e-06
  %v6559 = vadd.f32 %v6558, 0.00028619796
  %v6560 = vmul.f32 %v6557, %v6559
  %v6561 = vadd.f32 %v6560, 0.0036580483
  %v6562 = vmul.f32 %v6557, %v6561
  %v6563 = vadd.f32 %v6562, 0.05243302
  %v6564 = vmul.f32 %v6557, %v6563
  %v6565 = vadd.f32 %v6564, 0.18741608
  %v6566 = vmul.f32 %v6557, %v6565
  %v6567 = vadd.f32 %v6566, 1.1283791
  %v6568 = vmul.f32 %v6267, %v6567
  %v6569 = vmul.f32 %v6557, 3.8918573e-05
  %v6570 = vadd.f32 %v6569, 0.001143296
  %v6571 = vmul.f32 %v6557, %v6570
  %v6572 = vadd.f32 %v6571, 0.014752088
  %v6573 = vmul.f32 %v6557, %v6572
  %v6574 = vadd.f32 %v6573, 0.112945676
  %v6575 = vmul.f32 %v6557, %v6574
  %v6576 = vadd.f32 %v6575, 0.4994258
  %v6577 = vmul.f32 %v6557, %v6576
  %v6578 = vadd.f32 %v6577, 1.0
  %v6579 = vrcp.pop %v6578
  %v6580 = vmul.f32 %v6578, %v6579
  %v6581 = vsub.f32 1.0, %v6580
  %v6582 = vmul.f32 %v6579, %v6581
  %v6583 = vadd.f32 %v6579, %v6582
  %vm6584 = vweird.f32 %v6578
  %vm6585 = vweird.f32 %v6579
  %vm6586 = vmor %vm6584, %vm6585
  %v6587 = vsel %vm6586, %v6579, %v6583
  %v6588 = vand.u32 2147483647, %v6578
  %vm6589 = vcmp.eq.f32.partialorder %v6588, 8.507059e+37
  %v6590 = vand.u32 %v6578, 2147483648
  %v6591 = vor.u32 1.1754944e-38, %v6590
  %v6592 = vsel %vm6589, %v6591, %v6587
  %v6593 = vmul.f32 %v6568, %v6592
  %v6594 = vmin.f32 %v6593, 1.0
  %v6595 = vmax.f32 %v6594, -1.0
  %v6596 = vmul.f32 %v6268, %v6268
  %v6597 = vmin.f32 16.0, %v6596
  %v6598 = vmul.f32 %v6597, 2.1237322e-06
  %v6599 = vadd.f32 %v6598, 0.00028619796
  %v6600 = vmul.f32 %v6597, %v6599
  %v6601 = vadd.f32 %v6600, 0.0036580483
  %v6602 = vmul.f32 %v6597, %v6601
  %v6603 = vadd.f32 %v6602, 0.05243302
  %v6604 = vmul.f32 %v6597, %v6603
  %v6605 = vadd.f32 %v6604, 0.18741608
  %v6606 = vmul.f32 %v6597, %v6605
  %v6607 = vadd.f32 %v6606, 1.1283791
  %v6608 = vmul.f32 %v6268, %v6607
  %v6609 = vmul.f32 %v6597, 3.8918573e-05
  %v6610 = vadd.f32 %v6609, 0.001143296
  %v6611 = vmul.f32 %v6597, %v6610
  %v6612 = vadd.f32 %v6611, 0.014752088
  %v6613 = vmul.f32 %v6597, %v6612
  %v6614 = vadd.f32 %v6613, 0.112945676
  %v6615 = vmul.f32 %v6597, %v6614
  %v6616 = vadd.f32 %v6615, 0.4994258
  %v6617 = vmul.f32 %v6597, %v6616
  %v6618 = vadd.f32 %v6617, 1.0
  %v6619 = vrcp.pop %v6618
  %v6620 = vmul.f32 %v6618, %v6619
  %v6621 = vsub.f32 1.0, %v6620
  %v6622 = vmul.f32 %v6619, %v6621
  %v6623 = vadd.f32 %v6619, %v6622
  %vm6624 = vweird.f32 %v6618
  %vm6625 = vweird.f32 %v6619
  %vm6626 = vmor %vm6624, %vm6625
  %v6627 = vsel %vm6626, %v6619, %v6623
  %v6628 = vand.u32 2147483647, %v6618
  %vm6629 = vcmp.eq.f32.partialorder %v6628, 8.507059e+37
  %v6630 = vand.u32 %v6618, 2147483648
  %v6631 = vor.u32 1.1754944e-38, %v6630
  %v6632 = vsel %vm6629, %v6631, %v6627
  %v6633 = vmul.f32 %v6608, %v6632
  %v6634 = vmin.f32 %v6633, 1.0
  %v6635 = vmax.f32 %v6634, -1.0
  %v6636 = vmul.f32 %v6269, %v6269
  %v6637 = vmin.f32 16.0, %v6636
  %v6638 = vmul.f32 %v6637, 2.1237322e-06
  %v6639 = vadd.f32 %v6638, 0.00028619796
  %v6640 = vmul.f32 %v6637, %v6639
  %v6641 = vadd.f32 %v6640, 0.0036580483
  %v6642 = vmul.f32 %v6637, %v6641
  %v6643 = vadd.f32 %v6642, 0.05243302
  %v6644 = vmul.f32 %v6637, %v6643
  %v6645 = vadd.f32 %v6644, 0.18741608
  %v6646 = vmul.f32 %v6637, %v6645
  %v6647 = vadd.f32 %v6646, 1.1283791
  %v6648 = vmul.f32 %v6269, %v6647
  %v6649 = vmul.f32 %v6637, 3.8918573e-05
  %v6650 = vadd.f32 %v6649, 0.001143296
  %v6651 = vmul.f32 %v6637, %v6650
  %v6652 = vadd.f32 %v6651, 0.014752088
  %v6653 = vmul.f32 %v6637, %v6652
  %v6654 = vadd.f32 %v6653, 0.112945676
  %v6655 = vmul.f32 %v6637, %v6654
  %v6656 = vadd.f32 %v6655, 0.4994258
  %v6657 = vmul.f32 %v6637, %v6656
  %v6658 = vadd.f32 %v6657, 1.0
  %v6659 = vrcp.pop %v6658
  %v6660 = vmul.f32 %v6658, %v6659
  %v6661 = vsub.f32 1.0, %v6660
  %v6662 = vmul.f32 %v6659, %v6661
  %v6663 = vadd.f32 %v6659, %v6662
  %vm6664 = vweird.f32 %v6658
  %vm6665 = vweird.f32 %v6659
  %vm6666 = vmor %vm6664, %vm6665
  %v6667 = vsel %vm6666, %v6659, %v6663
  %v6668 = vand.u32 2147483647, %v6658
  %vm6669 = vcmp.eq.f32.partialorder %v6668, 8.507059e+37
  %v6670 = vand.u32 %v6658, 2147483648
  %v6671 = vor.u32 1.1754944e-38, %v6670
  %v6672 = vsel %vm6669, %v6671, %v6667
  %v6673 = vmul.f32 %v6648, %v6672
  %v6674 = vmin.f32 %v6673, 1.0
  %v6675 = vmax.f32 %v6674, -1.0
  %v6676 = vmul.f32 %v6270, %v6270
  %v6677 = vmin.f32 16.0, %v6676
  %v6678 = vmul.f32 %v6677, 2.1237322e-06
  %v6679 = vadd.f32 %v6678, 0.00028619796
  %v6680 = vmul.f32 %v6677, %v6679
  %v6681 = vadd.f32 %v6680, 0.0036580483
  %v6682 = vmul.f32 %v6677, %v6681
  %v6683 = vadd.f32 %v6682, 0.05243302
  %v6684 = vmul.f32 %v6677, %v6683
  %v6685 = vadd.f32 %v6684, 0.18741608
  %v6686 = vmul.f32 %v6677, %v6685
  %v6687 = vadd.f32 %v6686, 1.1283791
  %v6688 = vmul.f32 %v6270, %v6687
  %v6689 = vmul.f32 %v6677, 3.8918573e-05
  %v6690 = vadd.f32 %v6689, 0.001143296
  %v6691 = vmul.f32 %v6677, %v6690
  %v6692 = vadd.f32 %v6691, 0.014752088
  %v6693 = vmul.f32 %v6677, %v6692
  %v6694 = vadd.f32 %v6693, 0.112945676
  %v6695 = vmul.f32 %v6677, %v6694
  %v6696 = vadd.f32 %v6695, 0.4994258
  %v6697 = vmul.f32 %v6677, %v6696
  %v6698 = vadd.f32 %v6697, 1.0
  %v6699 = vrcp.pop %v6698
  %v6700 = vmul.f32 %v6698, %v6699
  %v6701 = vsub.f32 1.0, %v6700
  %v6702 = vmul.f32 %v6699, %v6701
  %v6703 = vadd.f32 %v6699, %v6702
  %vm6704 = vweird.f32 %v6698
  %vm6705 = vweird.f32 %v6699
  %vm6706 = vmor %vm6704, %vm6705
  %v6707 = vsel %vm6706, %v6699, %v6703
  %v6708 = vand.u32 2147483647, %v6698
  %vm6709 = vcmp.eq.f32.partialorder %v6708, 8.507059e+37
  %v6710 = vand.u32 %v6698, 2147483648
  %v6711 = vor.u32 1.1754944e-38, %v6710
  %v6712 = vsel %vm6709, %v6711, %v6707
  %v6713 = vmul.f32 %v6688, %v6712
  %v6714 = vmin.f32 %v6713, 1.0
  %v6715 = vmax.f32 %v6714, -1.0
  %v6716 = vmul.f32 %v6271, %v6271
  %v6717 = vmin.f32 16.0, %v6716
  %v6718 = vmul.f32 %v6717, 2.1237322e-06
  %v6719 = vadd.f32 %v6718, 0.00028619796
  %v6720 = vmul.f32 %v6717, %v6719
  %v6721 = vadd.f32 %v6720, 0.0036580483
  %v6722 = vmul.f32 %v6717, %v6721
  %v6723 = vadd.f32 %v6722, 0.05243302
  %v6724 = vmul.f32 %v6717, %v6723
  %v6725 = vadd.f32 %v6724, 0.18741608
  %v6726 = vmul.f32 %v6717, %v6725
  %v6727 = vadd.f32 %v6726, 1.1283791
  %v6728 = vmul.f32 %v6271, %v6727
  %v6729 = vmul.f32 %v6717, 3.8918573e-05
  %v6730 = vadd.f32 %v6729, 0.001143296
  %v6731 = vmul.f32 %v6717, %v6730
  %v6732 = vadd.f32 %v6731, 0.014752088
  %v6733 = vmul.f32 %v6717, %v6732
  %v6734 = vadd.f32 %v6733, 0.112945676
  %v6735 = vmul.f32 %v6717, %v6734
  %v6736 = vadd.f32 %v6735, 0.4994258
  %v6737 = vmul.f32 %v6717, %v6736
  %v6738 = vadd.f32 %v6737, 1.0
  %v6739 = vrcp.pop %v6738
  %v6740 = vmul.f32 %v6738, %v6739
  %v6741 = vsub.f32 1.0, %v6740
  %v6742 = vmul.f32 %v6739, %v6741
  %v6743 = vadd.f32 %v6739, %v6742
  %vm6744 = vweird.f32 %v6738
  %vm6745 = vweird.f32 %v6739
  %vm6746 = vmor %vm6744, %vm6745
  %v6747 = vsel %vm6746, %v6739, %v6743
  %v6748 = vand.u32 2147483647, %v6738
  %vm6749 = vcmp.eq.f32.partialorder %v6748, 8.507059e+37
  %v6750 = vand.u32 %v6738, 2147483648
  %v6751 = vor.u32 1.1754944e-38, %v6750
  %v6752 = vsel %vm6749, %v6751, %v6747
  %v6753 = vmul.f32 %v6728, %v6752
  %v6754 = vmin.f32 %v6753, 1.0
  %v6755 = vmax.f32 %v6754, -1.0
  %v6756 = vmul.f32 %v6272, %v6272
  %v6757 = vmin.f32 16.0, %v6756
  %v6758 = vmul.f32 %v6757, 2.1237322e-06
  %v6759 = vadd.f32 %v6758, 0.00028619796
  %v6760 = vmul.f32 %v6757, %v6759
  %v6761 = vadd.f32 %v6760, 0.0036580483
  %v6762 = vmul.f32 %v6757, %v6761
  %v6763 = vadd.f32 %v6762, 0.05243302
  %v6764 = vmul.f32 %v6757, %v6763
  %v6765 = vadd.f32 %v6764, 0.18741608
  %v6766 = vmul.f32 %v6757, %v6765
  %v6767 = vadd.f32 %v6766, 1.1283791
  %v6768 = vmul.f32 %v6272, %v6767
  %v6769 = vmul.f32 %v6757, 3.8918573e-05
  %v6770 = vadd.f32 %v6769, 0.001143296
  %v6771 = vmul.f32 %v6757, %v6770
  %v6772 = vadd.f32 %v6771, 0.014752088
  %v6773 = vmul.f32 %v6757, %v6772
  %v6774 = vadd.f32 %v6773, 0.112945676
  %v6775 = vmul.f32 %v6757, %v6774
  %v6776 = vadd.f32 %v6775, 0.4994258
  %v6777 = vmul.f32 %v6757, %v6776
  %v6778 = vadd.f32 %v6777, 1.0
  %v6779 = vrcp.pop %v6778
  %v6780 = vmul.f32 %v6778, %v6779
  %v6781 = vsub.f32 1.0, %v6780
  %v6782 = vmul.f32 %v6779, %v6781
  %v6783 = vadd.f32 %v6779, %v6782
  %vm6784 = vweird.f32 %v6778
  %vm6785 = vweird.f32 %v6779
  %vm6786 = vmor %vm6784, %vm6785
  %v6787 = vsel %vm6786, %v6779, %v6783
  %v6788 = vand.u32 2147483647, %v6778
  %vm6789 = vcmp.eq.f32.partialorder %v6788, 8.507059e+37
  %v6790 = vand.u32 %v6778, 2147483648
  %v6791 = vor.u32 1.1754944e-38, %v6790
  %v6792 = vsel %vm6789, %v6791, %v6787
  %v6793 = vmul.f32 %v6768, %v6792
  %v6794 = vmin.f32 %v6793, 1.0
  %v6795 = vmax.f32 %v6794, -1.0
  %v6796 = vmul.f32 %v6273, %v6273
  %v6797 = vmin.f32 16.0, %v6796
  %v6798 = vmul.f32 %v6797, 2.1237322e-06
  %v6799 = vadd.f32 %v6798, 0.00028619796
  %v6800 = vmul.f32 %v6797, %v6799
  %v6801 = vadd.f32 %v6800, 0.0036580483
  %v6802 = vmul.f32 %v6797, %v6801
  %v6803 = vadd.f32 %v6802, 0.05243302
  %v6804 = vmul.f32 %v6797, %v6803
  %v6805 = vadd.f32 %v6804, 0.18741608
  %v6806 = vmul.f32 %v6797, %v6805
  %v6807 = vadd.f32 %v6806, 1.1283791
  %v6808 = vmul.f32 %v6273, %v6807
  %v6809 = vmul.f32 %v6797, 3.8918573e-05
  %v6810 = vadd.f32 %v6809, 0.001143296
  %v6811 = vmul.f32 %v6797, %v6810
  %v6812 = vadd.f32 %v6811, 0.014752088
  %v6813 = vmul.f32 %v6797, %v6812
  %v6814 = vadd.f32 %v6813, 0.112945676
  %v6815 = vmul.f32 %v6797, %v6814
  %v6816 = vadd.f32 %v6815, 0.4994258
  %v6817 = vmul.f32 %v6797, %v6816
  %v6818 = vadd.f32 %v6817, 1.0
  %v6819 = vrcp.pop %v6818
  %v6820 = vmul.f32 %v6818, %v6819
  %v6821 = vsub.f32 1.0, %v6820
  %v6822 = vmul.f32 %v6819, %v6821
  %v6823 = vadd.f32 %v6819, %v6822
  %vm6824 = vweird.f32 %v6818
  %vm6825 = vweird.f32 %v6819
  %vm6826 = vmor %vm6824, %vm6825
  %v6827 = vsel %vm6826, %v6819, %v6823
  %v6828 = vand.u32 2147483647, %v6818
  %vm6829 = vcmp.eq.f32.partialorder %v6828, 8.507059e+37
  %v6830 = vand.u32 %v6818, 2147483648
  %v6831 = vor.u32 1.1754944e-38, %v6830
  %v6832 = vsel %vm6829, %v6831, %v6827
  %v6833 = vmul.f32 %v6808, %v6832
  %v6834 = vmin.f32 %v6833, 1.0
  %v6835 = vmax.f32 %v6834, -1.0
  %v6836 = vmul.f32 %v6274, %v6274
  %v6837 = vmin.f32 16.0, %v6836
  %v6838 = vmul.f32 %v6837, 2.1237322e-06
  %v6839 = vadd.f32 %v6838, 0.00028619796
  %v6840 = vmul.f32 %v6837, %v6839
  %v6841 = vadd.f32 %v6840, 0.0036580483
  %v6842 = vmul.f32 %v6837, %v6841
  %v6843 = vadd.f32 %v6842, 0.05243302
  %v6844 = vmul.f32 %v6837, %v6843
  %v6845 = vadd.f32 %v6844, 0.18741608
  %v6846 = vmul.f32 %v6837, %v6845
  %v6847 = vadd.f32 %v6846, 1.1283791
  %v6848 = vmul.f32 %v6274, %v6847
  %v6849 = vmul.f32 %v6837, 3.8918573e-05
  %v6850 = vadd.f32 %v6849, 0.001143296
  %v6851 = vmul.f32 %v6837, %v6850
  %v6852 = vadd.f32 %v6851, 0.014752088
  %v6853 = vmul.f32 %v6837, %v6852
  %v6854 = vadd.f32 %v6853, 0.112945676
  %v6855 = vmul.f32 %v6837, %v6854
  %v6856 = vadd.f32 %v6855, 0.4994258
  %v6857 = vmul.f32 %v6837, %v6856
  %v6858 = vadd.f32 %v6857, 1.0
  %v6859 = vrcp.pop %v6858
  %v6860 = vmul.f32 %v6858, %v6859
  %v6861 = vsub.f32 1.0, %v6860
  %v6862 = vmul.f32 %v6859, %v6861
  %v6863 = vadd.f32 %v6859, %v6862
  %vm6864 = vweird.f32 %v6858
  %vm6865 = vweird.f32 %v6859
  %vm6866 = vmor %vm6864, %vm6865
  %v6867 = vsel %vm6866, %v6859, %v6863
  %v6868 = vand.u32 2147483647, %v6858
  %vm6869 = vcmp.eq.f32.partialorder %v6868, 8.507059e+37
  %v6870 = vand.u32 %v6858, 2147483648
  %v6871 = vor.u32 1.1754944e-38, %v6870
  %v6872 = vsel %vm6869, %v6871, %v6867
  %v6873 = vmul.f32 %v6848, %v6872
  %v6874 = vmin.f32 %v6873, 1.0
  %v6875 = vmax.f32 %v6874, -1.0
  %v6876 = vmul.f32 %v6275, %v6275
  %v6877 = vmin.f32 16.0, %v6876
  %v6878 = vmul.f32 %v6877, 2.1237322e-06
  %v6879 = vadd.f32 %v6878, 0.00028619796
  %v6880 = vmul.f32 %v6877, %v6879
  %v6881 = vadd.f32 %v6880, 0.0036580483
  %v6882 = vmul.f32 %v6877, %v6881
  %v6883 = vadd.f32 %v6882, 0.05243302
  %v6884 = vmul.f32 %v6877, %v6883
  %v6885 = vadd.f32 %v6884, 0.18741608
  %v6886 = vmul.f32 %v6877, %v6885
  %v6887 = vadd.f32 %v6886, 1.1283791
  %v6888 = vmul.f32 %v6275, %v6887
  %v6889 = vmul.f32 %v6877, 3.8918573e-05
  %v6890 = vadd.f32 %v6889, 0.001143296
  %v6891 = vmul.f32 %v6877, %v6890
  %v6892 = vadd.f32 %v6891, 0.014752088
  %v6893 = vmul.f32 %v6877, %v6892
  %v6894 = vadd.f32 %v6893, 0.112945676
  %v6895 = vmul.f32 %v6877, %v6894
  %v6896 = vadd.f32 %v6895, 0.4994258
  %v6897 = vmul.f32 %v6877, %v6896
  %v6898 = vadd.f32 %v6897, 1.0
  %v6899 = vrcp.pop %v6898
  %v6900 = vmul.f32 %v6898, %v6899
  %v6901 = vsub.f32 1.0, %v6900
  %v6902 = vmul.f32 %v6899, %v6901
  %v6903 = vadd.f32 %v6899, %v6902
  %vm6904 = vweird.f32 %v6898
  %vm6905 = vweird.f32 %v6899
  %vm6906 = vmor %vm6904, %vm6905
  %v6907 = vsel %vm6906, %v6899, %v6903
  %v6908 = vand.u32 2147483647, %v6898
  %vm6909 = vcmp.eq.f32.partialorder %v6908, 8.507059e+37
  %v6910 = vand.u32 %v6898, 2147483648
  %v6911 = vor.u32 1.1754944e-38, %v6910
  %v6912 = vsel %vm6909, %v6911, %v6907
  %v6913 = vmul.f32 %v6888, %v6912
  %v6914 = vmin.f32 %v6913, 1.0
  %v6915 = vmax.f32 %v6914, -1.0
  %v6916 = vadd.f32 %v6315, 1.0
  %v6917 = vadd.f32 %v6355, 1.0
  %v6918 = vadd.f32 %v6395, 1.0
  %v6919 = vadd.f32 %v6435, 1.0
  %v6920 = vadd.f32 %v6475, 1.0
  %v6921 = vadd.f32 %v6515, 1.0
  %v6922 = vadd.f32 %v6555, 1.0
  %v6923 = vadd.f32 %v6595, 1.0
  %v6924 = vadd.f32 %v6635, 1.0
  %v6925 = vadd.f32 %v6675, 1.0
  %v6926 = vadd.f32 %v6715, 1.0
  %v6927 = vadd.f32 %v6755, 1.0
  %v6928 = vadd.f32 %v6795, 1.0
  %v6929 = vadd.f32 %v6835, 1.0
  %v6930 = vadd.f32 %v6875, 1.0
  %v6931 = vadd.f32 %v6915, 1.0
  %v6932 = vmul.f32 %v6244, %v6916
  %v6933 = vmul.f32 %v6245, %v6917
  %v6934 = vmul.f32 %v6246, %v6918
  %v6935 = vmul.f32 %v6247, %v6919
  %v6936 = vmul.f32 %v6248, %v6920
  %v6937 = vmul.f32 %v6249, %v6921
  %v6938 = vmul.f32 %v6250, %v6922
  %v6939 = vmul.f32 %v6251, %v6923
  %v6940 = vmul.f32 %v6252, %v6924
  %v6941 = vmul.f32 %v6253, %v6925
  %v6942 = vmul.f32 %v6254, %v6926
  %v6943 = vmul.f32 %v6255, %v6927
  %v6944 = vmul.f32 %v6256, %v6928
  %v6945 = vmul.f32 %v6257, %v6929
  %v6946 = vmul.f32 %v6258, %v6930
  %v6947 = vmul.f32 %v6259, %v6931
  %v6948 = vld [vmem:[%s4] sm:$0xff]
  %v6949 = vld [vmem:[%s4 + $0x8] sm:$0xff]
  %v6950 = vld [vmem:[%s4 + $0x10] sm:$0xff]
  %v6951 = vld [vmem:[%s4 + $0x18] sm:$0xff]
  %v6952 = vld [vmem:[%s4 + $0x20] sm:$0xff]
  %v6953 = vld [vmem:[%s4 + $0x28] sm:$0xff]
  %v6954 = vld [vmem:[%s4 + $0x30] sm:$0xff]
  %v6955 = vld [vmem:[%s4 + $0x38] sm:$0xff]
  %v6956 = vld [vmem:[%s4 + $0x40] sm:$0xff]
  %v6957 = vld [vmem:[%s4 + $0x48] sm:$0xff]
  %v6958 = vld [vmem:[%s4 + $0x50] sm:$0xff]
  %v6959 = vld [vmem:[%s4 + $0x58] sm:$0xff]
  %v6960 = vld [vmem:[%s4 + $0x60] sm:$0xff]
  %v6961 = vld [vmem:[%s4 + $0x68] sm:$0xff]
  %v6962 = vld [vmem:[%s4 + $0x70] sm:$0xff]
  %v6963 = vld [vmem:[%s4 + $0x78] sm:$0xff]
  %v6964 = vperm.slane %v28, 0
  %6965 = vmatpush.msra.mxu0 %v6963
  %6966 = vmatpush.msra.mxu0 %v6962
  %6967 = vmatpush.msra.mxu0 %v6961
  %6968 = vmatpush.msra.mxu0 %v6960
  %6969 = vmatpush.msra.mxu0 %v6959
  %6970 = vmatpush.msra.mxu0 %v6958
  %6971 = vmatpush.msra.mxu0 %v6957
  %6972 = vmatpush.msra.mxu0 %v6956
  %6973 = vmatpush.msra.mxu0 %v6955
  %6974 = vmatpush.msra.mxu0 %v6954
  %6975 = vmatpush.msra.mxu0 %v6953
  %6976 = vmatpush.msra.mxu0 %v6952
  %6977 = vmatpush.msra.mxu0 %v6951
  %6978 = vmatpush.msra.mxu0 %v6950
  %6979 = vmatpush.msra.mxu0 %v6949
  %6980 = vmatpush.msra.mxu0 %v6948
  %6981 = vmatmul.f32.gmra.mxu0 %v6932
  %v6982 = vpop.f32.mrf.mxu0
  %v6983 = vadd.f32 %v6964, %v6982
  %6984 = vmatmul.f32.gmra.mxu0 %v6933
  %v6985 = vpop.f32.mrf.mxu0
  %v6986 = vadd.f32 %v6964, %v6985
  %6987 = vmatmul.f32.gmra.mxu0 %v6934
  %v6988 = vpop.f32.mrf.mxu0
  %v6989 = vadd.f32 %v6964, %v6988
  %6990 = vmatmul.f32.gmra.mxu0 %v6935
  %v6991 = vpop.f32.mrf.mxu0
  %v6992 = vadd.f32 %v6964, %v6991
  %6993 = vmatmul.f32.gmra.mxu0 %v6936
  %v6994 = vpop.f32.mrf.mxu0
  %v6995 = vadd.f32 %v6964, %v6994
  %6996 = vmatmul.f32.gmra.mxu0 %v6937
  %v6997 = vpop.f32.mrf.mxu0
  %v6998 = vadd.f32 %v6964, %v6997
  %6999 = vmatmul.f32.gmra.mxu0 %v6938
  %v7000 = vpop.f32.mrf.mxu0
  %v7001 = vadd.f32 %v6964, %v7000
  %7002 = vmatmul.f32.gmra.mxu0 %v6939
  %v7003 = vpop.f32.mrf.mxu0
  %v7004 = vadd.f32 %v6964, %v7003
  %7005 = vmatmul.f32.gmra.mxu0 %v6940
  %v7006 = vpop.f32.mrf.mxu0
  %v7007 = vadd.f32 %v6964, %v7006
  %7008 = vmatmul.f32.gmra.mxu0 %v6941
  %v7009 = vpop.f32.mrf.mxu0
  %v7010 = vadd.f32 %v6964, %v7009
  %7011 = vmatmul.f32.gmra.mxu0 %v6942
  %v7012 = vpop.f32.mrf.mxu0
  %v7013 = vadd.f32 %v6964, %v7012
  %7014 = vmatmul.f32.gmra.mxu0 %v6943
  %v7015 = vpop.f32.mrf.mxu0
  %v7016 = vadd.f32 %v6964, %v7015
  %7017 = vmatmul.f32.gmra.mxu0 %v6944
  %v7018 = vpop.f32.mrf.mxu0
  %v7019 = vadd.f32 %v6964, %v7018
  %7020 = vmatmul.f32.gmra.mxu0 %v6945
  %v7021 = vpop.f32.mrf.mxu0
  %v7022 = vadd.f32 %v6964, %v7021
  %7023 = vmatmul.f32.gmra.mxu0 %v6946
  %v7024 = vpop.f32.mrf.mxu0
  %v7025 = vadd.f32 %v6964, %v7024
  %7026 = vmatmul.f32.gmra.mxu0 %v6947
  %v7027 = vpop.f32.mrf.mxu0
  %v7028 = vadd.f32 %v6964, %v7027
  %7029 = vdwg.mxu0
  %v7030 = vadd.f32 %v5724, %v6983
  %v7031 = vadd.f32 %v5725, %v6986
  %v7032 = vadd.f32 %v5726, %v6989
  %v7033 = vadd.f32 %v5727, %v6992
  %v7034 = vadd.f32 %v5728, %v6995
  %v7035 = vadd.f32 %v5729, %v6998
  %v7036 = vadd.f32 %v5730, %v7001
  %v7037 = vadd.f32 %v5731, %v7004
  %v7038 = vadd.f32 %v5732, %v7007
  %v7039 = vadd.f32 %v5733, %v7010
  %v7040 = vadd.f32 %v5734, %v7013
  %v7041 = vadd.f32 %v5735, %v7016
  %v7042 = vadd.f32 %v5736, %v7019
  %v7043 = vadd.f32 %v5737, %v7022
  %v7044 = vadd.f32 %v5738, %v7025
  %v7045 = vadd.f32 %v5739, %v7028
  %7046 = vst.msk [vmem:[%s6] sm:$0xff] %vm168, %v7030
  %7047 = vst.msk [vmem:[%s6 + $0x8] sm:$0xff] %vm168, %v7031
  %7048 = vst.msk [vmem:[%s6 + $0x10] sm:$0xff] %vm168, %v7032
  %7049 = vst.msk [vmem:[%s6 + $0x18] sm:$0xff] %vm168, %v7033
  %7050 = vst.msk [vmem:[%s6 + $0x20] sm:$0xff] %vm168, %v7034
  %7051 = vst.msk [vmem:[%s6 + $0x28] sm:$0xff] %vm168, %v7035
  %7052 = vst.msk [vmem:[%s6 + $0x30] sm:$0xff] %vm168, %v7036
  %7053 = vst.msk [vmem:[%s6 + $0x38] sm:$0xff] %vm168, %v7037
  %7054 = vst.msk [vmem:[%s6 + $0x40] sm:$0xff] %vm168, %v7038
  %7055 = vst.msk [vmem:[%s6 + $0x48] sm:$0xff] %vm168, %v7039
  %7056 = vst.msk [vmem:[%s6 + $0x50] sm:$0xff] %vm168, %v7040
  %7057 = vst.msk [vmem:[%s6 + $0x58] sm:$0xff] %vm168, %v7041
  %7058 = vst.msk [vmem:[%s6 + $0x60] sm:$0xff] %vm168, %v7042
  %7059 = vst.msk [vmem:[%s6 + $0x68] sm:$0xff] %vm168, %v7043
  %7060 = vst.msk [vmem:[%s6 + $0x70] sm:$0xff] %vm168, %v7044
  %7061 = vst.msk [vmem:[%s6 + $0x78] sm:$0xff] %vm168, %v7045
  // Predicated region
  $region26: #{tpu_custom_call.1} parent=0 // pred_check
    _
  $region27: #{tpu_custom_call.1} parent=0 // pred_check_branch
    %7063 = sbr.rel (0) target = $region29
  $region28: #{tpu_custom_call.1} parent=0 // pred_region
    _
  $region29: #{tpu_custom_call.1} parent=0 // pred_fallthru
    _
  // Predicated region
  $region30: #{tpu_custom_call.1} parent=0 // pred_check
    _
  $region31: #{tpu_custom_call.1} parent=0 // pred_check_branch
    %7065 = sbr.rel (0) target = $region33
  $region32: #{tpu_custom_call.1} parent=0 // pred_region
    _
  $region33: #{tpu_custom_call.1} parent=0 // pred_fallthru
    _

</llo_original>
